<compile_context>
chip_gen: v6e
topology: v6e:2x2x1
jax: 0.10.0
libtpu: 0.0.40
codegen_flags: <defaults>
</compile_context>

<pallas_src>
import jax
import jax.numpy as jnp
from jax.experimental import pallas as pl
from jax.experimental.pallas import tpu as pltpu  # noqa: F401  (kept for TPU-specific use)

# ---------------- small, module-consistent shapes ----------------
B, N, D = 2, 17, 32          # batch, tokens (16 spatial + cls), embedding_dim
NUM_HEADS = 2
NUM_CLASSES = 10
K_SLOTS = 10                 # n_unsup_concepts == n_concepts == n_spatial_concepts
NUM_BRANCHES = 3             # (unsup, concept, spatial)
NUM_ITERATIONS = 1           # ConceptISA(num_iterations=1, ...)
LN_EPS = 1e-5
SA_EPS = 1e-8
HEAD_DIM = D // NUM_HEADS
ATTN_SCALE = HEAD_DIM ** -0.5   # CrossAttention scale assumed head_dim**-0.5

# padded (sublane-aligned) extents used inside the kernel
NP = 24                      # N=17 -> 24 (multiple of 8)
KP = 16                      # K=10 -> 16 (multiple of 8)
BN = B * NP                  # stacked token rows
BK = B * KP                  # stacked slot rows


# ---------------- shared math helpers ----------------

def _ln(h, g, b):
    mu = jnp.mean(h, axis=-1, keepdims=True)
    var = jnp.mean(jnp.square(h - mu), axis=-1, keepdims=True)
    return (h - mu) * jax.lax.rsqrt(var + LN_EPS) * g + b


def _dot(a, b):       # a @ b
    return jnp.dot(a, b, preferred_element_type=jnp.float32)


def _dot_nt(a, b):    # a @ b.T  (contract last dims)
    return jax.lax.dot_general(a, b, (((1,), (1,)), ((), ())),
                               preferred_element_type=jnp.float32)


def _dot_tn(a, b):    # a.T @ b  (contract first dims)
    return jax.lax.dot_general(a, b, (((0,), (0,)), ((), ())),
                               preferred_element_type=jnp.float32)


def _softmax_exact(logits):
    m = jnp.max(logits, axis=-1, keepdims=True)
    e = jnp.exp(logits - m)
    return e / jnp.sum(e, axis=-1, keepdims=True)


def _softmax_approx(logits):
    """Kernel-only: EUP approximate reciprocal for the denominator."""
    m = jnp.max(logits, axis=-1, keepdims=True)
    e = jnp.exp(logits - m)
    return e * pl.reciprocal(jnp.sum(e, axis=-1, keepdims=True), approx=True)


# ======================= fused Pallas kernel (single step) =======================

def _fused_kernel(x_ref, slots_ref, masks_ref, pool_ref,
                  w_kv_ref, b_kv_ref, w_q_ref,
                  slot_vec_ref, slot_w_ref, gru_w_ref, gru_b_ref,
                  slot_pos_ref, ca_w_ref, ca_b_ref,
                  out_ref, attn_ref):
    x = x_ref[...]                               # (BN, D); padded token rows are 0
    logit_bias = masks_ref[0]                    # (BN, BK): 0 in-batch/valid-slot, else -1e30
    w_mask = masks_ref[1]                        # (BN, BK): 1 in-batch & valid-token row
    pool = pool_ref[...]                         # (B, BN):  per-batch mean over valid tokens

    # ---- token-side, all branches at once (LN affines folded into the weights) ----
    mu = jnp.mean(x, axis=-1, keepdims=True)
    var = jnp.mean(jnp.square(x - mu), axis=-1, keepdims=True)
    x_hat = (x - mu) * jax.lax.rsqrt(var + LN_EPS)                       # affine-free LN
    kv_all = _dot(x_hat, w_kv_ref[...]) + b_kv_ref[...]                  # (BN, 3*2D)
    q_all = _dot(x, w_q_ref[...])                                        # (BN, 3*D)

    ctx_acc = jnp.zeros((BN, NUM_CLASSES), jnp.float32)

    for br in range(NUM_BRANCHES):
        k = kv_all[:, br * 2 * D: br * 2 * D + D]                        # (BN, D), pre-scaled
        v = kv_all[:, br * 2 * D + D: (br + 1) * 2 * D]                  # (BN, D)

        lnv = slot_vec_ref[br]                                           # (6, D)
        g_s, b_s, g_m, b_m, mb1, mb2 = lnv[0], lnv[1], lnv[2], lnv[3], lnv[4], lnv[5]
        wq_s = slot_w_ref[br, 0]
        mlp1 = slot_w_ref[br, 1]
        mlp2 = slot_w_ref[br, 2]
        gwi = gru_w_ref[br, 0]
        gwh = gru_w_ref[br, 1]
        gb = gru_b_ref[br]
        gbi, gbh = gb[0], gb[1]

        # slots of ALL batch elements stacked -> one set of slot-side matmuls per branch
        slots = slots_ref[br]                                            # (BK, D)

        # TODO(synk): upstream ConceptISA's implicit-differentiation detach tricks are
        # forward-identity; the forward value is `num_iterations` plain slot-attention
        # steps (GRU + residual MLP update).
        for _ in range(NUM_ITERATIONS):
            slots_prev = slots
            q = _dot(_ln(slots, g_s, b_s), wq_s)                         # (BK, D)
            logits = _dot_nt(k, q) + logit_bias                          # (BN, BK)
            attn = _softmax_exact(logits)                                # over own-batch slots
            w = (attn + SA_EPS) * w_mask                                 # zero off-batch / pad tok
            w = w / jnp.sum(w, axis=0, keepdims=True)                    # per-slot token norm
            updates = _dot_tn(w, v)                                      # (BK, D)

            # GRUCell(input=updates, hidden=slots_prev), PyTorch gate order (r, z, n)
            gi = _dot(updates, gwi) + gbi                                # (BK, 3D)
            gh = _dot(slots_prev, gwh) + gbh                             # (BK, 3D)
            r = jax.nn.sigmoid(gi[:, :D] + gh[:, :D])
            z = jax.nn.sigmoid(gi[:, D:2 * D] + gh[:, D:2 * D])
            n = jnp.tanh(gi[:, 2 * D:] + r * gh[:, 2 * D:])
            slots = (1.0 - z) * n + z * slots_prev

            h1 = jax.nn.relu(_dot(_ln(slots, g_m, b_m), mlp1) + mb1)
            slots = slots + _dot(h1, mlp2) + mb2

        slots = slots + slot_pos_ref[br]                                 # (BK, D)

        # ---- multi-head cross attention (tokens -> slots); output projection folded ----
        s_ca = _dot(slots, ca_w_ref[br])                                 # (BK, D + H*C)
        ks = s_ca[:, :D]
        vproj = s_ca[:, D:]
        qx = q_all[:, br * D: (br + 1) * D]                              # (BN, D)

        a_sum = jnp.zeros((BN, BK), jnp.float32)
        ctx = jnp.zeros((BN, NUM_CLASSES), jnp.float32)
        for h in range(NUM_HEADS):
            c0 = h * HEAD_DIM
            a = _softmax_approx(
                _dot_nt(qx[:, c0:c0 + HEAD_DIM], ks[:, c0:c0 + HEAD_DIM]) * ATTN_SCALE
                + logit_bias)
            a_sum = a_sum + a
            ctx = ctx + _dot(a, vproj[:, h * NUM_CLASSES:(h + 1) * NUM_CLASSES])

        attn_ref[br] = a_sum * (1.0 / NUM_HEADS)         # padded slab; sliced in wrapper
        ctx_acc = ctx_acc + ctx                          # branch outputs are summed

    # per-batch token-mean of the projected read-out via one pooling matmul
    out_ref[...] = _dot(pool, ctx_acc) + ca_b_ref[...]   # (B, C)
    # (dropout layers are identity in eval mode)


def fused_forward_call(x_flat, slots_stacked, fp):
    fn = pl.pallas_call(
        _fused_kernel,
        out_shape=(jax.ShapeDtypeStruct((B, NUM_CLASSES), jnp.float32),
                   jax.ShapeDtypeStruct((NUM_BRANCHES, BN, BK), jnp.float32)),
    )
    return fn(x_flat, slots_stacked, fp['masks'], fp['pool'],
              fp['w_kv'], fp['b_kv'], fp['w_q'],
              fp['slot_vec'], fp['slot_w'], fp['gru_w'], fp['gru_b'],
              fp['slot_pos'], fp['ca_w'], fp['ca_b_sum'])


# ======================= wrapper-side parameter plumbing (done once) =======================

def _make_constants():
    rt = jnp.arange(BN)[:, None]
    cs = jnp.arange(BK)[None, :]
    same = (rt // NP) == (cs // KP)
    col_valid = (cs % KP) < K_SLOTS
    row_valid = (rt % NP) < N
    logit_bias = jnp.where(same & col_valid, 0.0, -1e30).astype(jnp.float32)
    w_mask = jnp.where(same & row_valid, 1.0, 0.0).astype(jnp.float32)
    masks = jnp.stack([logit_bias, w_mask])                              # (2, BN, BK)
    pr = jnp.arange(B)[:, None]
    pc = jnp.arange(BN)[None, :]
    pool = jnp.where((pc // NP == pr) & (pc % NP < N), 1.0 / N, 0.0).astype(jnp.float32)
    return masks, pool


def prepare_fused_params(params):
    """One-time weight folding / branch stacking (layout plumbing, done at init)."""
    branches = (params['unsup'], params['concept'], params['spatial'])
    # NOTE: reproduces the upstream forward, which routes the unsup branch through
    # `self.concept_tranformer` (the supervised-concept cross-attention).
    ca_branches = (params['concept']['ca'], params['concept']['ca'], params['spatial']['ca'])
    dh, C = HEAD_DIM, NUM_CLASSES

    w_kv_l, b_kv_l, wq_ca_l, ca_w_l = [], [], [], []
    slot_vec_l, slot_w_l, gru_w_l, gru_b_l, slot_pos_l = [], [], [], [], []
    ca_b_sum = jnp.zeros((1, C), jnp.float32)

    for brp, ca in zip(branches, ca_branches):
        isa = brp['isa']
        # fold input-LN affine + 1/sqrt(D) key scale into the fused k|v projection
        w_kv = jnp.concatenate([isa['wk'] * (D ** -0.5), isa['wv']], axis=1)   # (D, 2D)
        g_in, b_in = isa['ln_in_g'][0], isa['ln_in_b'][0]
        w_kv_l.append(g_in[:, None] * w_kv)
        b_kv_l.append(b_in @ w_kv)                                             # (2D,)
        wq_ca_l.append(ca['wq'])
        # CrossAttention: keep the k-half; fold per-head value slice @ output projection
        wk_ca, wv_ca = ca['wkv'][:, :D], ca['wkv'][:, D:]
        vproj = jnp.concatenate(
            [wv_ca[:, h * dh:(h + 1) * dh] @ ca['proj_w'][h * dh:(h + 1) * dh, :]
             for h in range(NUM_HEADS)], axis=1)                               # (D, H*C)
        ca_w_l.append(jnp.concatenate([wk_ca, vproj], axis=1))                 # (D, D+H*C)
        ca_b_sum = ca_b_sum + ca['proj_b']

        slot_vec_l.append(jnp.stack([isa['ln_s_g'][0], isa['ln_s_b'][0],
                                     isa['ln_m_g'][0], isa['ln_m_b'][0],
                                     isa['mlp_b1'][0], isa['mlp_b2'][0]]))     # (6, D)
        slot_w_l.append(jnp.stack([isa['wq'], isa['mlp_w1'], isa['mlp_w2']]))  # (3, D, D)
        gru_w_l.append(jnp.stack([isa['gru_wi'], isa['gru_wh']]))              # (2, D, 3D)
        gru_b_l.append(jnp.stack([isa['gru_bi'][0], isa['gru_bh'][0]]))        # (2, 3D)
        sp = jnp.pad(brp['slot_pos'][0], ((0, KP - K_SLOTS), (0, 0)))          # (KP, D)
        slot_pos_l.append(jnp.tile(sp, (B, 1)))                                # (B*KP, D)

    masks, pool = _make_constants()
    return dict(
        masks=masks, pool=pool,
        w_kv=jnp.concatenate(w_kv_l, axis=1),            # (D, 3*2D)
        b_kv=jnp.concatenate(b_kv_l)[None, :],           # (1, 3*2D)
        w_q=jnp.concatenate(wq_ca_l, axis=1),            # (D, 3*D)
        slot_vec=jnp.stack(slot_vec_l),                  # (3, 6, D)
        slot_w=jnp.stack(slot_w_l),                      # (3, 3, D, D)
        gru_w=jnp.stack(gru_w_l),                        # (3, 2, D, 3D)
        gru_b=jnp.stack(gru_b_l),                        # (3, 2, 3D)
        slot_pos=jnp.stack(slot_pos_l),                  # (3, B*KP, D)
        ca_w=jnp.stack(ca_w_l),                          # (3, D, D+H*C)
        ca_b_sum=ca_b_sum,                               # (1, C)
    )


def make_slot_inits(params, sigma, key):
    # TODO(synk): upstream ConceptISA's internal slot init for the no-init (unsup) call
    # is not specified; we use a deterministic learned init of shape (n_unsup, D).
    k1, k2 = jax.random.split(key)
    u = jnp.broadcast_to(params['unsup']['slots_init'][None], (B, K_SLOTS, D))
    mu = jnp.broadcast_to(params['concept']['slots_init'][None], (B, K_SLOTS, D))
    c = mu + jax.random.normal(k1, mu.shape, jnp.float32) * sigma * mu
    mu = jnp.broadcast_to(params['spatial']['slots_init'][None], (B, K_SLOTS, D))
    s = mu + jax.random.normal(k2, mu.shape, jnp.float32) * sigma * mu
    return u, c, s


def forward_pallas(params, fused_params, x, sigma=0.0, key=jax.random.PRNGKey(42)):
    u_init, c_init, s_init = make_slot_inits(params, sigma, key)
    x_flat = jnp.pad(x, ((0, 0), (0, NP - N), (0, 0))).reshape(B * NP, D)

    def stack_slots(s):
        return jnp.pad(s, ((0, 0), (0, KP - K_SLOTS), (0, 0))).reshape(B * KP, D)

    slots_stacked = jnp.stack([stack_slots(u_init), stack_slots(c_init), stack_slots(s_init)])
    out, attn = fused_forward_call(x_flat, slots_stacked, fused_params)

    # wrapper-side slicing of the padded attention slab (diagonal batch blocks)
    def extract(br):
        return jnp.stack([attn[br, b * NP:b * NP + N, b * KP:b * KP + K_SLOTS]
                          for b in range(B)])

    unsup_concept_attn = extract(0)                      # (B, N, K)
    concept_attn = extract(1).mean(axis=1)               # extra token-mean -> (B, K)
    spatial_concept_attn = extract(2)                    # (B, N, K)
    return out, unsup_concept_attn, concept_attn, spatial_concept_attn


# ======================= pure-JAX references (correctness check) =======================

def isa_ref(x, slots, p):
    x_ln = _ln(x, p['ln_in_g'][0], p['ln_in_b'][0])
    k = jnp.einsum('bnd,de->bne', x_ln, p['wk']) * (D ** -0.5)
    v = jnp.einsum('bnd,de->bne', x_ln, p['wv'])
    attn = None
    for _ in range(NUM_ITERATIONS):
        slots_prev = slots
        q = jnp.einsum('bkd,de->bke', _ln(slots, p['ln_s_g'][0], p['ln_s_b'][0]), p['wq'])
        attn = jax.nn.softmax(jnp.einsum('bnd,bkd->bnk', k, q), axis=-1)
        w = attn + SA_EPS
        w = w / jnp.sum(w, axis=1, keepdims=True)
        updates = jnp.einsum('bnk,bnd->bkd', w, v)
        gi = jnp.einsum('bkd,de->bke', updates, p['gru_wi']) + p['gru_bi'][0]
        gh = jnp.einsum('bkd,de->bke', slots_prev, p['gru_wh']) + p['gru_bh'][0]
        r = jax.nn.sigmoid(gi[..., :D] + gh[..., :D])
        zg = jax.nn.sigmoid(gi[..., D:2 * D] + gh[..., D:2 * D])
        n = jnp.tanh(gi[..., 2 * D:] + r * gh[..., 2 * D:])
        slots = (1.0 - zg) * n + zg * slots_prev
        h1 = jax.nn.relu(jnp.einsum('bkd,dh->bkh',
                                    _ln(slots, p['ln_m_g'][0], p['ln_m_b'][0]),
                                    p['mlp_w1']) + p['mlp_b1'][0])
        slots = slots + jnp.einsum('bkh,hd->bkd', h1, p['mlp_w2']) + p['mlp_b2'][0]
    return slots, attn


def cross_ref(x, y, p):
    q = jnp.einsum('bnd,de->bne', x, p['wq'])
    kv = jnp.einsum('bkd,de->bke', y, p['wkv'])
    k, v = kv[..., :D], kv[..., D:]
    dh = HEAD_DIM
    out = 0.0
    attns = []
    for h in range(NUM_HEADS):
        a = jax.nn.softmax(jnp.einsum('bnd,bkd->bnk',
                                      q[..., h * dh:(h + 1) * dh],
                                      k[..., h * dh:(h + 1) * dh]) * ATTN_SCALE, axis=-1)
        attns.append(a)
        out = out + jnp.einsum('bnk,bkd->bnd', a, v[..., h * dh:(h + 1) * dh]) \
            @ p['proj_w'][h * dh:(h + 1) * dh]
    out = out + p['proj_b'][0]
    return out, jnp.stack(attns, axis=1)


def forward_ref(params, x, sigma=0.0, key=jax.random.PRNGKey(42)):
    u_init, c_init, s_init = make_slot_inits(params, sigma, key)
    out = 0.0

    unsup_concepts, _ = isa_ref(x, u_init, params['unsup']['isa'])
    unsup_concepts = unsup_concepts + params['unsup']['slot_pos']
    out_unsup, unsup_attn = cross_ref(x, unsup_concepts, params['concept']['ca'])
    unsup_concept_attn = unsup_attn.mean(axis=1)
    out = out + out_unsup.mean(axis=1)

    concepts, _ = isa_ref(x, c_init, params['concept']['isa'])
    concepts = concepts + params['concept']['slot_pos']
    out_n, concept_attn = cross_ref(x, concepts, params['concept']['ca'])
    concept_attn = concept_attn.mean(axis=1)
    out = out + out_n.mean(axis=1)

    spatial_concepts, _ = isa_ref(x, s_init, params['spatial']['isa'])
    spatial_concepts = spatial_concepts + params['spatial']['slot_pos']
    out_s, spatial_concept_attn = cross_ref(x, spatial_concepts, params['spatial']['ca'])
    spatial_concept_attn = spatial_concept_attn.mean(axis=1)
    out = out + out_s.mean(axis=1)

    concept_attn = concept_attn.mean(axis=1)
    return out, unsup_concept_attn, concept_attn, spatial_concept_attn


# ======================= parameters (deterministic) =======================

def _w(key, shape, scale=0.02):
    return scale * jax.random.normal(key, shape, jnp.float32)


def _xavier(key, shape):
    limit = (6.0 / (shape[0] + shape[1])) ** 0.5
    return jax.random.uniform(key, shape, jnp.float32, -limit, limit)


def _init_isa_params(key):
    ks = jax.random.split(key, 7)
    return dict(
        ln_in_g=jnp.ones((1, D)), ln_in_b=jnp.zeros((1, D)),
        ln_s_g=jnp.ones((1, D)), ln_s_b=jnp.zeros((1, D)),
        ln_m_g=jnp.ones((1, D)), ln_m_b=jnp.zeros((1, D)),
        wq=_w(ks[0], (D, D)), wk=_w(ks[1], (D, D)), wv=_w(ks[2], (D, D)),
        gru_wi=_w(ks[3], (D, 3 * D)), gru_wh=_w(ks[4], (D, 3 * D)),
        gru_bi=jnp.zeros((1, 3 * D)), gru_bh=jnp.zeros((1, 3 * D)),
        mlp_w1=_w(ks[5], (D, D)), mlp_b1=jnp.zeros((1, D)),
        mlp_w2=_w(ks[6], (D, D)), mlp_b2=jnp.zeros((1, D)),
    )


def _init_ca_params(key):
    ks = jax.random.split(key, 3)
    return dict(wq=_w(ks[0], (D, D)), wkv=_w(ks[1], (D, 2 * D)),
                proj_w=_w(ks[2], (D, NUM_CLASSES)), proj_b=jnp.zeros((1, NUM_CLASSES)))


def init_params(key):
    ks = jax.random.split(key, 9)
    return dict(
        unsup=dict(isa=_init_isa_params(ks[0]), ca=_init_ca_params(ks[1]),
                   slots_init=_xavier(ks[2], (K_SLOTS, D)),
                   slot_pos=jnp.zeros((1, K_SLOTS, D))),
        concept=dict(isa=_init_isa_params(ks[3]), ca=_init_ca_params(ks[4]),
                     slots_init=_xavier(ks[5], (K_SLOTS, D)),
                     slot_pos=jnp.zeros((1, K_SLOTS, D))),
        spatial=dict(isa=_init_isa_params(ks[6]), ca=_init_ca_params(ks[7]),
                     slots_init=_xavier(ks[8], (K_SLOTS, D)),
                     slot_pos=jnp.zeros((1, K_SLOTS, D))),
    )


if __name__ == "__main__":
    root = jax.random.PRNGKey(0)
    pkey, xkey = jax.random.split(root)
    params = init_params(pkey)
    fused_params = prepare_fused_params(params)     # one-time weight folding / stacking
    x = jax.random.normal(xkey, (B, N, D), jnp.float32)

    outs = forward_pallas(params, fused_params, x, sigma=0.0)
    outs = jax.block_until_ready(outs)

    refs = forward_ref(params, x, sigma=0.0)
    names = ["out", "unsup_concept_attn", "concept_attn", "spatial_concept_attn"]
    for name, o, r in zip(names, outs, refs):
        assert o.shape == r.shape, (name, o.shape, r.shape)
        assert jnp.allclose(o, r, atol=3e-3, rtol=3e-3), f"mismatch in {name}"

    print("KERNEL_OK")
</pallas_src>

<mosaic_0001>
module attributes {stable_mosaic.version = 11 : i64} {
  func.func @_fused_kernel(%arg0: memref<48x32xf32, #tpu.memory_space<vmem>>, %arg1: memref<3x32x32xf32, #tpu.memory_space<vmem>>, %arg2: memref<2x48x32xf32, #tpu.memory_space<vmem>>, %arg3: memref<2x48xf32, #tpu.memory_space<vmem>>, %arg4: memref<32x192xf32, #tpu.memory_space<vmem>>, %arg5: memref<1x192xf32, #tpu.memory_space<vmem>>, %arg6: memref<32x96xf32, #tpu.memory_space<vmem>>, %arg7: memref<3x6x32xf32, #tpu.memory_space<vmem>>, %arg8: memref<3x3x32x32xf32, #tpu.memory_space<vmem>>, %arg9: memref<3x2x32x96xf32, #tpu.memory_space<vmem>>, %arg10: memref<3x2x96xf32, #tpu.memory_space<vmem>>, %arg11: memref<3x32x32xf32, #tpu.memory_space<vmem>>, %arg12: memref<3x32x52xf32, #tpu.memory_space<vmem>>, %arg13: memref<1x10xf32, #tpu.memory_space<vmem>>, %arg14: memref<2x10xf32, #tpu.memory_space<vmem>>, %arg15: memref<3x48x32xf32, #tpu.memory_space<vmem>>) attributes {dimension_semantics = [], scalar_prefetch = 0 : i64, scratch_operands = 0 : i64, tpu.core_type = #tpu.core_type<tc>} {
    %c0 = arith.constant 0 : index
    %c0_0 = arith.constant 0 : index
    %0 = vector.load %arg0[%c0, %c0_0] : memref<48x32xf32, #tpu.memory_space<vmem>>, vector<48x32xf32>
    %c0_1 = arith.constant 0 : index
    %c0_2 = arith.constant 0 : index
    %c0_3 = arith.constant 0 : index
    %1 = vector.load %arg2[%c0_1, %c0_2, %c0_3] : memref<2x48x32xf32, #tpu.memory_space<vmem>>, vector<1x48x32xf32>
    %2 = vector.shape_cast %1 : vector<1x48x32xf32> to vector<48x32xf32>
    %c1 = arith.constant 1 : index
    %c0_4 = arith.constant 0 : index
    %c0_5 = arith.constant 0 : index
    %3 = vector.load %arg2[%c1, %c0_4, %c0_5] : memref<2x48x32xf32, #tpu.memory_space<vmem>>, vector<1x48x32xf32>
    %4 = vector.shape_cast %3 : vector<1x48x32xf32> to vector<48x32xf32>
    %c0_6 = arith.constant 0 : index
    %c0_7 = arith.constant 0 : index
    %5 = vector.load %arg3[%c0_6, %c0_7] : memref<2x48xf32, #tpu.memory_space<vmem>>, vector<2x48xf32>
    %cst = arith.constant dense<0.000000e+00> : vector<48xf32>
    %6 = vector.multi_reduction <add>, %0, %cst [1] : vector<48x32xf32> to vector<48xf32>
    %7 = vector.shape_cast %6 : vector<48xf32> to vector<48x1xf32>
    %cst_8 = arith.constant 3.200000e+01 : f32
    %8 = vector.broadcast %cst_8 : f32 to vector<48x1xf32>
    %9 = arith.divf %7, %8 : vector<48x1xf32>
    %10 = vector.broadcast %9 : vector<48x1xf32> to vector<48x32xf32>
    %11 = arith.subf %0, %10 : vector<48x32xf32>
    %12 = arith.mulf %11, %11 : vector<48x32xf32>
    %cst_9 = arith.constant dense<0.000000e+00> : vector<48xf32>
    %13 = vector.multi_reduction <add>, %12, %cst_9 [1] : vector<48x32xf32> to vector<48xf32>
    %14 = vector.shape_cast %13 : vector<48xf32> to vector<48x1xf32>
    %cst_10 = arith.constant 3.200000e+01 : f32
    %15 = vector.broadcast %cst_10 : f32 to vector<48x1xf32>
    %16 = arith.divf %14, %15 : vector<48x1xf32>
    %17 = vector.broadcast %9 : vector<48x1xf32> to vector<48x32xf32>
    %18 = arith.subf %0, %17 : vector<48x32xf32>
    %cst_11 = arith.constant 9.99999974E-6 : f32
    %19 = vector.broadcast %cst_11 : f32 to vector<48x1xf32>
    %20 = arith.addf %16, %19 : vector<48x1xf32>
    %21 = math.rsqrt %20 : vector<48x1xf32>
    %22 = vector.broadcast %21 : vector<48x1xf32> to vector<48x32xf32>
    %23 = arith.mulf %18, %22 : vector<48x32xf32>
    %c0_12 = arith.constant 0 : index
    %c0_13 = arith.constant 0 : index
    %24 = vector.load %arg4[%c0_12, %c0_13] : memref<32x192xf32, #tpu.memory_space<vmem>>, vector<32x192xf32>
    %cst_14 = arith.constant dense<0.000000e+00> : vector<48x192xf32>
    %25 = tpu.matmul %23, %24, %cst_14 {dimension_numbers = #tpu.dot_dimension_numbers<[1], [0], [0], [1], [0, 0, 1, 1], [], []>} : vector<48x32xf32>, vector<32x192xf32>, vector<48x192xf32> -> vector<48x192xf32>
    %c0_15 = arith.constant 0 : index
    %c0_16 = arith.constant 0 : index
    %26 = vector.load %arg5[%c0_15, %c0_16] : memref<1x192xf32, #tpu.memory_space<vmem>>, vector<1x192xf32>
    %27 = vector.broadcast %26 : vector<1x192xf32> to vector<48x192xf32>
    %28 = arith.addf %25, %27 : vector<48x192xf32>
    %c0_17 = arith.constant 0 : index
    %c0_18 = arith.constant 0 : index
    %29 = vector.load %arg6[%c0_17, %c0_18] : memref<32x96xf32, #tpu.memory_space<vmem>>, vector<32x96xf32>
    %cst_19 = arith.constant dense<0.000000e+00> : vector<48x96xf32>
    %30 = tpu.matmul %0, %29, %cst_19 {dimension_numbers = #tpu.dot_dimension_numbers<[1], [0], [0], [1], [0, 0, 1, 1], [], []>} : vector<48x32xf32>, vector<32x96xf32>, vector<48x96xf32> -> vector<48x96xf32>
    %cst_20 = arith.constant 0.000000e+00 : f32
    %31 = vector.broadcast %cst_20 : f32 to vector<48x10xf32>
    %32 = vector.extract_strided_slice %28 {offsets = [0, 0], sizes = [48, 32], strides = [1, 1]} : vector<48x192xf32> to vector<48x32xf32>
    %33 = vector.extract_strided_slice %28 {offsets = [0, 32], sizes = [48, 32], strides = [1, 1]} : vector<48x192xf32> to vector<48x32xf32>
    %c0_21 = arith.constant 0 : index
    %c0_22 = arith.constant 0 : index
    %c0_23 = arith.constant 0 : index
    %34 = vector.load %arg7[%c0_21, %c0_22, %c0_23] : memref<3x6x32xf32, #tpu.memory_space<vmem>>, vector<1x6x32xf32>
    %35 = vector.shape_cast %34 : vector<1x6x32xf32> to vector<6x32xf32>
    %36 = vector.extract_strided_slice %35 {offsets = [0, 0], sizes = [1, 32], strides = [1, 1]} : vector<6x32xf32> to vector<1x32xf32>
    %37 = vector.shape_cast %36 : vector<1x32xf32> to vector<32xf32>
    %38 = vector.extract_strided_slice %35 {offsets = [1, 0], sizes = [1, 32], strides = [1, 1]} : vector<6x32xf32> to vector<1x32xf32>
    %39 = vector.shape_cast %38 : vector<1x32xf32> to vector<32xf32>
    %40 = vector.extract_strided_slice %35 {offsets = [2, 0], sizes = [1, 32], strides = [1, 1]} : vector<6x32xf32> to vector<1x32xf32>
    %41 = vector.shape_cast %40 : vector<1x32xf32> to vector<32xf32>
    %42 = vector.extract_strided_slice %35 {offsets = [3, 0], sizes = [1, 32], strides = [1, 1]} : vector<6x32xf32> to vector<1x32xf32>
    %43 = vector.shape_cast %42 : vector<1x32xf32> to vector<32xf32>
    %44 = vector.extract_strided_slice %35 {offsets = [4, 0], sizes = [1, 32], strides = [1, 1]} : vector<6x32xf32> to vector<1x32xf32>
    %45 = vector.shape_cast %44 : vector<1x32xf32> to vector<32xf32>
    %46 = vector.extract_strided_slice %35 {offsets = [5, 0], sizes = [1, 32], strides = [1, 1]} : vector<6x32xf32> to vector<1x32xf32>
    %47 = vector.shape_cast %46 : vector<1x32xf32> to vector<32xf32>
    %c0_24 = arith.constant 0 : index
    %c0_25 = arith.constant 0 : index
    %c0_26 = arith.constant 0 : index
    %c0_27 = arith.constant 0 : index
    %48 = vector.load %arg8[%c0_24, %c0_25, %c0_26, %c0_27] : memref<3x3x32x32xf32, #tpu.memory_space<vmem>>, vector<1x1x32x32xf32>
    %49 = vector.shape_cast %48 : vector<1x1x32x32xf32> to vector<32x32xf32>
    %c0_28 = arith.constant 0 : index
    %c1_29 = arith.constant 1 : index
    %c0_30 = arith.constant 0 : index
    %c0_31 = arith.constant 0 : index
    %50 = vector.load %arg8[%c0_28, %c1_29, %c0_30, %c0_31] : memref<3x3x32x32xf32, #tpu.memory_space<vmem>>, vector<1x1x32x32xf32>
    %51 = vector.shape_cast %50 : vector<1x1x32x32xf32> to vector<32x32xf32>
    %c0_32 = arith.constant 0 : index
    %c2 = arith.constant 2 : index
    %c0_33 = arith.constant 0 : index
    %c0_34 = arith.constant 0 : index
    %52 = vector.load %arg8[%c0_32, %c2, %c0_33, %c0_34] : memref<3x3x32x32xf32, #tpu.memory_space<vmem>>, vector<1x1x32x32xf32>
    %53 = vector.shape_cast %52 : vector<1x1x32x32xf32> to vector<32x32xf32>
    %c0_35 = arith.constant 0 : index
    %c0_36 = arith.constant 0 : index
    %c0_37 = arith.constant 0 : index
    %c0_38 = arith.constant 0 : index
    %54 = vector.load %arg9[%c0_35, %c0_36, %c0_37, %c0_38] : memref<3x2x32x96xf32, #tpu.memory_space<vmem>>, vector<1x1x32x96xf32>
    %55 = vector.shape_cast %54 : vector<1x1x32x96xf32> to vector<32x96xf32>
    %c0_39 = arith.constant 0 : index
    %c1_40 = arith.constant 1 : index
    %c0_41 = arith.constant 0 : index
    %c0_42 = arith.constant 0 : index
    %56 = vector.load %arg9[%c0_39, %c1_40, %c0_41, %c0_42] : memref<3x2x32x96xf32, #tpu.memory_space<vmem>>, vector<1x1x32x96xf32>
    %57 = vector.shape_cast %56 : vector<1x1x32x96xf32> to vector<32x96xf32>
    %c0_43 = arith.constant 0 : index
    %c0_44 = arith.constant 0 : index
    %c0_45 = arith.constant 0 : index
    %58 = vector.load %arg10[%c0_43, %c0_44, %c0_45] : memref<3x2x96xf32, #tpu.memory_space<vmem>>, vector<1x2x96xf32>
    %59 = vector.shape_cast %58 : vector<1x2x96xf32> to vector<2x96xf32>
    %60 = vector.extract_strided_slice %59 {offsets = [0, 0], sizes = [1, 96], strides = [1, 1]} : vector<2x96xf32> to vector<1x96xf32>
    %61 = vector.shape_cast %60 : vector<1x96xf32> to vector<96xf32>
    %62 = vector.extract_strided_slice %59 {offsets = [1, 0], sizes = [1, 96], strides = [1, 1]} : vector<2x96xf32> to vector<1x96xf32>
    %63 = vector.shape_cast %62 : vector<1x96xf32> to vector<96xf32>
    %c0_46 = arith.constant 0 : index
    %c0_47 = arith.constant 0 : index
    %c0_48 = arith.constant 0 : index
    %64 = vector.load %arg1[%c0_46, %c0_47, %c0_48] : memref<3x32x32xf32, #tpu.memory_space<vmem>>, vector<1x32x32xf32>
    %65 = vector.shape_cast %64 : vector<1x32x32xf32> to vector<32x32xf32>
    %cst_49 = arith.constant dense<0.000000e+00> : vector<32xf32>
    %66 = vector.multi_reduction <add>, %65, %cst_49 [1] : vector<32x32xf32> to vector<32xf32>
    %67 = vector.shape_cast %66 : vector<32xf32> to vector<32x1xf32>
    %cst_50 = arith.constant 3.200000e+01 : f32
    %68 = vector.broadcast %cst_50 : f32 to vector<32x1xf32>
    %69 = arith.divf %67, %68 : vector<32x1xf32>
    %70 = vector.broadcast %69 : vector<32x1xf32> to vector<32x32xf32>
    %71 = arith.subf %65, %70 : vector<32x32xf32>
    %72 = arith.mulf %71, %71 : vector<32x32xf32>
    %cst_51 = arith.constant dense<0.000000e+00> : vector<32xf32>
    %73 = vector.multi_reduction <add>, %72, %cst_51 [1] : vector<32x32xf32> to vector<32xf32>
    %74 = vector.shape_cast %73 : vector<32xf32> to vector<32x1xf32>
    %cst_52 = arith.constant 3.200000e+01 : f32
    %75 = vector.broadcast %cst_52 : f32 to vector<32x1xf32>
    %76 = arith.divf %74, %75 : vector<32x1xf32>
    %77 = vector.broadcast %69 : vector<32x1xf32> to vector<32x32xf32>
    %78 = arith.subf %65, %77 : vector<32x32xf32>
    %cst_53 = arith.constant 9.99999974E-6 : f32
    %79 = vector.broadcast %cst_53 : f32 to vector<32x1xf32>
    %80 = arith.addf %76, %79 : vector<32x1xf32>
    %81 = math.rsqrt %80 : vector<32x1xf32>
    %82 = vector.broadcast %81 : vector<32x1xf32> to vector<32x32xf32>
    %83 = arith.mulf %78, %82 : vector<32x32xf32>
    %84 = vector.shape_cast %37 : vector<32xf32> to vector<1x32xf32>
    %85 = vector.broadcast %84 : vector<1x32xf32> to vector<32x32xf32>
    %86 = arith.mulf %83, %85 : vector<32x32xf32>
    %87 = vector.shape_cast %39 : vector<32xf32> to vector<1x32xf32>
    %88 = vector.broadcast %87 : vector<1x32xf32> to vector<32x32xf32>
    %89 = arith.addf %86, %88 : vector<32x32xf32>
    %cst_54 = arith.constant dense<0.000000e+00> : vector<32x32xf32>
    %90 = tpu.matmul %89, %49, %cst_54 {dimension_numbers = #tpu.dot_dimension_numbers<[1], [0], [0], [1], [0, 0, 1, 1], [], []>} : vector<32x32xf32>, vector<32x32xf32>, vector<32x32xf32> -> vector<32x32xf32>
    %cst_55 = arith.constant dense<0.000000e+00> : vector<48x32xf32>
    %91 = tpu.matmul %32, %90, %cst_55 {dimension_numbers = #tpu.dot_dimension_numbers<[1], [1], [0], [0], [0, 0, 1, 0], [], []>} : vector<48x32xf32>, vector<32x32xf32>, vector<48x32xf32> -> vector<48x32xf32>
    %92 = arith.addf %91, %2 : vector<48x32xf32>
    %cst_56 = arith.constant dense<0xFF800000> : vector<48xf32>
    %93 = vector.multi_reduction <maximumf>, %92, %cst_56 [1] : vector<48x32xf32> to vector<48xf32>
    %94 = vector.shape_cast %93 : vector<48xf32> to vector<48x1xf32>
    %95 = vector.broadcast %94 : vector<48x1xf32> to vector<48x32xf32>
    %96 = arith.subf %92, %95 : vector<48x32xf32>
    %97 = math.exp %96 : vector<48x32xf32>
    %cst_57 = arith.constant dense<0.000000e+00> : vector<48xf32>
    %98 = vector.multi_reduction <add>, %97, %cst_57 [1] : vector<48x32xf32> to vector<48xf32>
    %99 = vector.shape_cast %98 : vector<48xf32> to vector<48x1xf32>
    %100 = vector.broadcast %99 : vector<48x1xf32> to vector<48x32xf32>
    %101 = arith.divf %97, %100 : vector<48x32xf32>
    %cst_58 = arith.constant 9.99999993E-9 : f32
    %102 = vector.broadcast %cst_58 : f32 to vector<48x32xf32>
    %103 = arith.addf %101, %102 : vector<48x32xf32>
    %104 = arith.mulf %103, %4 : vector<48x32xf32>
    %cst_59 = arith.constant dense<0.000000e+00> : vector<32xf32>
    %105 = vector.multi_reduction <add>, %104, %cst_59 [0] : vector<48x32xf32> to vector<32xf32>
    %106 = vector.shape_cast %105 : vector<32xf32> to vector<1x32xf32>
    %107 = vector.broadcast %106 : vector<1x32xf32> to vector<48x32xf32>
    %108 = arith.divf %104, %107 : vector<48x32xf32>
    %cst_60 = arith.constant dense<0.000000e+00> : vector<32x32xf32>
    %109 = tpu.matmul %108, %33, %cst_60 {dimension_numbers = #tpu.dot_dimension_numbers<[0], [0], [1], [1], [0, 1, 1, 1], [], []>} : vector<48x32xf32>, vector<48x32xf32>, vector<32x32xf32> -> vector<32x32xf32>
    %cst_61 = arith.constant dense<0.000000e+00> : vector<32x96xf32>
    %110 = tpu.matmul %109, %55, %cst_61 {dimension_numbers = #tpu.dot_dimension_numbers<[1], [0], [0], [1], [0, 0, 1, 1], [], []>} : vector<32x32xf32>, vector<32x96xf32>, vector<32x96xf32> -> vector<32x96xf32>
    %111 = vector.shape_cast %61 : vector<96xf32> to vector<1x96xf32>
    %112 = vector.broadcast %111 : vector<1x96xf32> to vector<32x96xf32>
    %113 = arith.addf %110, %112 : vector<32x96xf32>
    %cst_62 = arith.constant dense<0.000000e+00> : vector<32x96xf32>
    %114 = tpu.matmul %65, %57, %cst_62 {dimension_numbers = #tpu.dot_dimension_numbers<[1], [0], [0], [1], [0, 0, 1, 1], [], []>} : vector<32x32xf32>, vector<32x96xf32>, vector<32x96xf32> -> vector<32x96xf32>
    %115 = vector.shape_cast %63 : vector<96xf32> to vector<1x96xf32>
    %116 = vector.broadcast %115 : vector<1x96xf32> to vector<32x96xf32>
    %117 = arith.addf %114, %116 : vector<32x96xf32>
    %118 = vector.extract_strided_slice %113 {offsets = [0, 0], sizes = [32, 32], strides = [1, 1]} : vector<32x96xf32> to vector<32x32xf32>
    %119 = vector.extract_strided_slice %117 {offsets = [0, 0], sizes = [32, 32], strides = [1, 1]} : vector<32x96xf32> to vector<32x32xf32>
    %120 = arith.addf %118, %119 : vector<32x32xf32>
    %121 = arith.negf %120 : vector<32x32xf32>
    %122 = math.exp %121 : vector<32x32xf32>
    %cst_63 = arith.constant 1.000000e+00 : f32
    %123 = vector.broadcast %cst_63 : f32 to vector<32x32xf32>
    %124 = arith.addf %123, %122 : vector<32x32xf32>
    %125 = arith.divf %123, %124 : vector<32x32xf32>
    %126 = vector.extract_strided_slice %113 {offsets = [0, 32], sizes = [32, 32], strides = [1, 1]} : vector<32x96xf32> to vector<32x32xf32>
    %127 = vector.extract_strided_slice %117 {offsets = [0, 32], sizes = [32, 32], strides = [1, 1]} : vector<32x96xf32> to vector<32x32xf32>
    %128 = arith.addf %126, %127 : vector<32x32xf32>
    %129 = arith.negf %128 : vector<32x32xf32>
    %130 = math.exp %129 : vector<32x32xf32>
    %cst_64 = arith.constant 1.000000e+00 : f32
    %131 = vector.broadcast %cst_64 : f32 to vector<32x32xf32>
    %132 = arith.addf %131, %130 : vector<32x32xf32>
    %133 = arith.divf %131, %132 : vector<32x32xf32>
    %134 = vector.extract_strided_slice %113 {offsets = [0, 64], sizes = [32, 32], strides = [1, 1]} : vector<32x96xf32> to vector<32x32xf32>
    %135 = vector.extract_strided_slice %117 {offsets = [0, 64], sizes = [32, 32], strides = [1, 1]} : vector<32x96xf32> to vector<32x32xf32>
    %136 = arith.mulf %125, %135 : vector<32x32xf32>
    %137 = arith.addf %134, %136 : vector<32x32xf32>
    %138 = math.tanh %137 : vector<32x32xf32>
    %cst_65 = arith.constant 1.000000e+00 : f32
    %139 = vector.broadcast %cst_65 : f32 to vector<32x32xf32>
    %140 = arith.subf %139, %133 : vector<32x32xf32>
    %141 = arith.mulf %140, %138 : vector<32x32xf32>
    %142 = arith.mulf %133, %65 : vector<32x32xf32>
    %143 = arith.addf %141, %142 : vector<32x32xf32>
    %cst_66 = arith.constant dense<0.000000e+00> : vector<32xf32>
    %144 = vector.multi_reduction <add>, %143, %cst_66 [1] : vector<32x32xf32> to vector<32xf32>
    %145 = vector.shape_cast %144 : vector<32xf32> to vector<32x1xf32>
    %cst_67 = arith.constant 3.200000e+01 : f32
    %146 = vector.broadcast %cst_67 : f32 to vector<32x1xf32>
    %147 = arith.divf %145, %146 : vector<32x1xf32>
    %148 = vector.broadcast %147 : vector<32x1xf32> to vector<32x32xf32>
    %149 = arith.subf %143, %148 : vector<32x32xf32>
    %150 = arith.mulf %149, %149 : vector<32x32xf32>
    %cst_68 = arith.constant dense<0.000000e+00> : vector<32xf32>
    %151 = vector.multi_reduction <add>, %150, %cst_68 [1] : vector<32x32xf32> to vector<32xf32>
    %152 = vector.shape_cast %151 : vector<32xf32> to vector<32x1xf32>
    %cst_69 = arith.constant 3.200000e+01 : f32
    %153 = vector.broadcast %cst_69 : f32 to vector<32x1xf32>
    %154 = arith.divf %152, %153 : vector<32x1xf32>
    %155 = vector.broadcast %147 : vector<32x1xf32> to vector<32x32xf32>
    %156 = arith.subf %143, %155 : vector<32x32xf32>
    %cst_70 = arith.constant 9.99999974E-6 : f32
    %157 = vector.broadcast %cst_70 : f32 to vector<32x1xf32>
    %158 = arith.addf %154, %157 : vector<32x1xf32>
    %159 = math.rsqrt %158 : vector<32x1xf32>
    %160 = vector.broadcast %159 : vector<32x1xf32> to vector<32x32xf32>
    %161 = arith.mulf %156, %160 : vector<32x32xf32>
    %162 = vector.shape_cast %41 : vector<32xf32> to vector<1x32xf32>
    %163 = vector.broadcast %162 : vector<1x32xf32> to vector<32x32xf32>
    %164 = arith.mulf %161, %163 : vector<32x32xf32>
    %165 = vector.shape_cast %43 : vector<32xf32> to vector<1x32xf32>
    %166 = vector.broadcast %165 : vector<1x32xf32> to vector<32x32xf32>
    %167 = arith.addf %164, %166 : vector<32x32xf32>
    %cst_71 = arith.constant dense<0.000000e+00> : vector<32x32xf32>
    %168 = tpu.matmul %167, %51, %cst_71 {dimension_numbers = #tpu.dot_dimension_numbers<[1], [0], [0], [1], [0, 0, 1, 1], [], []>} : vector<32x32xf32>, vector<32x32xf32>, vector<32x32xf32> -> vector<32x32xf32>
    %169 = vector.shape_cast %45 : vector<32xf32> to vector<1x32xf32>
    %170 = vector.broadcast %169 : vector<1x32xf32> to vector<32x32xf32>
    %171 = arith.addf %168, %170 : vector<32x32xf32>
    %cst_72 = arith.constant 0.000000e+00 : f32
    %172 = vector.broadcast %cst_72 : f32 to vector<32x32xf32>
    %173 = arith.maximumf %171, %172 : vector<32x32xf32>
    %cst_73 = arith.constant dense<0.000000e+00> : vector<32x32xf32>
    %174 = tpu.matmul %173, %53, %cst_73 {dimension_numbers = #tpu.dot_dimension_numbers<[1], [0], [0], [1], [0, 0, 1, 1], [], []>} : vector<32x32xf32>, vector<32x32xf32>, vector<32x32xf32> -> vector<32x32xf32>
    %175 = arith.addf %143, %174 : vector<32x32xf32>
    %176 = vector.shape_cast %47 : vector<32xf32> to vector<1x32xf32>
    %177 = vector.broadcast %176 : vector<1x32xf32> to vector<32x32xf32>
    %178 = arith.addf %175, %177 : vector<32x32xf32>
    %c0_74 = arith.constant 0 : index
    %c0_75 = arith.constant 0 : index
    %c0_76 = arith.constant 0 : index
    %179 = vector.load %arg11[%c0_74, %c0_75, %c0_76] : memref<3x32x32xf32, #tpu.memory_space<vmem>>, vector<1x32x32xf32>
    %180 = vector.shape_cast %179 : vector<1x32x32xf32> to vector<32x32xf32>
    %181 = arith.addf %178, %180 : vector<32x32xf32>
    %c0_77 = arith.constant 0 : index
    %c0_78 = arith.constant 0 : index
    %c0_79 = arith.constant 0 : index
    %182 = vector.load %arg12[%c0_77, %c0_78, %c0_79] : memref<3x32x52xf32, #tpu.memory_space<vmem>>, vector<1x32x52xf32>
    %183 = vector.shape_cast %182 : vector<1x32x52xf32> to vector<32x52xf32>
    %cst_80 = arith.constant dense<0.000000e+00> : vector<32x52xf32>
    %184 = tpu.matmul %181, %183, %cst_80 {dimension_numbers = #tpu.dot_dimension_numbers<[1], [0], [0], [1], [0, 0, 1, 1], [], []>} : vector<32x32xf32>, vector<32x52xf32>, vector<32x52xf32> -> vector<32x52xf32>
    %185 = vector.extract_strided_slice %184 {offsets = [0, 0], sizes = [32, 32], strides = [1, 1]} : vector<32x52xf32> to vector<32x32xf32>
    %186 = vector.extract_strided_slice %184 {offsets = [0, 32], sizes = [32, 20], strides = [1, 1]} : vector<32x52xf32> to vector<32x20xf32>
    %187 = vector.extract_strided_slice %30 {offsets = [0, 0], sizes = [48, 32], strides = [1, 1]} : vector<48x96xf32> to vector<48x32xf32>
    %cst_81 = arith.constant 0.000000e+00 : f32
    %188 = vector.broadcast %cst_81 : f32 to vector<48x32xf32>
    %cst_82 = arith.constant 0.000000e+00 : f32
    %189 = vector.broadcast %cst_82 : f32 to vector<48x10xf32>
    %190 = vector.extract_strided_slice %187 {offsets = [0, 0], sizes = [48, 16], strides = [1, 1]} : vector<48x32xf32> to vector<48x16xf32>
    %191 = vector.extract_strided_slice %185 {offsets = [0, 0], sizes = [32, 16], strides = [1, 1]} : vector<32x32xf32> to vector<32x16xf32>
    %cst_83 = arith.constant dense<0.000000e+00> : vector<48x32xf32>
    %192 = tpu.matmul %190, %191, %cst_83 {dimension_numbers = #tpu.dot_dimension_numbers<[1], [1], [0], [0], [0, 0, 1, 0], [], []>} : vector<48x16xf32>, vector<32x16xf32>, vector<48x32xf32> -> vector<48x32xf32>
    %cst_84 = arith.constant 2.500000e-01 : f32
    %193 = vector.broadcast %cst_84 : f32 to vector<48x32xf32>
    %194 = arith.mulf %192, %193 : vector<48x32xf32>
    %195 = arith.addf %194, %2 : vector<48x32xf32>
    %cst_85 = arith.constant dense<0xFF800000> : vector<48xf32>
    %196 = vector.multi_reduction <maximumf>, %195, %cst_85 [1] : vector<48x32xf32> to vector<48xf32>
    %197 = vector.shape_cast %196 : vector<48xf32> to vector<48x1xf32>
    %198 = vector.broadcast %197 : vector<48x1xf32> to vector<48x32xf32>
    %199 = arith.subf %195, %198 : vector<48x32xf32>
    %200 = math.exp %199 : vector<48x32xf32>
    %cst_86 = arith.constant dense<0.000000e+00> : vector<48xf32>
    %201 = vector.multi_reduction <add>, %200, %cst_86 [1] : vector<48x32xf32> to vector<48xf32>
    %202 = vector.shape_cast %201 : vector<48xf32> to vector<48x1xf32>
    %203 = tpu.reciprocal %202 {approx = true} : vector<48x1xf32> -> vector<48x1xf32>
    %204 = vector.broadcast %203 : vector<48x1xf32> to vector<48x32xf32>
    %205 = arith.mulf %200, %204 : vector<48x32xf32>
    %206 = arith.addf %188, %205 : vector<48x32xf32>
    %207 = vector.extract_strided_slice %186 {offsets = [0, 0], sizes = [32, 10], strides = [1, 1]} : vector<32x20xf32> to vector<32x10xf32>
    %cst_87 = arith.constant dense<0.000000e+00> : vector<48x10xf32>
    %208 = tpu.matmul %205, %207, %cst_87 {dimension_numbers = #tpu.dot_dimension_numbers<[1], [0], [0], [1], [0, 0, 1, 1], [], []>} : vector<48x32xf32>, vector<32x10xf32>, vector<48x10xf32> -> vector<48x10xf32>
    %209 = arith.addf %189, %208 : vector<48x10xf32>
    %210 = vector.extract_strided_slice %187 {offsets = [0, 16], sizes = [48, 16], strides = [1, 1]} : vector<48x32xf32> to vector<48x16xf32>
    %211 = vector.extract_strided_slice %185 {offsets = [0, 16], sizes = [32, 16], strides = [1, 1]} : vector<32x32xf32> to vector<32x16xf32>
    %cst_88 = arith.constant dense<0.000000e+00> : vector<48x32xf32>
    %212 = tpu.matmul %210, %211, %cst_88 {dimension_numbers = #tpu.dot_dimension_numbers<[1], [1], [0], [0], [0, 0, 1, 0], [], []>} : vector<48x16xf32>, vector<32x16xf32>, vector<48x32xf32> -> vector<48x32xf32>
    %cst_89 = arith.constant 2.500000e-01 : f32
    %213 = vector.broadcast %cst_89 : f32 to vector<48x32xf32>
    %214 = arith.mulf %212, %213 : vector<48x32xf32>
    %215 = arith.addf %214, %2 : vector<48x32xf32>
    %cst_90 = arith.constant dense<0xFF800000> : vector<48xf32>
    %216 = vector.multi_reduction <maximumf>, %215, %cst_90 [1] : vector<48x32xf32> to vector<48xf32>
    %217 = vector.shape_cast %216 : vector<48xf32> to vector<48x1xf32>
    %218 = vector.broadcast %217 : vector<48x1xf32> to vector<48x32xf32>
    %219 = arith.subf %215, %218 : vector<48x32xf32>
    %220 = math.exp %219 : vector<48x32xf32>
    %cst_91 = arith.constant dense<0.000000e+00> : vector<48xf32>
    %221 = vector.multi_reduction <add>, %220, %cst_91 [1] : vector<48x32xf32> to vector<48xf32>
    %222 = vector.shape_cast %221 : vector<48xf32> to vector<48x1xf32>
    %223 = tpu.reciprocal %222 {approx = true} : vector<48x1xf32> -> vector<48x1xf32>
    %224 = vector.broadcast %223 : vector<48x1xf32> to vector<48x32xf32>
    %225 = arith.mulf %220, %224 : vector<48x32xf32>
    %226 = arith.addf %206, %225 : vector<48x32xf32>
    %227 = vector.extract_strided_slice %186 {offsets = [0, 10], sizes = [32, 10], strides = [1, 1]} : vector<32x20xf32> to vector<32x10xf32>
    %cst_92 = arith.constant dense<0.000000e+00> : vector<48x10xf32>
    %228 = tpu.matmul %225, %227, %cst_92 {dimension_numbers = #tpu.dot_dimension_numbers<[1], [0], [0], [1], [0, 0, 1, 1], [], []>} : vector<48x32xf32>, vector<32x10xf32>, vector<48x10xf32> -> vector<48x10xf32>
    %229 = arith.addf %209, %228 : vector<48x10xf32>
    %cst_93 = arith.constant 5.000000e-01 : f32
    %230 = vector.broadcast %cst_93 : f32 to vector<48x32xf32>
    %231 = arith.mulf %226, %230 : vector<48x32xf32>
    %c0_94 = arith.constant 0 : index
    %c0_95 = arith.constant 0 : index
    %c0_96 = arith.constant 0 : index
    %232 = vector.load %arg15[%c0_94, %c0_95, %c0_96] : memref<3x48x32xf32, #tpu.memory_space<vmem>>, vector<1x48x32xf32>
    %233 = vector.shape_cast %232 : vector<1x48x32xf32> to vector<48x32xf32>
    %234 = vector.shape_cast %231 : vector<48x32xf32> to vector<1x48x32xf32>
    tpu.vector_store %arg15[%c0_94, %c0_95, %c0_96], %234 {strides = array<i32>} : memref<3x48x32xf32, #tpu.memory_space<vmem>>, vector<1x48x32xf32>,
    %235 = arith.addf %31, %229 : vector<48x10xf32>
    %236 = vector.extract_strided_slice %28 {offsets = [0, 64], sizes = [48, 32], strides = [1, 1]} : vector<48x192xf32> to vector<48x32xf32>
    %237 = vector.extract_strided_slice %28 {offsets = [0, 96], sizes = [48, 32], strides = [1, 1]} : vector<48x192xf32> to vector<48x32xf32>
    %c1_97 = arith.constant 1 : index
    %c0_98 = arith.constant 0 : index
    %c0_99 = arith.constant 0 : index
    %238 = vector.load %arg7[%c1_97, %c0_98, %c0_99] : memref<3x6x32xf32, #tpu.memory_space<vmem>>, vector<1x6x32xf32>
    %239 = vector.shape_cast %238 : vector<1x6x32xf32> to vector<6x32xf32>
    %240 = vector.extract_strided_slice %239 {offsets = [0, 0], sizes = [1, 32], strides = [1, 1]} : vector<6x32xf32> to vector<1x32xf32>
    %241 = vector.shape_cast %240 : vector<1x32xf32> to vector<32xf32>
    %242 = vector.extract_strided_slice %239 {offsets = [1, 0], sizes = [1, 32], strides = [1, 1]} : vector<6x32xf32> to vector<1x32xf32>
    %243 = vector.shape_cast %242 : vector<1x32xf32> to vector<32xf32>
    %244 = vector.extract_strided_slice %239 {offsets = [2, 0], sizes = [1, 32], strides = [1, 1]} : vector<6x32xf32> to vector<1x32xf32>
    %245 = vector.shape_cast %244 : vector<1x32xf32> to vector<32xf32>
    %246 = vector.extract_strided_slice %239 {offsets = [3, 0], sizes = [1, 32], strides = [1, 1]} : vector<6x32xf32> to vector<1x32xf32>
    %247 = vector.shape_cast %246 : vector<1x32xf32> to vector<32xf32>
    %248 = vector.extract_strided_slice %239 {offsets = [4, 0], sizes = [1, 32], strides = [1, 1]} : vector<6x32xf32> to vector<1x32xf32>
    %249 = vector.shape_cast %248 : vector<1x32xf32> to vector<32xf32>
    %250 = vector.extract_strided_slice %239 {offsets = [5, 0], sizes = [1, 32], strides = [1, 1]} : vector<6x32xf32> to vector<1x32xf32>
    %251 = vector.shape_cast %250 : vector<1x32xf32> to vector<32xf32>
    %c1_100 = arith.constant 1 : index
    %c0_101 = arith.constant 0 : index
    %c0_102 = arith.constant 0 : index
    %c0_103 = arith.constant 0 : index
    %252 = vector.load %arg8[%c1_100, %c0_101, %c0_102, %c0_103] : memref<3x3x32x32xf32, #tpu.memory_space<vmem>>, vector<1x1x32x32xf32>
    %253 = vector.shape_cast %252 : vector<1x1x32x32xf32> to vector<32x32xf32>
    %c1_104 = arith.constant 1 : index
    %c1_105 = arith.constant 1 : index
    %c0_106 = arith.constant 0 : index
    %c0_107 = arith.constant 0 : index
    %254 = vector.load %arg8[%c1_104, %c1_105, %c0_106, %c0_107] : memref<3x3x32x32xf32, #tpu.memory_space<vmem>>, vector<1x1x32x32xf32>
    %255 = vector.shape_cast %254 : vector<1x1x32x32xf32> to vector<32x32xf32>
    %c1_108 = arith.constant 1 : index
    %c2_109 = arith.constant 2 : index
    %c0_110 = arith.constant 0 : index
    %c0_111 = arith.constant 0 : index
    %256 = vector.load %arg8[%c1_108, %c2_109, %c0_110, %c0_111] : memref<3x3x32x32xf32, #tpu.memory_space<vmem>>, vector<1x1x32x32xf32>
    %257 = vector.shape_cast %256 : vector<1x1x32x32xf32> to vector<32x32xf32>
    %c1_112 = arith.constant 1 : index
    %c0_113 = arith.constant 0 : index
    %c0_114 = arith.constant 0 : index
    %c0_115 = arith.constant 0 : index
    %258 = vector.load %arg9[%c1_112, %c0_113, %c0_114, %c0_115] : memref<3x2x32x96xf32, #tpu.memory_space<vmem>>, vector<1x1x32x96xf32>
    %259 = vector.shape_cast %258 : vector<1x1x32x96xf32> to vector<32x96xf32>
    %c1_116 = arith.constant 1 : index
    %c1_117 = arith.constant 1 : index
    %c0_118 = arith.constant 0 : index
    %c0_119 = arith.constant 0 : index
    %260 = vector.load %arg9[%c1_116, %c1_117, %c0_118, %c0_119] : memref<3x2x32x96xf32, #tpu.memory_space<vmem>>, vector<1x1x32x96xf32>
    %261 = vector.shape_cast %260 : vector<1x1x32x96xf32> to vector<32x96xf32>
    %c1_120 = arith.constant 1 : index
    %c0_121 = arith.constant 0 : index
    %c0_122 = arith.constant 0 : index
    %262 = vector.load %arg10[%c1_120, %c0_121, %c0_122] : memref<3x2x96xf32, #tpu.memory_space<vmem>>, vector<1x2x96xf32>
    %263 = vector.shape_cast %262 : vector<1x2x96xf32> to vector<2x96xf32>
    %264 = vector.extract_strided_slice %263 {offsets = [0, 0], sizes = [1, 96], strides = [1, 1]} : vector<2x96xf32> to vector<1x96xf32>
    %265 = vector.shape_cast %264 : vector<1x96xf32> to vector<96xf32>
    %266 = vector.extract_strided_slice %263 {offsets = [1, 0], sizes = [1, 96], strides = [1, 1]} : vector<2x96xf32> to vector<1x96xf32>
    %267 = vector.shape_cast %266 : vector<1x96xf32> to vector<96xf32>
    %c1_123 = arith.constant 1 : index
    %c0_124 = arith.constant 0 : index
    %c0_125 = arith.constant 0 : index
    %268 = vector.load %arg1[%c1_123, %c0_124, %c0_125] : memref<3x32x32xf32, #tpu.memory_space<vmem>>, vector<1x32x32xf32>
    %269 = vector.shape_cast %268 : vector<1x32x32xf32> to vector<32x32xf32>
    %cst_126 = arith.constant dense<0.000000e+00> : vector<32xf32>
    %270 = vector.multi_reduction <add>, %269, %cst_126 [1] : vector<32x32xf32> to vector<32xf32>
    %271 = vector.shape_cast %270 : vector<32xf32> to vector<32x1xf32>
    %cst_127 = arith.constant 3.200000e+01 : f32
    %272 = vector.broadcast %cst_127 : f32 to vector<32x1xf32>
    %273 = arith.divf %271, %272 : vector<32x1xf32>
    %274 = vector.broadcast %273 : vector<32x1xf32> to vector<32x32xf32>
    %275 = arith.subf %269, %274 : vector<32x32xf32>
    %276 = arith.mulf %275, %275 : vector<32x32xf32>
    %cst_128 = arith.constant dense<0.000000e+00> : vector<32xf32>
    %277 = vector.multi_reduction <add>, %276, %cst_128 [1] : vector<32x32xf32> to vector<32xf32>
    %278 = vector.shape_cast %277 : vector<32xf32> to vector<32x1xf32>
    %cst_129 = arith.constant 3.200000e+01 : f32
    %279 = vector.broadcast %cst_129 : f32 to vector<32x1xf32>
    %280 = arith.divf %278, %279 : vector<32x1xf32>
    %281 = vector.broadcast %273 : vector<32x1xf32> to vector<32x32xf32>
    %282 = arith.subf %269, %281 : vector<32x32xf32>
    %cst_130 = arith.constant 9.99999974E-6 : f32
    %283 = vector.broadcast %cst_130 : f32 to vector<32x1xf32>
    %284 = arith.addf %280, %283 : vector<32x1xf32>
    %285 = math.rsqrt %284 : vector<32x1xf32>
    %286 = vector.broadcast %285 : vector<32x1xf32> to vector<32x32xf32>
    %287 = arith.mulf %282, %286 : vector<32x32xf32>
    %288 = vector.shape_cast %241 : vector<32xf32> to vector<1x32xf32>
    %289 = vector.broadcast %288 : vector<1x32xf32> to vector<32x32xf32>
    %290 = arith.mulf %287, %289 : vector<32x32xf32>
    %291 = vector.shape_cast %243 : vector<32xf32> to vector<1x32xf32>
    %292 = vector.broadcast %291 : vector<1x32xf32> to vector<32x32xf32>
    %293 = arith.addf %290, %292 : vector<32x32xf32>
    %cst_131 = arith.constant dense<0.000000e+00> : vector<32x32xf32>
    %294 = tpu.matmul %293, %253, %cst_131 {dimension_numbers = #tpu.dot_dimension_numbers<[1], [0], [0], [1], [0, 0, 1, 1], [], []>} : vector<32x32xf32>, vector<32x32xf32>, vector<32x32xf32> -> vector<32x32xf32>
    %cst_132 = arith.constant dense<0.000000e+00> : vector<48x32xf32>
    %295 = tpu.matmul %236, %294, %cst_132 {dimension_numbers = #tpu.dot_dimension_numbers<[1], [1], [0], [0], [0, 0, 1, 0], [], []>} : vector<48x32xf32>, vector<32x32xf32>, vector<48x32xf32> -> vector<48x32xf32>
    %296 = arith.addf %295, %2 : vector<48x32xf32>
    %cst_133 = arith.constant dense<0xFF800000> : vector<48xf32>
    %297 = vector.multi_reduction <maximumf>, %296, %cst_133 [1] : vector<48x32xf32> to vector<48xf32>
    %298 = vector.shape_cast %297 : vector<48xf32> to vector<48x1xf32>
    %299 = vector.broadcast %298 : vector<48x1xf32> to vector<48x32xf32>
    %300 = arith.subf %296, %299 : vector<48x32xf32>
    %301 = math.exp %300 : vector<48x32xf32>
    %cst_134 = arith.constant dense<0.000000e+00> : vector<48xf32>
    %302 = vector.multi_reduction <add>, %301, %cst_134 [1] : vector<48x32xf32> to vector<48xf32>
    %303 = vector.shape_cast %302 : vector<48xf32> to vector<48x1xf32>
    %304 = vector.broadcast %303 : vector<48x1xf32> to vector<48x32xf32>
    %305 = arith.divf %301, %304 : vector<48x32xf32>
    %cst_135 = arith.constant 9.99999993E-9 : f32
    %306 = vector.broadcast %cst_135 : f32 to vector<48x32xf32>
    %307 = arith.addf %305, %306 : vector<48x32xf32>
    %308 = arith.mulf %307, %4 : vector<48x32xf32>
    %cst_136 = arith.constant dense<0.000000e+00> : vector<32xf32>
    %309 = vector.multi_reduction <add>, %308, %cst_136 [0] : vector<48x32xf32> to vector<32xf32>
    %310 = vector.shape_cast %309 : vector<32xf32> to vector<1x32xf32>
    %311 = vector.broadcast %310 : vector<1x32xf32> to vector<48x32xf32>
    %312 = arith.divf %308, %311 : vector<48x32xf32>
    %cst_137 = arith.constant dense<0.000000e+00> : vector<32x32xf32>
    %313 = tpu.matmul %312, %237, %cst_137 {dimension_numbers = #tpu.dot_dimension_numbers<[0], [0], [1], [1], [0, 1, 1, 1], [], []>} : vector<48x32xf32>, vector<48x32xf32>, vector<32x32xf32> -> vector<32x32xf32>
    %cst_138 = arith.constant dense<0.000000e+00> : vector<32x96xf32>
    %314 = tpu.matmul %313, %259, %cst_138 {dimension_numbers = #tpu.dot_dimension_numbers<[1], [0], [0], [1], [0, 0, 1, 1], [], []>} : vector<32x32xf32>, vector<32x96xf32>, vector<32x96xf32> -> vector<32x96xf32>
    %315 = vector.shape_cast %265 : vector<96xf32> to vector<1x96xf32>
    %316 = vector.broadcast %315 : vector<1x96xf32> to vector<32x96xf32>
    %317 = arith.addf %314, %316 : vector<32x96xf32>
    %cst_139 = arith.constant dense<0.000000e+00> : vector<32x96xf32>
    %318 = tpu.matmul %269, %261, %cst_139 {dimension_numbers = #tpu.dot_dimension_numbers<[1], [0], [0], [1], [0, 0, 1, 1], [], []>} : vector<32x32xf32>, vector<32x96xf32>, vector<32x96xf32> -> vector<32x96xf32>
    %319 = vector.shape_cast %267 : vector<96xf32> to vector<1x96xf32>
    %320 = vector.broadcast %319 : vector<1x96xf32> to vector<32x96xf32>
    %321 = arith.addf %318, %320 : vector<32x96xf32>
    %322 = vector.extract_strided_slice %317 {offsets = [0, 0], sizes = [32, 32], strides = [1, 1]} : vector<32x96xf32> to vector<32x32xf32>
    %323 = vector.extract_strided_slice %321 {offsets = [0, 0], sizes = [32, 32], strides = [1, 1]} : vector<32x96xf32> to vector<32x32xf32>
    %324 = arith.addf %322, %323 : vector<32x32xf32>
    %325 = arith.negf %324 : vector<32x32xf32>
    %326 = math.exp %325 : vector<32x32xf32>
    %cst_140 = arith.constant 1.000000e+00 : f32
    %327 = vector.broadcast %cst_140 : f32 to vector<32x32xf32>
    %328 = arith.addf %327, %326 : vector<32x32xf32>
    %329 = arith.divf %327, %328 : vector<32x32xf32>
    %330 = vector.extract_strided_slice %317 {offsets = [0, 32], sizes = [32, 32], strides = [1, 1]} : vector<32x96xf32> to vector<32x32xf32>
    %331 = vector.extract_strided_slice %321 {offsets = [0, 32], sizes = [32, 32], strides = [1, 1]} : vector<32x96xf32> to vector<32x32xf32>
    %332 = arith.addf %330, %331 : vector<32x32xf32>
    %333 = arith.negf %332 : vector<32x32xf32>
    %334 = math.exp %333 : vector<32x32xf32>
    %cst_141 = arith.constant 1.000000e+00 : f32
    %335 = vector.broadcast %cst_141 : f32 to vector<32x32xf32>
    %336 = arith.addf %335, %334 : vector<32x32xf32>
    %337 = arith.divf %335, %336 : vector<32x32xf32>
    %338 = vector.extract_strided_slice %317 {offsets = [0, 64], sizes = [32, 32], strides = [1, 1]} : vector<32x96xf32> to vector<32x32xf32>
    %339 = vector.extract_strided_slice %321 {offsets = [0, 64], sizes = [32, 32], strides = [1, 1]} : vector<32x96xf32> to vector<32x32xf32>
    %340 = arith.mulf %329, %339 : vector<32x32xf32>
    %341 = arith.addf %338, %340 : vector<32x32xf32>
    %342 = math.tanh %341 : vector<32x32xf32>
    %cst_142 = arith.constant 1.000000e+00 : f32
    %343 = vector.broadcast %cst_142 : f32 to vector<32x32xf32>
    %344 = arith.subf %343, %337 : vector<32x32xf32>
    %345 = arith.mulf %344, %342 : vector<32x32xf32>
    %346 = arith.mulf %337, %269 : vector<32x32xf32>
    %347 = arith.addf %345, %346 : vector<32x32xf32>
    %cst_143 = arith.constant dense<0.000000e+00> : vector<32xf32>
    %348 = vector.multi_reduction <add>, %347, %cst_143 [1] : vector<32x32xf32> to vector<32xf32>
    %349 = vector.shape_cast %348 : vector<32xf32> to vector<32x1xf32>
    %cst_144 = arith.constant 3.200000e+01 : f32
    %350 = vector.broadcast %cst_144 : f32 to vector<32x1xf32>
    %351 = arith.divf %349, %350 : vector<32x1xf32>
    %352 = vector.broadcast %351 : vector<32x1xf32> to vector<32x32xf32>
    %353 = arith.subf %347, %352 : vector<32x32xf32>
    %354 = arith.mulf %353, %353 : vector<32x32xf32>
    %cst_145 = arith.constant dense<0.000000e+00> : vector<32xf32>
    %355 = vector.multi_reduction <add>, %354, %cst_145 [1] : vector<32x32xf32> to vector<32xf32>
    %356 = vector.shape_cast %355 : vector<32xf32> to vector<32x1xf32>
    %cst_146 = arith.constant 3.200000e+01 : f32
    %357 = vector.broadcast %cst_146 : f32 to vector<32x1xf32>
    %358 = arith.divf %356, %357 : vector<32x1xf32>
    %359 = vector.broadcast %351 : vector<32x1xf32> to vector<32x32xf32>
    %360 = arith.subf %347, %359 : vector<32x32xf32>
    %cst_147 = arith.constant 9.99999974E-6 : f32
    %361 = vector.broadcast %cst_147 : f32 to vector<32x1xf32>
    %362 = arith.addf %358, %361 : vector<32x1xf32>
    %363 = math.rsqrt %362 : vector<32x1xf32>
    %364 = vector.broadcast %363 : vector<32x1xf32> to vector<32x32xf32>
    %365 = arith.mulf %360, %364 : vector<32x32xf32>
    %366 = vector.shape_cast %245 : vector<32xf32> to vector<1x32xf32>
    %367 = vector.broadcast %366 : vector<1x32xf32> to vector<32x32xf32>
    %368 = arith.mulf %365, %367 : vector<32x32xf32>
    %369 = vector.shape_cast %247 : vector<32xf32> to vector<1x32xf32>
    %370 = vector.broadcast %369 : vector<1x32xf32> to vector<32x32xf32>
    %371 = arith.addf %368, %370 : vector<32x32xf32>
    %cst_148 = arith.constant dense<0.000000e+00> : vector<32x32xf32>
    %372 = tpu.matmul %371, %255, %cst_148 {dimension_numbers = #tpu.dot_dimension_numbers<[1], [0], [0], [1], [0, 0, 1, 1], [], []>} : vector<32x32xf32>, vector<32x32xf32>, vector<32x32xf32> -> vector<32x32xf32>
    %373 = vector.shape_cast %249 : vector<32xf32> to vector<1x32xf32>
    %374 = vector.broadcast %373 : vector<1x32xf32> to vector<32x32xf32>
    %375 = arith.addf %372, %374 : vector<32x32xf32>
    %cst_149 = arith.constant 0.000000e+00 : f32
    %376 = vector.broadcast %cst_149 : f32 to vector<32x32xf32>
    %377 = arith.maximumf %375, %376 : vector<32x32xf32>
    %cst_150 = arith.constant dense<0.000000e+00> : vector<32x32xf32>
    %378 = tpu.matmul %377, %257, %cst_150 {dimension_numbers = #tpu.dot_dimension_numbers<[1], [0], [0], [1], [0, 0, 1, 1], [], []>} : vector<32x32xf32>, vector<32x32xf32>, vector<32x32xf32> -> vector<32x32xf32>
    %379 = arith.addf %347, %378 : vector<32x32xf32>
    %380 = vector.shape_cast %251 : vector<32xf32> to vector<1x32xf32>
    %381 = vector.broadcast %380 : vector<1x32xf32> to vector<32x32xf32>
    %382 = arith.addf %379, %381 : vector<32x32xf32>
    %c1_151 = arith.constant 1 : index
    %c0_152 = arith.constant 0 : index
    %c0_153 = arith.constant 0 : index
    %383 = vector.load %arg11[%c1_151, %c0_152, %c0_153] : memref<3x32x32xf32, #tpu.memory_space<vmem>>, vector<1x32x32xf32>
    %384 = vector.shape_cast %383 : vector<1x32x32xf32> to vector<32x32xf32>
    %385 = arith.addf %382, %384 : vector<32x32xf32>
    %c1_154 = arith.constant 1 : index
    %c0_155 = arith.constant 0 : index
    %c0_156 = arith.constant 0 : index
    %386 = vector.load %arg12[%c1_154, %c0_155, %c0_156] : memref<3x32x52xf32, #tpu.memory_space<vmem>>, vector<1x32x52xf32>
    %387 = vector.shape_cast %386 : vector<1x32x52xf32> to vector<32x52xf32>
    %cst_157 = arith.constant dense<0.000000e+00> : vector<32x52xf32>
    %388 = tpu.matmul %385, %387, %cst_157 {dimension_numbers = #tpu.dot_dimension_numbers<[1], [0], [0], [1], [0, 0, 1, 1], [], []>} : vector<32x32xf32>, vector<32x52xf32>, vector<32x52xf32> -> vector<32x52xf32>
    %389 = vector.extract_strided_slice %388 {offsets = [0, 0], sizes = [32, 32], strides = [1, 1]} : vector<32x52xf32> to vector<32x32xf32>
    %390 = vector.extract_strided_slice %388 {offsets = [0, 32], sizes = [32, 20], strides = [1, 1]} : vector<32x52xf32> to vector<32x20xf32>
    %391 = vector.extract_strided_slice %30 {offsets = [0, 32], sizes = [48, 32], strides = [1, 1]} : vector<48x96xf32> to vector<48x32xf32>
    %cst_158 = arith.constant 0.000000e+00 : f32
    %392 = vector.broadcast %cst_158 : f32 to vector<48x32xf32>
    %cst_159 = arith.constant 0.000000e+00 : f32
    %393 = vector.broadcast %cst_159 : f32 to vector<48x10xf32>
    %394 = vector.extract_strided_slice %391 {offsets = [0, 0], sizes = [48, 16], strides = [1, 1]} : vector<48x32xf32> to vector<48x16xf32>
    %395 = vector.extract_strided_slice %389 {offsets = [0, 0], sizes = [32, 16], strides = [1, 1]} : vector<32x32xf32> to vector<32x16xf32>
    %cst_160 = arith.constant dense<0.000000e+00> : vector<48x32xf32>
    %396 = tpu.matmul %394, %395, %cst_160 {dimension_numbers = #tpu.dot_dimension_numbers<[1], [1], [0], [0], [0, 0, 1, 0], [], []>} : vector<48x16xf32>, vector<32x16xf32>, vector<48x32xf32> -> vector<48x32xf32>
    %cst_161 = arith.constant 2.500000e-01 : f32
    %397 = vector.broadcast %cst_161 : f32 to vector<48x32xf32>
    %398 = arith.mulf %396, %397 : vector<48x32xf32>
    %399 = arith.addf %398, %2 : vector<48x32xf32>
    %cst_162 = arith.constant dense<0xFF800000> : vector<48xf32>
    %400 = vector.multi_reduction <maximumf>, %399, %cst_162 [1] : vector<48x32xf32> to vector<48xf32>
    %401 = vector.shape_cast %400 : vector<48xf32> to vector<48x1xf32>
    %402 = vector.broadcast %401 : vector<48x1xf32> to vector<48x32xf32>
    %403 = arith.subf %399, %402 : vector<48x32xf32>
    %404 = math.exp %403 : vector<48x32xf32>
    %cst_163 = arith.constant dense<0.000000e+00> : vector<48xf32>
    %405 = vector.multi_reduction <add>, %404, %cst_163 [1] : vector<48x32xf32> to vector<48xf32>
    %406 = vector.shape_cast %405 : vector<48xf32> to vector<48x1xf32>
    %407 = tpu.reciprocal %406 {approx = true} : vector<48x1xf32> -> vector<48x1xf32>
    %408 = vector.broadcast %407 : vector<48x1xf32> to vector<48x32xf32>
    %409 = arith.mulf %404, %408 : vector<48x32xf32>
    %410 = arith.addf %392, %409 : vector<48x32xf32>
    %411 = vector.extract_strided_slice %390 {offsets = [0, 0], sizes = [32, 10], strides = [1, 1]} : vector<32x20xf32> to vector<32x10xf32>
    %cst_164 = arith.constant dense<0.000000e+00> : vector<48x10xf32>
    %412 = tpu.matmul %409, %411, %cst_164 {dimension_numbers = #tpu.dot_dimension_numbers<[1], [0], [0], [1], [0, 0, 1, 1], [], []>} : vector<48x32xf32>, vector<32x10xf32>, vector<48x10xf32> -> vector<48x10xf32>
    %413 = arith.addf %393, %412 : vector<48x10xf32>
    %414 = vector.extract_strided_slice %391 {offsets = [0, 16], sizes = [48, 16], strides = [1, 1]} : vector<48x32xf32> to vector<48x16xf32>
    %415 = vector.extract_strided_slice %389 {offsets = [0, 16], sizes = [32, 16], strides = [1, 1]} : vector<32x32xf32> to vector<32x16xf32>
    %cst_165 = arith.constant dense<0.000000e+00> : vector<48x32xf32>
    %416 = tpu.matmul %414, %415, %cst_165 {dimension_numbers = #tpu.dot_dimension_numbers<[1], [1], [0], [0], [0, 0, 1, 0], [], []>} : vector<48x16xf32>, vector<32x16xf32>, vector<48x32xf32> -> vector<48x32xf32>
    %cst_166 = arith.constant 2.500000e-01 : f32
    %417 = vector.broadcast %cst_166 : f32 to vector<48x32xf32>
    %418 = arith.mulf %416, %417 : vector<48x32xf32>
    %419 = arith.addf %418, %2 : vector<48x32xf32>
    %cst_167 = arith.constant dense<0xFF800000> : vector<48xf32>
    %420 = vector.multi_reduction <maximumf>, %419, %cst_167 [1] : vector<48x32xf32> to vector<48xf32>
    %421 = vector.shape_cast %420 : vector<48xf32> to vector<48x1xf32>
    %422 = vector.broadcast %421 : vector<48x1xf32> to vector<48x32xf32>
    %423 = arith.subf %419, %422 : vector<48x32xf32>
    %424 = math.exp %423 : vector<48x32xf32>
    %cst_168 = arith.constant dense<0.000000e+00> : vector<48xf32>
    %425 = vector.multi_reduction <add>, %424, %cst_168 [1] : vector<48x32xf32> to vector<48xf32>
    %426 = vector.shape_cast %425 : vector<48xf32> to vector<48x1xf32>
    %427 = tpu.reciprocal %426 {approx = true} : vector<48x1xf32> -> vector<48x1xf32>
    %428 = vector.broadcast %427 : vector<48x1xf32> to vector<48x32xf32>
    %429 = arith.mulf %424, %428 : vector<48x32xf32>
    %430 = arith.addf %410, %429 : vector<48x32xf32>
    %431 = vector.extract_strided_slice %390 {offsets = [0, 10], sizes = [32, 10], strides = [1, 1]} : vector<32x20xf32> to vector<32x10xf32>
    %cst_169 = arith.constant dense<0.000000e+00> : vector<48x10xf32>
    %432 = tpu.matmul %429, %431, %cst_169 {dimension_numbers = #tpu.dot_dimension_numbers<[1], [0], [0], [1], [0, 0, 1, 1], [], []>} : vector<48x32xf32>, vector<32x10xf32>, vector<48x10xf32> -> vector<48x10xf32>
    %433 = arith.addf %413, %432 : vector<48x10xf32>
    %cst_170 = arith.constant 5.000000e-01 : f32
    %434 = vector.broadcast %cst_170 : f32 to vector<48x32xf32>
    %435 = arith.mulf %430, %434 : vector<48x32xf32>
    %c1_171 = arith.constant 1 : index
    %c0_172 = arith.constant 0 : index
    %c0_173 = arith.constant 0 : index
    %436 = vector.load %arg15[%c1_171, %c0_172, %c0_173] : memref<3x48x32xf32, #tpu.memory_space<vmem>>, vector<1x48x32xf32>
    %437 = vector.shape_cast %436 : vector<1x48x32xf32> to vector<48x32xf32>
    %438 = vector.shape_cast %435 : vector<48x32xf32> to vector<1x48x32xf32>
    tpu.vector_store %arg15[%c1_171, %c0_172, %c0_173], %438 {strides = array<i32>} : memref<3x48x32xf32, #tpu.memory_space<vmem>>, vector<1x48x32xf32>,
    %439 = arith.addf %235, %433 : vector<48x10xf32>
    %440 = vector.extract_strided_slice %28 {offsets = [0, 128], sizes = [48, 32], strides = [1, 1]} : vector<48x192xf32> to vector<48x32xf32>
    %441 = vector.extract_strided_slice %28 {offsets = [0, 160], sizes = [48, 32], strides = [1, 1]} : vector<48x192xf32> to vector<48x32xf32>
    %c2_174 = arith.constant 2 : index
    %c0_175 = arith.constant 0 : index
    %c0_176 = arith.constant 0 : index
    %442 = vector.load %arg7[%c2_174, %c0_175, %c0_176] : memref<3x6x32xf32, #tpu.memory_space<vmem>>, vector<1x6x32xf32>
    %443 = vector.shape_cast %442 : vector<1x6x32xf32> to vector<6x32xf32>
    %444 = vector.extract_strided_slice %443 {offsets = [0, 0], sizes = [1, 32], strides = [1, 1]} : vector<6x32xf32> to vector<1x32xf32>
    %445 = vector.shape_cast %444 : vector<1x32xf32> to vector<32xf32>
    %446 = vector.extract_strided_slice %443 {offsets = [1, 0], sizes = [1, 32], strides = [1, 1]} : vector<6x32xf32> to vector<1x32xf32>
    %447 = vector.shape_cast %446 : vector<1x32xf32> to vector<32xf32>
    %448 = vector.extract_strided_slice %443 {offsets = [2, 0], sizes = [1, 32], strides = [1, 1]} : vector<6x32xf32> to vector<1x32xf32>
    %449 = vector.shape_cast %448 : vector<1x32xf32> to vector<32xf32>
    %450 = vector.extract_strided_slice %443 {offsets = [3, 0], sizes = [1, 32], strides = [1, 1]} : vector<6x32xf32> to vector<1x32xf32>
    %451 = vector.shape_cast %450 : vector<1x32xf32> to vector<32xf32>
    %452 = vector.extract_strided_slice %443 {offsets = [4, 0], sizes = [1, 32], strides = [1, 1]} : vector<6x32xf32> to vector<1x32xf32>
    %453 = vector.shape_cast %452 : vector<1x32xf32> to vector<32xf32>
    %454 = vector.extract_strided_slice %443 {offsets = [5, 0], sizes = [1, 32], strides = [1, 1]} : vector<6x32xf32> to vector<1x32xf32>
    %455 = vector.shape_cast %454 : vector<1x32xf32> to vector<32xf32>
    %c2_177 = arith.constant 2 : index
    %c0_178 = arith.constant 0 : index
    %c0_179 = arith.constant 0 : index
    %c0_180 = arith.constant 0 : index
    %456 = vector.load %arg8[%c2_177, %c0_178, %c0_179, %c0_180] : memref<3x3x32x32xf32, #tpu.memory_space<vmem>>, vector<1x1x32x32xf32>
    %457 = vector.shape_cast %456 : vector<1x1x32x32xf32> to vector<32x32xf32>
    %c2_181 = arith.constant 2 : index
    %c1_182 = arith.constant 1 : index
    %c0_183 = arith.constant 0 : index
    %c0_184 = arith.constant 0 : index
    %458 = vector.load %arg8[%c2_181, %c1_182, %c0_183, %c0_184] : memref<3x3x32x32xf32, #tpu.memory_space<vmem>>, vector<1x1x32x32xf32>
    %459 = vector.shape_cast %458 : vector<1x1x32x32xf32> to vector<32x32xf32>
    %c2_185 = arith.constant 2 : index
    %c2_186 = arith.constant 2 : index
    %c0_187 = arith.constant 0 : index
    %c0_188 = arith.constant 0 : index
    %460 = vector.load %arg8[%c2_185, %c2_186, %c0_187, %c0_188] : memref<3x3x32x32xf32, #tpu.memory_space<vmem>>, vector<1x1x32x32xf32>
    %461 = vector.shape_cast %460 : vector<1x1x32x32xf32> to vector<32x32xf32>
    %c2_189 = arith.constant 2 : index
    %c0_190 = arith.constant 0 : index
    %c0_191 = arith.constant 0 : index
    %c0_192 = arith.constant 0 : index
    %462 = vector.load %arg9[%c2_189, %c0_190, %c0_191, %c0_192] : memref<3x2x32x96xf32, #tpu.memory_space<vmem>>, vector<1x1x32x96xf32>
    %463 = vector.shape_cast %462 : vector<1x1x32x96xf32> to vector<32x96xf32>
    %c2_193 = arith.constant 2 : index
    %c1_194 = arith.constant 1 : index
    %c0_195 = arith.constant 0 : index
    %c0_196 = arith.constant 0 : index
    %464 = vector.load %arg9[%c2_193, %c1_194, %c0_195, %c0_196] : memref<3x2x32x96xf32, #tpu.memory_space<vmem>>, vector<1x1x32x96xf32>
    %465 = vector.shape_cast %464 : vector<1x1x32x96xf32> to vector<32x96xf32>
    %c2_197 = arith.constant 2 : index
    %c0_198 = arith.constant 0 : index
    %c0_199 = arith.constant 0 : index
    %466 = vector.load %arg10[%c2_197, %c0_198, %c0_199] : memref<3x2x96xf32, #tpu.memory_space<vmem>>, vector<1x2x96xf32>
    %467 = vector.shape_cast %466 : vector<1x2x96xf32> to vector<2x96xf32>
    %468 = vector.extract_strided_slice %467 {offsets = [0, 0], sizes = [1, 96], strides = [1, 1]} : vector<2x96xf32> to vector<1x96xf32>
    %469 = vector.shape_cast %468 : vector<1x96xf32> to vector<96xf32>
    %470 = vector.extract_strided_slice %467 {offsets = [1, 0], sizes = [1, 96], strides = [1, 1]} : vector<2x96xf32> to vector<1x96xf32>
    %471 = vector.shape_cast %470 : vector<1x96xf32> to vector<96xf32>
    %c2_200 = arith.constant 2 : index
    %c0_201 = arith.constant 0 : index
    %c0_202 = arith.constant 0 : index
    %472 = vector.load %arg1[%c2_200, %c0_201, %c0_202] : memref<3x32x32xf32, #tpu.memory_space<vmem>>, vector<1x32x32xf32>
    %473 = vector.shape_cast %472 : vector<1x32x32xf32> to vector<32x32xf32>
    %cst_203 = arith.constant dense<0.000000e+00> : vector<32xf32>
    %474 = vector.multi_reduction <add>, %473, %cst_203 [1] : vector<32x32xf32> to vector<32xf32>
    %475 = vector.shape_cast %474 : vector<32xf32> to vector<32x1xf32>
    %cst_204 = arith.constant 3.200000e+01 : f32
    %476 = vector.broadcast %cst_204 : f32 to vector<32x1xf32>
    %477 = arith.divf %475, %476 : vector<32x1xf32>
    %478 = vector.broadcast %477 : vector<32x1xf32> to vector<32x32xf32>
    %479 = arith.subf %473, %478 : vector<32x32xf32>
    %480 = arith.mulf %479, %479 : vector<32x32xf32>
    %cst_205 = arith.constant dense<0.000000e+00> : vector<32xf32>
    %481 = vector.multi_reduction <add>, %480, %cst_205 [1] : vector<32x32xf32> to vector<32xf32>
    %482 = vector.shape_cast %481 : vector<32xf32> to vector<32x1xf32>
    %cst_206 = arith.constant 3.200000e+01 : f32
    %483 = vector.broadcast %cst_206 : f32 to vector<32x1xf32>
    %484 = arith.divf %482, %483 : vector<32x1xf32>
    %485 = vector.broadcast %477 : vector<32x1xf32> to vector<32x32xf32>
    %486 = arith.subf %473, %485 : vector<32x32xf32>
    %cst_207 = arith.constant 9.99999974E-6 : f32
    %487 = vector.broadcast %cst_207 : f32 to vector<32x1xf32>
    %488 = arith.addf %484, %487 : vector<32x1xf32>
    %489 = math.rsqrt %488 : vector<32x1xf32>
    %490 = vector.broadcast %489 : vector<32x1xf32> to vector<32x32xf32>
    %491 = arith.mulf %486, %490 : vector<32x32xf32>
    %492 = vector.shape_cast %445 : vector<32xf32> to vector<1x32xf32>
    %493 = vector.broadcast %492 : vector<1x32xf32> to vector<32x32xf32>
    %494 = arith.mulf %491, %493 : vector<32x32xf32>
    %495 = vector.shape_cast %447 : vector<32xf32> to vector<1x32xf32>
    %496 = vector.broadcast %495 : vector<1x32xf32> to vector<32x32xf32>
    %497 = arith.addf %494, %496 : vector<32x32xf32>
    %cst_208 = arith.constant dense<0.000000e+00> : vector<32x32xf32>
    %498 = tpu.matmul %497, %457, %cst_208 {dimension_numbers = #tpu.dot_dimension_numbers<[1], [0], [0], [1], [0, 0, 1, 1], [], []>} : vector<32x32xf32>, vector<32x32xf32>, vector<32x32xf32> -> vector<32x32xf32>
    %cst_209 = arith.constant dense<0.000000e+00> : vector<48x32xf32>
    %499 = tpu.matmul %440, %498, %cst_209 {dimension_numbers = #tpu.dot_dimension_numbers<[1], [1], [0], [0], [0, 0, 1, 0], [], []>} : vector<48x32xf32>, vector<32x32xf32>, vector<48x32xf32> -> vector<48x32xf32>
    %500 = arith.addf %499, %2 : vector<48x32xf32>
    %cst_210 = arith.constant dense<0xFF800000> : vector<48xf32>
    %501 = vector.multi_reduction <maximumf>, %500, %cst_210 [1] : vector<48x32xf32> to vector<48xf32>
    %502 = vector.shape_cast %501 : vector<48xf32> to vector<48x1xf32>
    %503 = vector.broadcast %502 : vector<48x1xf32> to vector<48x32xf32>
    %504 = arith.subf %500, %503 : vector<48x32xf32>
    %505 = math.exp %504 : vector<48x32xf32>
    %cst_211 = arith.constant dense<0.000000e+00> : vector<48xf32>
    %506 = vector.multi_reduction <add>, %505, %cst_211 [1] : vector<48x32xf32> to vector<48xf32>
    %507 = vector.shape_cast %506 : vector<48xf32> to vector<48x1xf32>
    %508 = vector.broadcast %507 : vector<48x1xf32> to vector<48x32xf32>
    %509 = arith.divf %505, %508 : vector<48x32xf32>
    %cst_212 = arith.constant 9.99999993E-9 : f32
    %510 = vector.broadcast %cst_212 : f32 to vector<48x32xf32>
    %511 = arith.addf %509, %510 : vector<48x32xf32>
    %512 = arith.mulf %511, %4 : vector<48x32xf32>
    %cst_213 = arith.constant dense<0.000000e+00> : vector<32xf32>
    %513 = vector.multi_reduction <add>, %512, %cst_213 [0] : vector<48x32xf32> to vector<32xf32>
    %514 = vector.shape_cast %513 : vector<32xf32> to vector<1x32xf32>
    %515 = vector.broadcast %514 : vector<1x32xf32> to vector<48x32xf32>
    %516 = arith.divf %512, %515 : vector<48x32xf32>
    %cst_214 = arith.constant dense<0.000000e+00> : vector<32x32xf32>
    %517 = tpu.matmul %516, %441, %cst_214 {dimension_numbers = #tpu.dot_dimension_numbers<[0], [0], [1], [1], [0, 1, 1, 1], [], []>} : vector<48x32xf32>, vector<48x32xf32>, vector<32x32xf32> -> vector<32x32xf32>
    %cst_215 = arith.constant dense<0.000000e+00> : vector<32x96xf32>
    %518 = tpu.matmul %517, %463, %cst_215 {dimension_numbers = #tpu.dot_dimension_numbers<[1], [0], [0], [1], [0, 0, 1, 1], [], []>} : vector<32x32xf32>, vector<32x96xf32>, vector<32x96xf32> -> vector<32x96xf32>
    %519 = vector.shape_cast %469 : vector<96xf32> to vector<1x96xf32>
    %520 = vector.broadcast %519 : vector<1x96xf32> to vector<32x96xf32>
    %521 = arith.addf %518, %520 : vector<32x96xf32>
    %cst_216 = arith.constant dense<0.000000e+00> : vector<32x96xf32>
    %522 = tpu.matmul %473, %465, %cst_216 {dimension_numbers = #tpu.dot_dimension_numbers<[1], [0], [0], [1], [0, 0, 1, 1], [], []>} : vector<32x32xf32>, vector<32x96xf32>, vector<32x96xf32> -> vector<32x96xf32>
    %523 = vector.shape_cast %471 : vector<96xf32> to vector<1x96xf32>
    %524 = vector.broadcast %523 : vector<1x96xf32> to vector<32x96xf32>
    %525 = arith.addf %522, %524 : vector<32x96xf32>
    %526 = vector.extract_strided_slice %521 {offsets = [0, 0], sizes = [32, 32], strides = [1, 1]} : vector<32x96xf32> to vector<32x32xf32>
    %527 = vector.extract_strided_slice %525 {offsets = [0, 0], sizes = [32, 32], strides = [1, 1]} : vector<32x96xf32> to vector<32x32xf32>
    %528 = arith.addf %526, %527 : vector<32x32xf32>
    %529 = arith.negf %528 : vector<32x32xf32>
    %530 = math.exp %529 : vector<32x32xf32>
    %cst_217 = arith.constant 1.000000e+00 : f32
    %531 = vector.broadcast %cst_217 : f32 to vector<32x32xf32>
    %532 = arith.addf %531, %530 : vector<32x32xf32>
    %533 = arith.divf %531, %532 : vector<32x32xf32>
    %534 = vector.extract_strided_slice %521 {offsets = [0, 32], sizes = [32, 32], strides = [1, 1]} : vector<32x96xf32> to vector<32x32xf32>
    %535 = vector.extract_strided_slice %525 {offsets = [0, 32], sizes = [32, 32], strides = [1, 1]} : vector<32x96xf32> to vector<32x32xf32>
    %536 = arith.addf %534, %535 : vector<32x32xf32>
    %537 = arith.negf %536 : vector<32x32xf32>
    %538 = math.exp %537 : vector<32x32xf32>
    %cst_218 = arith.constant 1.000000e+00 : f32
    %539 = vector.broadcast %cst_218 : f32 to vector<32x32xf32>
    %540 = arith.addf %539, %538 : vector<32x32xf32>
    %541 = arith.divf %539, %540 : vector<32x32xf32>
    %542 = vector.extract_strided_slice %521 {offsets = [0, 64], sizes = [32, 32], strides = [1, 1]} : vector<32x96xf32> to vector<32x32xf32>
    %543 = vector.extract_strided_slice %525 {offsets = [0, 64], sizes = [32, 32], strides = [1, 1]} : vector<32x96xf32> to vector<32x32xf32>
    %544 = arith.mulf %533, %543 : vector<32x32xf32>
    %545 = arith.addf %542, %544 : vector<32x32xf32>
    %546 = math.tanh %545 : vector<32x32xf32>
    %cst_219 = arith.constant 1.000000e+00 : f32
    %547 = vector.broadcast %cst_219 : f32 to vector<32x32xf32>
    %548 = arith.subf %547, %541 : vector<32x32xf32>
    %549 = arith.mulf %548, %546 : vector<32x32xf32>
    %550 = arith.mulf %541, %473 : vector<32x32xf32>
    %551 = arith.addf %549, %550 : vector<32x32xf32>
    %cst_220 = arith.constant dense<0.000000e+00> : vector<32xf32>
    %552 = vector.multi_reduction <add>, %551, %cst_220 [1] : vector<32x32xf32> to vector<32xf32>
    %553 = vector.shape_cast %552 : vector<32xf32> to vector<32x1xf32>
    %cst_221 = arith.constant 3.200000e+01 : f32
    %554 = vector.broadcast %cst_221 : f32 to vector<32x1xf32>
    %555 = arith.divf %553, %554 : vector<32x1xf32>
    %556 = vector.broadcast %555 : vector<32x1xf32> to vector<32x32xf32>
    %557 = arith.subf %551, %556 : vector<32x32xf32>
    %558 = arith.mulf %557, %557 : vector<32x32xf32>
    %cst_222 = arith.constant dense<0.000000e+00> : vector<32xf32>
    %559 = vector.multi_reduction <add>, %558, %cst_222 [1] : vector<32x32xf32> to vector<32xf32>
    %560 = vector.shape_cast %559 : vector<32xf32> to vector<32x1xf32>
    %cst_223 = arith.constant 3.200000e+01 : f32
    %561 = vector.broadcast %cst_223 : f32 to vector<32x1xf32>
    %562 = arith.divf %560, %561 : vector<32x1xf32>
    %563 = vector.broadcast %555 : vector<32x1xf32> to vector<32x32xf32>
    %564 = arith.subf %551, %563 : vector<32x32xf32>
    %cst_224 = arith.constant 9.99999974E-6 : f32
    %565 = vector.broadcast %cst_224 : f32 to vector<32x1xf32>
    %566 = arith.addf %562, %565 : vector<32x1xf32>
    %567 = math.rsqrt %566 : vector<32x1xf32>
    %568 = vector.broadcast %567 : vector<32x1xf32> to vector<32x32xf32>
    %569 = arith.mulf %564, %568 : vector<32x32xf32>
    %570 = vector.shape_cast %449 : vector<32xf32> to vector<1x32xf32>
    %571 = vector.broadcast %570 : vector<1x32xf32> to vector<32x32xf32>
    %572 = arith.mulf %569, %571 : vector<32x32xf32>
    %573 = vector.shape_cast %451 : vector<32xf32> to vector<1x32xf32>
    %574 = vector.broadcast %573 : vector<1x32xf32> to vector<32x32xf32>
    %575 = arith.addf %572, %574 : vector<32x32xf32>
    %cst_225 = arith.constant dense<0.000000e+00> : vector<32x32xf32>
    %576 = tpu.matmul %575, %459, %cst_225 {dimension_numbers = #tpu.dot_dimension_numbers<[1], [0], [0], [1], [0, 0, 1, 1], [], []>} : vector<32x32xf32>, vector<32x32xf32>, vector<32x32xf32> -> vector<32x32xf32>
    %577 = vector.shape_cast %453 : vector<32xf32> to vector<1x32xf32>
    %578 = vector.broadcast %577 : vector<1x32xf32> to vector<32x32xf32>
    %579 = arith.addf %576, %578 : vector<32x32xf32>
    %cst_226 = arith.constant 0.000000e+00 : f32
    %580 = vector.broadcast %cst_226 : f32 to vector<32x32xf32>
    %581 = arith.maximumf %579, %580 : vector<32x32xf32>
    %cst_227 = arith.constant dense<0.000000e+00> : vector<32x32xf32>
    %582 = tpu.matmul %581, %461, %cst_227 {dimension_numbers = #tpu.dot_dimension_numbers<[1], [0], [0], [1], [0, 0, 1, 1], [], []>} : vector<32x32xf32>, vector<32x32xf32>, vector<32x32xf32> -> vector<32x32xf32>
    %583 = arith.addf %551, %582 : vector<32x32xf32>
    %584 = vector.shape_cast %455 : vector<32xf32> to vector<1x32xf32>
    %585 = vector.broadcast %584 : vector<1x32xf32> to vector<32x32xf32>
    %586 = arith.addf %583, %585 : vector<32x32xf32>
    %c2_228 = arith.constant 2 : index
    %c0_229 = arith.constant 0 : index
    %c0_230 = arith.constant 0 : index
    %587 = vector.load %arg11[%c2_228, %c0_229, %c0_230] : memref<3x32x32xf32, #tpu.memory_space<vmem>>, vector<1x32x32xf32>
    %588 = vector.shape_cast %587 : vector<1x32x32xf32> to vector<32x32xf32>
    %589 = arith.addf %586, %588 : vector<32x32xf32>
    %c2_231 = arith.constant 2 : index
    %c0_232 = arith.constant 0 : index
    %c0_233 = arith.constant 0 : index
    %590 = vector.load %arg12[%c2_231, %c0_232, %c0_233] : memref<3x32x52xf32, #tpu.memory_space<vmem>>, vector<1x32x52xf32>
    %591 = vector.shape_cast %590 : vector<1x32x52xf32> to vector<32x52xf32>
    %cst_234 = arith.constant dense<0.000000e+00> : vector<32x52xf32>
    %592 = tpu.matmul %589, %591, %cst_234 {dimension_numbers = #tpu.dot_dimension_numbers<[1], [0], [0], [1], [0, 0, 1, 1], [], []>} : vector<32x32xf32>, vector<32x52xf32>, vector<32x52xf32> -> vector<32x52xf32>
    %593 = vector.extract_strided_slice %592 {offsets = [0, 0], sizes = [32, 32], strides = [1, 1]} : vector<32x52xf32> to vector<32x32xf32>
    %594 = vector.extract_strided_slice %592 {offsets = [0, 32], sizes = [32, 20], strides = [1, 1]} : vector<32x52xf32> to vector<32x20xf32>
    %595 = vector.extract_strided_slice %30 {offsets = [0, 64], sizes = [48, 32], strides = [1, 1]} : vector<48x96xf32> to vector<48x32xf32>
    %cst_235 = arith.constant 0.000000e+00 : f32
    %596 = vector.broadcast %cst_235 : f32 to vector<48x32xf32>
    %cst_236 = arith.constant 0.000000e+00 : f32
    %597 = vector.broadcast %cst_236 : f32 to vector<48x10xf32>
    %598 = vector.extract_strided_slice %595 {offsets = [0, 0], sizes = [48, 16], strides = [1, 1]} : vector<48x32xf32> to vector<48x16xf32>
    %599 = vector.extract_strided_slice %593 {offsets = [0, 0], sizes = [32, 16], strides = [1, 1]} : vector<32x32xf32> to vector<32x16xf32>
    %cst_237 = arith.constant dense<0.000000e+00> : vector<48x32xf32>
    %600 = tpu.matmul %598, %599, %cst_237 {dimension_numbers = #tpu.dot_dimension_numbers<[1], [1], [0], [0], [0, 0, 1, 0], [], []>} : vector<48x16xf32>, vector<32x16xf32>, vector<48x32xf32> -> vector<48x32xf32>
    %cst_238 = arith.constant 2.500000e-01 : f32
    %601 = vector.broadcast %cst_238 : f32 to vector<48x32xf32>
    %602 = arith.mulf %600, %601 : vector<48x32xf32>
    %603 = arith.addf %602, %2 : vector<48x32xf32>
    %cst_239 = arith.constant dense<0xFF800000> : vector<48xf32>
    %604 = vector.multi_reduction <maximumf>, %603, %cst_239 [1] : vector<48x32xf32> to vector<48xf32>
    %605 = vector.shape_cast %604 : vector<48xf32> to vector<48x1xf32>
    %606 = vector.broadcast %605 : vector<48x1xf32> to vector<48x32xf32>
    %607 = arith.subf %603, %606 : vector<48x32xf32>
    %608 = math.exp %607 : vector<48x32xf32>
    %cst_240 = arith.constant dense<0.000000e+00> : vector<48xf32>
    %609 = vector.multi_reduction <add>, %608, %cst_240 [1] : vector<48x32xf32> to vector<48xf32>
    %610 = vector.shape_cast %609 : vector<48xf32> to vector<48x1xf32>
    %611 = tpu.reciprocal %610 {approx = true} : vector<48x1xf32> -> vector<48x1xf32>
    %612 = vector.broadcast %611 : vector<48x1xf32> to vector<48x32xf32>
    %613 = arith.mulf %608, %612 : vector<48x32xf32>
    %614 = arith.addf %596, %613 : vector<48x32xf32>
    %615 = vector.extract_strided_slice %594 {offsets = [0, 0], sizes = [32, 10], strides = [1, 1]} : vector<32x20xf32> to vector<32x10xf32>
    %cst_241 = arith.constant dense<0.000000e+00> : vector<48x10xf32>
    %616 = tpu.matmul %613, %615, %cst_241 {dimension_numbers = #tpu.dot_dimension_numbers<[1], [0], [0], [1], [0, 0, 1, 1], [], []>} : vector<48x32xf32>, vector<32x10xf32>, vector<48x10xf32> -> vector<48x10xf32>
    %617 = arith.addf %597, %616 : vector<48x10xf32>
    %618 = vector.extract_strided_slice %595 {offsets = [0, 16], sizes = [48, 16], strides = [1, 1]} : vector<48x32xf32> to vector<48x16xf32>
    %619 = vector.extract_strided_slice %593 {offsets = [0, 16], sizes = [32, 16], strides = [1, 1]} : vector<32x32xf32> to vector<32x16xf32>
    %cst_242 = arith.constant dense<0.000000e+00> : vector<48x32xf32>
    %620 = tpu.matmul %618, %619, %cst_242 {dimension_numbers = #tpu.dot_dimension_numbers<[1], [1], [0], [0], [0, 0, 1, 0], [], []>} : vector<48x16xf32>, vector<32x16xf32>, vector<48x32xf32> -> vector<48x32xf32>
    %cst_243 = arith.constant 2.500000e-01 : f32
    %621 = vector.broadcast %cst_243 : f32 to vector<48x32xf32>
    %622 = arith.mulf %620, %621 : vector<48x32xf32>
    %623 = arith.addf %622, %2 : vector<48x32xf32>
    %cst_244 = arith.constant dense<0xFF800000> : vector<48xf32>
    %624 = vector.multi_reduction <maximumf>, %623, %cst_244 [1] : vector<48x32xf32> to vector<48xf32>
    %625 = vector.shape_cast %624 : vector<48xf32> to vector<48x1xf32>
    %626 = vector.broadcast %625 : vector<48x1xf32> to vector<48x32xf32>
    %627 = arith.subf %623, %626 : vector<48x32xf32>
    %628 = math.exp %627 : vector<48x32xf32>
    %cst_245 = arith.constant dense<0.000000e+00> : vector<48xf32>
    %629 = vector.multi_reduction <add>, %628, %cst_245 [1] : vector<48x32xf32> to vector<48xf32>
    %630 = vector.shape_cast %629 : vector<48xf32> to vector<48x1xf32>
    %631 = tpu.reciprocal %630 {approx = true} : vector<48x1xf32> -> vector<48x1xf32>
    %632 = vector.broadcast %631 : vector<48x1xf32> to vector<48x32xf32>
    %633 = arith.mulf %628, %632 : vector<48x32xf32>
    %634 = arith.addf %614, %633 : vector<48x32xf32>
    %635 = vector.extract_strided_slice %594 {offsets = [0, 10], sizes = [32, 10], strides = [1, 1]} : vector<32x20xf32> to vector<32x10xf32>
    %cst_246 = arith.constant dense<0.000000e+00> : vector<48x10xf32>
    %636 = tpu.matmul %633, %635, %cst_246 {dimension_numbers = #tpu.dot_dimension_numbers<[1], [0], [0], [1], [0, 0, 1, 1], [], []>} : vector<48x32xf32>, vector<32x10xf32>, vector<48x10xf32> -> vector<48x10xf32>
    %637 = arith.addf %617, %636 : vector<48x10xf32>
    %cst_247 = arith.constant 5.000000e-01 : f32
    %638 = vector.broadcast %cst_247 : f32 to vector<48x32xf32>
    %639 = arith.mulf %634, %638 : vector<48x32xf32>
    %c2_248 = arith.constant 2 : index
    %c0_249 = arith.constant 0 : index
    %c0_250 = arith.constant 0 : index
    %640 = vector.load %arg15[%c2_248, %c0_249, %c0_250] : memref<3x48x32xf32, #tpu.memory_space<vmem>>, vector<1x48x32xf32>
    %641 = vector.shape_cast %640 : vector<1x48x32xf32> to vector<48x32xf32>
    %642 = vector.shape_cast %639 : vector<48x32xf32> to vector<1x48x32xf32>
    tpu.vector_store %arg15[%c2_248, %c0_249, %c0_250], %642 {strides = array<i32>} : memref<3x48x32xf32, #tpu.memory_space<vmem>>, vector<1x48x32xf32>,
    %643 = arith.addf %439, %637 : vector<48x10xf32>
    %cst_251 = arith.constant dense<0.000000e+00> : vector<2x10xf32>
    %644 = tpu.matmul %5, %643, %cst_251 {dimension_numbers = #tpu.dot_dimension_numbers<[1], [0], [0], [1], [0, 0, 1, 1], [], []>} : vector<2x48xf32>, vector<48x10xf32>, vector<2x10xf32> -> vector<2x10xf32>
    %c0_252 = arith.constant 0 : index
    %c0_253 = arith.constant 0 : index
    %645 = vector.load %arg13[%c0_252, %c0_253] : memref<1x10xf32, #tpu.memory_space<vmem>>, vector<1x10xf32>
    %646 = vector.broadcast %645 : vector<1x10xf32> to vector<2x10xf32>
    %647 = arith.addf %644, %646 : vector<2x10xf32>
    %c0_254 = arith.constant 0 : index
    %c0_255 = arith.constant 0 : index
    %648 = vector.load %arg14[%c0_254, %c0_255] : memref<2x10xf32, #tpu.memory_space<vmem>>, vector<2x10xf32>
    tpu.vector_store %arg14[%c0_254, %c0_255], %647 {strides = array<i32>} : memref<2x10xf32, #tpu.memory_space<vmem>>, vector<2x10xf32>,
    return
  }
}

</mosaic_0001>

<llo_original>
// kernel: tpu_custom_call.1
$region0: #{tpu_custom_call.1}
  #allocation0 [shape = 'u32[]', space=smem, size = 0x4, offset = 0x4, fixed_abs, tag = 'smem constant byte address 0x4 - core index']
  #allocation1 [shape = 'u32[144,128]{1,0:T(1,128)}', space=vmem, size = 0x12000, scoped, tag = 'internal scratch']
  %s0 = inlined_call_operand.vmem [shape: f32[48,32], index: 0, kind: input, shape index: {}]
  %s1 = inlined_call_operand.hbm [shape: f32[3,32,32], index: 1, kind: input, shape index: {}]
  %s2 = inlined_call_operand.vmem [shape: f32[2,48,32], index: 2, kind: input, shape index: {}]
  %s3 = inlined_call_operand.hbm [shape: f32[2,48], index: 3, kind: input, shape index: {}]
  %s4 = inlined_call_operand.vmem [shape: f32[32,192], index: 4, kind: input, shape index: {}]
  %s5 = inlined_call_operand.hbm [shape: f32[1,192], index: 5, kind: input, shape index: {}]
  %s6 = inlined_call_operand.hbm [shape: f32[32,96], index: 6, kind: input, shape index: {}]
  %s7 = inlined_call_operand.hbm [shape: f32[3,6,32], index: 7, kind: input, shape index: {}]
  %s8 = inlined_call_operand.hbm [shape: f32[3,3,32,32], index: 8, kind: input, shape index: {}]
  %s9 = inlined_call_operand.vmem [shape: f32[3,2,32,96], index: 9, kind: input, shape index: {}]
  %s10 = inlined_call_operand.hbm [shape: f32[3,2,96], index: 10, kind: input, shape index: {}]
  %s11 = inlined_call_operand.hbm [shape: f32[3,32,32], index: 11, kind: input, shape index: {}]
  %s12 = inlined_call_operand.hbm [shape: f32[3,32,52], index: 12, kind: input, shape index: {}]
  %s13 = inlined_call_operand.vmem [shape: f32[1,10], index: 13, kind: input, shape index: {}]
  %s14 = inlined_call_operand.hbm [shape: f32[2,10], index: 14, kind: output, shape index: {0}]
  %s15 = inlined_call_operand.vmem [shape: f32[3,48,32], index: 15, kind: output, shape index: {1}]
  %16 = xla_tuple %s14, %s15
  %s17 = sld [smem:[#allocation0]]
  $region110: #{tpu_custom_call.1} parent=0
    _
  %s19 = ssub.s32 1, %s17
  %s20 = scalar_select 0, %s19, %s17
  $region1: #{tpu_custom_call.1} parent=0
    #allocation2 [shape = 'u8[49152]{0}', space=vmem, size = 0xc000, scoped, tag = 'input window, operand 1, single buffered']
    #allocation3 [shape = 's32[1]{0}', space=sflag, size = 0x4, scoped, tag = 'scoped memory for tpu_custom_call.1']
    #allocation4 [shape = 's32[1]{0}', space=sflag, size = 0x4, scoped, tag = 'scoped memory for tpu_custom_call.1']
    #allocation5 [shape = 'u8[1024]{0}', space=vmem, size = 0x400, scoped, tag = 'input window, operand 3, single buffered']
    #allocation6 [shape = 's32[1]{0}', space=sflag, size = 0x4, scoped, tag = 'scoped memory for tpu_custom_call.1']
    #allocation7 [shape = 'u8[1024]{0}', space=vmem, size = 0x400, scoped, tag = 'input window, operand 5, single buffered']
    #allocation8 [shape = 'u8[16384]{0}', space=vmem, size = 0x4000, scoped, tag = 'input window, operand 6, single buffered']
    #allocation9 [shape = 's32[1]{0}', space=sflag, size = 0x4, scoped, tag = 'scoped memory for tpu_custom_call.1']
    #allocation10 [shape = 'u8[12288]{0}', space=vmem, size = 0x3000, scoped, tag = 'input window, operand 7, single buffered']
    #allocation11 [shape = 'u8[147456]{0}', space=vmem, size = 0x24000, scoped, tag = 'input window, operand 8, single buffered']
    #allocation12 [shape = 's32[1]{0}', space=sflag, size = 0x4, scoped, tag = 'scoped memory for tpu_custom_call.1']
    #allocation13 [shape = 'u8[3072]{0}', space=vmem, size = 0xc00, scoped, tag = 'input window, operand 10, single buffered']
    #allocation14 [shape = 'u8[49152]{0}', space=vmem, size = 0xc000, scoped, tag = 'input window, operand 11, single buffered']
    #allocation15 [shape = 's32[1]{0}', space=sflag, size = 0x4, scoped, tag = 'scoped memory for tpu_custom_call.1']
    #allocation16 [shape = 'u8[49152]{0}', space=vmem, size = 0xc000, scoped, tag = 'input window, operand 12, single buffered']
    #allocation17 [shape = 'u8[1024]{0}', space=vmem, size = 0x400, scoped, tag = 'output window, operand 0, single buffered']
    %21 = vsyncpa [#allocation3], 0
    %22 = vsyncpa [#allocation6], 0
    %23 = vsyncpa [#allocation9], 0
    %24 = vsyncpa [#allocation12], 0
    %25 = vsyncpa [#allocation15], 0
    %26 = vsyncpa [#allocation4], 0
    // Predicated region
    $region2: #{tpu_custom_call.1} parent=1 // pred_check
      _
    $region3: #{tpu_custom_call.1} parent=1 // pred_check_branch
      %28 = sbr.rel (0) target = $region5
    $region4: #{tpu_custom_call.1} parent=1 // pred_region
      _
    $region5: #{tpu_custom_call.1} parent=1 // pred_fallthru
      _
    // Predicated region
    $region6: #{tpu_custom_call.1} parent=1 // pred_check
      _
    $region7: #{tpu_custom_call.1} parent=1 // pred_check_branch
      %30 = sbr.rel (0) target = $region9
    $region8: #{tpu_custom_call.1} parent=1 // pred_region
      %s32 = ssub.s32 1536, 1536
      %33 = vsyncadd [#allocation3], %s32
      %s34 = sshll.u32 [#allocation2], 4
      %s35 = int_to_ptr.vmem [resolvable:$true] %s34
      %40 = dma.hbm_to_vmem [thread:$0]  %s1, 1536, %s35, [#allocation3], 128, 128, 8
    $region9: #{tpu_custom_call.1} parent=1 // pred_fallthru
      _
    // Predicated region
    $region10: #{tpu_custom_call.1} parent=1 // pred_check
      _
    $region11: #{tpu_custom_call.1} parent=1 // pred_check_branch
      %42 = sbr.rel (0) target = $region13
    $region12: #{tpu_custom_call.1} parent=1 // pred_region
      _
    $region13: #{tpu_custom_call.1} parent=1 // pred_fallthru
      _
    // Predicated region
    $region14: #{tpu_custom_call.1} parent=1 // pred_check
      _
    $region15: #{tpu_custom_call.1} parent=1 // pred_check_branch
      %44 = sbr.rel (0) target = $region17
    $region16: #{tpu_custom_call.1} parent=1 // pred_region
      %s46 = ssub.s32 32, 32
      %47 = vsyncadd [#allocation6], %s46
      %s49 = sshll.u32 [#allocation5], 4
      %s50 = int_to_ptr.vmem [resolvable:$true] %s49
      %52 = dma.hbm_to_vmem [thread:$0]  %s3, 32, %s50, [#allocation6]
    $region17: #{tpu_custom_call.1} parent=1 // pred_fallthru
      _
    // Predicated region
    $region18: #{tpu_custom_call.1} parent=1 // pred_check
      _
    $region19: #{tpu_custom_call.1} parent=1 // pred_check_branch
      %54 = sbr.rel (0) target = $region21
    $region20: #{tpu_custom_call.1} parent=1 // pred_region
      _
    $region21: #{tpu_custom_call.1} parent=1 // pred_fallthru
      _
    // Predicated region
    $region22: #{tpu_custom_call.1} parent=1 // pred_check
      _
    $region23: #{tpu_custom_call.1} parent=1 // pred_check_branch
      %56 = sbr.rel (0) target = $region25
    $region24: #{tpu_custom_call.1} parent=1 // pred_region
      %s58 = ssub.s32 32, 32
      %59 = vsyncadd [#allocation6], %s58
      %s61 = sshll.u32 [#allocation7], 4
      %s62 = int_to_ptr.vmem [resolvable:$true] %s61
      %64 = dma.hbm_to_vmem [thread:$0]  %s5, 32, %s62, [#allocation6]
    $region25: #{tpu_custom_call.1} parent=1 // pred_fallthru
      _
    // Predicated region
    $region26: #{tpu_custom_call.1} parent=1 // pred_check
      _
    $region27: #{tpu_custom_call.1} parent=1 // pred_check_branch
      %66 = sbr.rel (0) target = $region29
    $region28: #{tpu_custom_call.1} parent=1 // pred_region
      %s68 = ssub.s32 512, 512
      %69 = vsyncadd [#allocation9], %s68
      %s70 = sshll.u32 [#allocation8], 4
      %s71 = int_to_ptr.vmem [resolvable:$true] %s70
      %76 = dma.hbm_to_vmem [thread:$0]  %s6, 512, %s71, [#allocation9], 128, 128, 8
    $region29: #{tpu_custom_call.1} parent=1 // pred_fallthru
      _
    // Predicated region
    $region30: #{tpu_custom_call.1} parent=1 // pred_check
      _
    $region31: #{tpu_custom_call.1} parent=1 // pred_check_branch
      %78 = sbr.rel (0) target = $region33
    $region32: #{tpu_custom_call.1} parent=1 // pred_region
      %s80 = ssub.s32 384, 384
      %81 = vsyncadd [#allocation9], %s80
      %s82 = sshll.u32 [#allocation10], 4
      %s83 = int_to_ptr.vmem [resolvable:$true] %s82
      %88 = dma.hbm_to_vmem [thread:$0]  %s7, 384, %s83, [#allocation9], 128, 128, 8
    $region33: #{tpu_custom_call.1} parent=1 // pred_fallthru
      _
    // Predicated region
    $region34: #{tpu_custom_call.1} parent=1 // pred_check
      _
    $region35: #{tpu_custom_call.1} parent=1 // pred_check_branch
      %90 = sbr.rel (0) target = $region37
    $region36: #{tpu_custom_call.1} parent=1 // pred_region
      %s92 = ssub.s32 4608, 4608
      %93 = vsyncadd [#allocation12], %s92
      %s94 = sshll.u32 [#allocation11], 4
      %s95 = int_to_ptr.vmem [resolvable:$true] %s94
      %100 = dma.hbm_to_vmem [thread:$0]  %s8, 4608, %s95, [#allocation12], 128, 128, 8
    $region37: #{tpu_custom_call.1} parent=1 // pred_fallthru
      _
    // Predicated region
    $region38: #{tpu_custom_call.1} parent=1 // pred_check
      _
    $region39: #{tpu_custom_call.1} parent=1 // pred_check_branch
      %102 = sbr.rel (0) target = $region41
    $region40: #{tpu_custom_call.1} parent=1 // pred_region
      _
    $region41: #{tpu_custom_call.1} parent=1 // pred_fallthru
      _
    // Predicated region
    $region42: #{tpu_custom_call.1} parent=1 // pred_check
      _
    $region43: #{tpu_custom_call.1} parent=1 // pred_check_branch
      %104 = sbr.rel (0) target = $region45
    $region44: #{tpu_custom_call.1} parent=1 // pred_region
      %s106 = ssub.s32 96, 96
      %107 = vsyncadd [#allocation12], %s106
      %s108 = sshll.u32 [#allocation13], 4
      %s109 = int_to_ptr.vmem [resolvable:$true] %s108
      %114 = dma.hbm_to_vmem [thread:$0]  %s10, 96, %s109, [#allocation12], 32, 32, 2
    $region45: #{tpu_custom_call.1} parent=1 // pred_fallthru
      _
    // Predicated region
    $region46: #{tpu_custom_call.1} parent=1 // pred_check
      _
    $region47: #{tpu_custom_call.1} parent=1 // pred_check_branch
      %116 = sbr.rel (0) target = $region49
    $region48: #{tpu_custom_call.1} parent=1 // pred_region
      %s118 = ssub.s32 1536, 1536
      %119 = vsyncadd [#allocation15], %s118
      %s120 = sshll.u32 [#allocation14], 4
      %s121 = int_to_ptr.vmem [resolvable:$true] %s120
      %126 = dma.hbm_to_vmem [thread:$0]  %s11, 1536, %s121, [#allocation15], 128, 128, 8
    $region49: #{tpu_custom_call.1} parent=1 // pred_fallthru
      _
    // Predicated region
    $region50: #{tpu_custom_call.1} parent=1 // pred_check
      _
    $region51: #{tpu_custom_call.1} parent=1 // pred_check_branch
      %128 = sbr.rel (0) target = $region53
    $region52: #{tpu_custom_call.1} parent=1 // pred_region
      %s130 = ssub.s32 1536, 1536
      %131 = vsyncadd [#allocation15], %s130
      %s132 = sshll.u32 [#allocation16], 4
      %s133 = int_to_ptr.vmem [resolvable:$true] %s132
      %138 = dma.hbm_to_vmem [thread:$0]  %s12, 1536, %s133, [#allocation15], 128, 128, 8
    $region53: #{tpu_custom_call.1} parent=1 // pred_fallthru
      _
    // Predicated region
    $region54: #{tpu_custom_call.1} parent=1 // pred_check
      _
    $region55: #{tpu_custom_call.1} parent=1 // pred_check_branch
      %140 = sbr.rel (0) target = $region57
    $region56: #{tpu_custom_call.1} parent=1 // pred_region
      _
    $region57: #{tpu_custom_call.1} parent=1 // pred_fallthru
      _
    // Predicated region
    $region58: #{tpu_custom_call.1} parent=1 // pred_check
      _
    $region59: #{tpu_custom_call.1} parent=1 // pred_check_branch
      %142 = sbr.rel (0) target = $region61
    $region60: #{tpu_custom_call.1} parent=1 // pred_region
      %143 = dma.done [#allocation3], 1536
    $region61: #{tpu_custom_call.1} parent=1 // pred_fallthru
      _
    // Predicated region
    $region62: #{tpu_custom_call.1} parent=1 // pred_check
      _
    $region63: #{tpu_custom_call.1} parent=1 // pred_check_branch
      %145 = sbr.rel (0) target = $region65
    $region64: #{tpu_custom_call.1} parent=1 // pred_region
      %146 = dma.done [#allocation6], 32
    $region65: #{tpu_custom_call.1} parent=1 // pred_fallthru
      _
    // Predicated region
    $region66: #{tpu_custom_call.1} parent=1 // pred_check
      _
    $region67: #{tpu_custom_call.1} parent=1 // pred_check_branch
      %148 = sbr.rel (0) target = $region69
    $region68: #{tpu_custom_call.1} parent=1 // pred_region
      %149 = dma.done [#allocation6], 32
    $region69: #{tpu_custom_call.1} parent=1 // pred_fallthru
      _
    // Predicated region
    $region70: #{tpu_custom_call.1} parent=1 // pred_check
      _
    $region71: #{tpu_custom_call.1} parent=1 // pred_check_branch
      %151 = sbr.rel (0) target = $region73
    $region72: #{tpu_custom_call.1} parent=1 // pred_region
      %152 = dma.done [#allocation9], 512
    $region73: #{tpu_custom_call.1} parent=1 // pred_fallthru
      _
    // Predicated region
    $region74: #{tpu_custom_call.1} parent=1 // pred_check
      _
    $region75: #{tpu_custom_call.1} parent=1 // pred_check_branch
      %154 = sbr.rel (0) target = $region77
    $region76: #{tpu_custom_call.1} parent=1 // pred_region
      %155 = dma.done [#allocation9], 384
    $region77: #{tpu_custom_call.1} parent=1 // pred_fallthru
      _
    // Predicated region
    $region78: #{tpu_custom_call.1} parent=1 // pred_check
      _
    $region79: #{tpu_custom_call.1} parent=1 // pred_check_branch
      %157 = sbr.rel (0) target = $region81
    $region80: #{tpu_custom_call.1} parent=1 // pred_region
      %158 = dma.done [#allocation12], 4608
    $region81: #{tpu_custom_call.1} parent=1 // pred_fallthru
      _
    // Predicated region
    $region82: #{tpu_custom_call.1} parent=1 // pred_check
      _
    $region83: #{tpu_custom_call.1} parent=1 // pred_check_branch
      %160 = sbr.rel (0) target = $region85
    $region84: #{tpu_custom_call.1} parent=1 // pred_region
      %161 = dma.done [#allocation12], 96
    $region85: #{tpu_custom_call.1} parent=1 // pred_fallthru
      _
    // Predicated region
    $region86: #{tpu_custom_call.1} parent=1 // pred_check
      _
    $region87: #{tpu_custom_call.1} parent=1 // pred_check_branch
      %163 = sbr.rel (0) target = $region89
    $region88: #{tpu_custom_call.1} parent=1 // pred_region
      %164 = dma.done [#allocation15], 1536
    $region89: #{tpu_custom_call.1} parent=1 // pred_fallthru
      _
    // Predicated region
    $region90: #{tpu_custom_call.1} parent=1 // pred_check
      _
    $region91: #{tpu_custom_call.1} parent=1 // pred_check_branch
      %166 = sbr.rel (0) target = $region93
    $region92: #{tpu_custom_call.1} parent=1 // pred_region
      %167 = dma.done [#allocation15], 1536
    $region93: #{tpu_custom_call.1} parent=1 // pred_fallthru
      _
    %v168 = vld [vmem:[%s0] sm:$0xff]
    %v169 = vld [vmem:[%s0 + $0x8] sm:$0xff]
    %v170 = vld [vmem:[%s0 + $0x10] sm:$0xff]
    %v171 = vld [vmem:[%s0 + $0x18] sm:$0xff]
    %v172 = vld [vmem:[%s0 + $0x20] sm:$0xff]
    %v173 = vld [vmem:[%s0 + $0x28] sm:$0xff]
    %v174 = vld [vmem:[%s2] sm:$0xff]
    %v175 = vld [vmem:[%s2 + $0x8] sm:$0xff]
    %v176 = vld [vmem:[%s2 + $0x10] sm:$0xff]
    %v177 = vld [vmem:[%s2 + $0x18] sm:$0xff]
    %v178 = vld [vmem:[%s2 + $0x20] sm:$0xff]
    %v179 = vld [vmem:[%s2 + $0x28] sm:$0xff]
    %s180 = scalar_lea.vmem %s2, 48
    %v181 = vld [vmem:[%s180] sm:$0xff]
    %v182 = vld [vmem:[%s180 + $0x8] sm:$0xff]
    %v183 = vld [vmem:[%s180 + $0x10] sm:$0xff]
    %v184 = vld [vmem:[%s180 + $0x18] sm:$0xff]
    %v185 = vld [vmem:[%s180 + $0x20] sm:$0xff]
    %v186 = vld [vmem:[%s180 + $0x28] sm:$0xff]
    %v187 = vld [vmem:[#allocation5] sm:$0x3]
    %vm188 = vcmask 261120
    %v189 = vsel %vm188, %v168, 0.0
    %190 = vadd.xlane.f32.xlu0 %v189
    %v191 = vpop.xlane.xlu0 %190
    %v192 = vsel %vm188, %v169, 0.0
    %193 = vadd.xlane.f32.xlu0 %v192
    %v194 = vpop.xlane.xlu0 %193
    %v195 = vsel %vm188, %v170, 0.0
    %196 = vadd.xlane.f32.xlu0 %v195
    %v197 = vpop.xlane.xlu0 %196
    %v198 = vsel %vm188, %v171, 0.0
    %199 = vadd.xlane.f32.xlu0 %v198
    %v200 = vpop.xlane.xlu0 %199
    %v201 = vsel %vm188, %v172, 0.0
    %202 = vadd.xlane.f32.xlu0 %v201
    %v203 = vpop.xlane.xlu0 %202
    %v204 = vsel %vm188, %v173, 0.0
    %205 = vadd.xlane.f32.xlu0 %v204
    %v206 = vpop.xlane.xlu0 %205
    %v207 = vrcp.pop 32.0
    %v208 = vmul.f32 %v191, %v207
    %v209 = vmul.f32 %v194, %v207
    %v210 = vmul.f32 %v197, %v207
    %v211 = vmul.f32 %v200, %v207
    %v212 = vmul.f32 %v203, %v207
    %v213 = vmul.f32 %v206, %v207
    %v214 = vsub.f32 %v168, %v208
    %v215 = vsub.f32 %v169, %v209
    %v216 = vsub.f32 %v170, %v210
    %v217 = vsub.f32 %v171, %v211
    %v218 = vsub.f32 %v172, %v212
    %v219 = vsub.f32 %v173, %v213
    %v220 = vmul.f32 %v214, %v214
    %v221 = vmul.f32 %v215, %v215
    %v222 = vmul.f32 %v216, %v216
    %v223 = vmul.f32 %v217, %v217
    %v224 = vmul.f32 %v218, %v218
    %v225 = vmul.f32 %v219, %v219
    %v226 = vsel %vm188, %v220, 0.0
    %227 = vadd.xlane.f32.xlu0 %v226
    %v228 = vpop.xlane.xlu0 %227
    %v229 = vsel %vm188, %v221, 0.0
    %230 = vadd.xlane.f32.xlu0 %v229
    %v231 = vpop.xlane.xlu0 %230
    %v232 = vsel %vm188, %v222, 0.0
    %233 = vadd.xlane.f32.xlu0 %v232
    %v234 = vpop.xlane.xlu0 %233
    %v235 = vsel %vm188, %v223, 0.0
    %236 = vadd.xlane.f32.xlu0 %v235
    %v237 = vpop.xlane.xlu0 %236
    %v238 = vsel %vm188, %v224, 0.0
    %239 = vadd.xlane.f32.xlu0 %v238
    %v240 = vpop.xlane.xlu0 %239
    %v241 = vsel %vm188, %v225, 0.0
    %242 = vadd.xlane.f32.xlu0 %v241
    %v243 = vpop.xlane.xlu0 %242
    %v244 = vmul.f32 %v228, %v207
    %v245 = vmul.f32 %v231, %v207
    %v246 = vmul.f32 %v234, %v207
    %v247 = vmul.f32 %v237, %v207
    %v248 = vmul.f32 %v240, %v207
    %v249 = vmul.f32 %v243, %v207
    %v250 = vadd.f32 %v244, 1e-05
    %v251 = vadd.f32 %v245, 1e-05
    %v252 = vadd.f32 %v246, 1e-05
    %v253 = vadd.f32 %v247, 1e-05
    %v254 = vadd.f32 %v248, 1e-05
    %v255 = vadd.f32 %v249, 1e-05
    %v256 = vrsqrt.pop %v250
    %v257 = vrsqrt.pop %v251
    %v258 = vrsqrt.pop %v252
    %v259 = vrsqrt.pop %v253
    %v260 = vrsqrt.pop %v254
    %v261 = vrsqrt.pop %v255
    %v262 = vmul.f32 %v214, %v256
    %v263 = vmul.f32 %v215, %v257
    %v264 = vmul.f32 %v216, %v258
    %v265 = vmul.f32 %v217, %v259
    %v266 = vmul.f32 %v218, %v260
    %v267 = vmul.f32 %v219, %v261
    %v268 = vld [vmem:[%s4] sm:$0xff]
    %v269 = vld [vmem:[%s4 + $0x8] sm:$0xff]
    %v270 = vld [vmem:[%s4 + $0x10] sm:$0xff]
    %v271 = vld [vmem:[%s4 + $0x18] sm:$0xff]
    %v272 = vld [vmem:[%s4 + $0x20] sm:$0xff]
    %v273 = vld [vmem:[%s4 + $0x28] sm:$0xff]
    %v274 = vld [vmem:[%s4 + $0x30] sm:$0xff]
    %v275 = vld [vmem:[%s4 + $0x38] sm:$0xff]
    %v276 = vld [vmem:[#allocation7] sm:$0x3]
    %v278 = vlaneseq
    %v279 = vshrl.u32 %v278, 7
    %v280 = vsub.s32 0, %v279
    %v281 = vrot.slane %v276, %v280
    %v282 = vlaneseq
    %v283 = vshrl.u32 %v282, 7
    %v284 = vsub.s32 1, %v283
    %v285 = vrot.slane %v276, %v284
    %v289 = vsel %vm188, %v262, 0
    %v292 = vsel %vm188, %v263, 0
    %v295 = vsel %vm188, %v264, 0
    %v298 = vsel %vm188, %v265, 0
    %v301 = vsel %vm188, %v266, 0
    %v304 = vsel %vm188, %v267, 0
    %306 = vmatprep.subr.mxu0 0.0
    %307 = vmatpush1.msra.mxu0 0.0
    %308 = vmatprep.subr.mxu0 0.0
    %309 = vmatpush1.msra.mxu0 0.0
    %310 = vmatprep.subr.mxu0 0.0
    %311 = vmatpush1.msra.mxu0 0.0
    %312 = vmatprep.subr.mxu0 0.0
    %313 = vmatpush1.msra.mxu0 0.0
    %314 = vmatprep.subr.mxu0 0.0
    %315 = vmatpush1.msra.mxu0 0.0
    %316 = vmatprep.subr.mxu0 0.0
    %317 = vmatpush1.msra.mxu0 0.0
    %318 = vmatprep.subr.mxu0 0.0
    %319 = vmatpush1.msra.mxu0 0.0
    %320 = vmatprep.subr.mxu0 0.0
    %321 = vmatpush1.msra.mxu0 0.0
    %322 = vmatprep.subr.mxu0 0.0
    %323 = vmatpush1.msra.mxu0 0.0
    %324 = vmatprep.subr.mxu0 0.0
    %325 = vmatpush1.msra.mxu0 0.0
    %326 = vmatprep.subr.mxu0 0.0
    %327 = vmatpush1.msra.mxu0 0.0
    %328 = vmatprep.subr.mxu0 0.0
    %329 = vmatpush1.msra.mxu0 0.0
    %330 = vmatprep.subr.mxu0 %v275
    %331 = vmatpush1.msra.mxu0 %v274
    %332 = vmatprep.subr.mxu0 %v273
    %333 = vmatpush1.msra.mxu0 %v272
    %334 = vmatprep.subr.mxu0 %v271
    %335 = vmatpush1.msra.mxu0 %v270
    %336 = vmatprep.subr.mxu0 %v269
    %337 = vmatpush1.msra.mxu0 %v268
    %338 = vmatprep.subr.mxu0 0.0
    %339 = vmatpush2.msra.mxu0 0.0
    %340 = vmatprep.subr.mxu0 0.0
    %341 = vmatpush2.msra.mxu0 0.0
    %342 = vmatprep.subr.mxu0 0.0
    %343 = vmatpush2.msra.mxu0 0.0
    %344 = vmatprep.subr.mxu0 0.0
    %345 = vmatpush2.msra.mxu0 0.0
    %346 = vmatprep.subr.mxu0 0.0
    %347 = vmatpush2.msra.mxu0 0.0
    %348 = vmatprep.subr.mxu0 0.0
    %349 = vmatpush2.msra.mxu0 0.0
    %350 = vmatprep.subr.mxu0 0.0
    %351 = vmatpush2.msra.mxu0 0.0
    %352 = vmatprep.subr.mxu0 0.0
    %353 = vmatpush2.msra.mxu0 0.0
    %354 = vmatprep.subr.mxu0 0.0
    %355 = vmatpush2.msra.mxu0 0.0
    %356 = vmatprep.subr.mxu0 0.0
    %357 = vmatpush2.msra.mxu0 0.0
    %358 = vmatprep.subr.mxu0 0.0
    %359 = vmatpush2.msra.mxu0 0.0
    %360 = vmatprep.subr.mxu0 0.0
    %361 = vmatpush2.msra.mxu0 0.0
    %362 = vmatprep.subr.mxu0 0.0
    %363 = vmatpush2.msra.mxu0 0.0
    %364 = vmatprep.subr.mxu0 0.0
    %365 = vmatpush2.msra.mxu0 0.0
    %366 = vmatprep.subr.mxu0 0.0
    %367 = vmatpush2.msra.mxu0 0.0
    %368 = vmatprep.subr.mxu0 0.0
    %369 = vmatpush2.msra.mxu0 0.0
    %370 = vmatprep.mubr.f32.mxu0 0.0
    %371 = vmatmul.mubr.f32.gmra.mxu0 %v289
    %v372 = vpop.f32.mrf.mxu0
    %v373 = vadd.f32 %v281, %v372
    %v374 = vpop.f32.mrf.mxu0
    %v375 = vadd.f32 %v285, %v374
    %376 = vmatprep.mubr.f32.mxu0 0.0
    %377 = vmatmul.mubr.f32.gmra.mxu0 %v292
    %v378 = vpop.f32.mrf.mxu0
    %v379 = vadd.f32 %v281, %v378
    %v380 = vpop.f32.mrf.mxu0
    %v381 = vadd.f32 %v285, %v380
    %382 = vmatprep.mubr.f32.mxu0 0.0
    %383 = vmatmul.mubr.f32.gmra.mxu0 %v295
    %v384 = vpop.f32.mrf.mxu0
    %v385 = vadd.f32 %v281, %v384
    %v386 = vpop.f32.mrf.mxu0
    %v387 = vadd.f32 %v285, %v386
    %388 = vmatprep.mubr.f32.mxu0 0.0
    %389 = vmatmul.mubr.f32.gmra.mxu0 %v298
    %v390 = vpop.f32.mrf.mxu0
    %v391 = vadd.f32 %v281, %v390
    %v392 = vpop.f32.mrf.mxu0
    %v393 = vadd.f32 %v285, %v392
    %394 = vmatprep.mubr.f32.mxu0 0.0
    %395 = vmatmul.mubr.f32.gmra.mxu0 %v301
    %v396 = vpop.f32.mrf.mxu0
    %v397 = vadd.f32 %v281, %v396
    %v398 = vpop.f32.mrf.mxu0
    %v399 = vadd.f32 %v285, %v398
    %400 = vmatprep.mubr.f32.mxu0 0.0
    %401 = vmatmul.mubr.f32.gmra.mxu0 %v304
    %v402 = vpop.f32.mrf.mxu0
    %v403 = vadd.f32 %v281, %v402
    %v404 = vpop.f32.mrf.mxu0
    %v405 = vadd.f32 %v285, %v404
    %406 = vdwg.mxu0
    %v407 = vld [vmem:[#allocation8] sm:$0xff]
    %v408 = vld [vmem:[#allocation8 + $0x8] sm:$0xff]
    %v409 = vld [vmem:[#allocation8 + $0x10] sm:$0xff]
    %v410 = vld [vmem:[#allocation8 + $0x18] sm:$0xff]
    %v412 = vsel %vm188, %v168, 0
    %v415 = vsel %vm188, %v169, 0
    %v418 = vsel %vm188, %v170, 0
    %v421 = vsel %vm188, %v171, 0
    %v424 = vsel %vm188, %v172, 0
    %v427 = vsel %vm188, %v173, 0
    %429 = vmatprep.subr.mxu0 0.0
    %430 = vmatpush1.msra.mxu0 0.0
    %431 = vmatprep.subr.mxu0 0.0
    %432 = vmatpush1.msra.mxu0 0.0
    %433 = vmatprep.subr.mxu0 0.0
    %434 = vmatpush1.msra.mxu0 0.0
    %435 = vmatprep.subr.mxu0 0.0
    %436 = vmatpush1.msra.mxu0 0.0
    %437 = vmatprep.subr.mxu0 0.0
    %438 = vmatpush1.msra.mxu0 0.0
    %439 = vmatprep.subr.mxu0 0.0
    %440 = vmatpush1.msra.mxu0 0.0
    %441 = vmatprep.subr.mxu0 0.0
    %442 = vmatpush1.msra.mxu0 0.0
    %443 = vmatprep.subr.mxu0 0.0
    %444 = vmatpush1.msra.mxu0 0.0
    %445 = vmatprep.subr.mxu0 0.0
    %446 = vmatpush1.msra.mxu0 0.0
    %447 = vmatprep.subr.mxu0 0.0
    %448 = vmatpush1.msra.mxu0 0.0
    %449 = vmatprep.subr.mxu0 0.0
    %450 = vmatpush1.msra.mxu0 0.0
    %451 = vmatprep.subr.mxu0 0.0
    %452 = vmatpush1.msra.mxu0 0.0
    %453 = vmatprep.subr.mxu0 0.0
    %454 = vmatpush1.msra.mxu0 %v410
    %455 = vmatprep.subr.mxu0 0.0
    %456 = vmatpush1.msra.mxu0 %v409
    %457 = vmatprep.subr.mxu0 0.0
    %458 = vmatpush1.msra.mxu0 %v408
    %459 = vmatprep.subr.mxu0 0.0
    %460 = vmatpush1.msra.mxu0 %v407
    %461 = vmatprep.subr.mxu0 0.0
    %462 = vmatpush2.msra.mxu0 0.0
    %463 = vmatprep.subr.mxu0 0.0
    %464 = vmatpush2.msra.mxu0 0.0
    %465 = vmatprep.subr.mxu0 0.0
    %466 = vmatpush2.msra.mxu0 0.0
    %467 = vmatprep.subr.mxu0 0.0
    %468 = vmatpush2.msra.mxu0 0.0
    %469 = vmatprep.subr.mxu0 0.0
    %470 = vmatpush2.msra.mxu0 0.0
    %471 = vmatprep.subr.mxu0 0.0
    %472 = vmatpush2.msra.mxu0 0.0
    %473 = vmatprep.subr.mxu0 0.0
    %474 = vmatpush2.msra.mxu0 0.0
    %475 = vmatprep.subr.mxu0 0.0
    %476 = vmatpush2.msra.mxu0 0.0
    %477 = vmatprep.subr.mxu0 0.0
    %478 = vmatpush2.msra.mxu0 0.0
    %479 = vmatprep.subr.mxu0 0.0
    %480 = vmatpush2.msra.mxu0 0.0
    %481 = vmatprep.subr.mxu0 0.0
    %482 = vmatpush2.msra.mxu0 0.0
    %483 = vmatprep.subr.mxu0 0.0
    %484 = vmatpush2.msra.mxu0 0.0
    %485 = vmatprep.subr.mxu0 0.0
    %486 = vmatpush2.msra.mxu0 0.0
    %487 = vmatprep.subr.mxu0 0.0
    %488 = vmatpush2.msra.mxu0 0.0
    %489 = vmatprep.subr.mxu0 0.0
    %490 = vmatpush2.msra.mxu0 0.0
    %491 = vmatprep.subr.mxu0 0.0
    %492 = vmatpush2.msra.mxu0 0.0
    %493 = vmatprep.mubr.f32.mxu0 0.0
    %494 = vmatmul.mubr.f32.gmra.mxu0 %v412
    %v495 = vpop.f32.mrf.mxu0
    %v496 = vadd.f32 0.0, %v495
    %v497 = vpop.f32.mrf.mxu0
    %498 = vmatprep.mubr.f32.mxu0 0.0
    %499 = vmatmul.mubr.f32.gmra.mxu0 %v415
    %v500 = vpop.f32.mrf.mxu0
    %v501 = vadd.f32 0.0, %v500
    %v502 = vpop.f32.mrf.mxu0
    %503 = vmatprep.mubr.f32.mxu0 0.0
    %504 = vmatmul.mubr.f32.gmra.mxu0 %v418
    %v505 = vpop.f32.mrf.mxu0
    %v506 = vadd.f32 0.0, %v505
    %v507 = vpop.f32.mrf.mxu0
    %508 = vmatprep.mubr.f32.mxu0 0.0
    %509 = vmatmul.mubr.f32.gmra.mxu0 %v421
    %v510 = vpop.f32.mrf.mxu0
    %v511 = vadd.f32 0.0, %v510
    %v512 = vpop.f32.mrf.mxu0
    %513 = vmatprep.mubr.f32.mxu0 0.0
    %514 = vmatmul.mubr.f32.gmra.mxu0 %v424
    %v515 = vpop.f32.mrf.mxu0
    %v516 = vadd.f32 0.0, %v515
    %v517 = vpop.f32.mrf.mxu0
    %518 = vmatprep.mubr.f32.mxu0 0.0
    %519 = vmatmul.mubr.f32.gmra.mxu0 %v427
    %v520 = vpop.f32.mrf.mxu0
    %v521 = vadd.f32 0.0, %v520
    %v522 = vpop.f32.mrf.mxu0
    %523 = vdwg.mxu0
    %v524 = vld [vmem:[#allocation10] sm:$0x3f]
    %v525 = vld [vmem:[#allocation11] sm:$0xff]
    %v526 = vld [vmem:[#allocation11 + $0x8] sm:$0xff]
    %v527 = vld [vmem:[#allocation11 + $0x10] sm:$0xff]
    %v528 = vld [vmem:[#allocation11 + $0x18] sm:$0xff]
    %s529 = scalar_lea.vmem [#allocation11], 32
    %v530 = vld [vmem:[%s529] sm:$0xff]
    %v531 = vld [vmem:[%s529 + $0x8] sm:$0xff]
    %v532 = vld [vmem:[%s529 + $0x10] sm:$0xff]
    %v533 = vld [vmem:[%s529 + $0x18] sm:$0xff]
    %s534 = scalar_lea.vmem [#allocation11], 64
    %v535 = vld [vmem:[%s534] sm:$0xff]
    %v536 = vld [vmem:[%s534 + $0x8] sm:$0xff]
    %v537 = vld [vmem:[%s534 + $0x10] sm:$0xff]
    %v538 = vld [vmem:[%s534 + $0x18] sm:$0xff]
    %v539 = vld [vmem:[%s9] sm:$0xff]
    %v540 = vld [vmem:[%s9 + $0x8] sm:$0xff]
    %v541 = vld [vmem:[%s9 + $0x10] sm:$0xff]
    %v542 = vld [vmem:[%s9 + $0x18] sm:$0xff]
    %s543 = scalar_lea.vmem %s9, 32
    %v544 = vld [vmem:[%s543] sm:$0xff]
    %v545 = vld [vmem:[%s543 + $0x8] sm:$0xff]
    %v546 = vld [vmem:[%s543 + $0x10] sm:$0xff]
    %v547 = vld [vmem:[%s543 + $0x18] sm:$0xff]
    %v548 = vld [vmem:[#allocation13] sm:$0x3]
    %v549 = vld [vmem:[#allocation2] sm:$0xff]
    %v550 = vld [vmem:[#allocation2 + $0x8] sm:$0xff]
    %v551 = vld [vmem:[#allocation2 + $0x10] sm:$0xff]
    %v552 = vld [vmem:[#allocation2 + $0x18] sm:$0xff]
    %v553 = vsel %vm188, %v549, 0.0
    %554 = vadd.xlane.f32.xlu0 %v553
    %v555 = vpop.xlane.xlu0 %554
    %v556 = vsel %vm188, %v550, 0.0
    %557 = vadd.xlane.f32.xlu0 %v556
    %v558 = vpop.xlane.xlu0 %557
    %v559 = vsel %vm188, %v551, 0.0
    %560 = vadd.xlane.f32.xlu0 %v559
    %v561 = vpop.xlane.xlu0 %560
    %v562 = vsel %vm188, %v552, 0.0
    %563 = vadd.xlane.f32.xlu0 %v562
    %v564 = vpop.xlane.xlu0 %563
    %v565 = vmul.f32 %v555, %v207
    %v566 = vmul.f32 %v558, %v207
    %v567 = vmul.f32 %v561, %v207
    %v568 = vmul.f32 %v564, %v207
    %v569 = vsub.f32 %v549, %v565
    %v570 = vsub.f32 %v550, %v566
    %v571 = vsub.f32 %v551, %v567
    %v572 = vsub.f32 %v552, %v568
    %v573 = vmul.f32 %v569, %v569
    %v574 = vmul.f32 %v570, %v570
    %v575 = vmul.f32 %v571, %v571
    %v576 = vmul.f32 %v572, %v572
    %v577 = vsel %vm188, %v573, 0.0
    %578 = vadd.xlane.f32.xlu0 %v577
    %v579 = vpop.xlane.xlu0 %578
    %v580 = vsel %vm188, %v574, 0.0
    %581 = vadd.xlane.f32.xlu0 %v580
    %v582 = vpop.xlane.xlu0 %581
    %v583 = vsel %vm188, %v575, 0.0
    %584 = vadd.xlane.f32.xlu0 %v583
    %v585 = vpop.xlane.xlu0 %584
    %v586 = vsel %vm188, %v576, 0.0
    %587 = vadd.xlane.f32.xlu0 %v586
    %v588 = vpop.xlane.xlu0 %587
    %v589 = vmul.f32 %v579, %v207
    %v590 = vmul.f32 %v582, %v207
    %v591 = vmul.f32 %v585, %v207
    %v592 = vmul.f32 %v588, %v207
    %v593 = vadd.f32 %v589, 1e-05
    %v594 = vadd.f32 %v590, 1e-05
    %v595 = vadd.f32 %v591, 1e-05
    %v596 = vadd.f32 %v592, 1e-05
    %v597 = vrsqrt.pop %v593
    %v598 = vrsqrt.pop %v594
    %v599 = vrsqrt.pop %v595
    %v600 = vrsqrt.pop %v596
    %v601 = vmul.f32 %v569, %v597
    %v602 = vmul.f32 %v570, %v598
    %v603 = vmul.f32 %v571, %v599
    %v604 = vmul.f32 %v572, %v600
    %v605 = vlaneseq
    %v606 = vshrl.u32 %v605, 7
    %v607 = vsub.s32 0, %v606
    %v608 = vrot.slane %v524, %v607
    %v609 = vmul.f32 %v601, %v608
    %v610 = vmul.f32 %v602, %v608
    %v611 = vmul.f32 %v603, %v608
    %v612 = vmul.f32 %v604, %v608
    %v613 = vlaneseq
    %v614 = vshrl.u32 %v613, 7
    %v615 = vsub.s32 1, %v614
    %v616 = vrot.slane %v524, %v615
    %v617 = vadd.f32 %v609, %v616
    %v618 = vadd.f32 %v610, %v616
    %v619 = vadd.f32 %v611, %v616
    %v620 = vadd.f32 %v612, %v616
    %v622 = vsel %vm188, %v617, 0
    %v625 = vsel %vm188, %v618, 0
    %v628 = vsel %vm188, %v619, 0
    %v631 = vsel %vm188, %v620, 0
    %633 = vmatprep.subr.mxu0 0.0
    %634 = vmatpush1.msra.mxu0 0.0
    %635 = vmatprep.subr.mxu0 0.0
    %636 = vmatpush1.msra.mxu0 0.0
    %637 = vmatprep.subr.mxu0 0.0
    %638 = vmatpush1.msra.mxu0 0.0
    %639 = vmatprep.subr.mxu0 0.0
    %640 = vmatpush1.msra.mxu0 0.0
    %641 = vmatprep.subr.mxu0 0.0
    %642 = vmatpush1.msra.mxu0 0.0
    %643 = vmatprep.subr.mxu0 0.0
    %644 = vmatpush1.msra.mxu0 0.0
    %645 = vmatprep.subr.mxu0 0.0
    %646 = vmatpush1.msra.mxu0 0.0
    %647 = vmatprep.subr.mxu0 0.0
    %648 = vmatpush1.msra.mxu0 0.0
    %649 = vmatprep.subr.mxu0 0.0
    %650 = vmatpush1.msra.mxu0 0.0
    %651 = vmatprep.subr.mxu0 0.0
    %652 = vmatpush1.msra.mxu0 0.0
    %653 = vmatprep.subr.mxu0 0.0
    %654 = vmatpush1.msra.mxu0 0.0
    %655 = vmatprep.subr.mxu0 0.0
    %656 = vmatpush1.msra.mxu0 0.0
    %657 = vmatprep.subr.mxu0 0.0
    %658 = vmatpush1.msra.mxu0 %v528
    %659 = vmatprep.subr.mxu0 0.0
    %660 = vmatpush1.msra.mxu0 %v527
    %661 = vmatprep.subr.mxu0 0.0
    %662 = vmatpush1.msra.mxu0 %v526
    %663 = vmatprep.subr.mxu0 0.0
    %664 = vmatpush1.msra.mxu0 %v525
    %665 = vmatprep.subr.mxu0 0.0
    %666 = vmatpush2.msra.mxu0 0.0
    %667 = vmatprep.subr.mxu0 0.0
    %668 = vmatpush2.msra.mxu0 0.0
    %669 = vmatprep.subr.mxu0 0.0
    %670 = vmatpush2.msra.mxu0 0.0
    %671 = vmatprep.subr.mxu0 0.0
    %672 = vmatpush2.msra.mxu0 0.0
    %673 = vmatprep.subr.mxu0 0.0
    %674 = vmatpush2.msra.mxu0 0.0
    %675 = vmatprep.subr.mxu0 0.0
    %676 = vmatpush2.msra.mxu0 0.0
    %677 = vmatprep.subr.mxu0 0.0
    %678 = vmatpush2.msra.mxu0 0.0
    %679 = vmatprep.subr.mxu0 0.0
    %680 = vmatpush2.msra.mxu0 0.0
    %681 = vmatprep.subr.mxu0 0.0
    %682 = vmatpush2.msra.mxu0 0.0
    %683 = vmatprep.subr.mxu0 0.0
    %684 = vmatpush2.msra.mxu0 0.0
    %685 = vmatprep.subr.mxu0 0.0
    %686 = vmatpush2.msra.mxu0 0.0
    %687 = vmatprep.subr.mxu0 0.0
    %688 = vmatpush2.msra.mxu0 0.0
    %689 = vmatprep.subr.mxu0 0.0
    %690 = vmatpush2.msra.mxu0 0.0
    %691 = vmatprep.subr.mxu0 0.0
    %692 = vmatpush2.msra.mxu0 0.0
    %693 = vmatprep.subr.mxu0 0.0
    %694 = vmatpush2.msra.mxu0 0.0
    %695 = vmatprep.subr.mxu0 0.0
    %696 = vmatpush2.msra.mxu0 0.0
    %697 = vmatprep.mubr.f32.mxu0 0.0
    %698 = vmatmul.mubr.f32.gmra.mxu0 %v622
    %v699 = vpop.f32.mrf.mxu0
    %v700 = vadd.f32 0.0, %v699
    %v701 = vpop.f32.mrf.mxu0
    %702 = vmatprep.mubr.f32.mxu0 0.0
    %703 = vmatmul.mubr.f32.gmra.mxu0 %v625
    %v704 = vpop.f32.mrf.mxu0
    %v705 = vadd.f32 0.0, %v704
    %v706 = vpop.f32.mrf.mxu0
    %707 = vmatprep.mubr.f32.mxu0 0.0
    %708 = vmatmul.mubr.f32.gmra.mxu0 %v628
    %v709 = vpop.f32.mrf.mxu0
    %v710 = vadd.f32 0.0, %v709
    %v711 = vpop.f32.mrf.mxu0
    %712 = vmatprep.mubr.f32.mxu0 0.0
    %713 = vmatmul.mubr.f32.gmra.mxu0 %v631
    %v714 = vpop.f32.mrf.mxu0
    %v715 = vadd.f32 0.0, %v714
    %v716 = vpop.f32.mrf.mxu0
    %717 = vdwg.mxu0
    %v719 = vsel %vm188, %v373, 0
    %v722 = vsel %vm188, %v379, 0
    %v725 = vsel %vm188, %v385, 0
    %v728 = vsel %vm188, %v391, 0
    %v731 = vsel %vm188, %v397, 0
    %v734 = vsel %vm188, %v403, 0
    %v737 = vsel %vm188, %v700, 0
    %v740 = vsel %vm188, %v705, 0
    %v743 = vsel %vm188, %v710, 0
    %v746 = vsel %vm188, %v715, 0
    %748 = vmatprep.subr.mxu0 0.0
    %749 = vmatpush1.xpose.msra.mxu0 0.0
    %750 = vmatprep.subr.mxu0 0.0
    %751 = vmatpush1.xpose.msra.mxu0 0.0
    %752 = vmatprep.subr.mxu0 0.0
    %753 = vmatpush1.xpose.msra.mxu0 0.0
    %754 = vmatprep.subr.mxu0 0.0
    %755 = vmatpush1.xpose.msra.mxu0 0.0
    %756 = vmatprep.subr.mxu0 0.0
    %757 = vmatpush1.xpose.msra.mxu0 0.0
    %758 = vmatprep.subr.mxu0 0.0
    %759 = vmatpush1.xpose.msra.mxu0 0.0
    %760 = vmatprep.subr.mxu0 0.0
    %761 = vmatpush1.xpose.msra.mxu0 0.0
    %762 = vmatprep.subr.mxu0 0.0
    %763 = vmatpush1.xpose.msra.mxu0 0.0
    %764 = vmatprep.subr.mxu0 0.0
    %765 = vmatpush1.xpose.msra.mxu0 0.0
    %766 = vmatprep.subr.mxu0 0.0
    %767 = vmatpush1.xpose.msra.mxu0 0.0
    %768 = vmatprep.subr.mxu0 0.0
    %769 = vmatpush1.xpose.msra.mxu0 0.0
    %770 = vmatprep.subr.mxu0 0.0
    %771 = vmatpush1.xpose.msra.mxu0 0.0
    %772 = vmatprep.subr.mxu0 0.0
    %773 = vmatpush1.xpose.msra.mxu0 %v746
    %774 = vmatprep.subr.mxu0 0.0
    %775 = vmatpush1.xpose.msra.mxu0 %v743
    %776 = vmatprep.subr.mxu0 0.0
    %777 = vmatpush1.xpose.msra.mxu0 %v740
    %778 = vmatprep.subr.mxu0 0.0
    %779 = vmatpush1.xpose.msra.mxu0 %v737
    %780 = vmatprep.subr.mxu0 0.0
    %781 = vmatpush2.xpose.msra.mxu0 0.0
    %782 = vmatprep.subr.mxu0 0.0
    %783 = vmatpush2.xpose.msra.mxu0 0.0
    %784 = vmatprep.subr.mxu0 0.0
    %785 = vmatpush2.xpose.msra.mxu0 0.0
    %786 = vmatprep.subr.mxu0 0.0
    %787 = vmatpush2.xpose.msra.mxu0 0.0
    %788 = vmatprep.subr.mxu0 0.0
    %789 = vmatpush2.xpose.msra.mxu0 0.0
    %790 = vmatprep.subr.mxu0 0.0
    %791 = vmatpush2.xpose.msra.mxu0 0.0
    %792 = vmatprep.subr.mxu0 0.0
    %793 = vmatpush2.xpose.msra.mxu0 0.0
    %794 = vmatprep.subr.mxu0 0.0
    %795 = vmatpush2.xpose.msra.mxu0 0.0
    %796 = vmatprep.subr.mxu0 0.0
    %797 = vmatpush2.xpose.msra.mxu0 0.0
    %798 = vmatprep.subr.mxu0 0.0
    %799 = vmatpush2.xpose.msra.mxu0 0.0
    %800 = vmatprep.subr.mxu0 0.0
    %801 = vmatpush2.xpose.msra.mxu0 0.0
    %802 = vmatprep.subr.mxu0 0.0
    %803 = vmatpush2.xpose.msra.mxu0 0.0
    %804 = vmatprep.subr.mxu0 0.0
    %805 = vmatpush2.xpose.msra.mxu0 0.0
    %806 = vmatprep.subr.mxu0 0.0
    %807 = vmatpush2.xpose.msra.mxu0 0.0
    %808 = vmatprep.subr.mxu0 0.0
    %809 = vmatpush2.xpose.msra.mxu0 0.0
    %810 = vmatprep.subr.mxu0 0.0
    %811 = vmatpush2.xpose.msra.mxu0 0.0
    %812 = vmatprep.mubr.f32.mxu0 0.0
    %813 = vmatmul.mubr.f32.gmra.mxu0 %v719
    %v814 = vpop.f32.mrf.mxu0
    %v815 = vadd.f32 %v174, %v814
    %v816 = vpop.f32.mrf.mxu0
    %817 = vmatprep.mubr.f32.mxu0 0.0
    %818 = vmatmul.mubr.f32.gmra.mxu0 %v722
    %v819 = vpop.f32.mrf.mxu0
    %v820 = vadd.f32 %v175, %v819
    %v821 = vpop.f32.mrf.mxu0
    %822 = vmatprep.mubr.f32.mxu0 0.0
    %823 = vmatmul.mubr.f32.gmra.mxu0 %v725
    %v824 = vpop.f32.mrf.mxu0
    %v825 = vadd.f32 %v176, %v824
    %v826 = vpop.f32.mrf.mxu0
    %827 = vmatprep.mubr.f32.mxu0 0.0
    %828 = vmatmul.mubr.f32.gmra.mxu0 %v728
    %v829 = vpop.f32.mrf.mxu0
    %v830 = vadd.f32 %v177, %v829
    %v831 = vpop.f32.mrf.mxu0
    %832 = vmatprep.mubr.f32.mxu0 0.0
    %833 = vmatmul.mubr.f32.gmra.mxu0 %v731
    %v834 = vpop.f32.mrf.mxu0
    %v835 = vadd.f32 %v178, %v834
    %v836 = vpop.f32.mrf.mxu0
    %837 = vmatprep.mubr.f32.mxu0 0.0
    %838 = vmatmul.mubr.f32.gmra.mxu0 %v734
    %v839 = vpop.f32.mrf.mxu0
    %v840 = vadd.f32 %v179, %v839
    %v841 = vpop.f32.mrf.mxu0
    %842 = vdwg.mxu0
    %v843 = vsel %vm188, %v815, -inf
    %844 = vmax.xlane.f32.xlu0 %v843
    %v845 = vpop.xlane.xlu0 %844
    %v846 = vsel %vm188, %v820, -inf
    %847 = vmax.xlane.f32.xlu0 %v846
    %v848 = vpop.xlane.xlu0 %847
    %v849 = vsel %vm188, %v825, -inf
    %850 = vmax.xlane.f32.xlu0 %v849
    %v851 = vpop.xlane.xlu0 %850
    %v852 = vsel %vm188, %v830, -inf
    %853 = vmax.xlane.f32.xlu0 %v852
    %v854 = vpop.xlane.xlu0 %853
    %v855 = vsel %vm188, %v835, -inf
    %856 = vmax.xlane.f32.xlu0 %v855
    %v857 = vpop.xlane.xlu0 %856
    %v858 = vsel %vm188, %v840, -inf
    %859 = vmax.xlane.f32.xlu0 %v858
    %v860 = vpop.xlane.xlu0 %859
    %v861 = vsub.f32 %v815, %v845
    %v862 = vsub.f32 %v820, %v848
    %v863 = vsub.f32 %v825, %v851
    %v864 = vsub.f32 %v830, %v854
    %v865 = vsub.f32 %v835, %v857
    %v866 = vsub.f32 %v840, %v860
    %v867 = vmul.f32 %v861, 1.442695
    %v868 = vpow.pop %v867
    %v869 = vmul.f32 %v862, 1.442695
    %v870 = vpow.pop %v869
    %v871 = vmul.f32 %v863, 1.442695
    %v872 = vpow.pop %v871
    %v873 = vmul.f32 %v864, 1.442695
    %v874 = vpow.pop %v873
    %v875 = vmul.f32 %v865, 1.442695
    %v876 = vpow.pop %v875
    %v877 = vmul.f32 %v866, 1.442695
    %v878 = vpow.pop %v877
    %v879 = vsel %vm188, %v868, 0.0
    %880 = vadd.xlane.f32.xlu0 %v879
    %v881 = vpop.xlane.xlu0 %880
    %v882 = vsel %vm188, %v870, 0.0
    %883 = vadd.xlane.f32.xlu0 %v882
    %v884 = vpop.xlane.xlu0 %883
    %v885 = vsel %vm188, %v872, 0.0
    %886 = vadd.xlane.f32.xlu0 %v885
    %v887 = vpop.xlane.xlu0 %886
    %v888 = vsel %vm188, %v874, 0.0
    %889 = vadd.xlane.f32.xlu0 %v888
    %v890 = vpop.xlane.xlu0 %889
    %v891 = vsel %vm188, %v876, 0.0
    %892 = vadd.xlane.f32.xlu0 %v891
    %v893 = vpop.xlane.xlu0 %892
    %v894 = vsel %vm188, %v878, 0.0
    %895 = vadd.xlane.f32.xlu0 %v894
    %v896 = vpop.xlane.xlu0 %895
    %v897 = vrcp.pop %v881
    %v898 = vmul.f32 %v868, %v897
    %v899 = vrcp.pop %v884
    %v900 = vmul.f32 %v870, %v899
    %v901 = vrcp.pop %v887
    %v902 = vmul.f32 %v872, %v901
    %v903 = vrcp.pop %v890
    %v904 = vmul.f32 %v874, %v903
    %v905 = vrcp.pop %v893
    %v906 = vmul.f32 %v876, %v905
    %v907 = vrcp.pop %v896
    %v908 = vmul.f32 %v878, %v907
    %v909 = vadd.f32 %v898, 1e-08
    %v910 = vadd.f32 %v900, 1e-08
    %v911 = vadd.f32 %v902, 1e-08
    %v912 = vadd.f32 %v904, 1e-08
    %v913 = vadd.f32 %v906, 1e-08
    %v914 = vadd.f32 %v908, 1e-08
    %v915 = vmul.f32 %v909, %v181
    %v916 = vmul.f32 %v910, %v182
    %v917 = vmul.f32 %v911, %v183
    %v918 = vmul.f32 %v912, %v184
    %v919 = vmul.f32 %v913, %v185
    %v920 = vmul.f32 %v914, %v186
    %v921 = vsel %vm188, %v915, 0.0
    %v922 = vsel %vm188, %v916, 0.0
    %v923 = vadd.f32 %v921, %v922
    %v924 = vsel %vm188, %v917, 0.0
    %v925 = vadd.f32 %v923, %v924
    %v926 = vsel %vm188, %v918, 0.0
    %v927 = vadd.f32 %v925, %v926
    %v928 = vsel %vm188, %v919, 0.0
    %v929 = vadd.f32 %v927, %v928
    %v930 = vsel %vm188, %v920, 0.0
    %v931 = vadd.f32 %v929, %v930
    %v932 = vrot.slane %v931, 4
    %v933 = vadd.f32 %v931, %v932
    %v934 = vrot.slane %v933, 2
    %v935 = vadd.f32 %v933, %v934
    %v936 = vrot.slane %v935, 1
    %v937 = vadd.f32 %v935, %v936
    %v938 = vrcp.pop %v937
    %v939 = vmul.f32 %v915, %v938
    %v940 = vmul.f32 %v916, %v938
    %v941 = vmul.f32 %v917, %v938
    %v942 = vmul.f32 %v918, %v938
    %v943 = vmul.f32 %v919, %v938
    %v944 = vmul.f32 %v920, %v938
    %945 = vxpose.xlu0.b32.start [1/16] %v939, 128
    %946 = vxpose.xlu0.b32.cont [2/16] %v940, 128
    %947 = vxpose.xlu0.b32.cont [3/16] %v941, 128
    %948 = vxpose.xlu0.b32.cont [4/16] %v942, 128
    %949 = vxpose.xlu0.b32.cont [5/16] %v943, 128
    %950 = vxpose.xlu0.b32.cont [6/16] %v944, 128
    %951 = vxpose.xlu0.b32.cont [7/16] 0.0, 128
    %952 = vxpose.xlu0.b32.cont [8/16] 0.0, 128
    %953 = vxpose.xlu0.b32.cont [9/16] 0.0, 128
    %954 = vxpose.xlu0.b32.cont [10/16] 0.0, 128
    %955 = vxpose.xlu0.b32.cont [11/16] 0.0, 128
    %956 = vxpose.xlu0.b32.cont [12/16] 0.0, 128
    %957 = vxpose.xlu0.b32.cont [13/16] 0.0, 128
    %958 = vxpose.xlu0.b32.cont [14/16] 0.0, 128
    %959 = vxpose.xlu0.b32.cont [15/16] 0.0, 128
    %960 = vxpose.xlu0.b32.end [16/16] 0.0, 128
    %v961 = vpop.trf.xlu0
    %v962 = vpop.trf.xlu0
    %v963 = vpop.trf.xlu0
    %v964 = vpop.trf.xlu0
    %v965 = vpop.trf.xlu0
    %v966 = vpop.trf.xlu0
    %v967 = vpop.trf.xlu0
    %v968 = vpop.trf.xlu0
    %v969 = vpop.trf.xlu0
    %v970 = vpop.trf.xlu0
    %v971 = vpop.trf.xlu0
    %v972 = vpop.trf.xlu0
    %v973 = vpop.trf.xlu0
    %v974 = vpop.trf.xlu0
    %v975 = vpop.trf.xlu0
    %v976 = vpop.trf.xlu0
    %977 = vrot.lane.b32.xlu0 %v373, 96
    %v978 = vpop.permute.xlu0 %977
    %979 = vrot.lane.b32.xlu0 %v379, 96
    %v980 = vpop.permute.xlu0 %979
    %981 = vrot.lane.b32.xlu0 %v385, 96
    %v982 = vpop.permute.xlu0 %981
    %983 = vrot.lane.b32.xlu0 %v391, 96
    %v984 = vpop.permute.xlu0 %983
    %985 = vrot.lane.b32.xlu0 %v397, 96
    %v986 = vpop.permute.xlu0 %985
    %987 = vrot.lane.b32.xlu0 %v403, 96
    %v988 = vpop.permute.xlu0 %987
    %vm995 = vcmask 392192
    %v997 = vsel %vm995, %v961, 0
    %v1000 = vsel %vm995, %v962, 0
    %v1003 = vsel %vm995, %v963, 0
    %v1006 = vsel %vm995, %v964, 0
    %1008 = vmatprep.subr.mxu0 0.0
    %1009 = vmatpush1.msra.mxu0 0.0
    %1010 = vmatprep.subr.mxu0 0.0
    %1011 = vmatpush1.msra.mxu0 0.0
    %1012 = vmatprep.subr.mxu0 0.0
    %1013 = vmatpush1.msra.mxu0 0.0
    %1014 = vmatprep.subr.mxu0 0.0
    %1015 = vmatpush1.msra.mxu0 0.0
    %1016 = vmatprep.subr.mxu0 0.0
    %1017 = vmatpush1.msra.mxu0 0.0
    %1018 = vmatprep.subr.mxu0 0.0
    %1019 = vmatpush1.msra.mxu0 0.0
    %1020 = vmatprep.subr.mxu0 0.0
    %1021 = vmatpush1.msra.mxu0 0.0
    %1022 = vmatprep.subr.mxu0 0.0
    %1023 = vmatpush1.msra.mxu0 0.0
    %1024 = vmatprep.subr.mxu0 0.0
    %1025 = vmatpush1.msra.mxu0 0.0
    %1026 = vmatprep.subr.mxu0 0.0
    %1027 = vmatpush1.msra.mxu0 0.0
    %1028 = vmatprep.subr.mxu0 0.0
    %1029 = vmatpush1.msra.mxu0 %v988
    %1030 = vmatprep.subr.mxu0 0.0
    %1031 = vmatpush1.msra.mxu0 %v986
    %1032 = vmatprep.subr.mxu0 0.0
    %1033 = vmatpush1.msra.mxu0 %v984
    %1034 = vmatprep.subr.mxu0 0.0
    %1035 = vmatpush1.msra.mxu0 %v982
    %1036 = vmatprep.subr.mxu0 0.0
    %1037 = vmatpush1.msra.mxu0 %v980
    %1038 = vmatprep.subr.mxu0 0.0
    %1039 = vmatpush1.msra.mxu0 %v978
    %1040 = vmatprep.subr.mxu0 0.0
    %1041 = vmatpush2.msra.mxu0 0.0
    %1042 = vmatprep.subr.mxu0 0.0
    %1043 = vmatpush2.msra.mxu0 0.0
    %1044 = vmatprep.subr.mxu0 0.0
    %1045 = vmatpush2.msra.mxu0 0.0
    %1046 = vmatprep.subr.mxu0 0.0
    %1047 = vmatpush2.msra.mxu0 0.0
    %1048 = vmatprep.subr.mxu0 0.0
    %1049 = vmatpush2.msra.mxu0 0.0
    %1050 = vmatprep.subr.mxu0 0.0
    %1051 = vmatpush2.msra.mxu0 0.0
    %1052 = vmatprep.subr.mxu0 0.0
    %1053 = vmatpush2.msra.mxu0 0.0
    %1054 = vmatprep.subr.mxu0 0.0
    %1055 = vmatpush2.msra.mxu0 0.0
    %1056 = vmatprep.subr.mxu0 0.0
    %1057 = vmatpush2.msra.mxu0 0.0
    %1058 = vmatprep.subr.mxu0 0.0
    %1059 = vmatpush2.msra.mxu0 0.0
    %1060 = vmatprep.subr.mxu0 0.0
    %1061 = vmatpush2.msra.mxu0 0.0
    %1062 = vmatprep.subr.mxu0 0.0
    %1063 = vmatpush2.msra.mxu0 0.0
    %1064 = vmatprep.subr.mxu0 0.0
    %1065 = vmatpush2.msra.mxu0 0.0
    %1066 = vmatprep.subr.mxu0 0.0
    %1067 = vmatpush2.msra.mxu0 0.0
    %1068 = vmatprep.subr.mxu0 0.0
    %1069 = vmatpush2.msra.mxu0 0.0
    %1070 = vmatprep.subr.mxu0 0.0
    %1071 = vmatpush2.msra.mxu0 0.0
    %1072 = vmatprep.mubr.f32.mxu0 0.0
    %1073 = vmatmul.mubr.f32.gmra.mxu0 %v997
    %v1074 = vpop.f32.mrf.mxu0
    %v1075 = vadd.f32 0.0, %v1074
    %v1076 = vpop.f32.mrf.mxu0
    %1077 = vmatprep.mubr.f32.mxu0 0.0
    %1078 = vmatmul.mubr.f32.gmra.mxu0 %v1000
    %v1079 = vpop.f32.mrf.mxu0
    %v1080 = vadd.f32 0.0, %v1079
    %v1081 = vpop.f32.mrf.mxu0
    %1082 = vmatprep.mubr.f32.mxu0 0.0
    %1083 = vmatmul.mubr.f32.gmra.mxu0 %v1003
    %v1084 = vpop.f32.mrf.mxu0
    %v1085 = vadd.f32 0.0, %v1084
    %v1086 = vpop.f32.mrf.mxu0
    %1087 = vmatprep.mubr.f32.mxu0 0.0
    %1088 = vmatmul.mubr.f32.gmra.mxu0 %v1006
    %v1089 = vpop.f32.mrf.mxu0
    %v1090 = vadd.f32 0.0, %v1089
    %v1091 = vpop.f32.mrf.mxu0
    %1092 = vdwg.mxu0
    %v1093 = vlaneseq
    %v1094 = vshrl.u32 %v1093, 7
    %v1095 = vsub.s32 0, %v1094
    %v1096 = vrot.slane %v548, %v1095
    %v1098 = vsel %vm188, %v1075, 0
    %v1101 = vsel %vm188, %v1080, 0
    %v1104 = vsel %vm188, %v1085, 0
    %v1107 = vsel %vm188, %v1090, 0
    %1109 = vmatprep.subr.mxu0 0.0
    %1110 = vmatpush1.msra.mxu0 0.0
    %1111 = vmatprep.subr.mxu0 0.0
    %1112 = vmatpush1.msra.mxu0 0.0
    %1113 = vmatprep.subr.mxu0 0.0
    %1114 = vmatpush1.msra.mxu0 0.0
    %1115 = vmatprep.subr.mxu0 0.0
    %1116 = vmatpush1.msra.mxu0 0.0
    %1117 = vmatprep.subr.mxu0 0.0
    %1118 = vmatpush1.msra.mxu0 0.0
    %1119 = vmatprep.subr.mxu0 0.0
    %1120 = vmatpush1.msra.mxu0 0.0
    %1121 = vmatprep.subr.mxu0 0.0
    %1122 = vmatpush1.msra.mxu0 0.0
    %1123 = vmatprep.subr.mxu0 0.0
    %1124 = vmatpush1.msra.mxu0 0.0
    %1125 = vmatprep.subr.mxu0 0.0
    %1126 = vmatpush1.msra.mxu0 0.0
    %1127 = vmatprep.subr.mxu0 0.0
    %1128 = vmatpush1.msra.mxu0 0.0
    %1129 = vmatprep.subr.mxu0 0.0
    %1130 = vmatpush1.msra.mxu0 0.0
    %1131 = vmatprep.subr.mxu0 0.0
    %1132 = vmatpush1.msra.mxu0 0.0
    %1133 = vmatprep.subr.mxu0 0.0
    %1134 = vmatpush1.msra.mxu0 %v542
    %1135 = vmatprep.subr.mxu0 0.0
    %1136 = vmatpush1.msra.mxu0 %v541
    %1137 = vmatprep.subr.mxu0 0.0
    %1138 = vmatpush1.msra.mxu0 %v540
    %1139 = vmatprep.subr.mxu0 0.0
    %1140 = vmatpush1.msra.mxu0 %v539
    %1141 = vmatprep.subr.mxu0 0.0
    %1142 = vmatpush2.msra.mxu0 0.0
    %1143 = vmatprep.subr.mxu0 0.0
    %1144 = vmatpush2.msra.mxu0 0.0
    %1145 = vmatprep.subr.mxu0 0.0
    %1146 = vmatpush2.msra.mxu0 0.0
    %1147 = vmatprep.subr.mxu0 0.0
    %1148 = vmatpush2.msra.mxu0 0.0
    %1149 = vmatprep.subr.mxu0 0.0
    %1150 = vmatpush2.msra.mxu0 0.0
    %1151 = vmatprep.subr.mxu0 0.0
    %1152 = vmatpush2.msra.mxu0 0.0
    %1153 = vmatprep.subr.mxu0 0.0
    %1154 = vmatpush2.msra.mxu0 0.0
    %1155 = vmatprep.subr.mxu0 0.0
    %1156 = vmatpush2.msra.mxu0 0.0
    %1157 = vmatprep.subr.mxu0 0.0
    %1158 = vmatpush2.msra.mxu0 0.0
    %1159 = vmatprep.subr.mxu0 0.0
    %1160 = vmatpush2.msra.mxu0 0.0
    %1161 = vmatprep.subr.mxu0 0.0
    %1162 = vmatpush2.msra.mxu0 0.0
    %1163 = vmatprep.subr.mxu0 0.0
    %1164 = vmatpush2.msra.mxu0 0.0
    %1165 = vmatprep.subr.mxu0 0.0
    %1166 = vmatpush2.msra.mxu0 0.0
    %1167 = vmatprep.subr.mxu0 0.0
    %1168 = vmatpush2.msra.mxu0 0.0
    %1169 = vmatprep.subr.mxu0 0.0
    %1170 = vmatpush2.msra.mxu0 0.0
    %1171 = vmatprep.subr.mxu0 0.0
    %1172 = vmatpush2.msra.mxu0 0.0
    %1173 = vmatprep.mubr.f32.mxu0 0.0
    %1174 = vmatmul.mubr.f32.gmra.mxu0 %v1098
    %v1175 = vpop.f32.mrf.mxu0
    %v1176 = vadd.f32 %v1096, %v1175
    %v1177 = vpop.f32.mrf.mxu0
    %1178 = vmatprep.mubr.f32.mxu0 0.0
    %1179 = vmatmul.mubr.f32.gmra.mxu0 %v1101
    %v1180 = vpop.f32.mrf.mxu0
    %v1181 = vadd.f32 %v1096, %v1180
    %v1182 = vpop.f32.mrf.mxu0
    %1183 = vmatprep.mubr.f32.mxu0 0.0
    %1184 = vmatmul.mubr.f32.gmra.mxu0 %v1104
    %v1185 = vpop.f32.mrf.mxu0
    %v1186 = vadd.f32 %v1096, %v1185
    %v1187 = vpop.f32.mrf.mxu0
    %1188 = vmatprep.mubr.f32.mxu0 0.0
    %1189 = vmatmul.mubr.f32.gmra.mxu0 %v1107
    %v1190 = vpop.f32.mrf.mxu0
    %v1191 = vadd.f32 %v1096, %v1190
    %v1192 = vpop.f32.mrf.mxu0
    %1193 = vdwg.mxu0
    %v1194 = vlaneseq
    %v1195 = vshrl.u32 %v1194, 7
    %v1196 = vsub.s32 1, %v1195
    %v1197 = vrot.slane %v548, %v1196
    %v1199 = vsel %vm188, %v549, 0
    %v1202 = vsel %vm188, %v550, 0
    %v1205 = vsel %vm188, %v551, 0
    %v1208 = vsel %vm188, %v552, 0
    %1210 = vmatprep.subr.mxu0 0.0
    %1211 = vmatpush1.msra.mxu0 0.0
    %1212 = vmatprep.subr.mxu0 0.0
    %1213 = vmatpush1.msra.mxu0 0.0
    %1214 = vmatprep.subr.mxu0 0.0
    %1215 = vmatpush1.msra.mxu0 0.0
    %1216 = vmatprep.subr.mxu0 0.0
    %1217 = vmatpush1.msra.mxu0 0.0
    %1218 = vmatprep.subr.mxu0 0.0
    %1219 = vmatpush1.msra.mxu0 0.0
    %1220 = vmatprep.subr.mxu0 0.0
    %1221 = vmatpush1.msra.mxu0 0.0
    %1222 = vmatprep.subr.mxu0 0.0
    %1223 = vmatpush1.msra.mxu0 0.0
    %1224 = vmatprep.subr.mxu0 0.0
    %1225 = vmatpush1.msra.mxu0 0.0
    %1226 = vmatprep.subr.mxu0 0.0
    %1227 = vmatpush1.msra.mxu0 0.0
    %1228 = vmatprep.subr.mxu0 0.0
    %1229 = vmatpush1.msra.mxu0 0.0
    %1230 = vmatprep.subr.mxu0 0.0
    %1231 = vmatpush1.msra.mxu0 0.0
    %1232 = vmatprep.subr.mxu0 0.0
    %1233 = vmatpush1.msra.mxu0 0.0
    %1234 = vmatprep.subr.mxu0 0.0
    %1235 = vmatpush1.msra.mxu0 %v547
    %1236 = vmatprep.subr.mxu0 0.0
    %1237 = vmatpush1.msra.mxu0 %v546
    %1238 = vmatprep.subr.mxu0 0.0
    %1239 = vmatpush1.msra.mxu0 %v545
    %1240 = vmatprep.subr.mxu0 0.0
    %1241 = vmatpush1.msra.mxu0 %v544
    %1242 = vmatprep.subr.mxu0 0.0
    %1243 = vmatpush2.msra.mxu0 0.0
    %1244 = vmatprep.subr.mxu0 0.0
    %1245 = vmatpush2.msra.mxu0 0.0
    %1246 = vmatprep.subr.mxu0 0.0
    %1247 = vmatpush2.msra.mxu0 0.0
    %1248 = vmatprep.subr.mxu0 0.0
    %1249 = vmatpush2.msra.mxu0 0.0
    %1250 = vmatprep.subr.mxu0 0.0
    %1251 = vmatpush2.msra.mxu0 0.0
    %1252 = vmatprep.subr.mxu0 0.0
    %1253 = vmatpush2.msra.mxu0 0.0
    %1254 = vmatprep.subr.mxu0 0.0
    %1255 = vmatpush2.msra.mxu0 0.0
    %1256 = vmatprep.subr.mxu0 0.0
    %1257 = vmatpush2.msra.mxu0 0.0
    %1258 = vmatprep.subr.mxu0 0.0
    %1259 = vmatpush2.msra.mxu0 0.0
    %1260 = vmatprep.subr.mxu0 0.0
    %1261 = vmatpush2.msra.mxu0 0.0
    %1262 = vmatprep.subr.mxu0 0.0
    %1263 = vmatpush2.msra.mxu0 0.0
    %1264 = vmatprep.subr.mxu0 0.0
    %1265 = vmatpush2.msra.mxu0 0.0
    %1266 = vmatprep.subr.mxu0 0.0
    %1267 = vmatpush2.msra.mxu0 0.0
    %1268 = vmatprep.subr.mxu0 0.0
    %1269 = vmatpush2.msra.mxu0 0.0
    %1270 = vmatprep.subr.mxu0 0.0
    %1271 = vmatpush2.msra.mxu0 0.0
    %1272 = vmatprep.subr.mxu0 0.0
    %1273 = vmatpush2.msra.mxu0 0.0
    %1274 = vmatprep.mubr.f32.mxu0 0.0
    %1275 = vmatmul.mubr.f32.gmra.mxu0 %v1199
    %v1276 = vpop.f32.mrf.mxu0
    %v1277 = vadd.f32 %v1197, %v1276
    %v1278 = vpop.f32.mrf.mxu0
    %1279 = vmatprep.mubr.f32.mxu0 0.0
    %1280 = vmatmul.mubr.f32.gmra.mxu0 %v1202
    %v1281 = vpop.f32.mrf.mxu0
    %v1282 = vadd.f32 %v1197, %v1281
    %v1283 = vpop.f32.mrf.mxu0
    %1284 = vmatprep.mubr.f32.mxu0 0.0
    %1285 = vmatmul.mubr.f32.gmra.mxu0 %v1205
    %v1286 = vpop.f32.mrf.mxu0
    %v1287 = vadd.f32 %v1197, %v1286
    %v1288 = vpop.f32.mrf.mxu0
    %1289 = vmatprep.mubr.f32.mxu0 0.0
    %1290 = vmatmul.mubr.f32.gmra.mxu0 %v1208
    %v1291 = vpop.f32.mrf.mxu0
    %v1292 = vadd.f32 %v1197, %v1291
    %v1293 = vpop.f32.mrf.mxu0
    %1294 = vdwg.mxu0
    %v1295 = vadd.f32 %v1176, %v1277
    %v1296 = vadd.f32 %v1181, %v1282
    %v1297 = vadd.f32 %v1186, %v1287
    %v1298 = vadd.f32 %v1191, %v1292
    %v1299 = vxor.u32 %v1295, 2147483648
    %v1300 = vxor.u32 %v1296, 2147483648
    %v1301 = vxor.u32 %v1297, 2147483648
    %v1302 = vxor.u32 %v1298, 2147483648
    %v1303 = vmul.f32 %v1299, 1.442695
    %v1304 = vpow.pop %v1303
    %v1305 = vmul.f32 %v1300, 1.442695
    %v1306 = vpow.pop %v1305
    %v1307 = vmul.f32 %v1301, 1.442695
    %v1308 = vpow.pop %v1307
    %v1309 = vmul.f32 %v1302, 1.442695
    %v1310 = vpow.pop %v1309
    %v1311 = vadd.f32 %v1304, 1.0
    %v1312 = vadd.f32 %v1306, 1.0
    %v1313 = vadd.f32 %v1308, 1.0
    %v1314 = vadd.f32 %v1310, 1.0
    %v1315 = vrcp.pop %v1311
    %v1316 = vmul.f32 1.0, %v1315
    %v1317 = vrcp.pop %v1312
    %v1318 = vmul.f32 1.0, %v1317
    %v1319 = vrcp.pop %v1313
    %v1320 = vmul.f32 1.0, %v1319
    %v1321 = vrcp.pop %v1314
    %v1322 = vmul.f32 1.0, %v1321
    %1327 = vrot.lane.b32.xlu0 %v1277, 64
    %v1328 = vpop.permute.xlu0 %1327
    %1329 = vrot.lane.b32.xlu0 %v1282, 64
    %v1330 = vpop.permute.xlu0 %1329
    %1331 = vrot.lane.b32.xlu0 %v1287, 64
    %v1332 = vpop.permute.xlu0 %1331
    %1333 = vrot.lane.b32.xlu0 %v1292, 64
    %v1334 = vpop.permute.xlu0 %1333
    %v1339 = vmul.f32 %v1316, %v1328
    %v1340 = vmul.f32 %v1318, %v1330
    %v1341 = vmul.f32 %v1320, %v1332
    %v1342 = vmul.f32 %v1322, %v1334
    %1347 = vrot.lane.b32.xlu0 %v1339, 64
    %v1348 = vpop.permute.xlu0 %1347
    %1349 = vrot.lane.b32.xlu0 %v1340, 64
    %v1350 = vpop.permute.xlu0 %1349
    %1351 = vrot.lane.b32.xlu0 %v1341, 64
    %v1352 = vpop.permute.xlu0 %1351
    %1353 = vrot.lane.b32.xlu0 %v1342, 64
    %v1354 = vpop.permute.xlu0 %1353
    %v1359 = vadd.f32 %v1176, %v1348
    %v1360 = vadd.f32 %v1181, %v1350
    %v1361 = vadd.f32 %v1186, %v1352
    %v1362 = vadd.f32 %v1191, %v1354
    %v1363 = vtanh.pop %v1359
    %v1364 = vtanh.pop %v1360
    %v1365 = vtanh.pop %v1361
    %v1366 = vtanh.pop %v1362
    %v1367 = vsub.f32 1.0, %v1316
    %v1368 = vsub.f32 1.0, %v1318
    %v1369 = vsub.f32 1.0, %v1320
    %v1370 = vsub.f32 1.0, %v1322
    %1375 = vrot.lane.b32.xlu0 %v1363, 96
    %v1376 = vpop.permute.xlu0 %1375
    %1377 = vrot.lane.b32.xlu0 %v1364, 96
    %v1378 = vpop.permute.xlu0 %1377
    %1379 = vrot.lane.b32.xlu0 %v1365, 96
    %v1380 = vpop.permute.xlu0 %1379
    %1381 = vrot.lane.b32.xlu0 %v1366, 96
    %v1382 = vpop.permute.xlu0 %1381
    %v1387 = vmul.f32 %v1367, %v1376
    %v1388 = vmul.f32 %v1368, %v1378
    %v1389 = vmul.f32 %v1369, %v1380
    %v1390 = vmul.f32 %v1370, %v1382
    %1391 = vrot.lane.b32.xlu0 %v549, 32
    %v1392 = vpop.permute.xlu0 %1391
    %1393 = vrot.lane.b32.xlu0 %v550, 32
    %v1394 = vpop.permute.xlu0 %1393
    %1395 = vrot.lane.b32.xlu0 %v551, 32
    %v1396 = vpop.permute.xlu0 %1395
    %1397 = vrot.lane.b32.xlu0 %v552, 32
    %v1398 = vpop.permute.xlu0 %1397
    %v1403 = vmul.f32 %v1316, %v1392
    %v1404 = vmul.f32 %v1318, %v1394
    %v1405 = vmul.f32 %v1320, %v1396
    %v1406 = vmul.f32 %v1322, %v1398
    %v1407 = vadd.f32 %v1387, %v1403
    %v1408 = vadd.f32 %v1388, %v1404
    %v1409 = vadd.f32 %v1389, %v1405
    %v1410 = vadd.f32 %v1390, %v1406
    %1415 = vrot.lane.b32.xlu0 %v1407, 96
    %v1416 = vpop.permute.xlu0 %1415
    %1417 = vrot.lane.b32.xlu0 %v1408, 96
    %v1418 = vpop.permute.xlu0 %1417
    %1419 = vrot.lane.b32.xlu0 %v1409, 96
    %v1420 = vpop.permute.xlu0 %1419
    %1421 = vrot.lane.b32.xlu0 %v1410, 96
    %v1422 = vpop.permute.xlu0 %1421
    %v1427 = vsel %vm188, %v1416, 0.0
    %1428 = vadd.xlane.f32.xlu0 %v1427
    %v1429 = vpop.xlane.xlu0 %1428
    %v1430 = vsel %vm188, %v1418, 0.0
    %1431 = vadd.xlane.f32.xlu0 %v1430
    %v1432 = vpop.xlane.xlu0 %1431
    %v1433 = vsel %vm188, %v1420, 0.0
    %1434 = vadd.xlane.f32.xlu0 %v1433
    %v1435 = vpop.xlane.xlu0 %1434
    %v1436 = vsel %vm188, %v1422, 0.0
    %1437 = vadd.xlane.f32.xlu0 %v1436
    %v1438 = vpop.xlane.xlu0 %1437
    %v1439 = vmul.f32 %v1429, %v207
    %v1440 = vmul.f32 %v1432, %v207
    %v1441 = vmul.f32 %v1435, %v207
    %v1442 = vmul.f32 %v1438, %v207
    %v1443 = vsub.f32 %v1407, %v1439
    %v1444 = vsub.f32 %v1408, %v1440
    %v1445 = vsub.f32 %v1409, %v1441
    %v1446 = vsub.f32 %v1410, %v1442
    %v1447 = vmul.f32 %v1443, %v1443
    %v1448 = vmul.f32 %v1444, %v1444
    %v1449 = vmul.f32 %v1445, %v1445
    %v1450 = vmul.f32 %v1446, %v1446
    %1455 = vrot.lane.b32.xlu0 %v1447, 96
    %v1456 = vpop.permute.xlu0 %1455
    %1457 = vrot.lane.b32.xlu0 %v1448, 96
    %v1458 = vpop.permute.xlu0 %1457
    %1459 = vrot.lane.b32.xlu0 %v1449, 96
    %v1460 = vpop.permute.xlu0 %1459
    %1461 = vrot.lane.b32.xlu0 %v1450, 96
    %v1462 = vpop.permute.xlu0 %1461
    %v1467 = vsel %vm188, %v1456, 0.0
    %1468 = vadd.xlane.f32.xlu0 %v1467
    %v1469 = vpop.xlane.xlu0 %1468
    %v1470 = vsel %vm188, %v1458, 0.0
    %1471 = vadd.xlane.f32.xlu0 %v1470
    %v1472 = vpop.xlane.xlu0 %1471
    %v1473 = vsel %vm188, %v1460, 0.0
    %1474 = vadd.xlane.f32.xlu0 %v1473
    %v1475 = vpop.xlane.xlu0 %1474
    %v1476 = vsel %vm188, %v1462, 0.0
    %1477 = vadd.xlane.f32.xlu0 %v1476
    %v1478 = vpop.xlane.xlu0 %1477
    %v1479 = vmul.f32 %v1469, %v207
    %v1480 = vmul.f32 %v1472, %v207
    %v1481 = vmul.f32 %v1475, %v207
    %v1482 = vmul.f32 %v1478, %v207
    %v1483 = vadd.f32 %v1479, 1e-05
    %v1484 = vadd.f32 %v1480, 1e-05
    %v1485 = vadd.f32 %v1481, 1e-05
    %v1486 = vadd.f32 %v1482, 1e-05
    %v1487 = vrsqrt.pop %v1483
    %v1488 = vrsqrt.pop %v1484
    %v1489 = vrsqrt.pop %v1485
    %v1490 = vrsqrt.pop %v1486
    %v1491 = vmul.f32 %v1443, %v1487
    %v1492 = vmul.f32 %v1444, %v1488
    %v1493 = vmul.f32 %v1445, %v1489
    %v1494 = vmul.f32 %v1446, %v1490
    %v1495 = vlaneseq
    %v1496 = vshrl.u32 %v1495, 7
    %v1497 = vsub.s32 2, %v1496
    %v1498 = vrot.slane %v524, %v1497
    %1500 = vrot.lane.b32.xlu0 %v1498, 32
    %v1501 = vpop.permute.xlu0 %1500
    %v1503 = vmul.f32 %v1491, %v1501
    %v1504 = vmul.f32 %v1492, %v1501
    %v1505 = vmul.f32 %v1493, %v1501
    %v1506 = vmul.f32 %v1494, %v1501
    %v1507 = vlaneseq
    %v1508 = vshrl.u32 %v1507, 7
    %v1509 = vsub.s32 3, %v1508
    %v1510 = vrot.slane %v524, %v1509
    %1512 = vrot.lane.b32.xlu0 %v1510, 32
    %v1513 = vpop.permute.xlu0 %1512
    %v1515 = vadd.f32 %v1503, %v1513
    %v1516 = vadd.f32 %v1504, %v1513
    %v1517 = vadd.f32 %v1505, %v1513
    %v1518 = vadd.f32 %v1506, %v1513
    %v1519 = vlaneseq
    %v1520 = vshrl.u32 %v1519, 7
    %v1521 = vsub.s32 4, %v1520
    %v1522 = vrot.slane %v524, %v1521
    %1527 = vrot.lane.b32.xlu0 %v1515, 96
    %v1528 = vpop.permute.xlu0 %1527
    %1529 = vrot.lane.b32.xlu0 %v1516, 96
    %v1530 = vpop.permute.xlu0 %1529
    %1531 = vrot.lane.b32.xlu0 %v1517, 96
    %v1532 = vpop.permute.xlu0 %1531
    %1533 = vrot.lane.b32.xlu0 %v1518, 96
    %v1534 = vpop.permute.xlu0 %1533
    %v1535 = vsel %vm188, %v1528, 0
    %v1537 = vsel %vm188, %v1530, 0
    %v1539 = vsel %vm188, %v1532, 0
    %v1541 = vsel %vm188, %v1534, 0
    %1543 = vmatprep.subr.mxu0 0.0
    %1544 = vmatpush1.msra.mxu0 0.0
    %1545 = vmatprep.subr.mxu0 0.0
    %1546 = vmatpush1.msra.mxu0 0.0
    %1547 = vmatprep.subr.mxu0 0.0
    %1548 = vmatpush1.msra.mxu0 0.0
    %1549 = vmatprep.subr.mxu0 0.0
    %1550 = vmatpush1.msra.mxu0 0.0
    %1551 = vmatprep.subr.mxu0 0.0
    %1552 = vmatpush1.msra.mxu0 0.0
    %1553 = vmatprep.subr.mxu0 0.0
    %1554 = vmatpush1.msra.mxu0 0.0
    %1555 = vmatprep.subr.mxu0 0.0
    %1556 = vmatpush1.msra.mxu0 0.0
    %1557 = vmatprep.subr.mxu0 0.0
    %1558 = vmatpush1.msra.mxu0 0.0
    %1559 = vmatprep.subr.mxu0 0.0
    %1560 = vmatpush1.msra.mxu0 0.0
    %1561 = vmatprep.subr.mxu0 0.0
    %1562 = vmatpush1.msra.mxu0 0.0
    %1563 = vmatprep.subr.mxu0 0.0
    %1564 = vmatpush1.msra.mxu0 0.0
    %1565 = vmatprep.subr.mxu0 0.0
    %1566 = vmatpush1.msra.mxu0 0.0
    %1567 = vmatprep.subr.mxu0 0.0
    %1568 = vmatpush1.msra.mxu0 %v533
    %1569 = vmatprep.subr.mxu0 0.0
    %1570 = vmatpush1.msra.mxu0 %v532
    %1571 = vmatprep.subr.mxu0 0.0
    %1572 = vmatpush1.msra.mxu0 %v531
    %1573 = vmatprep.subr.mxu0 0.0
    %1574 = vmatpush1.msra.mxu0 %v530
    %1575 = vmatprep.subr.mxu0 0.0
    %1576 = vmatpush2.msra.mxu0 0.0
    %1577 = vmatprep.subr.mxu0 0.0
    %1578 = vmatpush2.msra.mxu0 0.0
    %1579 = vmatprep.subr.mxu0 0.0
    %1580 = vmatpush2.msra.mxu0 0.0
    %1581 = vmatprep.subr.mxu0 0.0
    %1582 = vmatpush2.msra.mxu0 0.0
    %1583 = vmatprep.subr.mxu0 0.0
    %1584 = vmatpush2.msra.mxu0 0.0
    %1585 = vmatprep.subr.mxu0 0.0
    %1586 = vmatpush2.msra.mxu0 0.0
    %1587 = vmatprep.subr.mxu0 0.0
    %1588 = vmatpush2.msra.mxu0 0.0
    %1589 = vmatprep.subr.mxu0 0.0
    %1590 = vmatpush2.msra.mxu0 0.0
    %1591 = vmatprep.subr.mxu0 0.0
    %1592 = vmatpush2.msra.mxu0 0.0
    %1593 = vmatprep.subr.mxu0 0.0
    %1594 = vmatpush2.msra.mxu0 0.0
    %1595 = vmatprep.subr.mxu0 0.0
    %1596 = vmatpush2.msra.mxu0 0.0
    %1597 = vmatprep.subr.mxu0 0.0
    %1598 = vmatpush2.msra.mxu0 0.0
    %1599 = vmatprep.subr.mxu0 0.0
    %1600 = vmatpush2.msra.mxu0 0.0
    %1601 = vmatprep.subr.mxu0 0.0
    %1602 = vmatpush2.msra.mxu0 0.0
    %1603 = vmatprep.subr.mxu0 0.0
    %1604 = vmatpush2.msra.mxu0 0.0
    %1605 = vmatprep.subr.mxu0 0.0
    %1606 = vmatpush2.msra.mxu0 0.0
    %1607 = vmatprep.mubr.f32.mxu0 0.0
    %1608 = vmatmul.mubr.f32.gmra.mxu0 %v1535
    %v1609 = vpop.f32.mrf.mxu0
    %v1610 = vadd.f32 %v1522, %v1609
    %v1611 = vpop.f32.mrf.mxu0
    %1612 = vmatprep.mubr.f32.mxu0 0.0
    %1613 = vmatmul.mubr.f32.gmra.mxu0 %v1537
    %v1614 = vpop.f32.mrf.mxu0
    %v1615 = vadd.f32 %v1522, %v1614
    %v1616 = vpop.f32.mrf.mxu0
    %1617 = vmatprep.mubr.f32.mxu0 0.0
    %1618 = vmatmul.mubr.f32.gmra.mxu0 %v1539
    %v1619 = vpop.f32.mrf.mxu0
    %v1620 = vadd.f32 %v1522, %v1619
    %v1621 = vpop.f32.mrf.mxu0
    %1622 = vmatprep.mubr.f32.mxu0 0.0
    %1623 = vmatmul.mubr.f32.gmra.mxu0 %v1541
    %v1624 = vpop.f32.mrf.mxu0
    %v1625 = vadd.f32 %v1522, %v1624
    %v1626 = vpop.f32.mrf.mxu0
    %1627 = vdwg.mxu0
    %v1628 = vmax.f32 %v1610, 0.0
    %v1629 = vmax.f32 %v1615, 0.0
    %v1630 = vmax.f32 %v1620, 0.0
    %v1631 = vmax.f32 %v1625, 0.0
    %v1633 = vsel %vm188, %v1628, 0
    %v1636 = vsel %vm188, %v1629, 0
    %v1639 = vsel %vm188, %v1630, 0
    %v1642 = vsel %vm188, %v1631, 0
    %1644 = vmatprep.subr.mxu0 0.0
    %1645 = vmatpush1.msra.mxu0 0.0
    %1646 = vmatprep.subr.mxu0 0.0
    %1647 = vmatpush1.msra.mxu0 0.0
    %1648 = vmatprep.subr.mxu0 0.0
    %1649 = vmatpush1.msra.mxu0 0.0
    %1650 = vmatprep.subr.mxu0 0.0
    %1651 = vmatpush1.msra.mxu0 0.0
    %1652 = vmatprep.subr.mxu0 0.0
    %1653 = vmatpush1.msra.mxu0 0.0
    %1654 = vmatprep.subr.mxu0 0.0
    %1655 = vmatpush1.msra.mxu0 0.0
    %1656 = vmatprep.subr.mxu0 0.0
    %1657 = vmatpush1.msra.mxu0 0.0
    %1658 = vmatprep.subr.mxu0 0.0
    %1659 = vmatpush1.msra.mxu0 0.0
    %1660 = vmatprep.subr.mxu0 0.0
    %1661 = vmatpush1.msra.mxu0 0.0
    %1662 = vmatprep.subr.mxu0 0.0
    %1663 = vmatpush1.msra.mxu0 0.0
    %1664 = vmatprep.subr.mxu0 0.0
    %1665 = vmatpush1.msra.mxu0 0.0
    %1666 = vmatprep.subr.mxu0 0.0
    %1667 = vmatpush1.msra.mxu0 0.0
    %1668 = vmatprep.subr.mxu0 0.0
    %1669 = vmatpush1.msra.mxu0 %v538
    %1670 = vmatprep.subr.mxu0 0.0
    %1671 = vmatpush1.msra.mxu0 %v537
    %1672 = vmatprep.subr.mxu0 0.0
    %1673 = vmatpush1.msra.mxu0 %v536
    %1674 = vmatprep.subr.mxu0 0.0
    %1675 = vmatpush1.msra.mxu0 %v535
    %1676 = vmatprep.subr.mxu0 0.0
    %1677 = vmatpush2.msra.mxu0 0.0
    %1678 = vmatprep.subr.mxu0 0.0
    %1679 = vmatpush2.msra.mxu0 0.0
    %1680 = vmatprep.subr.mxu0 0.0
    %1681 = vmatpush2.msra.mxu0 0.0
    %1682 = vmatprep.subr.mxu0 0.0
    %1683 = vmatpush2.msra.mxu0 0.0
    %1684 = vmatprep.subr.mxu0 0.0
    %1685 = vmatpush2.msra.mxu0 0.0
    %1686 = vmatprep.subr.mxu0 0.0
    %1687 = vmatpush2.msra.mxu0 0.0
    %1688 = vmatprep.subr.mxu0 0.0
    %1689 = vmatpush2.msra.mxu0 0.0
    %1690 = vmatprep.subr.mxu0 0.0
    %1691 = vmatpush2.msra.mxu0 0.0
    %1692 = vmatprep.subr.mxu0 0.0
    %1693 = vmatpush2.msra.mxu0 0.0
    %1694 = vmatprep.subr.mxu0 0.0
    %1695 = vmatpush2.msra.mxu0 0.0
    %1696 = vmatprep.subr.mxu0 0.0
    %1697 = vmatpush2.msra.mxu0 0.0
    %1698 = vmatprep.subr.mxu0 0.0
    %1699 = vmatpush2.msra.mxu0 0.0
    %1700 = vmatprep.subr.mxu0 0.0
    %1701 = vmatpush2.msra.mxu0 0.0
    %1702 = vmatprep.subr.mxu0 0.0
    %1703 = vmatpush2.msra.mxu0 0.0
    %1704 = vmatprep.subr.mxu0 0.0
    %1705 = vmatpush2.msra.mxu0 0.0
    %1706 = vmatprep.subr.mxu0 0.0
    %1707 = vmatpush2.msra.mxu0 0.0
    %1708 = vmatprep.mubr.f32.mxu0 0.0
    %1709 = vmatmul.mubr.f32.gmra.mxu0 %v1633
    %v1710 = vpop.f32.mrf.mxu0
    %v1711 = vadd.f32 0.0, %v1710
    %v1712 = vpop.f32.mrf.mxu0
    %1713 = vmatprep.mubr.f32.mxu0 0.0
    %1714 = vmatmul.mubr.f32.gmra.mxu0 %v1636
    %v1715 = vpop.f32.mrf.mxu0
    %v1716 = vadd.f32 0.0, %v1715
    %v1717 = vpop.f32.mrf.mxu0
    %1718 = vmatprep.mubr.f32.mxu0 0.0
    %1719 = vmatmul.mubr.f32.gmra.mxu0 %v1639
    %v1720 = vpop.f32.mrf.mxu0
    %v1721 = vadd.f32 0.0, %v1720
    %v1722 = vpop.f32.mrf.mxu0
    %1723 = vmatprep.mubr.f32.mxu0 0.0
    %1724 = vmatmul.mubr.f32.gmra.mxu0 %v1642
    %v1725 = vpop.f32.mrf.mxu0
    %v1726 = vadd.f32 0.0, %v1725
    %v1727 = vpop.f32.mrf.mxu0
    %1728 = vdwg.mxu0
    %1733 = vrot.lane.b32.xlu0 %v1711, 32
    %v1734 = vpop.permute.xlu0 %1733
    %1735 = vrot.lane.b32.xlu0 %v1716, 32
    %v1736 = vpop.permute.xlu0 %1735
    %1737 = vrot.lane.b32.xlu0 %v1721, 32
    %v1738 = vpop.permute.xlu0 %1737
    %1739 = vrot.lane.b32.xlu0 %v1726, 32
    %v1740 = vpop.permute.xlu0 %1739
    %v1745 = vadd.f32 %v1407, %v1734
    %v1746 = vadd.f32 %v1408, %v1736
    %v1747 = vadd.f32 %v1409, %v1738
    %v1748 = vadd.f32 %v1410, %v1740
    %v1749 = vlaneseq
    %v1750 = vshrl.u32 %v1749, 7
    %v1751 = vsub.s32 5, %v1750
    %v1752 = vrot.slane %v524, %v1751
    %1754 = vrot.lane.b32.xlu0 %v1752, 32
    %v1755 = vpop.permute.xlu0 %1754
    %v1757 = vadd.f32 %v1745, %v1755
    %v1758 = vadd.f32 %v1746, %v1755
    %v1759 = vadd.f32 %v1747, %v1755
    %v1760 = vadd.f32 %v1748, %v1755
    %v1761 = vld [vmem:[#allocation14] sm:$0xff]
    %v1762 = vld [vmem:[#allocation14 + $0x8] sm:$0xff]
    %v1763 = vld [vmem:[#allocation14 + $0x10] sm:$0xff]
    %v1764 = vld [vmem:[#allocation14 + $0x18] sm:$0xff]
    %1769 = vrot.lane.b32.xlu0 %v1761, 32
    %v1770 = vpop.permute.xlu0 %1769
    %1771 = vrot.lane.b32.xlu0 %v1762, 32
    %v1772 = vpop.permute.xlu0 %1771
    %1773 = vrot.lane.b32.xlu0 %v1763, 32
    %v1774 = vpop.permute.xlu0 %1773
    %1775 = vrot.lane.b32.xlu0 %v1764, 32
    %v1776 = vpop.permute.xlu0 %1775
    %v1781 = vadd.f32 %v1757, %v1770
    %v1782 = vadd.f32 %v1758, %v1772
    %v1783 = vadd.f32 %v1759, %v1774
    %v1784 = vadd.f32 %v1760, %v1776
    %v1785 = vld [vmem:[#allocation16] sm:$0xff]
    %v1786 = vld [vmem:[#allocation16 + $0x8] sm:$0xff]
    %v1787 = vld [vmem:[#allocation16 + $0x10] sm:$0xff]
    %v1788 = vld [vmem:[#allocation16 + $0x18] sm:$0xff]
    %1793 = vrot.lane.b32.xlu0 %v1781, 96
    %v1794 = vpop.permute.xlu0 %1793
    %1795 = vrot.lane.b32.xlu0 %v1782, 96
    %v1796 = vpop.permute.xlu0 %1795
    %1797 = vrot.lane.b32.xlu0 %v1783, 96
    %v1798 = vpop.permute.xlu0 %1797
    %1799 = vrot.lane.b32.xlu0 %v1784, 96
    %v1800 = vpop.permute.xlu0 %1799
    %v1801 = vsel %vm188, %v1794, 0
    %v1803 = vsel %vm188, %v1796, 0
    %v1805 = vsel %vm188, %v1798, 0
    %v1807 = vsel %vm188, %v1800, 0
    %1809 = vmatprep.subr.mxu0 0.0
    %1810 = vmatpush1.msra.mxu0 0.0
    %1811 = vmatprep.subr.mxu0 0.0
    %1812 = vmatpush1.msra.mxu0 0.0
    %1813 = vmatprep.subr.mxu0 0.0
    %1814 = vmatpush1.msra.mxu0 0.0
    %1815 = vmatprep.subr.mxu0 0.0
    %1816 = vmatpush1.msra.mxu0 0.0
    %1817 = vmatprep.subr.mxu0 0.0
    %1818 = vmatpush1.msra.mxu0 0.0
    %1819 = vmatprep.subr.mxu0 0.0
    %1820 = vmatpush1.msra.mxu0 0.0
    %1821 = vmatprep.subr.mxu0 0.0
    %1822 = vmatpush1.msra.mxu0 0.0
    %1823 = vmatprep.subr.mxu0 0.0
    %1824 = vmatpush1.msra.mxu0 0.0
    %1825 = vmatprep.subr.mxu0 0.0
    %1826 = vmatpush1.msra.mxu0 0.0
    %1827 = vmatprep.subr.mxu0 0.0
    %1828 = vmatpush1.msra.mxu0 0.0
    %1829 = vmatprep.subr.mxu0 0.0
    %1830 = vmatpush1.msra.mxu0 0.0
    %1831 = vmatprep.subr.mxu0 0.0
    %1832 = vmatpush1.msra.mxu0 0.0
    %1833 = vmatprep.subr.mxu0 0.0
    %1834 = vmatpush1.msra.mxu0 %v1788
    %1835 = vmatprep.subr.mxu0 0.0
    %1836 = vmatpush1.msra.mxu0 %v1787
    %1837 = vmatprep.subr.mxu0 0.0
    %1838 = vmatpush1.msra.mxu0 %v1786
    %1839 = vmatprep.subr.mxu0 0.0
    %1840 = vmatpush1.msra.mxu0 %v1785
    %1841 = vmatprep.subr.mxu0 0.0
    %1842 = vmatpush2.msra.mxu0 0.0
    %1843 = vmatprep.subr.mxu0 0.0
    %1844 = vmatpush2.msra.mxu0 0.0
    %1845 = vmatprep.subr.mxu0 0.0
    %1846 = vmatpush2.msra.mxu0 0.0
    %1847 = vmatprep.subr.mxu0 0.0
    %1848 = vmatpush2.msra.mxu0 0.0
    %1849 = vmatprep.subr.mxu0 0.0
    %1850 = vmatpush2.msra.mxu0 0.0
    %1851 = vmatprep.subr.mxu0 0.0
    %1852 = vmatpush2.msra.mxu0 0.0
    %1853 = vmatprep.subr.mxu0 0.0
    %1854 = vmatpush2.msra.mxu0 0.0
    %1855 = vmatprep.subr.mxu0 0.0
    %1856 = vmatpush2.msra.mxu0 0.0
    %1857 = vmatprep.subr.mxu0 0.0
    %1858 = vmatpush2.msra.mxu0 0.0
    %1859 = vmatprep.subr.mxu0 0.0
    %1860 = vmatpush2.msra.mxu0 0.0
    %1861 = vmatprep.subr.mxu0 0.0
    %1862 = vmatpush2.msra.mxu0 0.0
    %1863 = vmatprep.subr.mxu0 0.0
    %1864 = vmatpush2.msra.mxu0 0.0
    %1865 = vmatprep.subr.mxu0 0.0
    %1866 = vmatpush2.msra.mxu0 0.0
    %1867 = vmatprep.subr.mxu0 0.0
    %1868 = vmatpush2.msra.mxu0 0.0
    %1869 = vmatprep.subr.mxu0 0.0
    %1870 = vmatpush2.msra.mxu0 0.0
    %1871 = vmatprep.subr.mxu0 0.0
    %1872 = vmatpush2.msra.mxu0 0.0
    %1873 = vmatprep.mubr.f32.mxu0 0.0
    %1874 = vmatmul.mubr.f32.gmra.mxu0 %v1801
    %v1875 = vpop.f32.mrf.mxu0
    %v1876 = vadd.f32 0.0, %v1875
    %v1877 = vpop.f32.mrf.mxu0
    %1878 = vmatprep.mubr.f32.mxu0 0.0
    %1879 = vmatmul.mubr.f32.gmra.mxu0 %v1803
    %v1880 = vpop.f32.mrf.mxu0
    %v1881 = vadd.f32 0.0, %v1880
    %v1882 = vpop.f32.mrf.mxu0
    %1883 = vmatprep.mubr.f32.mxu0 0.0
    %1884 = vmatmul.mubr.f32.gmra.mxu0 %v1805
    %v1885 = vpop.f32.mrf.mxu0
    %v1886 = vadd.f32 0.0, %v1885
    %v1887 = vpop.f32.mrf.mxu0
    %1888 = vmatprep.mubr.f32.mxu0 0.0
    %1889 = vmatmul.mubr.f32.gmra.mxu0 %v1807
    %v1890 = vpop.f32.mrf.mxu0
    %v1891 = vadd.f32 0.0, %v1890
    %v1892 = vpop.f32.mrf.mxu0
    %1893 = vdwg.mxu0
    %vm1894 = vcmask 130048
    %v1896 = vsel %vm1894, %v496, 0
    %v1899 = vsel %vm1894, %v501, 0
    %v1902 = vsel %vm1894, %v506, 0
    %v1905 = vsel %vm1894, %v511, 0
    %v1908 = vsel %vm1894, %v516, 0
    %v1911 = vsel %vm1894, %v521, 0
    %v1914 = vsel %vm1894, %v1876, 0
    %v1917 = vsel %vm1894, %v1881, 0
    %v1920 = vsel %vm1894, %v1886, 0
    %v1923 = vsel %vm1894, %v1891, 0
    %1925 = vmatprep.subr.mxu0 0.0
    %1926 = vmatpush1.xpose.msra.mxu0 0.0
    %1927 = vmatprep.subr.mxu0 0.0
    %1928 = vmatpush1.xpose.msra.mxu0 0.0
    %1929 = vmatprep.subr.mxu0 0.0
    %1930 = vmatpush1.xpose.msra.mxu0 0.0
    %1931 = vmatprep.subr.mxu0 0.0
    %1932 = vmatpush1.xpose.msra.mxu0 0.0
    %1933 = vmatprep.subr.mxu0 0.0
    %1934 = vmatpush1.xpose.msra.mxu0 0.0
    %1935 = vmatprep.subr.mxu0 0.0
    %1936 = vmatpush1.xpose.msra.mxu0 0.0
    %1937 = vmatprep.subr.mxu0 0.0
    %1938 = vmatpush1.xpose.msra.mxu0 0.0
    %1939 = vmatprep.subr.mxu0 0.0
    %1940 = vmatpush1.xpose.msra.mxu0 0.0
    %1941 = vmatprep.subr.mxu0 0.0
    %1942 = vmatpush1.xpose.msra.mxu0 0.0
    %1943 = vmatprep.subr.mxu0 0.0
    %1944 = vmatpush1.xpose.msra.mxu0 0.0
    %1945 = vmatprep.subr.mxu0 0.0
    %1946 = vmatpush1.xpose.msra.mxu0 0.0
    %1947 = vmatprep.subr.mxu0 0.0
    %1948 = vmatpush1.xpose.msra.mxu0 0.0
    %1949 = vmatprep.subr.mxu0 0.0
    %1950 = vmatpush1.xpose.msra.mxu0 %v1923
    %1951 = vmatprep.subr.mxu0 0.0
    %1952 = vmatpush1.xpose.msra.mxu0 %v1920
    %1953 = vmatprep.subr.mxu0 0.0
    %1954 = vmatpush1.xpose.msra.mxu0 %v1917
    %1955 = vmatprep.subr.mxu0 0.0
    %1956 = vmatpush1.xpose.msra.mxu0 %v1914
    %1957 = vmatprep.subr.mxu0 0.0
    %1958 = vmatpush2.xpose.msra.mxu0 0.0
    %1959 = vmatprep.subr.mxu0 0.0
    %1960 = vmatpush2.xpose.msra.mxu0 0.0
    %1961 = vmatprep.subr.mxu0 0.0
    %1962 = vmatpush2.xpose.msra.mxu0 0.0
    %1963 = vmatprep.subr.mxu0 0.0
    %1964 = vmatpush2.xpose.msra.mxu0 0.0
    %1965 = vmatprep.subr.mxu0 0.0
    %1966 = vmatpush2.xpose.msra.mxu0 0.0
    %1967 = vmatprep.subr.mxu0 0.0
    %1968 = vmatpush2.xpose.msra.mxu0 0.0
    %1969 = vmatprep.subr.mxu0 0.0
    %1970 = vmatpush2.xpose.msra.mxu0 0.0
    %1971 = vmatprep.subr.mxu0 0.0
    %1972 = vmatpush2.xpose.msra.mxu0 0.0
    %1973 = vmatprep.subr.mxu0 0.0
    %1974 = vmatpush2.xpose.msra.mxu0 0.0
    %1975 = vmatprep.subr.mxu0 0.0
    %1976 = vmatpush2.xpose.msra.mxu0 0.0
    %1977 = vmatprep.subr.mxu0 0.0
    %1978 = vmatpush2.xpose.msra.mxu0 0.0
    %1979 = vmatprep.subr.mxu0 0.0
    %1980 = vmatpush2.xpose.msra.mxu0 0.0
    %1981 = vmatprep.subr.mxu0 0.0
    %1982 = vmatpush2.xpose.msra.mxu0 0.0
    %1983 = vmatprep.subr.mxu0 0.0
    %1984 = vmatpush2.xpose.msra.mxu0 0.0
    %1985 = vmatprep.subr.mxu0 0.0
    %1986 = vmatpush2.xpose.msra.mxu0 0.0
    %1987 = vmatprep.subr.mxu0 0.0
    %1988 = vmatpush2.xpose.msra.mxu0 0.0
    %1989 = vmatprep.mubr.f32.mxu0 0.0
    %1990 = vmatmul.mubr.f32.gmra.mxu0 %v1896
    %v1991 = vpop.f32.mrf.mxu0
    %v1992 = vadd.f32 0.0, %v1991
    %v1993 = vpop.f32.mrf.mxu0
    %1994 = vmatprep.mubr.f32.mxu0 0.0
    %1995 = vmatmul.mubr.f32.gmra.mxu0 %v1899
    %v1996 = vpop.f32.mrf.mxu0
    %v1997 = vadd.f32 0.0, %v1996
    %v1998 = vpop.f32.mrf.mxu0
    %1999 = vmatprep.mubr.f32.mxu0 0.0
    %2000 = vmatmul.mubr.f32.gmra.mxu0 %v1902
    %v2001 = vpop.f32.mrf.mxu0
    %v2002 = vadd.f32 0.0, %v2001
    %v2003 = vpop.f32.mrf.mxu0
    %2004 = vmatprep.mubr.f32.mxu0 0.0
    %2005 = vmatmul.mubr.f32.gmra.mxu0 %v1905
    %v2006 = vpop.f32.mrf.mxu0
    %v2007 = vadd.f32 0.0, %v2006
    %v2008 = vpop.f32.mrf.mxu0
    %2009 = vmatprep.mubr.f32.mxu0 0.0
    %2010 = vmatmul.mubr.f32.gmra.mxu0 %v1908
    %v2011 = vpop.f32.mrf.mxu0
    %v2012 = vadd.f32 0.0, %v2011
    %v2013 = vpop.f32.mrf.mxu0
    %2014 = vmatprep.mubr.f32.mxu0 0.0
    %2015 = vmatmul.mubr.f32.gmra.mxu0 %v1911
    %v2016 = vpop.f32.mrf.mxu0
    %v2017 = vadd.f32 0.0, %v2016
    %v2018 = vpop.f32.mrf.mxu0
    %2019 = vdwg.mxu0
    %v2020 = vmul.f32 %v1992, 0.25
    %v2021 = vmul.f32 %v1997, 0.25
    %v2022 = vmul.f32 %v2002, 0.25
    %v2023 = vmul.f32 %v2007, 0.25
    %v2024 = vmul.f32 %v2012, 0.25
    %v2025 = vmul.f32 %v2017, 0.25
    %v2026 = vadd.f32 %v2020, %v174
    %v2027 = vadd.f32 %v2021, %v175
    %v2028 = vadd.f32 %v2022, %v176
    %v2029 = vadd.f32 %v2023, %v177
    %v2030 = vadd.f32 %v2024, %v178
    %v2031 = vadd.f32 %v2025, %v179
    %v2032 = vsel %vm188, %v2026, -inf
    %2033 = vmax.xlane.f32.xlu0 %v2032
    %v2034 = vpop.xlane.xlu0 %2033
    %v2035 = vsel %vm188, %v2027, -inf
    %2036 = vmax.xlane.f32.xlu0 %v2035
    %v2037 = vpop.xlane.xlu0 %2036
    %v2038 = vsel %vm188, %v2028, -inf
    %2039 = vmax.xlane.f32.xlu0 %v2038
    %v2040 = vpop.xlane.xlu0 %2039
    %v2041 = vsel %vm188, %v2029, -inf
    %2042 = vmax.xlane.f32.xlu0 %v2041
    %v2043 = vpop.xlane.xlu0 %2042
    %v2044 = vsel %vm188, %v2030, -inf
    %2045 = vmax.xlane.f32.xlu0 %v2044
    %v2046 = vpop.xlane.xlu0 %2045
    %v2047 = vsel %vm188, %v2031, -inf
    %2048 = vmax.xlane.f32.xlu0 %v2047
    %v2049 = vpop.xlane.xlu0 %2048
    %v2050 = vsub.f32 %v2026, %v2034
    %v2051 = vsub.f32 %v2027, %v2037
    %v2052 = vsub.f32 %v2028, %v2040
    %v2053 = vsub.f32 %v2029, %v2043
    %v2054 = vsub.f32 %v2030, %v2046
    %v2055 = vsub.f32 %v2031, %v2049
    %v2056 = vmul.f32 %v2050, 1.442695
    %v2057 = vpow.pop %v2056
    %v2058 = vmul.f32 %v2051, 1.442695
    %v2059 = vpow.pop %v2058
    %v2060 = vmul.f32 %v2052, 1.442695
    %v2061 = vpow.pop %v2060
    %v2062 = vmul.f32 %v2053, 1.442695
    %v2063 = vpow.pop %v2062
    %v2064 = vmul.f32 %v2054, 1.442695
    %v2065 = vpow.pop %v2064
    %v2066 = vmul.f32 %v2055, 1.442695
    %v2067 = vpow.pop %v2066
    %v2068 = vsel %vm188, %v2057, 0.0
    %2069 = vadd.xlane.f32.xlu0 %v2068
    %v2070 = vpop.xlane.xlu0 %2069
    %v2071 = vsel %vm188, %v2059, 0.0
    %2072 = vadd.xlane.f32.xlu0 %v2071
    %v2073 = vpop.xlane.xlu0 %2072
    %v2074 = vsel %vm188, %v2061, 0.0
    %2075 = vadd.xlane.f32.xlu0 %v2074
    %v2076 = vpop.xlane.xlu0 %2075
    %v2077 = vsel %vm188, %v2063, 0.0
    %2078 = vadd.xlane.f32.xlu0 %v2077
    %v2079 = vpop.xlane.xlu0 %2078
    %v2080 = vsel %vm188, %v2065, 0.0
    %2081 = vadd.xlane.f32.xlu0 %v2080
    %v2082 = vpop.xlane.xlu0 %2081
    %v2083 = vsel %vm188, %v2067, 0.0
    %2084 = vadd.xlane.f32.xlu0 %v2083
    %v2085 = vpop.xlane.xlu0 %2084
    %v2086 = vrcp.pop %v2070
    %v2087 = vrcp.pop %v2073
    %v2088 = vrcp.pop %v2076
    %v2089 = vrcp.pop %v2079
    %v2090 = vrcp.pop %v2082
    %v2091 = vrcp.pop %v2085
    %v2092 = vmul.f32 %v2057, %v2086
    %v2093 = vmul.f32 %v2059, %v2087
    %v2094 = vmul.f32 %v2061, %v2088
    %v2095 = vmul.f32 %v2063, %v2089
    %v2096 = vmul.f32 %v2065, %v2090
    %v2097 = vmul.f32 %v2067, %v2091
    %v2098 = vadd.f32 %v2092, 0.0
    %v2099 = vadd.f32 %v2093, 0.0
    %v2100 = vadd.f32 %v2094, 0.0
    %v2101 = vadd.f32 %v2095, 0.0
    %v2102 = vadd.f32 %v2096, 0.0
    %v2103 = vadd.f32 %v2097, 0.0
    %2104 = vrot.lane.b32.xlu0 %v496, 112
    %v2105 = vpop.permute.xlu0 %2104
    %2106 = vrot.lane.b32.xlu0 %v501, 112
    %v2107 = vpop.permute.xlu0 %2106
    %2108 = vrot.lane.b32.xlu0 %v506, 112
    %v2109 = vpop.permute.xlu0 %2108
    %2110 = vrot.lane.b32.xlu0 %v511, 112
    %v2111 = vpop.permute.xlu0 %2110
    %2112 = vrot.lane.b32.xlu0 %v516, 112
    %v2113 = vpop.permute.xlu0 %2112
    %2114 = vrot.lane.b32.xlu0 %v521, 112
    %v2115 = vpop.permute.xlu0 %2114
    %2116 = vrot.lane.b32.xlu0 %v1876, 112
    %v2117 = vpop.permute.xlu0 %2116
    %2118 = vrot.lane.b32.xlu0 %v1881, 112
    %v2119 = vpop.permute.xlu0 %2118
    %2120 = vrot.lane.b32.xlu0 %v1886, 112
    %v2121 = vpop.permute.xlu0 %2120
    %2122 = vrot.lane.b32.xlu0 %v1891, 112
    %v2123 = vpop.permute.xlu0 %2122
    %v2124 = vsel %vm1894, %v2105, 0
    %v2126 = vsel %vm1894, %v2107, 0
    %v2128 = vsel %vm1894, %v2109, 0
    %v2130 = vsel %vm1894, %v2111, 0
    %v2132 = vsel %vm1894, %v2113, 0
    %v2134 = vsel %vm1894, %v2115, 0
    %v2136 = vsel %vm1894, %v2117, 0
    %v2138 = vsel %vm1894, %v2119, 0
    %v2140 = vsel %vm1894, %v2121, 0
    %v2142 = vsel %vm1894, %v2123, 0
    %2144 = vmatprep.subr.mxu0 0.0
    %2145 = vmatpush1.xpose.msra.mxu0 0.0
    %2146 = vmatprep.subr.mxu0 0.0
    %2147 = vmatpush1.xpose.msra.mxu0 0.0
    %2148 = vmatprep.subr.mxu0 0.0
    %2149 = vmatpush1.xpose.msra.mxu0 0.0
    %2150 = vmatprep.subr.mxu0 0.0
    %2151 = vmatpush1.xpose.msra.mxu0 0.0
    %2152 = vmatprep.subr.mxu0 0.0
    %2153 = vmatpush1.xpose.msra.mxu0 0.0
    %2154 = vmatprep.subr.mxu0 0.0
    %2155 = vmatpush1.xpose.msra.mxu0 0.0
    %2156 = vmatprep.subr.mxu0 0.0
    %2157 = vmatpush1.xpose.msra.mxu0 0.0
    %2158 = vmatprep.subr.mxu0 0.0
    %2159 = vmatpush1.xpose.msra.mxu0 0.0
    %2160 = vmatprep.subr.mxu0 0.0
    %2161 = vmatpush1.xpose.msra.mxu0 0.0
    %2162 = vmatprep.subr.mxu0 0.0
    %2163 = vmatpush1.xpose.msra.mxu0 0.0
    %2164 = vmatprep.subr.mxu0 0.0
    %2165 = vmatpush1.xpose.msra.mxu0 0.0
    %2166 = vmatprep.subr.mxu0 0.0
    %2167 = vmatpush1.xpose.msra.mxu0 0.0
    %2168 = vmatprep.subr.mxu0 0.0
    %2169 = vmatpush1.xpose.msra.mxu0 %v2142
    %2170 = vmatprep.subr.mxu0 0.0
    %2171 = vmatpush1.xpose.msra.mxu0 %v2140
    %2172 = vmatprep.subr.mxu0 0.0
    %2173 = vmatpush1.xpose.msra.mxu0 %v2138
    %2174 = vmatprep.subr.mxu0 0.0
    %2175 = vmatpush1.xpose.msra.mxu0 %v2136
    %2176 = vmatprep.subr.mxu0 0.0
    %2177 = vmatpush2.xpose.msra.mxu0 0.0
    %2178 = vmatprep.subr.mxu0 0.0
    %2179 = vmatpush2.xpose.msra.mxu0 0.0
    %2180 = vmatprep.subr.mxu0 0.0
    %2181 = vmatpush2.xpose.msra.mxu0 0.0
    %2182 = vmatprep.subr.mxu0 0.0
    %2183 = vmatpush2.xpose.msra.mxu0 0.0
    %2184 = vmatprep.subr.mxu0 0.0
    %2185 = vmatpush2.xpose.msra.mxu0 0.0
    %2186 = vmatprep.subr.mxu0 0.0
    %2187 = vmatpush2.xpose.msra.mxu0 0.0
    %2188 = vmatprep.subr.mxu0 0.0
    %2189 = vmatpush2.xpose.msra.mxu0 0.0
    %2190 = vmatprep.subr.mxu0 0.0
    %2191 = vmatpush2.xpose.msra.mxu0 0.0
    %2192 = vmatprep.subr.mxu0 0.0
    %2193 = vmatpush2.xpose.msra.mxu0 0.0
    %2194 = vmatprep.subr.mxu0 0.0
    %2195 = vmatpush2.xpose.msra.mxu0 0.0
    %2196 = vmatprep.subr.mxu0 0.0
    %2197 = vmatpush2.xpose.msra.mxu0 0.0
    %2198 = vmatprep.subr.mxu0 0.0
    %2199 = vmatpush2.xpose.msra.mxu0 0.0
    %2200 = vmatprep.subr.mxu0 0.0
    %2201 = vmatpush2.xpose.msra.mxu0 0.0
    %2202 = vmatprep.subr.mxu0 0.0
    %2203 = vmatpush2.xpose.msra.mxu0 0.0
    %2204 = vmatprep.subr.mxu0 0.0
    %2205 = vmatpush2.xpose.msra.mxu0 0.0
    %2206 = vmatprep.subr.mxu0 0.0
    %2207 = vmatpush2.xpose.msra.mxu0 0.0
    %2208 = vmatprep.mubr.f32.mxu0 0.0
    %2209 = vmatmul.mubr.f32.gmra.mxu0 %v2124
    %v2210 = vpop.f32.mrf.mxu0
    %v2211 = vadd.f32 0.0, %v2210
    %v2212 = vpop.f32.mrf.mxu0
    %2213 = vmatprep.mubr.f32.mxu0 0.0
    %2214 = vmatmul.mubr.f32.gmra.mxu0 %v2126
    %v2215 = vpop.f32.mrf.mxu0
    %v2216 = vadd.f32 0.0, %v2215
    %v2217 = vpop.f32.mrf.mxu0
    %2218 = vmatprep.mubr.f32.mxu0 0.0
    %2219 = vmatmul.mubr.f32.gmra.mxu0 %v2128
    %v2220 = vpop.f32.mrf.mxu0
    %v2221 = vadd.f32 0.0, %v2220
    %v2222 = vpop.f32.mrf.mxu0
    %2223 = vmatprep.mubr.f32.mxu0 0.0
    %2224 = vmatmul.mubr.f32.gmra.mxu0 %v2130
    %v2225 = vpop.f32.mrf.mxu0
    %v2226 = vadd.f32 0.0, %v2225
    %v2227 = vpop.f32.mrf.mxu0
    %2228 = vmatprep.mubr.f32.mxu0 0.0
    %2229 = vmatmul.mubr.f32.gmra.mxu0 %v2132
    %v2230 = vpop.f32.mrf.mxu0
    %v2231 = vadd.f32 0.0, %v2230
    %v2232 = vpop.f32.mrf.mxu0
    %2233 = vmatprep.mubr.f32.mxu0 0.0
    %2234 = vmatmul.mubr.f32.gmra.mxu0 %v2134
    %v2235 = vpop.f32.mrf.mxu0
    %v2236 = vadd.f32 0.0, %v2235
    %v2237 = vpop.f32.mrf.mxu0
    %2238 = vdwg.mxu0
    %v2239 = vmul.f32 %v2211, 0.25
    %v2240 = vmul.f32 %v2216, 0.25
    %v2241 = vmul.f32 %v2221, 0.25
    %v2242 = vmul.f32 %v2226, 0.25
    %v2243 = vmul.f32 %v2231, 0.25
    %v2244 = vmul.f32 %v2236, 0.25
    %v2245 = vadd.f32 %v2239, %v174
    %v2246 = vadd.f32 %v2240, %v175
    %v2247 = vadd.f32 %v2241, %v176
    %v2248 = vadd.f32 %v2242, %v177
    %v2249 = vadd.f32 %v2243, %v178
    %v2250 = vadd.f32 %v2244, %v179
    %v2251 = vsel %vm188, %v2245, -inf
    %2252 = vmax.xlane.f32.xlu0 %v2251
    %v2253 = vpop.xlane.xlu0 %2252
    %v2254 = vsel %vm188, %v2246, -inf
    %2255 = vmax.xlane.f32.xlu0 %v2254
    %v2256 = vpop.xlane.xlu0 %2255
    %v2257 = vsel %vm188, %v2247, -inf
    %2258 = vmax.xlane.f32.xlu0 %v2257
    %v2259 = vpop.xlane.xlu0 %2258
    %v2260 = vsel %vm188, %v2248, -inf
    %2261 = vmax.xlane.f32.xlu0 %v2260
    %v2262 = vpop.xlane.xlu0 %2261
    %v2263 = vsel %vm188, %v2249, -inf
    %2264 = vmax.xlane.f32.xlu0 %v2263
    %v2265 = vpop.xlane.xlu0 %2264
    %v2266 = vsel %vm188, %v2250, -inf
    %2267 = vmax.xlane.f32.xlu0 %v2266
    %v2268 = vpop.xlane.xlu0 %2267
    %v2269 = vsub.f32 %v2245, %v2253
    %v2270 = vsub.f32 %v2246, %v2256
    %v2271 = vsub.f32 %v2247, %v2259
    %v2272 = vsub.f32 %v2248, %v2262
    %v2273 = vsub.f32 %v2249, %v2265
    %v2274 = vsub.f32 %v2250, %v2268
    %v2275 = vmul.f32 %v2269, 1.442695
    %v2276 = vpow.pop %v2275
    %v2277 = vmul.f32 %v2270, 1.442695
    %v2278 = vpow.pop %v2277
    %v2279 = vmul.f32 %v2271, 1.442695
    %v2280 = vpow.pop %v2279
    %v2281 = vmul.f32 %v2272, 1.442695
    %v2282 = vpow.pop %v2281
    %v2283 = vmul.f32 %v2273, 1.442695
    %v2284 = vpow.pop %v2283
    %v2285 = vmul.f32 %v2274, 1.442695
    %v2286 = vpow.pop %v2285
    %v2287 = vsel %vm188, %v2276, 0.0
    %2288 = vadd.xlane.f32.xlu0 %v2287
    %v2289 = vpop.xlane.xlu0 %2288
    %v2290 = vsel %vm188, %v2278, 0.0
    %2291 = vadd.xlane.f32.xlu0 %v2290
    %v2292 = vpop.xlane.xlu0 %2291
    %v2293 = vsel %vm188, %v2280, 0.0
    %2294 = vadd.xlane.f32.xlu0 %v2293
    %v2295 = vpop.xlane.xlu0 %2294
    %v2296 = vsel %vm188, %v2282, 0.0
    %2297 = vadd.xlane.f32.xlu0 %v2296
    %v2298 = vpop.xlane.xlu0 %2297
    %v2299 = vsel %vm188, %v2284, 0.0
    %2300 = vadd.xlane.f32.xlu0 %v2299
    %v2301 = vpop.xlane.xlu0 %2300
    %v2302 = vsel %vm188, %v2286, 0.0
    %2303 = vadd.xlane.f32.xlu0 %v2302
    %v2304 = vpop.xlane.xlu0 %2303
    %v2305 = vrcp.pop %v2289
    %v2306 = vrcp.pop %v2292
    %v2307 = vrcp.pop %v2295
    %v2308 = vrcp.pop %v2298
    %v2309 = vrcp.pop %v2301
    %v2310 = vrcp.pop %v2304
    %v2311 = vmul.f32 %v2276, %v2305
    %v2312 = vmul.f32 %v2278, %v2306
    %v2313 = vmul.f32 %v2280, %v2307
    %v2314 = vmul.f32 %v2282, %v2308
    %v2315 = vmul.f32 %v2284, %v2309
    %v2316 = vmul.f32 %v2286, %v2310
    %v2317 = vadd.f32 %v2098, %v2311
    %v2318 = vadd.f32 %v2099, %v2312
    %v2319 = vadd.f32 %v2100, %v2313
    %v2320 = vadd.f32 %v2101, %v2314
    %v2321 = vadd.f32 %v2102, %v2315
    %v2322 = vadd.f32 %v2103, %v2316
    %2323 = vrot.lane.b32.xlu0 %v1876, 86
    %v2324 = vpop.permute.xlu0 %2323
    %2325 = vrot.lane.b32.xlu0 %v1881, 86
    %v2326 = vpop.permute.xlu0 %2325
    %2327 = vrot.lane.b32.xlu0 %v1886, 86
    %v2328 = vpop.permute.xlu0 %2327
    %2329 = vrot.lane.b32.xlu0 %v1891, 86
    %v2330 = vpop.permute.xlu0 %2329
    %v2336 = vsel %vm188, %v2311, 0
    %v2339 = vsel %vm188, %v2312, 0
    %v2342 = vsel %vm188, %v2313, 0
    %v2345 = vsel %vm188, %v2314, 0
    %v2348 = vsel %vm188, %v2315, 0
    %v2351 = vsel %vm188, %v2316, 0
    %2353 = vmatprep.subr.mxu0 0.0
    %2354 = vmatpush1.msra.mxu0 0.0
    %2355 = vmatprep.subr.mxu0 0.0
    %2356 = vmatpush1.msra.mxu0 0.0
    %2357 = vmatprep.subr.mxu0 0.0
    %2358 = vmatpush1.msra.mxu0 0.0
    %2359 = vmatprep.subr.mxu0 0.0
    %2360 = vmatpush1.msra.mxu0 0.0
    %2361 = vmatprep.subr.mxu0 0.0
    %2362 = vmatpush1.msra.mxu0 0.0
    %2363 = vmatprep.subr.mxu0 0.0
    %2364 = vmatpush1.msra.mxu0 0.0
    %2365 = vmatprep.subr.mxu0 0.0
    %2366 = vmatpush1.msra.mxu0 0.0
    %2367 = vmatprep.subr.mxu0 0.0
    %2368 = vmatpush1.msra.mxu0 0.0
    %2369 = vmatprep.subr.mxu0 0.0
    %2370 = vmatpush1.msra.mxu0 0.0
    %2371 = vmatprep.subr.mxu0 0.0
    %2372 = vmatpush1.msra.mxu0 0.0
    %2373 = vmatprep.subr.mxu0 0.0
    %2374 = vmatpush1.msra.mxu0 0.0
    %2375 = vmatprep.subr.mxu0 0.0
    %2376 = vmatpush1.msra.mxu0 0.0
    %2377 = vmatprep.subr.mxu0 0.0
    %2378 = vmatpush1.msra.mxu0 %v2330
    %2379 = vmatprep.subr.mxu0 0.0
    %2380 = vmatpush1.msra.mxu0 %v2328
    %2381 = vmatprep.subr.mxu0 0.0
    %2382 = vmatpush1.msra.mxu0 %v2326
    %2383 = vmatprep.subr.mxu0 0.0
    %2384 = vmatpush1.msra.mxu0 %v2324
    %2385 = vmatprep.subr.mxu0 0.0
    %2386 = vmatpush2.msra.mxu0 0.0
    %2387 = vmatprep.subr.mxu0 0.0
    %2388 = vmatpush2.msra.mxu0 0.0
    %2389 = vmatprep.subr.mxu0 0.0
    %2390 = vmatpush2.msra.mxu0 0.0
    %2391 = vmatprep.subr.mxu0 0.0
    %2392 = vmatpush2.msra.mxu0 0.0
    %2393 = vmatprep.subr.mxu0 0.0
    %2394 = vmatpush2.msra.mxu0 0.0
    %2395 = vmatprep.subr.mxu0 0.0
    %2396 = vmatpush2.msra.mxu0 0.0
    %2397 = vmatprep.subr.mxu0 0.0
    %2398 = vmatpush2.msra.mxu0 0.0
    %2399 = vmatprep.subr.mxu0 0.0
    %2400 = vmatpush2.msra.mxu0 0.0
    %2401 = vmatprep.subr.mxu0 0.0
    %2402 = vmatpush2.msra.mxu0 0.0
    %2403 = vmatprep.subr.mxu0 0.0
    %2404 = vmatpush2.msra.mxu0 0.0
    %2405 = vmatprep.subr.mxu0 0.0
    %2406 = vmatpush2.msra.mxu0 0.0
    %2407 = vmatprep.subr.mxu0 0.0
    %2408 = vmatpush2.msra.mxu0 0.0
    %2409 = vmatprep.subr.mxu0 0.0
    %2410 = vmatpush2.msra.mxu0 0.0
    %2411 = vmatprep.subr.mxu0 0.0
    %2412 = vmatpush2.msra.mxu0 0.0
    %2413 = vmatprep.subr.mxu0 0.0
    %2414 = vmatpush2.msra.mxu0 0.0
    %2415 = vmatprep.subr.mxu0 0.0
    %2416 = vmatpush2.msra.mxu0 0.0
    %2417 = vmatprep.mubr.f32.mxu0 0.0
    %2418 = vmatmul.mubr.f32.gmra.mxu0 %v2336
    %v2419 = vpop.f32.mrf.mxu0
    %v2420 = vadd.f32 0.0, %v2419
    %v2421 = vpop.f32.mrf.mxu0
    %2422 = vmatprep.mubr.f32.mxu0 0.0
    %2423 = vmatmul.mubr.f32.gmra.mxu0 %v2339
    %v2424 = vpop.f32.mrf.mxu0
    %v2425 = vadd.f32 0.0, %v2424
    %v2426 = vpop.f32.mrf.mxu0
    %2427 = vmatprep.mubr.f32.mxu0 0.0
    %2428 = vmatmul.mubr.f32.gmra.mxu0 %v2342
    %v2429 = vpop.f32.mrf.mxu0
    %v2430 = vadd.f32 0.0, %v2429
    %v2431 = vpop.f32.mrf.mxu0
    %2432 = vmatprep.mubr.f32.mxu0 0.0
    %2433 = vmatmul.mubr.f32.gmra.mxu0 %v2345
    %v2434 = vpop.f32.mrf.mxu0
    %v2435 = vadd.f32 0.0, %v2434
    %v2436 = vpop.f32.mrf.mxu0
    %2437 = vmatprep.mubr.f32.mxu0 0.0
    %2438 = vmatmul.mubr.f32.gmra.mxu0 %v2348
    %v2439 = vpop.f32.mrf.mxu0
    %v2440 = vadd.f32 0.0, %v2439
    %v2441 = vpop.f32.mrf.mxu0
    %2442 = vmatprep.mubr.f32.mxu0 0.0
    %2443 = vmatmul.mubr.f32.gmra.mxu0 %v2351
    %v2444 = vpop.f32.mrf.mxu0
    %v2445 = vadd.f32 0.0, %v2444
    %v2446 = vpop.f32.mrf.mxu0
    %2447 = vdwg.mxu0
    %2448 = vrot.lane.b32.xlu0 %v1876, 96
    %v2449 = vpop.permute.xlu0 %2448
    %2450 = vrot.lane.b32.xlu0 %v1881, 96
    %v2451 = vpop.permute.xlu0 %2450
    %2452 = vrot.lane.b32.xlu0 %v1886, 96
    %v2453 = vpop.permute.xlu0 %2452
    %2454 = vrot.lane.b32.xlu0 %v1891, 96
    %v2455 = vpop.permute.xlu0 %2454
    %v2461 = vsel %vm188, %v2092, 0
    %v2464 = vsel %vm188, %v2093, 0
    %v2467 = vsel %vm188, %v2094, 0
    %v2470 = vsel %vm188, %v2095, 0
    %v2473 = vsel %vm188, %v2096, 0
    %v2476 = vsel %vm188, %v2097, 0
    %2478 = vmatprep.subr.mxu0 0.0
    %2479 = vmatpush1.msra.mxu0 0.0
    %2480 = vmatprep.subr.mxu0 0.0
    %2481 = vmatpush1.msra.mxu0 0.0
    %2482 = vmatprep.subr.mxu0 0.0
    %2483 = vmatpush1.msra.mxu0 0.0
    %2484 = vmatprep.subr.mxu0 0.0
    %2485 = vmatpush1.msra.mxu0 0.0
    %2486 = vmatprep.subr.mxu0 0.0
    %2487 = vmatpush1.msra.mxu0 0.0
    %2488 = vmatprep.subr.mxu0 0.0
    %2489 = vmatpush1.msra.mxu0 0.0
    %2490 = vmatprep.subr.mxu0 0.0
    %2491 = vmatpush1.msra.mxu0 0.0
    %2492 = vmatprep.subr.mxu0 0.0
    %2493 = vmatpush1.msra.mxu0 0.0
    %2494 = vmatprep.subr.mxu0 0.0
    %2495 = vmatpush1.msra.mxu0 0.0
    %2496 = vmatprep.subr.mxu0 0.0
    %2497 = vmatpush1.msra.mxu0 0.0
    %2498 = vmatprep.subr.mxu0 0.0
    %2499 = vmatpush1.msra.mxu0 0.0
    %2500 = vmatprep.subr.mxu0 0.0
    %2501 = vmatpush1.msra.mxu0 0.0
    %2502 = vmatprep.subr.mxu0 0.0
    %2503 = vmatpush1.msra.mxu0 %v2455
    %2504 = vmatprep.subr.mxu0 0.0
    %2505 = vmatpush1.msra.mxu0 %v2453
    %2506 = vmatprep.subr.mxu0 0.0
    %2507 = vmatpush1.msra.mxu0 %v2451
    %2508 = vmatprep.subr.mxu0 0.0
    %2509 = vmatpush1.msra.mxu0 %v2449
    %2510 = vmatprep.subr.mxu0 0.0
    %2511 = vmatpush2.msra.mxu0 0.0
    %2512 = vmatprep.subr.mxu0 0.0
    %2513 = vmatpush2.msra.mxu0 0.0
    %2514 = vmatprep.subr.mxu0 0.0
    %2515 = vmatpush2.msra.mxu0 0.0
    %2516 = vmatprep.subr.mxu0 0.0
    %2517 = vmatpush2.msra.mxu0 0.0
    %2518 = vmatprep.subr.mxu0 0.0
    %2519 = vmatpush2.msra.mxu0 0.0
    %2520 = vmatprep.subr.mxu0 0.0
    %2521 = vmatpush2.msra.mxu0 0.0
    %2522 = vmatprep.subr.mxu0 0.0
    %2523 = vmatpush2.msra.mxu0 0.0
    %2524 = vmatprep.subr.mxu0 0.0
    %2525 = vmatpush2.msra.mxu0 0.0
    %2526 = vmatprep.subr.mxu0 0.0
    %2527 = vmatpush2.msra.mxu0 0.0
    %2528 = vmatprep.subr.mxu0 0.0
    %2529 = vmatpush2.msra.mxu0 0.0
    %2530 = vmatprep.subr.mxu0 0.0
    %2531 = vmatpush2.msra.mxu0 0.0
    %2532 = vmatprep.subr.mxu0 0.0
    %2533 = vmatpush2.msra.mxu0 0.0
    %2534 = vmatprep.subr.mxu0 0.0
    %2535 = vmatpush2.msra.mxu0 0.0
    %2536 = vmatprep.subr.mxu0 0.0
    %2537 = vmatpush2.msra.mxu0 0.0
    %2538 = vmatprep.subr.mxu0 0.0
    %2539 = vmatpush2.msra.mxu0 0.0
    %2540 = vmatprep.subr.mxu0 0.0
    %2541 = vmatpush2.msra.mxu0 0.0
    %2542 = vmatprep.mubr.f32.mxu0 0.0
    %2543 = vmatmul.mubr.f32.gmra.mxu0 %v2461
    %v2544 = vpop.f32.mrf.mxu0
    %v2545 = vadd.f32 %v2420, %v2544
    %v2546 = vpop.f32.mrf.mxu0
    %2547 = vmatprep.mubr.f32.mxu0 0.0
    %2548 = vmatmul.mubr.f32.gmra.mxu0 %v2464
    %v2549 = vpop.f32.mrf.mxu0
    %v2550 = vadd.f32 %v2425, %v2549
    %v2551 = vpop.f32.mrf.mxu0
    %2552 = vmatprep.mubr.f32.mxu0 0.0
    %2553 = vmatmul.mubr.f32.gmra.mxu0 %v2467
    %v2554 = vpop.f32.mrf.mxu0
    %v2555 = vadd.f32 %v2430, %v2554
    %v2556 = vpop.f32.mrf.mxu0
    %2557 = vmatprep.mubr.f32.mxu0 0.0
    %2558 = vmatmul.mubr.f32.gmra.mxu0 %v2470
    %v2559 = vpop.f32.mrf.mxu0
    %v2560 = vadd.f32 %v2435, %v2559
    %v2561 = vpop.f32.mrf.mxu0
    %2562 = vmatprep.mubr.f32.mxu0 0.0
    %2563 = vmatmul.mubr.f32.gmra.mxu0 %v2473
    %v2564 = vpop.f32.mrf.mxu0
    %v2565 = vadd.f32 %v2440, %v2564
    %v2566 = vpop.f32.mrf.mxu0
    %2567 = vmatprep.mubr.f32.mxu0 0.0
    %2568 = vmatmul.mubr.f32.gmra.mxu0 %v2476
    %v2569 = vpop.f32.mrf.mxu0
    %v2570 = vadd.f32 %v2445, %v2569
    %v2571 = vpop.f32.mrf.mxu0
    %2572 = vdwg.mxu0
    %v2573 = vmul.f32 %v2317, 0.5
    %v2574 = vmul.f32 %v2318, 0.5
    %v2575 = vmul.f32 %v2319, 0.5
    %v2576 = vmul.f32 %v2320, 0.5
    %v2577 = vmul.f32 %v2321, 0.5
    %v2578 = vmul.f32 %v2322, 0.5
    %2579 = vst.msk [vmem:[%s15] sm:$0xff] %vm188, %v2573
    %2580 = vst.msk [vmem:[%s15 + $0x8] sm:$0xff] %vm188, %v2574
    %2581 = vst.msk [vmem:[%s15 + $0x10] sm:$0xff] %vm188, %v2575
    %2582 = vst.msk [vmem:[%s15 + $0x18] sm:$0xff] %vm188, %v2576
    %2583 = vst.msk [vmem:[%s15 + $0x20] sm:$0xff] %vm188, %v2577
    %2584 = vst.msk [vmem:[%s15 + $0x28] sm:$0xff] %vm188, %v2578
    %v2585 = vadd.f32 %v2545, 0.0
    %v2586 = vadd.f32 %v2550, 0.0
    %v2587 = vadd.f32 %v2555, 0.0
    %v2588 = vadd.f32 %v2560, 0.0
    %v2589 = vadd.f32 %v2565, 0.0
    %v2590 = vadd.f32 %v2570, 0.0
    %s2591 = scalar_lea.vmem [#allocation10], 8
    %v2592 = vld [vmem:[%s2591] sm:$0x3f]
    %s2593 = scalar_lea.vmem [#allocation11], 96
    %v2594 = vld [vmem:[%s2593] sm:$0xff]
    %v2595 = vld [vmem:[%s2593 + $0x8] sm:$0xff]
    %v2596 = vld [vmem:[%s2593 + $0x10] sm:$0xff]
    %v2597 = vld [vmem:[%s2593 + $0x18] sm:$0xff]
    %s2598 = scalar_lea.vmem [#allocation11], 128
    %v2599 = vld [vmem:[%s2598] sm:$0xff]
    %v2600 = vld [vmem:[%s2598 + $0x8] sm:$0xff]
    %v2601 = vld [vmem:[%s2598 + $0x10] sm:$0xff]
    %v2602 = vld [vmem:[%s2598 + $0x18] sm:$0xff]
    %s2603 = scalar_lea.vmem [#allocation11], 160
    %v2604 = vld [vmem:[%s2603] sm:$0xff]
    %v2605 = vld [vmem:[%s2603 + $0x8] sm:$0xff]
    %v2606 = vld [vmem:[%s2603 + $0x10] sm:$0xff]
    %v2607 = vld [vmem:[%s2603 + $0x18] sm:$0xff]
    %s2608 = scalar_lea.vmem %s9, 64
    %v2609 = vld [vmem:[%s2608] sm:$0xff]
    %v2610 = vld [vmem:[%s2608 + $0x8] sm:$0xff]
    %v2611 = vld [vmem:[%s2608 + $0x10] sm:$0xff]
    %v2612 = vld [vmem:[%s2608 + $0x18] sm:$0xff]
    %s2613 = scalar_lea.vmem %s9, 96
    %v2614 = vld [vmem:[%s2613] sm:$0xff]
    %v2615 = vld [vmem:[%s2613 + $0x8] sm:$0xff]
    %v2616 = vld [vmem:[%s2613 + $0x10] sm:$0xff]
    %v2617 = vld [vmem:[%s2613 + $0x18] sm:$0xff]
    %s2618 = scalar_lea.vmem [#allocation13], 2
    %v2619 = vld [vmem:[%s2618] sm:$0x3]
    %s2620 = scalar_lea.vmem [#allocation2], 32
    %v2621 = vld [vmem:[%s2620] sm:$0xff]
    %v2622 = vld [vmem:[%s2620 + $0x8] sm:$0xff]
    %v2623 = vld [vmem:[%s2620 + $0x10] sm:$0xff]
    %v2624 = vld [vmem:[%s2620 + $0x18] sm:$0xff]
    %v2625 = vsel %vm188, %v2621, 0.0
    %2626 = vadd.xlane.f32.xlu0 %v2625
    %v2627 = vpop.xlane.xlu0 %2626
    %v2628 = vsel %vm188, %v2622, 0.0
    %2629 = vadd.xlane.f32.xlu0 %v2628
    %v2630 = vpop.xlane.xlu0 %2629
    %v2631 = vsel %vm188, %v2623, 0.0
    %2632 = vadd.xlane.f32.xlu0 %v2631
    %v2633 = vpop.xlane.xlu0 %2632
    %v2634 = vsel %vm188, %v2624, 0.0
    %2635 = vadd.xlane.f32.xlu0 %v2634
    %v2636 = vpop.xlane.xlu0 %2635
    %v2637 = vmul.f32 %v2627, %v207
    %v2638 = vmul.f32 %v2630, %v207
    %v2639 = vmul.f32 %v2633, %v207
    %v2640 = vmul.f32 %v2636, %v207
    %v2641 = vsub.f32 %v2621, %v2637
    %v2642 = vsub.f32 %v2622, %v2638
    %v2643 = vsub.f32 %v2623, %v2639
    %v2644 = vsub.f32 %v2624, %v2640
    %v2645 = vmul.f32 %v2641, %v2641
    %v2646 = vmul.f32 %v2642, %v2642
    %v2647 = vmul.f32 %v2643, %v2643
    %v2648 = vmul.f32 %v2644, %v2644
    %v2649 = vsel %vm188, %v2645, 0.0
    %2650 = vadd.xlane.f32.xlu0 %v2649
    %v2651 = vpop.xlane.xlu0 %2650
    %v2652 = vsel %vm188, %v2646, 0.0
    %2653 = vadd.xlane.f32.xlu0 %v2652
    %v2654 = vpop.xlane.xlu0 %2653
    %v2655 = vsel %vm188, %v2647, 0.0
    %2656 = vadd.xlane.f32.xlu0 %v2655
    %v2657 = vpop.xlane.xlu0 %2656
    %v2658 = vsel %vm188, %v2648, 0.0
    %2659 = vadd.xlane.f32.xlu0 %v2658
    %v2660 = vpop.xlane.xlu0 %2659
    %v2661 = vmul.f32 %v2651, %v207
    %v2662 = vmul.f32 %v2654, %v207
    %v2663 = vmul.f32 %v2657, %v207
    %v2664 = vmul.f32 %v2660, %v207
    %v2665 = vadd.f32 %v2661, 1e-05
    %v2666 = vadd.f32 %v2662, 1e-05
    %v2667 = vadd.f32 %v2663, 1e-05
    %v2668 = vadd.f32 %v2664, 1e-05
    %v2669 = vrsqrt.pop %v2665
    %v2670 = vrsqrt.pop %v2666
    %v2671 = vrsqrt.pop %v2667
    %v2672 = vrsqrt.pop %v2668
    %v2673 = vmul.f32 %v2641, %v2669
    %v2674 = vmul.f32 %v2642, %v2670
    %v2675 = vmul.f32 %v2643, %v2671
    %v2676 = vmul.f32 %v2644, %v2672
    %v2677 = vlaneseq
    %v2678 = vshrl.u32 %v2677, 7
    %v2679 = vsub.s32 0, %v2678
    %v2680 = vrot.slane %v2592, %v2679
    %v2681 = vmul.f32 %v2673, %v2680
    %v2682 = vmul.f32 %v2674, %v2680
    %v2683 = vmul.f32 %v2675, %v2680
    %v2684 = vmul.f32 %v2676, %v2680
    %v2685 = vlaneseq
    %v2686 = vshrl.u32 %v2685, 7
    %v2687 = vsub.s32 1, %v2686
    %v2688 = vrot.slane %v2592, %v2687
    %v2689 = vadd.f32 %v2681, %v2688
    %v2690 = vadd.f32 %v2682, %v2688
    %v2691 = vadd.f32 %v2683, %v2688
    %v2692 = vadd.f32 %v2684, %v2688
    %v2694 = vsel %vm188, %v2689, 0
    %v2697 = vsel %vm188, %v2690, 0
    %v2700 = vsel %vm188, %v2691, 0
    %v2703 = vsel %vm188, %v2692, 0
    %2705 = vmatprep.subr.mxu0 0.0
    %2706 = vmatpush1.msra.mxu0 0.0
    %2707 = vmatprep.subr.mxu0 0.0
    %2708 = vmatpush1.msra.mxu0 0.0
    %2709 = vmatprep.subr.mxu0 0.0
    %2710 = vmatpush1.msra.mxu0 0.0
    %2711 = vmatprep.subr.mxu0 0.0
    %2712 = vmatpush1.msra.mxu0 0.0
    %2713 = vmatprep.subr.mxu0 0.0
    %2714 = vmatpush1.msra.mxu0 0.0
    %2715 = vmatprep.subr.mxu0 0.0
    %2716 = vmatpush1.msra.mxu0 0.0
    %2717 = vmatprep.subr.mxu0 0.0
    %2718 = vmatpush1.msra.mxu0 0.0
    %2719 = vmatprep.subr.mxu0 0.0
    %2720 = vmatpush1.msra.mxu0 0.0
    %2721 = vmatprep.subr.mxu0 0.0
    %2722 = vmatpush1.msra.mxu0 0.0
    %2723 = vmatprep.subr.mxu0 0.0
    %2724 = vmatpush1.msra.mxu0 0.0
    %2725 = vmatprep.subr.mxu0 0.0
    %2726 = vmatpush1.msra.mxu0 0.0
    %2727 = vmatprep.subr.mxu0 0.0
    %2728 = vmatpush1.msra.mxu0 0.0
    %2729 = vmatprep.subr.mxu0 0.0
    %2730 = vmatpush1.msra.mxu0 %v2597
    %2731 = vmatprep.subr.mxu0 0.0
    %2732 = vmatpush1.msra.mxu0 %v2596
    %2733 = vmatprep.subr.mxu0 0.0
    %2734 = vmatpush1.msra.mxu0 %v2595
    %2735 = vmatprep.subr.mxu0 0.0
    %2736 = vmatpush1.msra.mxu0 %v2594
    %2737 = vmatprep.subr.mxu0 0.0
    %2738 = vmatpush2.msra.mxu0 0.0
    %2739 = vmatprep.subr.mxu0 0.0
    %2740 = vmatpush2.msra.mxu0 0.0
    %2741 = vmatprep.subr.mxu0 0.0
    %2742 = vmatpush2.msra.mxu0 0.0
    %2743 = vmatprep.subr.mxu0 0.0
    %2744 = vmatpush2.msra.mxu0 0.0
    %2745 = vmatprep.subr.mxu0 0.0
    %2746 = vmatpush2.msra.mxu0 0.0
    %2747 = vmatprep.subr.mxu0 0.0
    %2748 = vmatpush2.msra.mxu0 0.0
    %2749 = vmatprep.subr.mxu0 0.0
    %2750 = vmatpush2.msra.mxu0 0.0
    %2751 = vmatprep.subr.mxu0 0.0
    %2752 = vmatpush2.msra.mxu0 0.0
    %2753 = vmatprep.subr.mxu0 0.0
    %2754 = vmatpush2.msra.mxu0 0.0
    %2755 = vmatprep.subr.mxu0 0.0
    %2756 = vmatpush2.msra.mxu0 0.0
    %2757 = vmatprep.subr.mxu0 0.0
    %2758 = vmatpush2.msra.mxu0 0.0
    %2759 = vmatprep.subr.mxu0 0.0
    %2760 = vmatpush2.msra.mxu0 0.0
    %2761 = vmatprep.subr.mxu0 0.0
    %2762 = vmatpush2.msra.mxu0 0.0
    %2763 = vmatprep.subr.mxu0 0.0
    %2764 = vmatpush2.msra.mxu0 0.0
    %2765 = vmatprep.subr.mxu0 0.0
    %2766 = vmatpush2.msra.mxu0 0.0
    %2767 = vmatprep.subr.mxu0 0.0
    %2768 = vmatpush2.msra.mxu0 0.0
    %2769 = vmatprep.mubr.f32.mxu0 0.0
    %2770 = vmatmul.mubr.f32.gmra.mxu0 %v2694
    %v2771 = vpop.f32.mrf.mxu0
    %v2772 = vadd.f32 0.0, %v2771
    %v2773 = vpop.f32.mrf.mxu0
    %2774 = vmatprep.mubr.f32.mxu0 0.0
    %2775 = vmatmul.mubr.f32.gmra.mxu0 %v2697
    %v2776 = vpop.f32.mrf.mxu0
    %v2777 = vadd.f32 0.0, %v2776
    %v2778 = vpop.f32.mrf.mxu0
    %2779 = vmatprep.mubr.f32.mxu0 0.0
    %2780 = vmatmul.mubr.f32.gmra.mxu0 %v2700
    %v2781 = vpop.f32.mrf.mxu0
    %v2782 = vadd.f32 0.0, %v2781
    %v2783 = vpop.f32.mrf.mxu0
    %2784 = vmatprep.mubr.f32.mxu0 0.0
    %2785 = vmatmul.mubr.f32.gmra.mxu0 %v2703
    %v2786 = vpop.f32.mrf.mxu0
    %v2787 = vadd.f32 0.0, %v2786
    %v2788 = vpop.f32.mrf.mxu0
    %2789 = vdwg.mxu0
    %2790 = vrot.lane.b32.xlu0 %v373, 64
    %v2791 = vpop.permute.xlu0 %2790
    %2792 = vrot.lane.b32.xlu0 %v379, 64
    %v2793 = vpop.permute.xlu0 %2792
    %2794 = vrot.lane.b32.xlu0 %v385, 64
    %v2795 = vpop.permute.xlu0 %2794
    %2796 = vrot.lane.b32.xlu0 %v391, 64
    %v2797 = vpop.permute.xlu0 %2796
    %2798 = vrot.lane.b32.xlu0 %v397, 64
    %v2799 = vpop.permute.xlu0 %2798
    %2800 = vrot.lane.b32.xlu0 %v403, 64
    %v2801 = vpop.permute.xlu0 %2800
    %v2802 = vsel %vm188, %v2791, 0
    %v2804 = vsel %vm188, %v2793, 0
    %v2806 = vsel %vm188, %v2795, 0
    %v2808 = vsel %vm188, %v2797, 0
    %v2810 = vsel %vm188, %v2799, 0
    %v2812 = vsel %vm188, %v2801, 0
    %v2815 = vsel %vm188, %v2772, 0
    %v2818 = vsel %vm188, %v2777, 0
    %v2821 = vsel %vm188, %v2782, 0
    %v2824 = vsel %vm188, %v2787, 0
    %2826 = vmatprep.subr.mxu0 0.0
    %2827 = vmatpush1.xpose.msra.mxu0 0.0
    %2828 = vmatprep.subr.mxu0 0.0
    %2829 = vmatpush1.xpose.msra.mxu0 0.0
    %2830 = vmatprep.subr.mxu0 0.0
    %2831 = vmatpush1.xpose.msra.mxu0 0.0
    %2832 = vmatprep.subr.mxu0 0.0
    %2833 = vmatpush1.xpose.msra.mxu0 0.0
    %2834 = vmatprep.subr.mxu0 0.0
    %2835 = vmatpush1.xpose.msra.mxu0 0.0
    %2836 = vmatprep.subr.mxu0 0.0
    %2837 = vmatpush1.xpose.msra.mxu0 0.0
    %2838 = vmatprep.subr.mxu0 0.0
    %2839 = vmatpush1.xpose.msra.mxu0 0.0
    %2840 = vmatprep.subr.mxu0 0.0
    %2841 = vmatpush1.xpose.msra.mxu0 0.0
    %2842 = vmatprep.subr.mxu0 0.0
    %2843 = vmatpush1.xpose.msra.mxu0 0.0
    %2844 = vmatprep.subr.mxu0 0.0
    %2845 = vmatpush1.xpose.msra.mxu0 0.0
    %2846 = vmatprep.subr.mxu0 0.0
    %2847 = vmatpush1.xpose.msra.mxu0 0.0
    %2848 = vmatprep.subr.mxu0 0.0
    %2849 = vmatpush1.xpose.msra.mxu0 0.0
    %2850 = vmatprep.subr.mxu0 0.0
    %2851 = vmatpush1.xpose.msra.mxu0 %v2824
    %2852 = vmatprep.subr.mxu0 0.0
    %2853 = vmatpush1.xpose.msra.mxu0 %v2821
    %2854 = vmatprep.subr.mxu0 0.0
    %2855 = vmatpush1.xpose.msra.mxu0 %v2818
    %2856 = vmatprep.subr.mxu0 0.0
    %2857 = vmatpush1.xpose.msra.mxu0 %v2815
    %2858 = vmatprep.subr.mxu0 0.0
    %2859 = vmatpush2.xpose.msra.mxu0 0.0
    %2860 = vmatprep.subr.mxu0 0.0
    %2861 = vmatpush2.xpose.msra.mxu0 0.0
    %2862 = vmatprep.subr.mxu0 0.0
    %2863 = vmatpush2.xpose.msra.mxu0 0.0
    %2864 = vmatprep.subr.mxu0 0.0
    %2865 = vmatpush2.xpose.msra.mxu0 0.0
    %2866 = vmatprep.subr.mxu0 0.0
    %2867 = vmatpush2.xpose.msra.mxu0 0.0
    %2868 = vmatprep.subr.mxu0 0.0
    %2869 = vmatpush2.xpose.msra.mxu0 0.0
    %2870 = vmatprep.subr.mxu0 0.0
    %2871 = vmatpush2.xpose.msra.mxu0 0.0
    %2872 = vmatprep.subr.mxu0 0.0
    %2873 = vmatpush2.xpose.msra.mxu0 0.0
    %2874 = vmatprep.subr.mxu0 0.0
    %2875 = vmatpush2.xpose.msra.mxu0 0.0
    %2876 = vmatprep.subr.mxu0 0.0
    %2877 = vmatpush2.xpose.msra.mxu0 0.0
    %2878 = vmatprep.subr.mxu0 0.0
    %2879 = vmatpush2.xpose.msra.mxu0 0.0
    %2880 = vmatprep.subr.mxu0 0.0
    %2881 = vmatpush2.xpose.msra.mxu0 0.0
    %2882 = vmatprep.subr.mxu0 0.0
    %2883 = vmatpush2.xpose.msra.mxu0 0.0
    %2884 = vmatprep.subr.mxu0 0.0
    %2885 = vmatpush2.xpose.msra.mxu0 0.0
    %2886 = vmatprep.subr.mxu0 0.0
    %2887 = vmatpush2.xpose.msra.mxu0 0.0
    %2888 = vmatprep.subr.mxu0 0.0
    %2889 = vmatpush2.xpose.msra.mxu0 0.0
    %2890 = vmatprep.mubr.f32.mxu0 0.0
    %2891 = vmatmul.mubr.f32.gmra.mxu0 %v2802
    %v2892 = vpop.f32.mrf.mxu0
    %v2893 = vadd.f32 %v174, %v2892
    %v2894 = vpop.f32.mrf.mxu0
    %2895 = vmatprep.mubr.f32.mxu0 0.0
    %2896 = vmatmul.mubr.f32.gmra.mxu0 %v2804
    %v2897 = vpop.f32.mrf.mxu0
    %v2898 = vadd.f32 %v175, %v2897
    %v2899 = vpop.f32.mrf.mxu0
    %2900 = vmatprep.mubr.f32.mxu0 0.0
    %2901 = vmatmul.mubr.f32.gmra.mxu0 %v2806
    %v2902 = vpop.f32.mrf.mxu0
    %v2903 = vadd.f32 %v176, %v2902
    %v2904 = vpop.f32.mrf.mxu0
    %2905 = vmatprep.mubr.f32.mxu0 0.0
    %2906 = vmatmul.mubr.f32.gmra.mxu0 %v2808
    %v2907 = vpop.f32.mrf.mxu0
    %v2908 = vadd.f32 %v177, %v2907
    %v2909 = vpop.f32.mrf.mxu0
    %2910 = vmatprep.mubr.f32.mxu0 0.0
    %2911 = vmatmul.mubr.f32.gmra.mxu0 %v2810
    %v2912 = vpop.f32.mrf.mxu0
    %v2913 = vadd.f32 %v178, %v2912
    %v2914 = vpop.f32.mrf.mxu0
    %2915 = vmatprep.mubr.f32.mxu0 0.0
    %2916 = vmatmul.mubr.f32.gmra.mxu0 %v2812
    %v2917 = vpop.f32.mrf.mxu0
    %v2918 = vadd.f32 %v179, %v2917
    %v2919 = vpop.f32.mrf.mxu0
    %2920 = vdwg.mxu0
    %v2921 = vsel %vm188, %v2893, -inf
    %2922 = vmax.xlane.f32.xlu0 %v2921
    %v2923 = vpop.xlane.xlu0 %2922
    %v2924 = vsel %vm188, %v2898, -inf
    %2925 = vmax.xlane.f32.xlu0 %v2924
    %v2926 = vpop.xlane.xlu0 %2925
    %v2927 = vsel %vm188, %v2903, -inf
    %2928 = vmax.xlane.f32.xlu0 %v2927
    %v2929 = vpop.xlane.xlu0 %2928
    %v2930 = vsel %vm188, %v2908, -inf
    %2931 = vmax.xlane.f32.xlu0 %v2930
    %v2932 = vpop.xlane.xlu0 %2931
    %v2933 = vsel %vm188, %v2913, -inf
    %2934 = vmax.xlane.f32.xlu0 %v2933
    %v2935 = vpop.xlane.xlu0 %2934
    %v2936 = vsel %vm188, %v2918, -inf
    %2937 = vmax.xlane.f32.xlu0 %v2936
    %v2938 = vpop.xlane.xlu0 %2937
    %v2939 = vsub.f32 %v2893, %v2923
    %v2940 = vsub.f32 %v2898, %v2926
    %v2941 = vsub.f32 %v2903, %v2929
    %v2942 = vsub.f32 %v2908, %v2932
    %v2943 = vsub.f32 %v2913, %v2935
    %v2944 = vsub.f32 %v2918, %v2938
    %v2945 = vmul.f32 %v2939, 1.442695
    %v2946 = vpow.pop %v2945
    %v2947 = vmul.f32 %v2940, 1.442695
    %v2948 = vpow.pop %v2947
    %v2949 = vmul.f32 %v2941, 1.442695
    %v2950 = vpow.pop %v2949
    %v2951 = vmul.f32 %v2942, 1.442695
    %v2952 = vpow.pop %v2951
    %v2953 = vmul.f32 %v2943, 1.442695
    %v2954 = vpow.pop %v2953
    %v2955 = vmul.f32 %v2944, 1.442695
    %v2956 = vpow.pop %v2955
    %v2957 = vsel %vm188, %v2946, 0.0
    %2958 = vadd.xlane.f32.xlu0 %v2957
    %v2959 = vpop.xlane.xlu0 %2958
    %v2960 = vsel %vm188, %v2948, 0.0
    %2961 = vadd.xlane.f32.xlu0 %v2960
    %v2962 = vpop.xlane.xlu0 %2961
    %v2963 = vsel %vm188, %v2950, 0.0
    %2964 = vadd.xlane.f32.xlu0 %v2963
    %v2965 = vpop.xlane.xlu0 %2964
    %v2966 = vsel %vm188, %v2952, 0.0
    %2967 = vadd.xlane.f32.xlu0 %v2966
    %v2968 = vpop.xlane.xlu0 %2967
    %v2969 = vsel %vm188, %v2954, 0.0
    %2970 = vadd.xlane.f32.xlu0 %v2969
    %v2971 = vpop.xlane.xlu0 %2970
    %v2972 = vsel %vm188, %v2956, 0.0
    %2973 = vadd.xlane.f32.xlu0 %v2972
    %v2974 = vpop.xlane.xlu0 %2973
    %v2975 = vrcp.pop %v2959
    %v2976 = vmul.f32 %v2946, %v2975
    %v2977 = vrcp.pop %v2962
    %v2978 = vmul.f32 %v2948, %v2977
    %v2979 = vrcp.pop %v2965
    %v2980 = vmul.f32 %v2950, %v2979
    %v2981 = vrcp.pop %v2968
    %v2982 = vmul.f32 %v2952, %v2981
    %v2983 = vrcp.pop %v2971
    %v2984 = vmul.f32 %v2954, %v2983
    %v2985 = vrcp.pop %v2974
    %v2986 = vmul.f32 %v2956, %v2985
    %v2987 = vadd.f32 %v2976, 1e-08
    %v2988 = vadd.f32 %v2978, 1e-08
    %v2989 = vadd.f32 %v2980, 1e-08
    %v2990 = vadd.f32 %v2982, 1e-08
    %v2991 = vadd.f32 %v2984, 1e-08
    %v2992 = vadd.f32 %v2986, 1e-08
    %v2993 = vmul.f32 %v2987, %v181
    %v2994 = vmul.f32 %v2988, %v182
    %v2995 = vmul.f32 %v2989, %v183
    %v2996 = vmul.f32 %v2990, %v184
    %v2997 = vmul.f32 %v2991, %v185
    %v2998 = vmul.f32 %v2992, %v186
    %v2999 = vsel %vm188, %v2993, 0.0
    %v3000 = vsel %vm188, %v2994, 0.0
    %v3001 = vadd.f32 %v2999, %v3000
    %v3002 = vsel %vm188, %v2995, 0.0
    %v3003 = vadd.f32 %v3001, %v3002
    %v3004 = vsel %vm188, %v2996, 0.0
    %v3005 = vadd.f32 %v3003, %v3004
    %v3006 = vsel %vm188, %v2997, 0.0
    %v3007 = vadd.f32 %v3005, %v3006
    %v3008 = vsel %vm188, %v2998, 0.0
    %v3009 = vadd.f32 %v3007, %v3008
    %v3010 = vrot.slane %v3009, 4
    %v3011 = vadd.f32 %v3009, %v3010
    %v3012 = vrot.slane %v3011, 2
    %v3013 = vadd.f32 %v3011, %v3012
    %v3014 = vrot.slane %v3013, 1
    %v3015 = vadd.f32 %v3013, %v3014
    %v3016 = vrcp.pop %v3015
    %v3017 = vmul.f32 %v2993, %v3016
    %v3018 = vmul.f32 %v2994, %v3016
    %v3019 = vmul.f32 %v2995, %v3016
    %v3020 = vmul.f32 %v2996, %v3016
    %v3021 = vmul.f32 %v2997, %v3016
    %v3022 = vmul.f32 %v2998, %v3016
    %3023 = vxpose.xlu0.b32.start [1/16] %v3017, 128
    %3024 = vxpose.xlu0.b32.cont [2/16] %v3018, 128
    %3025 = vxpose.xlu0.b32.cont [3/16] %v3019, 128
    %3026 = vxpose.xlu0.b32.cont [4/16] %v3020, 128
    %3027 = vxpose.xlu0.b32.cont [5/16] %v3021, 128
    %3028 = vxpose.xlu0.b32.cont [6/16] %v3022, 128
    %3029 = vxpose.xlu0.b32.cont [7/16] 0.0, 128
    %3030 = vxpose.xlu0.b32.cont [8/16] 0.0, 128
    %3031 = vxpose.xlu0.b32.cont [9/16] 0.0, 128
    %3032 = vxpose.xlu0.b32.cont [10/16] 0.0, 128
    %3033 = vxpose.xlu0.b32.cont [11/16] 0.0, 128
    %3034 = vxpose.xlu0.b32.cont [12/16] 0.0, 128
    %3035 = vxpose.xlu0.b32.cont [13/16] 0.0, 128
    %3036 = vxpose.xlu0.b32.cont [14/16] 0.0, 128
    %3037 = vxpose.xlu0.b32.cont [15/16] 0.0, 128
    %3038 = vxpose.xlu0.b32.end [16/16] 0.0, 128
    %v3039 = vpop.trf.xlu0
    %v3040 = vpop.trf.xlu0
    %v3041 = vpop.trf.xlu0
    %v3042 = vpop.trf.xlu0
    %v3043 = vpop.trf.xlu0
    %v3044 = vpop.trf.xlu0
    %v3045 = vpop.trf.xlu0
    %v3046 = vpop.trf.xlu0
    %v3047 = vpop.trf.xlu0
    %v3048 = vpop.trf.xlu0
    %v3049 = vpop.trf.xlu0
    %v3050 = vpop.trf.xlu0
    %v3051 = vpop.trf.xlu0
    %v3052 = vpop.trf.xlu0
    %v3053 = vpop.trf.xlu0
    %v3054 = vpop.trf.xlu0
    %3055 = vrot.lane.b32.xlu0 %v373, 32
    %v3056 = vpop.permute.xlu0 %3055
    %3057 = vrot.lane.b32.xlu0 %v379, 32
    %v3058 = vpop.permute.xlu0 %3057
    %3059 = vrot.lane.b32.xlu0 %v385, 32
    %v3060 = vpop.permute.xlu0 %3059
    %3061 = vrot.lane.b32.xlu0 %v391, 32
    %v3062 = vpop.permute.xlu0 %3061
    %3063 = vrot.lane.b32.xlu0 %v397, 32
    %v3064 = vpop.permute.xlu0 %3063
    %3065 = vrot.lane.b32.xlu0 %v403, 32
    %v3066 = vpop.permute.xlu0 %3065
    %v3074 = vsel %vm995, %v3039, 0
    %v3077 = vsel %vm995, %v3040, 0
    %v3080 = vsel %vm995, %v3041, 0
    %v3083 = vsel %vm995, %v3042, 0
    %3085 = vmatprep.subr.mxu0 0.0
    %3086 = vmatpush1.msra.mxu0 0.0
    %3087 = vmatprep.subr.mxu0 0.0
    %3088 = vmatpush1.msra.mxu0 0.0
    %3089 = vmatprep.subr.mxu0 0.0
    %3090 = vmatpush1.msra.mxu0 0.0
    %3091 = vmatprep.subr.mxu0 0.0
    %3092 = vmatpush1.msra.mxu0 0.0
    %3093 = vmatprep.subr.mxu0 0.0
    %3094 = vmatpush1.msra.mxu0 0.0
    %3095 = vmatprep.subr.mxu0 0.0
    %3096 = vmatpush1.msra.mxu0 0.0
    %3097 = vmatprep.subr.mxu0 0.0
    %3098 = vmatpush1.msra.mxu0 0.0
    %3099 = vmatprep.subr.mxu0 0.0
    %3100 = vmatpush1.msra.mxu0 0.0
    %3101 = vmatprep.subr.mxu0 0.0
    %3102 = vmatpush1.msra.mxu0 0.0
    %3103 = vmatprep.subr.mxu0 0.0
    %3104 = vmatpush1.msra.mxu0 0.0
    %3105 = vmatprep.subr.mxu0 0.0
    %3106 = vmatpush1.msra.mxu0 %v3066
    %3107 = vmatprep.subr.mxu0 0.0
    %3108 = vmatpush1.msra.mxu0 %v3064
    %3109 = vmatprep.subr.mxu0 0.0
    %3110 = vmatpush1.msra.mxu0 %v3062
    %3111 = vmatprep.subr.mxu0 0.0
    %3112 = vmatpush1.msra.mxu0 %v3060
    %3113 = vmatprep.subr.mxu0 0.0
    %3114 = vmatpush1.msra.mxu0 %v3058
    %3115 = vmatprep.subr.mxu0 0.0
    %3116 = vmatpush1.msra.mxu0 %v3056
    %3117 = vmatprep.subr.mxu0 0.0
    %3118 = vmatpush2.msra.mxu0 0.0
    %3119 = vmatprep.subr.mxu0 0.0
    %3120 = vmatpush2.msra.mxu0 0.0
    %3121 = vmatprep.subr.mxu0 0.0
    %3122 = vmatpush2.msra.mxu0 0.0
    %3123 = vmatprep.subr.mxu0 0.0
    %3124 = vmatpush2.msra.mxu0 0.0
    %3125 = vmatprep.subr.mxu0 0.0
    %3126 = vmatpush2.msra.mxu0 0.0
    %3127 = vmatprep.subr.mxu0 0.0
    %3128 = vmatpush2.msra.mxu0 0.0
    %3129 = vmatprep.subr.mxu0 0.0
    %3130 = vmatpush2.msra.mxu0 0.0
    %3131 = vmatprep.subr.mxu0 0.0
    %3132 = vmatpush2.msra.mxu0 0.0
    %3133 = vmatprep.subr.mxu0 0.0
    %3134 = vmatpush2.msra.mxu0 0.0
    %3135 = vmatprep.subr.mxu0 0.0
    %3136 = vmatpush2.msra.mxu0 0.0
    %3137 = vmatprep.subr.mxu0 0.0
    %3138 = vmatpush2.msra.mxu0 0.0
    %3139 = vmatprep.subr.mxu0 0.0
    %3140 = vmatpush2.msra.mxu0 0.0
    %3141 = vmatprep.subr.mxu0 0.0
    %3142 = vmatpush2.msra.mxu0 0.0
    %3143 = vmatprep.subr.mxu0 0.0
    %3144 = vmatpush2.msra.mxu0 0.0
    %3145 = vmatprep.subr.mxu0 0.0
    %3146 = vmatpush2.msra.mxu0 0.0
    %3147 = vmatprep.subr.mxu0 0.0
    %3148 = vmatpush2.msra.mxu0 0.0
    %3149 = vmatprep.mubr.f32.mxu0 0.0
    %3150 = vmatmul.mubr.f32.gmra.mxu0 %v3074
    %v3151 = vpop.f32.mrf.mxu0
    %v3152 = vadd.f32 0.0, %v3151
    %v3153 = vpop.f32.mrf.mxu0
    %3154 = vmatprep.mubr.f32.mxu0 0.0
    %3155 = vmatmul.mubr.f32.gmra.mxu0 %v3077
    %v3156 = vpop.f32.mrf.mxu0
    %v3157 = vadd.f32 0.0, %v3156
    %v3158 = vpop.f32.mrf.mxu0
    %3159 = vmatprep.mubr.f32.mxu0 0.0
    %3160 = vmatmul.mubr.f32.gmra.mxu0 %v3080
    %v3161 = vpop.f32.mrf.mxu0
    %v3162 = vadd.f32 0.0, %v3161
    %v3163 = vpop.f32.mrf.mxu0
    %3164 = vmatprep.mubr.f32.mxu0 0.0
    %3165 = vmatmul.mubr.f32.gmra.mxu0 %v3083
    %v3166 = vpop.f32.mrf.mxu0
    %v3167 = vadd.f32 0.0, %v3166
    %v3168 = vpop.f32.mrf.mxu0
    %3169 = vdwg.mxu0
    %v3170 = vlaneseq
    %v3171 = vshrl.u32 %v3170, 7
    %v3172 = vsub.s32 0, %v3171
    %v3173 = vrot.slane %v2619, %v3172
    %v3175 = vsel %vm188, %v3152, 0
    %v3178 = vsel %vm188, %v3157, 0
    %v3181 = vsel %vm188, %v3162, 0
    %v3184 = vsel %vm188, %v3167, 0
    %3186 = vmatprep.subr.mxu0 0.0
    %3187 = vmatpush1.msra.mxu0 0.0
    %3188 = vmatprep.subr.mxu0 0.0
    %3189 = vmatpush1.msra.mxu0 0.0
    %3190 = vmatprep.subr.mxu0 0.0
    %3191 = vmatpush1.msra.mxu0 0.0
    %3192 = vmatprep.subr.mxu0 0.0
    %3193 = vmatpush1.msra.mxu0 0.0
    %3194 = vmatprep.subr.mxu0 0.0
    %3195 = vmatpush1.msra.mxu0 0.0
    %3196 = vmatprep.subr.mxu0 0.0
    %3197 = vmatpush1.msra.mxu0 0.0
    %3198 = vmatprep.subr.mxu0 0.0
    %3199 = vmatpush1.msra.mxu0 0.0
    %3200 = vmatprep.subr.mxu0 0.0
    %3201 = vmatpush1.msra.mxu0 0.0
    %3202 = vmatprep.subr.mxu0 0.0
    %3203 = vmatpush1.msra.mxu0 0.0
    %3204 = vmatprep.subr.mxu0 0.0
    %3205 = vmatpush1.msra.mxu0 0.0
    %3206 = vmatprep.subr.mxu0 0.0
    %3207 = vmatpush1.msra.mxu0 0.0
    %3208 = vmatprep.subr.mxu0 0.0
    %3209 = vmatpush1.msra.mxu0 0.0
    %3210 = vmatprep.subr.mxu0 0.0
    %3211 = vmatpush1.msra.mxu0 %v2612
    %3212 = vmatprep.subr.mxu0 0.0
    %3213 = vmatpush1.msra.mxu0 %v2611
    %3214 = vmatprep.subr.mxu0 0.0
    %3215 = vmatpush1.msra.mxu0 %v2610
    %3216 = vmatprep.subr.mxu0 0.0
    %3217 = vmatpush1.msra.mxu0 %v2609
    %3218 = vmatprep.subr.mxu0 0.0
    %3219 = vmatpush2.msra.mxu0 0.0
    %3220 = vmatprep.subr.mxu0 0.0
    %3221 = vmatpush2.msra.mxu0 0.0
    %3222 = vmatprep.subr.mxu0 0.0
    %3223 = vmatpush2.msra.mxu0 0.0
    %3224 = vmatprep.subr.mxu0 0.0
    %3225 = vmatpush2.msra.mxu0 0.0
    %3226 = vmatprep.subr.mxu0 0.0
    %3227 = vmatpush2.msra.mxu0 0.0
    %3228 = vmatprep.subr.mxu0 0.0
    %3229 = vmatpush2.msra.mxu0 0.0
    %3230 = vmatprep.subr.mxu0 0.0
    %3231 = vmatpush2.msra.mxu0 0.0
    %3232 = vmatprep.subr.mxu0 0.0
    %3233 = vmatpush2.msra.mxu0 0.0
    %3234 = vmatprep.subr.mxu0 0.0
    %3235 = vmatpush2.msra.mxu0 0.0
    %3236 = vmatprep.subr.mxu0 0.0
    %3237 = vmatpush2.msra.mxu0 0.0
    %3238 = vmatprep.subr.mxu0 0.0
    %3239 = vmatpush2.msra.mxu0 0.0
    %3240 = vmatprep.subr.mxu0 0.0
    %3241 = vmatpush2.msra.mxu0 0.0
    %3242 = vmatprep.subr.mxu0 0.0
    %3243 = vmatpush2.msra.mxu0 0.0
    %3244 = vmatprep.subr.mxu0 0.0
    %3245 = vmatpush2.msra.mxu0 0.0
    %3246 = vmatprep.subr.mxu0 0.0
    %3247 = vmatpush2.msra.mxu0 0.0
    %3248 = vmatprep.subr.mxu0 0.0
    %3249 = vmatpush2.msra.mxu0 0.0
    %3250 = vmatprep.mubr.f32.mxu0 0.0
    %3251 = vmatmul.mubr.f32.gmra.mxu0 %v3175
    %v3252 = vpop.f32.mrf.mxu0
    %v3253 = vadd.f32 %v3173, %v3252
    %v3254 = vpop.f32.mrf.mxu0
    %3255 = vmatprep.mubr.f32.mxu0 0.0
    %3256 = vmatmul.mubr.f32.gmra.mxu0 %v3178
    %v3257 = vpop.f32.mrf.mxu0
    %v3258 = vadd.f32 %v3173, %v3257
    %v3259 = vpop.f32.mrf.mxu0
    %3260 = vmatprep.mubr.f32.mxu0 0.0
    %3261 = vmatmul.mubr.f32.gmra.mxu0 %v3181
    %v3262 = vpop.f32.mrf.mxu0
    %v3263 = vadd.f32 %v3173, %v3262
    %v3264 = vpop.f32.mrf.mxu0
    %3265 = vmatprep.mubr.f32.mxu0 0.0
    %3266 = vmatmul.mubr.f32.gmra.mxu0 %v3184
    %v3267 = vpop.f32.mrf.mxu0
    %v3268 = vadd.f32 %v3173, %v3267
    %v3269 = vpop.f32.mrf.mxu0
    %3270 = vdwg.mxu0
    %v3271 = vlaneseq
    %v3272 = vshrl.u32 %v3271, 7
    %v3273 = vsub.s32 1, %v3272
    %v3274 = vrot.slane %v2619, %v3273
    %v3276 = vsel %vm188, %v2621, 0
    %v3279 = vsel %vm188, %v2622, 0
    %v3282 = vsel %vm188, %v2623, 0
    %v3285 = vsel %vm188, %v2624, 0
    %3287 = vmatprep.subr.mxu0 0.0
    %3288 = vmatpush1.msra.mxu0 0.0
    %3289 = vmatprep.subr.mxu0 0.0
    %3290 = vmatpush1.msra.mxu0 0.0
    %3291 = vmatprep.subr.mxu0 0.0
    %3292 = vmatpush1.msra.mxu0 0.0
    %3293 = vmatprep.subr.mxu0 0.0
    %3294 = vmatpush1.msra.mxu0 0.0
    %3295 = vmatprep.subr.mxu0 0.0
    %3296 = vmatpush1.msra.mxu0 0.0
    %3297 = vmatprep.subr.mxu0 0.0
    %3298 = vmatpush1.msra.mxu0 0.0
    %3299 = vmatprep.subr.mxu0 0.0
    %3300 = vmatpush1.msra.mxu0 0.0
    %3301 = vmatprep.subr.mxu0 0.0
    %3302 = vmatpush1.msra.mxu0 0.0
    %3303 = vmatprep.subr.mxu0 0.0
    %3304 = vmatpush1.msra.mxu0 0.0
    %3305 = vmatprep.subr.mxu0 0.0
    %3306 = vmatpush1.msra.mxu0 0.0
    %3307 = vmatprep.subr.mxu0 0.0
    %3308 = vmatpush1.msra.mxu0 0.0
    %3309 = vmatprep.subr.mxu0 0.0
    %3310 = vmatpush1.msra.mxu0 0.0
    %3311 = vmatprep.subr.mxu0 0.0
    %3312 = vmatpush1.msra.mxu0 %v2617
    %3313 = vmatprep.subr.mxu0 0.0
    %3314 = vmatpush1.msra.mxu0 %v2616
    %3315 = vmatprep.subr.mxu0 0.0
    %3316 = vmatpush1.msra.mxu0 %v2615
    %3317 = vmatprep.subr.mxu0 0.0
    %3318 = vmatpush1.msra.mxu0 %v2614
    %3319 = vmatprep.subr.mxu0 0.0
    %3320 = vmatpush2.msra.mxu0 0.0
    %3321 = vmatprep.subr.mxu0 0.0
    %3322 = vmatpush2.msra.mxu0 0.0
    %3323 = vmatprep.subr.mxu0 0.0
    %3324 = vmatpush2.msra.mxu0 0.0
    %3325 = vmatprep.subr.mxu0 0.0
    %3326 = vmatpush2.msra.mxu0 0.0
    %3327 = vmatprep.subr.mxu0 0.0
    %3328 = vmatpush2.msra.mxu0 0.0
    %3329 = vmatprep.subr.mxu0 0.0
    %3330 = vmatpush2.msra.mxu0 0.0
    %3331 = vmatprep.subr.mxu0 0.0
    %3332 = vmatpush2.msra.mxu0 0.0
    %3333 = vmatprep.subr.mxu0 0.0
    %3334 = vmatpush2.msra.mxu0 0.0
    %3335 = vmatprep.subr.mxu0 0.0
    %3336 = vmatpush2.msra.mxu0 0.0
    %3337 = vmatprep.subr.mxu0 0.0
    %3338 = vmatpush2.msra.mxu0 0.0
    %3339 = vmatprep.subr.mxu0 0.0
    %3340 = vmatpush2.msra.mxu0 0.0
    %3341 = vmatprep.subr.mxu0 0.0
    %3342 = vmatpush2.msra.mxu0 0.0
    %3343 = vmatprep.subr.mxu0 0.0
    %3344 = vmatpush2.msra.mxu0 0.0
    %3345 = vmatprep.subr.mxu0 0.0
    %3346 = vmatpush2.msra.mxu0 0.0
    %3347 = vmatprep.subr.mxu0 0.0
    %3348 = vmatpush2.msra.mxu0 0.0
    %3349 = vmatprep.subr.mxu0 0.0
    %3350 = vmatpush2.msra.mxu0 0.0
    %3351 = vmatprep.mubr.f32.mxu0 0.0
    %3352 = vmatmul.mubr.f32.gmra.mxu0 %v3276
    %v3353 = vpop.f32.mrf.mxu0
    %v3354 = vadd.f32 %v3274, %v3353
    %v3355 = vpop.f32.mrf.mxu0
    %3356 = vmatprep.mubr.f32.mxu0 0.0
    %3357 = vmatmul.mubr.f32.gmra.mxu0 %v3279
    %v3358 = vpop.f32.mrf.mxu0
    %v3359 = vadd.f32 %v3274, %v3358
    %v3360 = vpop.f32.mrf.mxu0
    %3361 = vmatprep.mubr.f32.mxu0 0.0
    %3362 = vmatmul.mubr.f32.gmra.mxu0 %v3282
    %v3363 = vpop.f32.mrf.mxu0
    %v3364 = vadd.f32 %v3274, %v3363
    %v3365 = vpop.f32.mrf.mxu0
    %3366 = vmatprep.mubr.f32.mxu0 0.0
    %3367 = vmatmul.mubr.f32.gmra.mxu0 %v3285
    %v3368 = vpop.f32.mrf.mxu0
    %v3369 = vadd.f32 %v3274, %v3368
    %v3370 = vpop.f32.mrf.mxu0
    %3371 = vdwg.mxu0
    %v3372 = vadd.f32 %v3253, %v3354
    %v3373 = vadd.f32 %v3258, %v3359
    %v3374 = vadd.f32 %v3263, %v3364
    %v3375 = vadd.f32 %v3268, %v3369
    %v3376 = vxor.u32 %v3372, 2147483648
    %v3377 = vxor.u32 %v3373, 2147483648
    %v3378 = vxor.u32 %v3374, 2147483648
    %v3379 = vxor.u32 %v3375, 2147483648
    %v3380 = vmul.f32 %v3376, 1.442695
    %v3381 = vpow.pop %v3380
    %v3382 = vmul.f32 %v3377, 1.442695
    %v3383 = vpow.pop %v3382
    %v3384 = vmul.f32 %v3378, 1.442695
    %v3385 = vpow.pop %v3384
    %v3386 = vmul.f32 %v3379, 1.442695
    %v3387 = vpow.pop %v3386
    %v3388 = vadd.f32 %v3381, 1.0
    %v3389 = vadd.f32 %v3383, 1.0
    %v3390 = vadd.f32 %v3385, 1.0
    %v3391 = vadd.f32 %v3387, 1.0
    %v3392 = vrcp.pop %v3388
    %v3393 = vmul.f32 1.0, %v3392
    %v3394 = vrcp.pop %v3389
    %v3395 = vmul.f32 1.0, %v3394
    %v3396 = vrcp.pop %v3390
    %v3397 = vmul.f32 1.0, %v3396
    %v3398 = vrcp.pop %v3391
    %v3399 = vmul.f32 1.0, %v3398
    %3404 = vrot.lane.b32.xlu0 %v3354, 64
    %v3405 = vpop.permute.xlu0 %3404
    %3406 = vrot.lane.b32.xlu0 %v3359, 64
    %v3407 = vpop.permute.xlu0 %3406
    %3408 = vrot.lane.b32.xlu0 %v3364, 64
    %v3409 = vpop.permute.xlu0 %3408
    %3410 = vrot.lane.b32.xlu0 %v3369, 64
    %v3411 = vpop.permute.xlu0 %3410
    %v3416 = vmul.f32 %v3393, %v3405
    %v3417 = vmul.f32 %v3395, %v3407
    %v3418 = vmul.f32 %v3397, %v3409
    %v3419 = vmul.f32 %v3399, %v3411
    %3424 = vrot.lane.b32.xlu0 %v3416, 64
    %v3425 = vpop.permute.xlu0 %3424
    %3426 = vrot.lane.b32.xlu0 %v3417, 64
    %v3427 = vpop.permute.xlu0 %3426
    %3428 = vrot.lane.b32.xlu0 %v3418, 64
    %v3429 = vpop.permute.xlu0 %3428
    %3430 = vrot.lane.b32.xlu0 %v3419, 64
    %v3431 = vpop.permute.xlu0 %3430
    %v3436 = vadd.f32 %v3253, %v3425
    %v3437 = vadd.f32 %v3258, %v3427
    %v3438 = vadd.f32 %v3263, %v3429
    %v3439 = vadd.f32 %v3268, %v3431
    %v3440 = vtanh.pop %v3436
    %v3441 = vtanh.pop %v3437
    %v3442 = vtanh.pop %v3438
    %v3443 = vtanh.pop %v3439
    %v3444 = vsub.f32 1.0, %v3393
    %v3445 = vsub.f32 1.0, %v3395
    %v3446 = vsub.f32 1.0, %v3397
    %v3447 = vsub.f32 1.0, %v3399
    %3452 = vrot.lane.b32.xlu0 %v3440, 96
    %v3453 = vpop.permute.xlu0 %3452
    %3454 = vrot.lane.b32.xlu0 %v3441, 96
    %v3455 = vpop.permute.xlu0 %3454
    %3456 = vrot.lane.b32.xlu0 %v3442, 96
    %v3457 = vpop.permute.xlu0 %3456
    %3458 = vrot.lane.b32.xlu0 %v3443, 96
    %v3459 = vpop.permute.xlu0 %3458
    %v3464 = vmul.f32 %v3444, %v3453
    %v3465 = vmul.f32 %v3445, %v3455
    %v3466 = vmul.f32 %v3446, %v3457
    %v3467 = vmul.f32 %v3447, %v3459
    %3468 = vrot.lane.b32.xlu0 %v2621, 32
    %v3469 = vpop.permute.xlu0 %3468
    %3470 = vrot.lane.b32.xlu0 %v2622, 32
    %v3471 = vpop.permute.xlu0 %3470
    %3472 = vrot.lane.b32.xlu0 %v2623, 32
    %v3473 = vpop.permute.xlu0 %3472
    %3474 = vrot.lane.b32.xlu0 %v2624, 32
    %v3475 = vpop.permute.xlu0 %3474
    %v3480 = vmul.f32 %v3393, %v3469
    %v3481 = vmul.f32 %v3395, %v3471
    %v3482 = vmul.f32 %v3397, %v3473
    %v3483 = vmul.f32 %v3399, %v3475
    %v3484 = vadd.f32 %v3464, %v3480
    %v3485 = vadd.f32 %v3465, %v3481
    %v3486 = vadd.f32 %v3466, %v3482
    %v3487 = vadd.f32 %v3467, %v3483
    %3492 = vrot.lane.b32.xlu0 %v3484, 96
    %v3493 = vpop.permute.xlu0 %3492
    %3494 = vrot.lane.b32.xlu0 %v3485, 96
    %v3495 = vpop.permute.xlu0 %3494
    %3496 = vrot.lane.b32.xlu0 %v3486, 96
    %v3497 = vpop.permute.xlu0 %3496
    %3498 = vrot.lane.b32.xlu0 %v3487, 96
    %v3499 = vpop.permute.xlu0 %3498
    %v3504 = vsel %vm188, %v3493, 0.0
    %3505 = vadd.xlane.f32.xlu0 %v3504
    %v3506 = vpop.xlane.xlu0 %3505
    %v3507 = vsel %vm188, %v3495, 0.0
    %3508 = vadd.xlane.f32.xlu0 %v3507
    %v3509 = vpop.xlane.xlu0 %3508
    %v3510 = vsel %vm188, %v3497, 0.0
    %3511 = vadd.xlane.f32.xlu0 %v3510
    %v3512 = vpop.xlane.xlu0 %3511
    %v3513 = vsel %vm188, %v3499, 0.0
    %3514 = vadd.xlane.f32.xlu0 %v3513
    %v3515 = vpop.xlane.xlu0 %3514
    %v3516 = vmul.f32 %v3506, %v207
    %v3517 = vmul.f32 %v3509, %v207
    %v3518 = vmul.f32 %v3512, %v207
    %v3519 = vmul.f32 %v3515, %v207
    %v3520 = vsub.f32 %v3484, %v3516
    %v3521 = vsub.f32 %v3485, %v3517
    %v3522 = vsub.f32 %v3486, %v3518
    %v3523 = vsub.f32 %v3487, %v3519
    %v3524 = vmul.f32 %v3520, %v3520
    %v3525 = vmul.f32 %v3521, %v3521
    %v3526 = vmul.f32 %v3522, %v3522
    %v3527 = vmul.f32 %v3523, %v3523
    %3532 = vrot.lane.b32.xlu0 %v3524, 96
    %v3533 = vpop.permute.xlu0 %3532
    %3534 = vrot.lane.b32.xlu0 %v3525, 96
    %v3535 = vpop.permute.xlu0 %3534
    %3536 = vrot.lane.b32.xlu0 %v3526, 96
    %v3537 = vpop.permute.xlu0 %3536
    %3538 = vrot.lane.b32.xlu0 %v3527, 96
    %v3539 = vpop.permute.xlu0 %3538
    %v3544 = vsel %vm188, %v3533, 0.0
    %3545 = vadd.xlane.f32.xlu0 %v3544
    %v3546 = vpop.xlane.xlu0 %3545
    %v3547 = vsel %vm188, %v3535, 0.0
    %3548 = vadd.xlane.f32.xlu0 %v3547
    %v3549 = vpop.xlane.xlu0 %3548
    %v3550 = vsel %vm188, %v3537, 0.0
    %3551 = vadd.xlane.f32.xlu0 %v3550
    %v3552 = vpop.xlane.xlu0 %3551
    %v3553 = vsel %vm188, %v3539, 0.0
    %3554 = vadd.xlane.f32.xlu0 %v3553
    %v3555 = vpop.xlane.xlu0 %3554
    %v3556 = vmul.f32 %v3546, %v207
    %v3557 = vmul.f32 %v3549, %v207
    %v3558 = vmul.f32 %v3552, %v207
    %v3559 = vmul.f32 %v3555, %v207
    %v3560 = vadd.f32 %v3556, 1e-05
    %v3561 = vadd.f32 %v3557, 1e-05
    %v3562 = vadd.f32 %v3558, 1e-05
    %v3563 = vadd.f32 %v3559, 1e-05
    %v3564 = vrsqrt.pop %v3560
    %v3565 = vrsqrt.pop %v3561
    %v3566 = vrsqrt.pop %v3562
    %v3567 = vrsqrt.pop %v3563
    %v3568 = vmul.f32 %v3520, %v3564
    %v3569 = vmul.f32 %v3521, %v3565
    %v3570 = vmul.f32 %v3522, %v3566
    %v3571 = vmul.f32 %v3523, %v3567
    %v3572 = vlaneseq
    %v3573 = vshrl.u32 %v3572, 7
    %v3574 = vsub.s32 2, %v3573
    %v3575 = vrot.slane %v2592, %v3574
    %3577 = vrot.lane.b32.xlu0 %v3575, 32
    %v3578 = vpop.permute.xlu0 %3577
    %v3580 = vmul.f32 %v3568, %v3578
    %v3581 = vmul.f32 %v3569, %v3578
    %v3582 = vmul.f32 %v3570, %v3578
    %v3583 = vmul.f32 %v3571, %v3578
    %v3584 = vlaneseq
    %v3585 = vshrl.u32 %v3584, 7
    %v3586 = vsub.s32 3, %v3585
    %v3587 = vrot.slane %v2592, %v3586
    %3589 = vrot.lane.b32.xlu0 %v3587, 32
    %v3590 = vpop.permute.xlu0 %3589
    %v3592 = vadd.f32 %v3580, %v3590
    %v3593 = vadd.f32 %v3581, %v3590
    %v3594 = vadd.f32 %v3582, %v3590
    %v3595 = vadd.f32 %v3583, %v3590
    %v3596 = vlaneseq
    %v3597 = vshrl.u32 %v3596, 7
    %v3598 = vsub.s32 4, %v3597
    %v3599 = vrot.slane %v2592, %v3598
    %3604 = vrot.lane.b32.xlu0 %v3592, 96
    %v3605 = vpop.permute.xlu0 %3604
    %3606 = vrot.lane.b32.xlu0 %v3593, 96
    %v3607 = vpop.permute.xlu0 %3606
    %3608 = vrot.lane.b32.xlu0 %v3594, 96
    %v3609 = vpop.permute.xlu0 %3608
    %3610 = vrot.lane.b32.xlu0 %v3595, 96
    %v3611 = vpop.permute.xlu0 %3610
    %v3612 = vsel %vm188, %v3605, 0
    %v3614 = vsel %vm188, %v3607, 0
    %v3616 = vsel %vm188, %v3609, 0
    %v3618 = vsel %vm188, %v3611, 0
    %3620 = vmatprep.subr.mxu0 0.0
    %3621 = vmatpush1.msra.mxu0 0.0
    %3622 = vmatprep.subr.mxu0 0.0
    %3623 = vmatpush1.msra.mxu0 0.0
    %3624 = vmatprep.subr.mxu0 0.0
    %3625 = vmatpush1.msra.mxu0 0.0
    %3626 = vmatprep.subr.mxu0 0.0
    %3627 = vmatpush1.msra.mxu0 0.0
    %3628 = vmatprep.subr.mxu0 0.0
    %3629 = vmatpush1.msra.mxu0 0.0
    %3630 = vmatprep.subr.mxu0 0.0
    %3631 = vmatpush1.msra.mxu0 0.0
    %3632 = vmatprep.subr.mxu0 0.0
    %3633 = vmatpush1.msra.mxu0 0.0
    %3634 = vmatprep.subr.mxu0 0.0
    %3635 = vmatpush1.msra.mxu0 0.0
    %3636 = vmatprep.subr.mxu0 0.0
    %3637 = vmatpush1.msra.mxu0 0.0
    %3638 = vmatprep.subr.mxu0 0.0
    %3639 = vmatpush1.msra.mxu0 0.0
    %3640 = vmatprep.subr.mxu0 0.0
    %3641 = vmatpush1.msra.mxu0 0.0
    %3642 = vmatprep.subr.mxu0 0.0
    %3643 = vmatpush1.msra.mxu0 0.0
    %3644 = vmatprep.subr.mxu0 0.0
    %3645 = vmatpush1.msra.mxu0 %v2602
    %3646 = vmatprep.subr.mxu0 0.0
    %3647 = vmatpush1.msra.mxu0 %v2601
    %3648 = vmatprep.subr.mxu0 0.0
    %3649 = vmatpush1.msra.mxu0 %v2600
    %3650 = vmatprep.subr.mxu0 0.0
    %3651 = vmatpush1.msra.mxu0 %v2599
    %3652 = vmatprep.subr.mxu0 0.0
    %3653 = vmatpush2.msra.mxu0 0.0
    %3654 = vmatprep.subr.mxu0 0.0
    %3655 = vmatpush2.msra.mxu0 0.0
    %3656 = vmatprep.subr.mxu0 0.0
    %3657 = vmatpush2.msra.mxu0 0.0
    %3658 = vmatprep.subr.mxu0 0.0
    %3659 = vmatpush2.msra.mxu0 0.0
    %3660 = vmatprep.subr.mxu0 0.0
    %3661 = vmatpush2.msra.mxu0 0.0
    %3662 = vmatprep.subr.mxu0 0.0
    %3663 = vmatpush2.msra.mxu0 0.0
    %3664 = vmatprep.subr.mxu0 0.0
    %3665 = vmatpush2.msra.mxu0 0.0
    %3666 = vmatprep.subr.mxu0 0.0
    %3667 = vmatpush2.msra.mxu0 0.0
    %3668 = vmatprep.subr.mxu0 0.0
    %3669 = vmatpush2.msra.mxu0 0.0
    %3670 = vmatprep.subr.mxu0 0.0
    %3671 = vmatpush2.msra.mxu0 0.0
    %3672 = vmatprep.subr.mxu0 0.0
    %3673 = vmatpush2.msra.mxu0 0.0
    %3674 = vmatprep.subr.mxu0 0.0
    %3675 = vmatpush2.msra.mxu0 0.0
    %3676 = vmatprep.subr.mxu0 0.0
    %3677 = vmatpush2.msra.mxu0 0.0
    %3678 = vmatprep.subr.mxu0 0.0
    %3679 = vmatpush2.msra.mxu0 0.0
    %3680 = vmatprep.subr.mxu0 0.0
    %3681 = vmatpush2.msra.mxu0 0.0
    %3682 = vmatprep.subr.mxu0 0.0
    %3683 = vmatpush2.msra.mxu0 0.0
    %3684 = vmatprep.mubr.f32.mxu0 0.0
    %3685 = vmatmul.mubr.f32.gmra.mxu0 %v3612
    %v3686 = vpop.f32.mrf.mxu0
    %v3687 = vadd.f32 %v3599, %v3686
    %v3688 = vpop.f32.mrf.mxu0
    %3689 = vmatprep.mubr.f32.mxu0 0.0
    %3690 = vmatmul.mubr.f32.gmra.mxu0 %v3614
    %v3691 = vpop.f32.mrf.mxu0
    %v3692 = vadd.f32 %v3599, %v3691
    %v3693 = vpop.f32.mrf.mxu0
    %3694 = vmatprep.mubr.f32.mxu0 0.0
    %3695 = vmatmul.mubr.f32.gmra.mxu0 %v3616
    %v3696 = vpop.f32.mrf.mxu0
    %v3697 = vadd.f32 %v3599, %v3696
    %v3698 = vpop.f32.mrf.mxu0
    %3699 = vmatprep.mubr.f32.mxu0 0.0
    %3700 = vmatmul.mubr.f32.gmra.mxu0 %v3618
    %v3701 = vpop.f32.mrf.mxu0
    %v3702 = vadd.f32 %v3599, %v3701
    %v3703 = vpop.f32.mrf.mxu0
    %3704 = vdwg.mxu0
    %v3705 = vmax.f32 %v3687, 0.0
    %v3706 = vmax.f32 %v3692, 0.0
    %v3707 = vmax.f32 %v3697, 0.0
    %v3708 = vmax.f32 %v3702, 0.0
    %v3710 = vsel %vm188, %v3705, 0
    %v3713 = vsel %vm188, %v3706, 0
    %v3716 = vsel %vm188, %v3707, 0
    %v3719 = vsel %vm188, %v3708, 0
    %3721 = vmatprep.subr.mxu0 0.0
    %3722 = vmatpush1.msra.mxu0 0.0
    %3723 = vmatprep.subr.mxu0 0.0
    %3724 = vmatpush1.msra.mxu0 0.0
    %3725 = vmatprep.subr.mxu0 0.0
    %3726 = vmatpush1.msra.mxu0 0.0
    %3727 = vmatprep.subr.mxu0 0.0
    %3728 = vmatpush1.msra.mxu0 0.0
    %3729 = vmatprep.subr.mxu0 0.0
    %3730 = vmatpush1.msra.mxu0 0.0
    %3731 = vmatprep.subr.mxu0 0.0
    %3732 = vmatpush1.msra.mxu0 0.0
    %3733 = vmatprep.subr.mxu0 0.0
    %3734 = vmatpush1.msra.mxu0 0.0
    %3735 = vmatprep.subr.mxu0 0.0
    %3736 = vmatpush1.msra.mxu0 0.0
    %3737 = vmatprep.subr.mxu0 0.0
    %3738 = vmatpush1.msra.mxu0 0.0
    %3739 = vmatprep.subr.mxu0 0.0
    %3740 = vmatpush1.msra.mxu0 0.0
    %3741 = vmatprep.subr.mxu0 0.0
    %3742 = vmatpush1.msra.mxu0 0.0
    %3743 = vmatprep.subr.mxu0 0.0
    %3744 = vmatpush1.msra.mxu0 0.0
    %3745 = vmatprep.subr.mxu0 0.0
    %3746 = vmatpush1.msra.mxu0 %v2607
    %3747 = vmatprep.subr.mxu0 0.0
    %3748 = vmatpush1.msra.mxu0 %v2606
    %3749 = vmatprep.subr.mxu0 0.0
    %3750 = vmatpush1.msra.mxu0 %v2605
    %3751 = vmatprep.subr.mxu0 0.0
    %3752 = vmatpush1.msra.mxu0 %v2604
    %3753 = vmatprep.subr.mxu0 0.0
    %3754 = vmatpush2.msra.mxu0 0.0
    %3755 = vmatprep.subr.mxu0 0.0
    %3756 = vmatpush2.msra.mxu0 0.0
    %3757 = vmatprep.subr.mxu0 0.0
    %3758 = vmatpush2.msra.mxu0 0.0
    %3759 = vmatprep.subr.mxu0 0.0
    %3760 = vmatpush2.msra.mxu0 0.0
    %3761 = vmatprep.subr.mxu0 0.0
    %3762 = vmatpush2.msra.mxu0 0.0
    %3763 = vmatprep.subr.mxu0 0.0
    %3764 = vmatpush2.msra.mxu0 0.0
    %3765 = vmatprep.subr.mxu0 0.0
    %3766 = vmatpush2.msra.mxu0 0.0
    %3767 = vmatprep.subr.mxu0 0.0
    %3768 = vmatpush2.msra.mxu0 0.0
    %3769 = vmatprep.subr.mxu0 0.0
    %3770 = vmatpush2.msra.mxu0 0.0
    %3771 = vmatprep.subr.mxu0 0.0
    %3772 = vmatpush2.msra.mxu0 0.0
    %3773 = vmatprep.subr.mxu0 0.0
    %3774 = vmatpush2.msra.mxu0 0.0
    %3775 = vmatprep.subr.mxu0 0.0
    %3776 = vmatpush2.msra.mxu0 0.0
    %3777 = vmatprep.subr.mxu0 0.0
    %3778 = vmatpush2.msra.mxu0 0.0
    %3779 = vmatprep.subr.mxu0 0.0
    %3780 = vmatpush2.msra.mxu0 0.0
    %3781 = vmatprep.subr.mxu0 0.0
    %3782 = vmatpush2.msra.mxu0 0.0
    %3783 = vmatprep.subr.mxu0 0.0
    %3784 = vmatpush2.msra.mxu0 0.0
    %3785 = vmatprep.mubr.f32.mxu0 0.0
    %3786 = vmatmul.mubr.f32.gmra.mxu0 %v3710
    %v3787 = vpop.f32.mrf.mxu0
    %v3788 = vadd.f32 0.0, %v3787
    %v3789 = vpop.f32.mrf.mxu0
    %3790 = vmatprep.mubr.f32.mxu0 0.0
    %3791 = vmatmul.mubr.f32.gmra.mxu0 %v3713
    %v3792 = vpop.f32.mrf.mxu0
    %v3793 = vadd.f32 0.0, %v3792
    %v3794 = vpop.f32.mrf.mxu0
    %3795 = vmatprep.mubr.f32.mxu0 0.0
    %3796 = vmatmul.mubr.f32.gmra.mxu0 %v3716
    %v3797 = vpop.f32.mrf.mxu0
    %v3798 = vadd.f32 0.0, %v3797
    %v3799 = vpop.f32.mrf.mxu0
    %3800 = vmatprep.mubr.f32.mxu0 0.0
    %3801 = vmatmul.mubr.f32.gmra.mxu0 %v3719
    %v3802 = vpop.f32.mrf.mxu0
    %v3803 = vadd.f32 0.0, %v3802
    %v3804 = vpop.f32.mrf.mxu0
    %3805 = vdwg.mxu0
    %3810 = vrot.lane.b32.xlu0 %v3788, 32
    %v3811 = vpop.permute.xlu0 %3810
    %3812 = vrot.lane.b32.xlu0 %v3793, 32
    %v3813 = vpop.permute.xlu0 %3812
    %3814 = vrot.lane.b32.xlu0 %v3798, 32
    %v3815 = vpop.permute.xlu0 %3814
    %3816 = vrot.lane.b32.xlu0 %v3803, 32
    %v3817 = vpop.permute.xlu0 %3816
    %v3822 = vadd.f32 %v3484, %v3811
    %v3823 = vadd.f32 %v3485, %v3813
    %v3824 = vadd.f32 %v3486, %v3815
    %v3825 = vadd.f32 %v3487, %v3817
    %v3826 = vlaneseq
    %v3827 = vshrl.u32 %v3826, 7
    %v3828 = vsub.s32 5, %v3827
    %v3829 = vrot.slane %v2592, %v3828
    %3831 = vrot.lane.b32.xlu0 %v3829, 32
    %v3832 = vpop.permute.xlu0 %3831
    %v3834 = vadd.f32 %v3822, %v3832
    %v3835 = vadd.f32 %v3823, %v3832
    %v3836 = vadd.f32 %v3824, %v3832
    %v3837 = vadd.f32 %v3825, %v3832
    %s3838 = scalar_lea.vmem [#allocation14], 32
    %v3839 = vld [vmem:[%s3838] sm:$0xff]
    %v3840 = vld [vmem:[%s3838 + $0x8] sm:$0xff]
    %v3841 = vld [vmem:[%s3838 + $0x10] sm:$0xff]
    %v3842 = vld [vmem:[%s3838 + $0x18] sm:$0xff]
    %3847 = vrot.lane.b32.xlu0 %v3839, 32
    %v3848 = vpop.permute.xlu0 %3847
    %3849 = vrot.lane.b32.xlu0 %v3840, 32
    %v3850 = vpop.permute.xlu0 %3849
    %3851 = vrot.lane.b32.xlu0 %v3841, 32
    %v3852 = vpop.permute.xlu0 %3851
    %3853 = vrot.lane.b32.xlu0 %v3842, 32
    %v3854 = vpop.permute.xlu0 %3853
    %v3859 = vadd.f32 %v3834, %v3848
    %v3860 = vadd.f32 %v3835, %v3850
    %v3861 = vadd.f32 %v3836, %v3852
    %v3862 = vadd.f32 %v3837, %v3854
    %s3863 = scalar_lea.vmem [#allocation16], 32
    %v3864 = vld [vmem:[%s3863] sm:$0xff]
    %v3865 = vld [vmem:[%s3863 + $0x8] sm:$0xff]
    %v3866 = vld [vmem:[%s3863 + $0x10] sm:$0xff]
    %v3867 = vld [vmem:[%s3863 + $0x18] sm:$0xff]
    %3872 = vrot.lane.b32.xlu0 %v3859, 96
    %v3873 = vpop.permute.xlu0 %3872
    %3874 = vrot.lane.b32.xlu0 %v3860, 96
    %v3875 = vpop.permute.xlu0 %3874
    %3876 = vrot.lane.b32.xlu0 %v3861, 96
    %v3877 = vpop.permute.xlu0 %3876
    %3878 = vrot.lane.b32.xlu0 %v3862, 96
    %v3879 = vpop.permute.xlu0 %3878
    %v3880 = vsel %vm188, %v3873, 0
    %v3882 = vsel %vm188, %v3875, 0
    %v3884 = vsel %vm188, %v3877, 0
    %v3886 = vsel %vm188, %v3879, 0
    %3888 = vmatprep.subr.mxu0 0.0
    %3889 = vmatpush1.msra.mxu0 0.0
    %3890 = vmatprep.subr.mxu0 0.0
    %3891 = vmatpush1.msra.mxu0 0.0
    %3892 = vmatprep.subr.mxu0 0.0
    %3893 = vmatpush1.msra.mxu0 0.0
    %3894 = vmatprep.subr.mxu0 0.0
    %3895 = vmatpush1.msra.mxu0 0.0
    %3896 = vmatprep.subr.mxu0 0.0
    %3897 = vmatpush1.msra.mxu0 0.0
    %3898 = vmatprep.subr.mxu0 0.0
    %3899 = vmatpush1.msra.mxu0 0.0
    %3900 = vmatprep.subr.mxu0 0.0
    %3901 = vmatpush1.msra.mxu0 0.0
    %3902 = vmatprep.subr.mxu0 0.0
    %3903 = vmatpush1.msra.mxu0 0.0
    %3904 = vmatprep.subr.mxu0 0.0
    %3905 = vmatpush1.msra.mxu0 0.0
    %3906 = vmatprep.subr.mxu0 0.0
    %3907 = vmatpush1.msra.mxu0 0.0
    %3908 = vmatprep.subr.mxu0 0.0
    %3909 = vmatpush1.msra.mxu0 0.0
    %3910 = vmatprep.subr.mxu0 0.0
    %3911 = vmatpush1.msra.mxu0 0.0
    %3912 = vmatprep.subr.mxu0 0.0
    %3913 = vmatpush1.msra.mxu0 %v3867
    %3914 = vmatprep.subr.mxu0 0.0
    %3915 = vmatpush1.msra.mxu0 %v3866
    %3916 = vmatprep.subr.mxu0 0.0
    %3917 = vmatpush1.msra.mxu0 %v3865
    %3918 = vmatprep.subr.mxu0 0.0
    %3919 = vmatpush1.msra.mxu0 %v3864
    %3920 = vmatprep.subr.mxu0 0.0
    %3921 = vmatpush2.msra.mxu0 0.0
    %3922 = vmatprep.subr.mxu0 0.0
    %3923 = vmatpush2.msra.mxu0 0.0
    %3924 = vmatprep.subr.mxu0 0.0
    %3925 = vmatpush2.msra.mxu0 0.0
    %3926 = vmatprep.subr.mxu0 0.0
    %3927 = vmatpush2.msra.mxu0 0.0
    %3928 = vmatprep.subr.mxu0 0.0
    %3929 = vmatpush2.msra.mxu0 0.0
    %3930 = vmatprep.subr.mxu0 0.0
    %3931 = vmatpush2.msra.mxu0 0.0
    %3932 = vmatprep.subr.mxu0 0.0
    %3933 = vmatpush2.msra.mxu0 0.0
    %3934 = vmatprep.subr.mxu0 0.0
    %3935 = vmatpush2.msra.mxu0 0.0
    %3936 = vmatprep.subr.mxu0 0.0
    %3937 = vmatpush2.msra.mxu0 0.0
    %3938 = vmatprep.subr.mxu0 0.0
    %3939 = vmatpush2.msra.mxu0 0.0
    %3940 = vmatprep.subr.mxu0 0.0
    %3941 = vmatpush2.msra.mxu0 0.0
    %3942 = vmatprep.subr.mxu0 0.0
    %3943 = vmatpush2.msra.mxu0 0.0
    %3944 = vmatprep.subr.mxu0 0.0
    %3945 = vmatpush2.msra.mxu0 0.0
    %3946 = vmatprep.subr.mxu0 0.0
    %3947 = vmatpush2.msra.mxu0 0.0
    %3948 = vmatprep.subr.mxu0 0.0
    %3949 = vmatpush2.msra.mxu0 0.0
    %3950 = vmatprep.subr.mxu0 0.0
    %3951 = vmatpush2.msra.mxu0 0.0
    %3952 = vmatprep.mubr.f32.mxu0 0.0
    %3953 = vmatmul.mubr.f32.gmra.mxu0 %v3880
    %v3954 = vpop.f32.mrf.mxu0
    %v3955 = vadd.f32 0.0, %v3954
    %v3956 = vpop.f32.mrf.mxu0
    %3957 = vmatprep.mubr.f32.mxu0 0.0
    %3958 = vmatmul.mubr.f32.gmra.mxu0 %v3882
    %v3959 = vpop.f32.mrf.mxu0
    %v3960 = vadd.f32 0.0, %v3959
    %v3961 = vpop.f32.mrf.mxu0
    %3962 = vmatprep.mubr.f32.mxu0 0.0
    %3963 = vmatmul.mubr.f32.gmra.mxu0 %v3884
    %v3964 = vpop.f32.mrf.mxu0
    %v3965 = vadd.f32 0.0, %v3964
    %v3966 = vpop.f32.mrf.mxu0
    %3967 = vmatprep.mubr.f32.mxu0 0.0
    %3968 = vmatmul.mubr.f32.gmra.mxu0 %v3886
    %v3969 = vpop.f32.mrf.mxu0
    %v3970 = vadd.f32 0.0, %v3969
    %v3971 = vpop.f32.mrf.mxu0
    %3972 = vdwg.mxu0
    %3973 = vrot.lane.b32.xlu0 %v496, 96
    %v3974 = vpop.permute.xlu0 %3973
    %3975 = vrot.lane.b32.xlu0 %v501, 96
    %v3976 = vpop.permute.xlu0 %3975
    %3977 = vrot.lane.b32.xlu0 %v506, 96
    %v3978 = vpop.permute.xlu0 %3977
    %3979 = vrot.lane.b32.xlu0 %v511, 96
    %v3980 = vpop.permute.xlu0 %3979
    %3981 = vrot.lane.b32.xlu0 %v516, 96
    %v3982 = vpop.permute.xlu0 %3981
    %3983 = vrot.lane.b32.xlu0 %v521, 96
    %v3984 = vpop.permute.xlu0 %3983
    %v3985 = vsel %vm1894, %v3974, 0
    %v3987 = vsel %vm1894, %v3976, 0
    %v3989 = vsel %vm1894, %v3978, 0
    %v3991 = vsel %vm1894, %v3980, 0
    %v3993 = vsel %vm1894, %v3982, 0
    %v3995 = vsel %vm1894, %v3984, 0
    %v3998 = vsel %vm1894, %v3955, 0
    %v4001 = vsel %vm1894, %v3960, 0
    %v4004 = vsel %vm1894, %v3965, 0
    %v4007 = vsel %vm1894, %v3970, 0
    %4009 = vmatprep.subr.mxu0 0.0
    %4010 = vmatpush1.xpose.msra.mxu0 0.0
    %4011 = vmatprep.subr.mxu0 0.0
    %4012 = vmatpush1.xpose.msra.mxu0 0.0
    %4013 = vmatprep.subr.mxu0 0.0
    %4014 = vmatpush1.xpose.msra.mxu0 0.0
    %4015 = vmatprep.subr.mxu0 0.0
    %4016 = vmatpush1.xpose.msra.mxu0 0.0
    %4017 = vmatprep.subr.mxu0 0.0
    %4018 = vmatpush1.xpose.msra.mxu0 0.0
    %4019 = vmatprep.subr.mxu0 0.0
    %4020 = vmatpush1.xpose.msra.mxu0 0.0
    %4021 = vmatprep.subr.mxu0 0.0
    %4022 = vmatpush1.xpose.msra.mxu0 0.0
    %4023 = vmatprep.subr.mxu0 0.0
    %4024 = vmatpush1.xpose.msra.mxu0 0.0
    %4025 = vmatprep.subr.mxu0 0.0
    %4026 = vmatpush1.xpose.msra.mxu0 0.0
    %4027 = vmatprep.subr.mxu0 0.0
    %4028 = vmatpush1.xpose.msra.mxu0 0.0
    %4029 = vmatprep.subr.mxu0 0.0
    %4030 = vmatpush1.xpose.msra.mxu0 0.0
    %4031 = vmatprep.subr.mxu0 0.0
    %4032 = vmatpush1.xpose.msra.mxu0 0.0
    %4033 = vmatprep.subr.mxu0 0.0
    %4034 = vmatpush1.xpose.msra.mxu0 %v4007
    %4035 = vmatprep.subr.mxu0 0.0
    %4036 = vmatpush1.xpose.msra.mxu0 %v4004
    %4037 = vmatprep.subr.mxu0 0.0
    %4038 = vmatpush1.xpose.msra.mxu0 %v4001
    %4039 = vmatprep.subr.mxu0 0.0
    %4040 = vmatpush1.xpose.msra.mxu0 %v3998
    %4041 = vmatprep.subr.mxu0 0.0
    %4042 = vmatpush2.xpose.msra.mxu0 0.0
    %4043 = vmatprep.subr.mxu0 0.0
    %4044 = vmatpush2.xpose.msra.mxu0 0.0
    %4045 = vmatprep.subr.mxu0 0.0
    %4046 = vmatpush2.xpose.msra.mxu0 0.0
    %4047 = vmatprep.subr.mxu0 0.0
    %4048 = vmatpush2.xpose.msra.mxu0 0.0
    %4049 = vmatprep.subr.mxu0 0.0
    %4050 = vmatpush2.xpose.msra.mxu0 0.0
    %4051 = vmatprep.subr.mxu0 0.0
    %4052 = vmatpush2.xpose.msra.mxu0 0.0
    %4053 = vmatprep.subr.mxu0 0.0
    %4054 = vmatpush2.xpose.msra.mxu0 0.0
    %4055 = vmatprep.subr.mxu0 0.0
    %4056 = vmatpush2.xpose.msra.mxu0 0.0
    %4057 = vmatprep.subr.mxu0 0.0
    %4058 = vmatpush2.xpose.msra.mxu0 0.0
    %4059 = vmatprep.subr.mxu0 0.0
    %4060 = vmatpush2.xpose.msra.mxu0 0.0
    %4061 = vmatprep.subr.mxu0 0.0
    %4062 = vmatpush2.xpose.msra.mxu0 0.0
    %4063 = vmatprep.subr.mxu0 0.0
    %4064 = vmatpush2.xpose.msra.mxu0 0.0
    %4065 = vmatprep.subr.mxu0 0.0
    %4066 = vmatpush2.xpose.msra.mxu0 0.0
    %4067 = vmatprep.subr.mxu0 0.0
    %4068 = vmatpush2.xpose.msra.mxu0 0.0
    %4069 = vmatprep.subr.mxu0 0.0
    %4070 = vmatpush2.xpose.msra.mxu0 0.0
    %4071 = vmatprep.subr.mxu0 0.0
    %4072 = vmatpush2.xpose.msra.mxu0 0.0
    %4073 = vmatprep.mubr.f32.mxu0 0.0
    %4074 = vmatmul.mubr.f32.gmra.mxu0 %v3985
    %v4075 = vpop.f32.mrf.mxu0
    %v4076 = vadd.f32 0.0, %v4075
    %v4077 = vpop.f32.mrf.mxu0
    %4078 = vmatprep.mubr.f32.mxu0 0.0
    %4079 = vmatmul.mubr.f32.gmra.mxu0 %v3987
    %v4080 = vpop.f32.mrf.mxu0
    %v4081 = vadd.f32 0.0, %v4080
    %v4082 = vpop.f32.mrf.mxu0
    %4083 = vmatprep.mubr.f32.mxu0 0.0
    %4084 = vmatmul.mubr.f32.gmra.mxu0 %v3989
    %v4085 = vpop.f32.mrf.mxu0
    %v4086 = vadd.f32 0.0, %v4085
    %v4087 = vpop.f32.mrf.mxu0
    %4088 = vmatprep.mubr.f32.mxu0 0.0
    %4089 = vmatmul.mubr.f32.gmra.mxu0 %v3991
    %v4090 = vpop.f32.mrf.mxu0
    %v4091 = vadd.f32 0.0, %v4090
    %v4092 = vpop.f32.mrf.mxu0
    %4093 = vmatprep.mubr.f32.mxu0 0.0
    %4094 = vmatmul.mubr.f32.gmra.mxu0 %v3993
    %v4095 = vpop.f32.mrf.mxu0
    %v4096 = vadd.f32 0.0, %v4095
    %v4097 = vpop.f32.mrf.mxu0
    %4098 = vmatprep.mubr.f32.mxu0 0.0
    %4099 = vmatmul.mubr.f32.gmra.mxu0 %v3995
    %v4100 = vpop.f32.mrf.mxu0
    %v4101 = vadd.f32 0.0, %v4100
    %v4102 = vpop.f32.mrf.mxu0
    %4103 = vdwg.mxu0
    %v4104 = vmul.f32 %v4076, 0.25
    %v4105 = vmul.f32 %v4081, 0.25
    %v4106 = vmul.f32 %v4086, 0.25
    %v4107 = vmul.f32 %v4091, 0.25
    %v4108 = vmul.f32 %v4096, 0.25
    %v4109 = vmul.f32 %v4101, 0.25
    %v4110 = vadd.f32 %v4104, %v174
    %v4111 = vadd.f32 %v4105, %v175
    %v4112 = vadd.f32 %v4106, %v176
    %v4113 = vadd.f32 %v4107, %v177
    %v4114 = vadd.f32 %v4108, %v178
    %v4115 = vadd.f32 %v4109, %v179
    %v4116 = vsel %vm188, %v4110, -inf
    %4117 = vmax.xlane.f32.xlu0 %v4116
    %v4118 = vpop.xlane.xlu0 %4117
    %v4119 = vsel %vm188, %v4111, -inf
    %4120 = vmax.xlane.f32.xlu0 %v4119
    %v4121 = vpop.xlane.xlu0 %4120
    %v4122 = vsel %vm188, %v4112, -inf
    %4123 = vmax.xlane.f32.xlu0 %v4122
    %v4124 = vpop.xlane.xlu0 %4123
    %v4125 = vsel %vm188, %v4113, -inf
    %4126 = vmax.xlane.f32.xlu0 %v4125
    %v4127 = vpop.xlane.xlu0 %4126
    %v4128 = vsel %vm188, %v4114, -inf
    %4129 = vmax.xlane.f32.xlu0 %v4128
    %v4130 = vpop.xlane.xlu0 %4129
    %v4131 = vsel %vm188, %v4115, -inf
    %4132 = vmax.xlane.f32.xlu0 %v4131
    %v4133 = vpop.xlane.xlu0 %4132
    %v4134 = vsub.f32 %v4110, %v4118
    %v4135 = vsub.f32 %v4111, %v4121
    %v4136 = vsub.f32 %v4112, %v4124
    %v4137 = vsub.f32 %v4113, %v4127
    %v4138 = vsub.f32 %v4114, %v4130
    %v4139 = vsub.f32 %v4115, %v4133
    %v4140 = vmul.f32 %v4134, 1.442695
    %v4141 = vpow.pop %v4140
    %v4142 = vmul.f32 %v4135, 1.442695
    %v4143 = vpow.pop %v4142
    %v4144 = vmul.f32 %v4136, 1.442695
    %v4145 = vpow.pop %v4144
    %v4146 = vmul.f32 %v4137, 1.442695
    %v4147 = vpow.pop %v4146
    %v4148 = vmul.f32 %v4138, 1.442695
    %v4149 = vpow.pop %v4148
    %v4150 = vmul.f32 %v4139, 1.442695
    %v4151 = vpow.pop %v4150
    %v4152 = vsel %vm188, %v4141, 0.0
    %4153 = vadd.xlane.f32.xlu0 %v4152
    %v4154 = vpop.xlane.xlu0 %4153
    %v4155 = vsel %vm188, %v4143, 0.0
    %4156 = vadd.xlane.f32.xlu0 %v4155
    %v4157 = vpop.xlane.xlu0 %4156
    %v4158 = vsel %vm188, %v4145, 0.0
    %4159 = vadd.xlane.f32.xlu0 %v4158
    %v4160 = vpop.xlane.xlu0 %4159
    %v4161 = vsel %vm188, %v4147, 0.0
    %4162 = vadd.xlane.f32.xlu0 %v4161
    %v4163 = vpop.xlane.xlu0 %4162
    %v4164 = vsel %vm188, %v4149, 0.0
    %4165 = vadd.xlane.f32.xlu0 %v4164
    %v4166 = vpop.xlane.xlu0 %4165
    %v4167 = vsel %vm188, %v4151, 0.0
    %4168 = vadd.xlane.f32.xlu0 %v4167
    %v4169 = vpop.xlane.xlu0 %4168
    %v4170 = vrcp.pop %v4154
    %v4171 = vrcp.pop %v4157
    %v4172 = vrcp.pop %v4160
    %v4173 = vrcp.pop %v4163
    %v4174 = vrcp.pop %v4166
    %v4175 = vrcp.pop %v4169
    %v4176 = vmul.f32 %v4141, %v4170
    %v4177 = vmul.f32 %v4143, %v4171
    %v4178 = vmul.f32 %v4145, %v4172
    %v4179 = vmul.f32 %v4147, %v4173
    %v4180 = vmul.f32 %v4149, %v4174
    %v4181 = vmul.f32 %v4151, %v4175
    %v4182 = vadd.f32 %v4176, 0.0
    %v4183 = vadd.f32 %v4177, 0.0
    %v4184 = vadd.f32 %v4178, 0.0
    %v4185 = vadd.f32 %v4179, 0.0
    %v4186 = vadd.f32 %v4180, 0.0
    %v4187 = vadd.f32 %v4181, 0.0
    %4188 = vrot.lane.b32.xlu0 %v496, 80
    %v4189 = vpop.permute.xlu0 %4188
    %4190 = vrot.lane.b32.xlu0 %v501, 80
    %v4191 = vpop.permute.xlu0 %4190
    %4192 = vrot.lane.b32.xlu0 %v506, 80
    %v4193 = vpop.permute.xlu0 %4192
    %4194 = vrot.lane.b32.xlu0 %v511, 80
    %v4195 = vpop.permute.xlu0 %4194
    %4196 = vrot.lane.b32.xlu0 %v516, 80
    %v4197 = vpop.permute.xlu0 %4196
    %4198 = vrot.lane.b32.xlu0 %v521, 80
    %v4199 = vpop.permute.xlu0 %4198
    %4200 = vrot.lane.b32.xlu0 %v3955, 112
    %v4201 = vpop.permute.xlu0 %4200
    %4202 = vrot.lane.b32.xlu0 %v3960, 112
    %v4203 = vpop.permute.xlu0 %4202
    %4204 = vrot.lane.b32.xlu0 %v3965, 112
    %v4205 = vpop.permute.xlu0 %4204
    %4206 = vrot.lane.b32.xlu0 %v3970, 112
    %v4207 = vpop.permute.xlu0 %4206
    %v4208 = vsel %vm1894, %v4189, 0
    %v4210 = vsel %vm1894, %v4191, 0
    %v4212 = vsel %vm1894, %v4193, 0
    %v4214 = vsel %vm1894, %v4195, 0
    %v4216 = vsel %vm1894, %v4197, 0
    %v4218 = vsel %vm1894, %v4199, 0
    %v4220 = vsel %vm1894, %v4201, 0
    %v4222 = vsel %vm1894, %v4203, 0
    %v4224 = vsel %vm1894, %v4205, 0
    %v4226 = vsel %vm1894, %v4207, 0
    %4228 = vmatprep.subr.mxu0 0.0
    %4229 = vmatpush1.xpose.msra.mxu0 0.0
    %4230 = vmatprep.subr.mxu0 0.0
    %4231 = vmatpush1.xpose.msra.mxu0 0.0
    %4232 = vmatprep.subr.mxu0 0.0
    %4233 = vmatpush1.xpose.msra.mxu0 0.0
    %4234 = vmatprep.subr.mxu0 0.0
    %4235 = vmatpush1.xpose.msra.mxu0 0.0
    %4236 = vmatprep.subr.mxu0 0.0
    %4237 = vmatpush1.xpose.msra.mxu0 0.0
    %4238 = vmatprep.subr.mxu0 0.0
    %4239 = vmatpush1.xpose.msra.mxu0 0.0
    %4240 = vmatprep.subr.mxu0 0.0
    %4241 = vmatpush1.xpose.msra.mxu0 0.0
    %4242 = vmatprep.subr.mxu0 0.0
    %4243 = vmatpush1.xpose.msra.mxu0 0.0
    %4244 = vmatprep.subr.mxu0 0.0
    %4245 = vmatpush1.xpose.msra.mxu0 0.0
    %4246 = vmatprep.subr.mxu0 0.0
    %4247 = vmatpush1.xpose.msra.mxu0 0.0
    %4248 = vmatprep.subr.mxu0 0.0
    %4249 = vmatpush1.xpose.msra.mxu0 0.0
    %4250 = vmatprep.subr.mxu0 0.0
    %4251 = vmatpush1.xpose.msra.mxu0 0.0
    %4252 = vmatprep.subr.mxu0 0.0
    %4253 = vmatpush1.xpose.msra.mxu0 %v4226
    %4254 = vmatprep.subr.mxu0 0.0
    %4255 = vmatpush1.xpose.msra.mxu0 %v4224
    %4256 = vmatprep.subr.mxu0 0.0
    %4257 = vmatpush1.xpose.msra.mxu0 %v4222
    %4258 = vmatprep.subr.mxu0 0.0
    %4259 = vmatpush1.xpose.msra.mxu0 %v4220
    %4260 = vmatprep.subr.mxu0 0.0
    %4261 = vmatpush2.xpose.msra.mxu0 0.0
    %4262 = vmatprep.subr.mxu0 0.0
    %4263 = vmatpush2.xpose.msra.mxu0 0.0
    %4264 = vmatprep.subr.mxu0 0.0
    %4265 = vmatpush2.xpose.msra.mxu0 0.0
    %4266 = vmatprep.subr.mxu0 0.0
    %4267 = vmatpush2.xpose.msra.mxu0 0.0
    %4268 = vmatprep.subr.mxu0 0.0
    %4269 = vmatpush2.xpose.msra.mxu0 0.0
    %4270 = vmatprep.subr.mxu0 0.0
    %4271 = vmatpush2.xpose.msra.mxu0 0.0
    %4272 = vmatprep.subr.mxu0 0.0
    %4273 = vmatpush2.xpose.msra.mxu0 0.0
    %4274 = vmatprep.subr.mxu0 0.0
    %4275 = vmatpush2.xpose.msra.mxu0 0.0
    %4276 = vmatprep.subr.mxu0 0.0
    %4277 = vmatpush2.xpose.msra.mxu0 0.0
    %4278 = vmatprep.subr.mxu0 0.0
    %4279 = vmatpush2.xpose.msra.mxu0 0.0
    %4280 = vmatprep.subr.mxu0 0.0
    %4281 = vmatpush2.xpose.msra.mxu0 0.0
    %4282 = vmatprep.subr.mxu0 0.0
    %4283 = vmatpush2.xpose.msra.mxu0 0.0
    %4284 = vmatprep.subr.mxu0 0.0
    %4285 = vmatpush2.xpose.msra.mxu0 0.0
    %4286 = vmatprep.subr.mxu0 0.0
    %4287 = vmatpush2.xpose.msra.mxu0 0.0
    %4288 = vmatprep.subr.mxu0 0.0
    %4289 = vmatpush2.xpose.msra.mxu0 0.0
    %4290 = vmatprep.subr.mxu0 0.0
    %4291 = vmatpush2.xpose.msra.mxu0 0.0
    %4292 = vmatprep.mubr.f32.mxu0 0.0
    %4293 = vmatmul.mubr.f32.gmra.mxu0 %v4208
    %v4294 = vpop.f32.mrf.mxu0
    %v4295 = vadd.f32 0.0, %v4294
    %v4296 = vpop.f32.mrf.mxu0
    %4297 = vmatprep.mubr.f32.mxu0 0.0
    %4298 = vmatmul.mubr.f32.gmra.mxu0 %v4210
    %v4299 = vpop.f32.mrf.mxu0
    %v4300 = vadd.f32 0.0, %v4299
    %v4301 = vpop.f32.mrf.mxu0
    %4302 = vmatprep.mubr.f32.mxu0 0.0
    %4303 = vmatmul.mubr.f32.gmra.mxu0 %v4212
    %v4304 = vpop.f32.mrf.mxu0
    %v4305 = vadd.f32 0.0, %v4304
    %v4306 = vpop.f32.mrf.mxu0
    %4307 = vmatprep.mubr.f32.mxu0 0.0
    %4308 = vmatmul.mubr.f32.gmra.mxu0 %v4214
    %v4309 = vpop.f32.mrf.mxu0
    %v4310 = vadd.f32 0.0, %v4309
    %v4311 = vpop.f32.mrf.mxu0
    %4312 = vmatprep.mubr.f32.mxu0 0.0
    %4313 = vmatmul.mubr.f32.gmra.mxu0 %v4216
    %v4314 = vpop.f32.mrf.mxu0
    %v4315 = vadd.f32 0.0, %v4314
    %v4316 = vpop.f32.mrf.mxu0
    %4317 = vmatprep.mubr.f32.mxu0 0.0
    %4318 = vmatmul.mubr.f32.gmra.mxu0 %v4218
    %v4319 = vpop.f32.mrf.mxu0
    %v4320 = vadd.f32 0.0, %v4319
    %v4321 = vpop.f32.mrf.mxu0
    %4322 = vdwg.mxu0
    %v4323 = vmul.f32 %v4295, 0.25
    %v4324 = vmul.f32 %v4300, 0.25
    %v4325 = vmul.f32 %v4305, 0.25
    %v4326 = vmul.f32 %v4310, 0.25
    %v4327 = vmul.f32 %v4315, 0.25
    %v4328 = vmul.f32 %v4320, 0.25
    %v4329 = vadd.f32 %v4323, %v174
    %v4330 = vadd.f32 %v4324, %v175
    %v4331 = vadd.f32 %v4325, %v176
    %v4332 = vadd.f32 %v4326, %v177
    %v4333 = vadd.f32 %v4327, %v178
    %v4334 = vadd.f32 %v4328, %v179
    %v4335 = vsel %vm188, %v4329, -inf
    %4336 = vmax.xlane.f32.xlu0 %v4335
    %v4337 = vpop.xlane.xlu0 %4336
    %v4338 = vsel %vm188, %v4330, -inf
    %4339 = vmax.xlane.f32.xlu0 %v4338
    %v4340 = vpop.xlane.xlu0 %4339
    %v4341 = vsel %vm188, %v4331, -inf
    %4342 = vmax.xlane.f32.xlu0 %v4341
    %v4343 = vpop.xlane.xlu0 %4342
    %v4344 = vsel %vm188, %v4332, -inf
    %4345 = vmax.xlane.f32.xlu0 %v4344
    %v4346 = vpop.xlane.xlu0 %4345
    %v4347 = vsel %vm188, %v4333, -inf
    %4348 = vmax.xlane.f32.xlu0 %v4347
    %v4349 = vpop.xlane.xlu0 %4348
    %v4350 = vsel %vm188, %v4334, -inf
    %4351 = vmax.xlane.f32.xlu0 %v4350
    %v4352 = vpop.xlane.xlu0 %4351
    %v4353 = vsub.f32 %v4329, %v4337
    %v4354 = vsub.f32 %v4330, %v4340
    %v4355 = vsub.f32 %v4331, %v4343
    %v4356 = vsub.f32 %v4332, %v4346
    %v4357 = vsub.f32 %v4333, %v4349
    %v4358 = vsub.f32 %v4334, %v4352
    %v4359 = vmul.f32 %v4353, 1.442695
    %v4360 = vpow.pop %v4359
    %v4361 = vmul.f32 %v4354, 1.442695
    %v4362 = vpow.pop %v4361
    %v4363 = vmul.f32 %v4355, 1.442695
    %v4364 = vpow.pop %v4363
    %v4365 = vmul.f32 %v4356, 1.442695
    %v4366 = vpow.pop %v4365
    %v4367 = vmul.f32 %v4357, 1.442695
    %v4368 = vpow.pop %v4367
    %v4369 = vmul.f32 %v4358, 1.442695
    %v4370 = vpow.pop %v4369
    %v4371 = vsel %vm188, %v4360, 0.0
    %4372 = vadd.xlane.f32.xlu0 %v4371
    %v4373 = vpop.xlane.xlu0 %4372
    %v4374 = vsel %vm188, %v4362, 0.0
    %4375 = vadd.xlane.f32.xlu0 %v4374
    %v4376 = vpop.xlane.xlu0 %4375
    %v4377 = vsel %vm188, %v4364, 0.0
    %4378 = vadd.xlane.f32.xlu0 %v4377
    %v4379 = vpop.xlane.xlu0 %4378
    %v4380 = vsel %vm188, %v4366, 0.0
    %4381 = vadd.xlane.f32.xlu0 %v4380
    %v4382 = vpop.xlane.xlu0 %4381
    %v4383 = vsel %vm188, %v4368, 0.0
    %4384 = vadd.xlane.f32.xlu0 %v4383
    %v4385 = vpop.xlane.xlu0 %4384
    %v4386 = vsel %vm188, %v4370, 0.0
    %4387 = vadd.xlane.f32.xlu0 %v4386
    %v4388 = vpop.xlane.xlu0 %4387
    %v4389 = vrcp.pop %v4373
    %v4390 = vrcp.pop %v4376
    %v4391 = vrcp.pop %v4379
    %v4392 = vrcp.pop %v4382
    %v4393 = vrcp.pop %v4385
    %v4394 = vrcp.pop %v4388
    %v4395 = vmul.f32 %v4360, %v4389
    %v4396 = vmul.f32 %v4362, %v4390
    %v4397 = vmul.f32 %v4364, %v4391
    %v4398 = vmul.f32 %v4366, %v4392
    %v4399 = vmul.f32 %v4368, %v4393
    %v4400 = vmul.f32 %v4370, %v4394
    %v4401 = vadd.f32 %v4182, %v4395
    %v4402 = vadd.f32 %v4183, %v4396
    %v4403 = vadd.f32 %v4184, %v4397
    %v4404 = vadd.f32 %v4185, %v4398
    %v4405 = vadd.f32 %v4186, %v4399
    %v4406 = vadd.f32 %v4187, %v4400
    %4407 = vrot.lane.b32.xlu0 %v3955, 86
    %v4408 = vpop.permute.xlu0 %4407
    %4409 = vrot.lane.b32.xlu0 %v3960, 86
    %v4410 = vpop.permute.xlu0 %4409
    %4411 = vrot.lane.b32.xlu0 %v3965, 86
    %v4412 = vpop.permute.xlu0 %4411
    %4413 = vrot.lane.b32.xlu0 %v3970, 86
    %v4414 = vpop.permute.xlu0 %4413
    %v4420 = vsel %vm188, %v4395, 0
    %v4423 = vsel %vm188, %v4396, 0
    %v4426 = vsel %vm188, %v4397, 0
    %v4429 = vsel %vm188, %v4398, 0
    %v4432 = vsel %vm188, %v4399, 0
    %v4435 = vsel %vm188, %v4400, 0
    %4437 = vmatprep.subr.mxu0 0.0
    %4438 = vmatpush1.msra.mxu0 0.0
    %4439 = vmatprep.subr.mxu0 0.0
    %4440 = vmatpush1.msra.mxu0 0.0
    %4441 = vmatprep.subr.mxu0 0.0
    %4442 = vmatpush1.msra.mxu0 0.0
    %4443 = vmatprep.subr.mxu0 0.0
    %4444 = vmatpush1.msra.mxu0 0.0
    %4445 = vmatprep.subr.mxu0 0.0
    %4446 = vmatpush1.msra.mxu0 0.0
    %4447 = vmatprep.subr.mxu0 0.0
    %4448 = vmatpush1.msra.mxu0 0.0
    %4449 = vmatprep.subr.mxu0 0.0
    %4450 = vmatpush1.msra.mxu0 0.0
    %4451 = vmatprep.subr.mxu0 0.0
    %4452 = vmatpush1.msra.mxu0 0.0
    %4453 = vmatprep.subr.mxu0 0.0
    %4454 = vmatpush1.msra.mxu0 0.0
    %4455 = vmatprep.subr.mxu0 0.0
    %4456 = vmatpush1.msra.mxu0 0.0
    %4457 = vmatprep.subr.mxu0 0.0
    %4458 = vmatpush1.msra.mxu0 0.0
    %4459 = vmatprep.subr.mxu0 0.0
    %4460 = vmatpush1.msra.mxu0 0.0
    %4461 = vmatprep.subr.mxu0 0.0
    %4462 = vmatpush1.msra.mxu0 %v4414
    %4463 = vmatprep.subr.mxu0 0.0
    %4464 = vmatpush1.msra.mxu0 %v4412
    %4465 = vmatprep.subr.mxu0 0.0
    %4466 = vmatpush1.msra.mxu0 %v4410
    %4467 = vmatprep.subr.mxu0 0.0
    %4468 = vmatpush1.msra.mxu0 %v4408
    %4469 = vmatprep.subr.mxu0 0.0
    %4470 = vmatpush2.msra.mxu0 0.0
    %4471 = vmatprep.subr.mxu0 0.0
    %4472 = vmatpush2.msra.mxu0 0.0
    %4473 = vmatprep.subr.mxu0 0.0
    %4474 = vmatpush2.msra.mxu0 0.0
    %4475 = vmatprep.subr.mxu0 0.0
    %4476 = vmatpush2.msra.mxu0 0.0
    %4477 = vmatprep.subr.mxu0 0.0
    %4478 = vmatpush2.msra.mxu0 0.0
    %4479 = vmatprep.subr.mxu0 0.0
    %4480 = vmatpush2.msra.mxu0 0.0
    %4481 = vmatprep.subr.mxu0 0.0
    %4482 = vmatpush2.msra.mxu0 0.0
    %4483 = vmatprep.subr.mxu0 0.0
    %4484 = vmatpush2.msra.mxu0 0.0
    %4485 = vmatprep.subr.mxu0 0.0
    %4486 = vmatpush2.msra.mxu0 0.0
    %4487 = vmatprep.subr.mxu0 0.0
    %4488 = vmatpush2.msra.mxu0 0.0
    %4489 = vmatprep.subr.mxu0 0.0
    %4490 = vmatpush2.msra.mxu0 0.0
    %4491 = vmatprep.subr.mxu0 0.0
    %4492 = vmatpush2.msra.mxu0 0.0
    %4493 = vmatprep.subr.mxu0 0.0
    %4494 = vmatpush2.msra.mxu0 0.0
    %4495 = vmatprep.subr.mxu0 0.0
    %4496 = vmatpush2.msra.mxu0 0.0
    %4497 = vmatprep.subr.mxu0 0.0
    %4498 = vmatpush2.msra.mxu0 0.0
    %4499 = vmatprep.subr.mxu0 0.0
    %4500 = vmatpush2.msra.mxu0 0.0
    %4501 = vmatprep.mubr.f32.mxu0 0.0
    %4502 = vmatmul.mubr.f32.gmra.mxu0 %v4420
    %v4503 = vpop.f32.mrf.mxu0
    %v4504 = vadd.f32 0.0, %v4503
    %v4505 = vpop.f32.mrf.mxu0
    %4506 = vmatprep.mubr.f32.mxu0 0.0
    %4507 = vmatmul.mubr.f32.gmra.mxu0 %v4423
    %v4508 = vpop.f32.mrf.mxu0
    %v4509 = vadd.f32 0.0, %v4508
    %v4510 = vpop.f32.mrf.mxu0
    %4511 = vmatprep.mubr.f32.mxu0 0.0
    %4512 = vmatmul.mubr.f32.gmra.mxu0 %v4426
    %v4513 = vpop.f32.mrf.mxu0
    %v4514 = vadd.f32 0.0, %v4513
    %v4515 = vpop.f32.mrf.mxu0
    %4516 = vmatprep.mubr.f32.mxu0 0.0
    %4517 = vmatmul.mubr.f32.gmra.mxu0 %v4429
    %v4518 = vpop.f32.mrf.mxu0
    %v4519 = vadd.f32 0.0, %v4518
    %v4520 = vpop.f32.mrf.mxu0
    %4521 = vmatprep.mubr.f32.mxu0 0.0
    %4522 = vmatmul.mubr.f32.gmra.mxu0 %v4432
    %v4523 = vpop.f32.mrf.mxu0
    %v4524 = vadd.f32 0.0, %v4523
    %v4525 = vpop.f32.mrf.mxu0
    %4526 = vmatprep.mubr.f32.mxu0 0.0
    %4527 = vmatmul.mubr.f32.gmra.mxu0 %v4435
    %v4528 = vpop.f32.mrf.mxu0
    %v4529 = vadd.f32 0.0, %v4528
    %v4530 = vpop.f32.mrf.mxu0
    %4531 = vdwg.mxu0
    %4532 = vrot.lane.b32.xlu0 %v3955, 96
    %v4533 = vpop.permute.xlu0 %4532
    %4534 = vrot.lane.b32.xlu0 %v3960, 96
    %v4535 = vpop.permute.xlu0 %4534
    %4536 = vrot.lane.b32.xlu0 %v3965, 96
    %v4537 = vpop.permute.xlu0 %4536
    %4538 = vrot.lane.b32.xlu0 %v3970, 96
    %v4539 = vpop.permute.xlu0 %4538
    %v4545 = vsel %vm188, %v4176, 0
    %v4548 = vsel %vm188, %v4177, 0
    %v4551 = vsel %vm188, %v4178, 0
    %v4554 = vsel %vm188, %v4179, 0
    %v4557 = vsel %vm188, %v4180, 0
    %v4560 = vsel %vm188, %v4181, 0
    %4562 = vmatprep.subr.mxu0 0.0
    %4563 = vmatpush1.msra.mxu0 0.0
    %4564 = vmatprep.subr.mxu0 0.0
    %4565 = vmatpush1.msra.mxu0 0.0
    %4566 = vmatprep.subr.mxu0 0.0
    %4567 = vmatpush1.msra.mxu0 0.0
    %4568 = vmatprep.subr.mxu0 0.0
    %4569 = vmatpush1.msra.mxu0 0.0
    %4570 = vmatprep.subr.mxu0 0.0
    %4571 = vmatpush1.msra.mxu0 0.0
    %4572 = vmatprep.subr.mxu0 0.0
    %4573 = vmatpush1.msra.mxu0 0.0
    %4574 = vmatprep.subr.mxu0 0.0
    %4575 = vmatpush1.msra.mxu0 0.0
    %4576 = vmatprep.subr.mxu0 0.0
    %4577 = vmatpush1.msra.mxu0 0.0
    %4578 = vmatprep.subr.mxu0 0.0
    %4579 = vmatpush1.msra.mxu0 0.0
    %4580 = vmatprep.subr.mxu0 0.0
    %4581 = vmatpush1.msra.mxu0 0.0
    %4582 = vmatprep.subr.mxu0 0.0
    %4583 = vmatpush1.msra.mxu0 0.0
    %4584 = vmatprep.subr.mxu0 0.0
    %4585 = vmatpush1.msra.mxu0 0.0
    %4586 = vmatprep.subr.mxu0 0.0
    %4587 = vmatpush1.msra.mxu0 %v4539
    %4588 = vmatprep.subr.mxu0 0.0
    %4589 = vmatpush1.msra.mxu0 %v4537
    %4590 = vmatprep.subr.mxu0 0.0
    %4591 = vmatpush1.msra.mxu0 %v4535
    %4592 = vmatprep.subr.mxu0 0.0
    %4593 = vmatpush1.msra.mxu0 %v4533
    %4594 = vmatprep.subr.mxu0 0.0
    %4595 = vmatpush2.msra.mxu0 0.0
    %4596 = vmatprep.subr.mxu0 0.0
    %4597 = vmatpush2.msra.mxu0 0.0
    %4598 = vmatprep.subr.mxu0 0.0
    %4599 = vmatpush2.msra.mxu0 0.0
    %4600 = vmatprep.subr.mxu0 0.0
    %4601 = vmatpush2.msra.mxu0 0.0
    %4602 = vmatprep.subr.mxu0 0.0
    %4603 = vmatpush2.msra.mxu0 0.0
    %4604 = vmatprep.subr.mxu0 0.0
    %4605 = vmatpush2.msra.mxu0 0.0
    %4606 = vmatprep.subr.mxu0 0.0
    %4607 = vmatpush2.msra.mxu0 0.0
    %4608 = vmatprep.subr.mxu0 0.0
    %4609 = vmatpush2.msra.mxu0 0.0
    %4610 = vmatprep.subr.mxu0 0.0
    %4611 = vmatpush2.msra.mxu0 0.0
    %4612 = vmatprep.subr.mxu0 0.0
    %4613 = vmatpush2.msra.mxu0 0.0
    %4614 = vmatprep.subr.mxu0 0.0
    %4615 = vmatpush2.msra.mxu0 0.0
    %4616 = vmatprep.subr.mxu0 0.0
    %4617 = vmatpush2.msra.mxu0 0.0
    %4618 = vmatprep.subr.mxu0 0.0
    %4619 = vmatpush2.msra.mxu0 0.0
    %4620 = vmatprep.subr.mxu0 0.0
    %4621 = vmatpush2.msra.mxu0 0.0
    %4622 = vmatprep.subr.mxu0 0.0
    %4623 = vmatpush2.msra.mxu0 0.0
    %4624 = vmatprep.subr.mxu0 0.0
    %4625 = vmatpush2.msra.mxu0 0.0
    %4626 = vmatprep.mubr.f32.mxu0 0.0
    %4627 = vmatmul.mubr.f32.gmra.mxu0 %v4545
    %v4628 = vpop.f32.mrf.mxu0
    %v4629 = vadd.f32 %v4504, %v4628
    %v4630 = vpop.f32.mrf.mxu0
    %4631 = vmatprep.mubr.f32.mxu0 0.0
    %4632 = vmatmul.mubr.f32.gmra.mxu0 %v4548
    %v4633 = vpop.f32.mrf.mxu0
    %v4634 = vadd.f32 %v4509, %v4633
    %v4635 = vpop.f32.mrf.mxu0
    %4636 = vmatprep.mubr.f32.mxu0 0.0
    %4637 = vmatmul.mubr.f32.gmra.mxu0 %v4551
    %v4638 = vpop.f32.mrf.mxu0
    %v4639 = vadd.f32 %v4514, %v4638
    %v4640 = vpop.f32.mrf.mxu0
    %4641 = vmatprep.mubr.f32.mxu0 0.0
    %4642 = vmatmul.mubr.f32.gmra.mxu0 %v4554
    %v4643 = vpop.f32.mrf.mxu0
    %v4644 = vadd.f32 %v4519, %v4643
    %v4645 = vpop.f32.mrf.mxu0
    %4646 = vmatprep.mubr.f32.mxu0 0.0
    %4647 = vmatmul.mubr.f32.gmra.mxu0 %v4557
    %v4648 = vpop.f32.mrf.mxu0
    %v4649 = vadd.f32 %v4524, %v4648
    %v4650 = vpop.f32.mrf.mxu0
    %4651 = vmatprep.mubr.f32.mxu0 0.0
    %4652 = vmatmul.mubr.f32.gmra.mxu0 %v4560
    %v4653 = vpop.f32.mrf.mxu0
    %v4654 = vadd.f32 %v4529, %v4653
    %v4655 = vpop.f32.mrf.mxu0
    %4656 = vdwg.mxu0
    %v4657 = vmul.f32 %v4401, 0.5
    %v4658 = vmul.f32 %v4402, 0.5
    %v4659 = vmul.f32 %v4403, 0.5
    %v4660 = vmul.f32 %v4404, 0.5
    %v4661 = vmul.f32 %v4405, 0.5
    %v4662 = vmul.f32 %v4406, 0.5
    %s4663 = scalar_lea.vmem %s15, 48
    %4664 = vst.msk [vmem:[%s4663] sm:$0xff] %vm188, %v4657
    %4665 = vst.msk [vmem:[%s4663 + $0x8] sm:$0xff] %vm188, %v4658
    %4666 = vst.msk [vmem:[%s4663 + $0x10] sm:$0xff] %vm188, %v4659
    %4667 = vst.msk [vmem:[%s4663 + $0x18] sm:$0xff] %vm188, %v4660
    %4668 = vst.msk [vmem:[%s4663 + $0x20] sm:$0xff] %vm188, %v4661
    %4669 = vst.msk [vmem:[%s4663 + $0x28] sm:$0xff] %vm188, %v4662
    %v4670 = vadd.f32 %v2585, %v4629
    %v4671 = vadd.f32 %v2586, %v4634
    %v4672 = vadd.f32 %v2587, %v4639
    %v4673 = vadd.f32 %v2588, %v4644
    %v4674 = vadd.f32 %v2589, %v4649
    %v4675 = vadd.f32 %v2590, %v4654
    %s4676 = scalar_lea.vmem [#allocation10], 16
    %v4677 = vld [vmem:[%s4676] sm:$0x3f]
    %s4678 = scalar_lea.vmem [#allocation11], 192
    %v4679 = vld [vmem:[%s4678] sm:$0xff]
    %v4680 = vld [vmem:[%s4678 + $0x8] sm:$0xff]
    %v4681 = vld [vmem:[%s4678 + $0x10] sm:$0xff]
    %v4682 = vld [vmem:[%s4678 + $0x18] sm:$0xff]
    %s4683 = scalar_lea.vmem [#allocation11], 224
    %v4684 = vld [vmem:[%s4683] sm:$0xff]
    %v4685 = vld [vmem:[%s4683 + $0x8] sm:$0xff]
    %v4686 = vld [vmem:[%s4683 + $0x10] sm:$0xff]
    %v4687 = vld [vmem:[%s4683 + $0x18] sm:$0xff]
    %s4688 = scalar_lea.vmem [#allocation11], 256
    %v4689 = vld [vmem:[%s4688] sm:$0xff]
    %v4690 = vld [vmem:[%s4688 + $0x8] sm:$0xff]
    %v4691 = vld [vmem:[%s4688 + $0x10] sm:$0xff]
    %v4692 = vld [vmem:[%s4688 + $0x18] sm:$0xff]
    %s4693 = scalar_lea.vmem %s9, 128
    %v4694 = vld [vmem:[%s4693] sm:$0xff]
    %v4695 = vld [vmem:[%s4693 + $0x8] sm:$0xff]
    %v4696 = vld [vmem:[%s4693 + $0x10] sm:$0xff]
    %v4697 = vld [vmem:[%s4693 + $0x18] sm:$0xff]
    %s4698 = scalar_lea.vmem %s9, 160
    %v4699 = vld [vmem:[%s4698] sm:$0xff]
    %v4700 = vld [vmem:[%s4698 + $0x8] sm:$0xff]
    %v4701 = vld [vmem:[%s4698 + $0x10] sm:$0xff]
    %v4702 = vld [vmem:[%s4698 + $0x18] sm:$0xff]
    %s4703 = scalar_lea.vmem [#allocation13], 4
    %v4704 = vld [vmem:[%s4703] sm:$0x3]
    %s4705 = scalar_lea.vmem [#allocation2], 64
    %v4706 = vld [vmem:[%s4705] sm:$0xff]
    %v4707 = vld [vmem:[%s4705 + $0x8] sm:$0xff]
    %v4708 = vld [vmem:[%s4705 + $0x10] sm:$0xff]
    %v4709 = vld [vmem:[%s4705 + $0x18] sm:$0xff]
    %v4710 = vsel %vm188, %v4706, 0.0
    %4711 = vadd.xlane.f32.xlu0 %v4710
    %v4712 = vpop.xlane.xlu0 %4711
    %v4713 = vsel %vm188, %v4707, 0.0
    %4714 = vadd.xlane.f32.xlu0 %v4713
    %v4715 = vpop.xlane.xlu0 %4714
    %v4716 = vsel %vm188, %v4708, 0.0
    %4717 = vadd.xlane.f32.xlu0 %v4716
    %v4718 = vpop.xlane.xlu0 %4717
    %v4719 = vsel %vm188, %v4709, 0.0
    %4720 = vadd.xlane.f32.xlu0 %v4719
    %v4721 = vpop.xlane.xlu0 %4720
    %v4722 = vmul.f32 %v4712, %v207
    %v4723 = vmul.f32 %v4715, %v207
    %v4724 = vmul.f32 %v4718, %v207
    %v4725 = vmul.f32 %v4721, %v207
    %v4726 = vsub.f32 %v4706, %v4722
    %v4727 = vsub.f32 %v4707, %v4723
    %v4728 = vsub.f32 %v4708, %v4724
    %v4729 = vsub.f32 %v4709, %v4725
    %v4730 = vmul.f32 %v4726, %v4726
    %v4731 = vmul.f32 %v4727, %v4727
    %v4732 = vmul.f32 %v4728, %v4728
    %v4733 = vmul.f32 %v4729, %v4729
    %v4734 = vsel %vm188, %v4730, 0.0
    %4735 = vadd.xlane.f32.xlu0 %v4734
    %v4736 = vpop.xlane.xlu0 %4735
    %v4737 = vsel %vm188, %v4731, 0.0
    %4738 = vadd.xlane.f32.xlu0 %v4737
    %v4739 = vpop.xlane.xlu0 %4738
    %v4740 = vsel %vm188, %v4732, 0.0
    %4741 = vadd.xlane.f32.xlu0 %v4740
    %v4742 = vpop.xlane.xlu0 %4741
    %v4743 = vsel %vm188, %v4733, 0.0
    %4744 = vadd.xlane.f32.xlu0 %v4743
    %v4745 = vpop.xlane.xlu0 %4744
    %v4746 = vmul.f32 %v4736, %v207
    %v4747 = vmul.f32 %v4739, %v207
    %v4748 = vmul.f32 %v4742, %v207
    %v4749 = vmul.f32 %v4745, %v207
    %v4750 = vadd.f32 %v4746, 1e-05
    %v4751 = vadd.f32 %v4747, 1e-05
    %v4752 = vadd.f32 %v4748, 1e-05
    %v4753 = vadd.f32 %v4749, 1e-05
    %v4754 = vrsqrt.pop %v4750
    %v4755 = vrsqrt.pop %v4751
    %v4756 = vrsqrt.pop %v4752
    %v4757 = vrsqrt.pop %v4753
    %v4758 = vmul.f32 %v4726, %v4754
    %v4759 = vmul.f32 %v4727, %v4755
    %v4760 = vmul.f32 %v4728, %v4756
    %v4761 = vmul.f32 %v4729, %v4757
    %v4762 = vlaneseq
    %v4763 = vshrl.u32 %v4762, 7
    %v4764 = vsub.s32 0, %v4763
    %v4765 = vrot.slane %v4677, %v4764
    %v4766 = vmul.f32 %v4758, %v4765
    %v4767 = vmul.f32 %v4759, %v4765
    %v4768 = vmul.f32 %v4760, %v4765
    %v4769 = vmul.f32 %v4761, %v4765
    %v4770 = vlaneseq
    %v4771 = vshrl.u32 %v4770, 7
    %v4772 = vsub.s32 1, %v4771
    %v4773 = vrot.slane %v4677, %v4772
    %v4774 = vadd.f32 %v4766, %v4773
    %v4775 = vadd.f32 %v4767, %v4773
    %v4776 = vadd.f32 %v4768, %v4773
    %v4777 = vadd.f32 %v4769, %v4773
    %v4779 = vsel %vm188, %v4774, 0
    %v4782 = vsel %vm188, %v4775, 0
    %v4785 = vsel %vm188, %v4776, 0
    %v4788 = vsel %vm188, %v4777, 0
    %4790 = vmatprep.subr.mxu0 0.0
    %4791 = vmatpush1.msra.mxu0 0.0
    %4792 = vmatprep.subr.mxu0 0.0
    %4793 = vmatpush1.msra.mxu0 0.0
    %4794 = vmatprep.subr.mxu0 0.0
    %4795 = vmatpush1.msra.mxu0 0.0
    %4796 = vmatprep.subr.mxu0 0.0
    %4797 = vmatpush1.msra.mxu0 0.0
    %4798 = vmatprep.subr.mxu0 0.0
    %4799 = vmatpush1.msra.mxu0 0.0
    %4800 = vmatprep.subr.mxu0 0.0
    %4801 = vmatpush1.msra.mxu0 0.0
    %4802 = vmatprep.subr.mxu0 0.0
    %4803 = vmatpush1.msra.mxu0 0.0
    %4804 = vmatprep.subr.mxu0 0.0
    %4805 = vmatpush1.msra.mxu0 0.0
    %4806 = vmatprep.subr.mxu0 0.0
    %4807 = vmatpush1.msra.mxu0 0.0
    %4808 = vmatprep.subr.mxu0 0.0
    %4809 = vmatpush1.msra.mxu0 0.0
    %4810 = vmatprep.subr.mxu0 0.0
    %4811 = vmatpush1.msra.mxu0 0.0
    %4812 = vmatprep.subr.mxu0 0.0
    %4813 = vmatpush1.msra.mxu0 0.0
    %4814 = vmatprep.subr.mxu0 0.0
    %4815 = vmatpush1.msra.mxu0 %v4682
    %4816 = vmatprep.subr.mxu0 0.0
    %4817 = vmatpush1.msra.mxu0 %v4681
    %4818 = vmatprep.subr.mxu0 0.0
    %4819 = vmatpush1.msra.mxu0 %v4680
    %4820 = vmatprep.subr.mxu0 0.0
    %4821 = vmatpush1.msra.mxu0 %v4679
    %4822 = vmatprep.subr.mxu0 0.0
    %4823 = vmatpush2.msra.mxu0 0.0
    %4824 = vmatprep.subr.mxu0 0.0
    %4825 = vmatpush2.msra.mxu0 0.0
    %4826 = vmatprep.subr.mxu0 0.0
    %4827 = vmatpush2.msra.mxu0 0.0
    %4828 = vmatprep.subr.mxu0 0.0
    %4829 = vmatpush2.msra.mxu0 0.0
    %4830 = vmatprep.subr.mxu0 0.0
    %4831 = vmatpush2.msra.mxu0 0.0
    %4832 = vmatprep.subr.mxu0 0.0
    %4833 = vmatpush2.msra.mxu0 0.0
    %4834 = vmatprep.subr.mxu0 0.0
    %4835 = vmatpush2.msra.mxu0 0.0
    %4836 = vmatprep.subr.mxu0 0.0
    %4837 = vmatpush2.msra.mxu0 0.0
    %4838 = vmatprep.subr.mxu0 0.0
    %4839 = vmatpush2.msra.mxu0 0.0
    %4840 = vmatprep.subr.mxu0 0.0
    %4841 = vmatpush2.msra.mxu0 0.0
    %4842 = vmatprep.subr.mxu0 0.0
    %4843 = vmatpush2.msra.mxu0 0.0
    %4844 = vmatprep.subr.mxu0 0.0
    %4845 = vmatpush2.msra.mxu0 0.0
    %4846 = vmatprep.subr.mxu0 0.0
    %4847 = vmatpush2.msra.mxu0 0.0
    %4848 = vmatprep.subr.mxu0 0.0
    %4849 = vmatpush2.msra.mxu0 0.0
    %4850 = vmatprep.subr.mxu0 0.0
    %4851 = vmatpush2.msra.mxu0 0.0
    %4852 = vmatprep.subr.mxu0 0.0
    %4853 = vmatpush2.msra.mxu0 0.0
    %4854 = vmatprep.mubr.f32.mxu0 0.0
    %4855 = vmatmul.mubr.f32.gmra.mxu0 %v4779
    %v4856 = vpop.f32.mrf.mxu0
    %v4857 = vadd.f32 0.0, %v4856
    %v4858 = vpop.f32.mrf.mxu0
    %4859 = vmatprep.mubr.f32.mxu0 0.0
    %4860 = vmatmul.mubr.f32.gmra.mxu0 %v4782
    %v4861 = vpop.f32.mrf.mxu0
    %v4862 = vadd.f32 0.0, %v4861
    %v4863 = vpop.f32.mrf.mxu0
    %4864 = vmatprep.mubr.f32.mxu0 0.0
    %4865 = vmatmul.mubr.f32.gmra.mxu0 %v4785
    %v4866 = vpop.f32.mrf.mxu0
    %v4867 = vadd.f32 0.0, %v4866
    %v4868 = vpop.f32.mrf.mxu0
    %4869 = vmatprep.mubr.f32.mxu0 0.0
    %4870 = vmatmul.mubr.f32.gmra.mxu0 %v4788
    %v4871 = vpop.f32.mrf.mxu0
    %v4872 = vadd.f32 0.0, %v4871
    %v4873 = vpop.f32.mrf.mxu0
    %4874 = vdwg.mxu0
    %v4876 = vsel %vm188, %v375, 0
    %v4879 = vsel %vm188, %v381, 0
    %v4882 = vsel %vm188, %v387, 0
    %v4885 = vsel %vm188, %v393, 0
    %v4888 = vsel %vm188, %v399, 0
    %v4891 = vsel %vm188, %v405, 0
    %v4894 = vsel %vm188, %v4857, 0
    %v4897 = vsel %vm188, %v4862, 0
    %v4900 = vsel %vm188, %v4867, 0
    %v4903 = vsel %vm188, %v4872, 0
    %4905 = vmatprep.subr.mxu0 0.0
    %4906 = vmatpush1.xpose.msra.mxu0 0.0
    %4907 = vmatprep.subr.mxu0 0.0
    %4908 = vmatpush1.xpose.msra.mxu0 0.0
    %4909 = vmatprep.subr.mxu0 0.0
    %4910 = vmatpush1.xpose.msra.mxu0 0.0
    %4911 = vmatprep.subr.mxu0 0.0
    %4912 = vmatpush1.xpose.msra.mxu0 0.0
    %4913 = vmatprep.subr.mxu0 0.0
    %4914 = vmatpush1.xpose.msra.mxu0 0.0
    %4915 = vmatprep.subr.mxu0 0.0
    %4916 = vmatpush1.xpose.msra.mxu0 0.0
    %4917 = vmatprep.subr.mxu0 0.0
    %4918 = vmatpush1.xpose.msra.mxu0 0.0
    %4919 = vmatprep.subr.mxu0 0.0
    %4920 = vmatpush1.xpose.msra.mxu0 0.0
    %4921 = vmatprep.subr.mxu0 0.0
    %4922 = vmatpush1.xpose.msra.mxu0 0.0
    %4923 = vmatprep.subr.mxu0 0.0
    %4924 = vmatpush1.xpose.msra.mxu0 0.0
    %4925 = vmatprep.subr.mxu0 0.0
    %4926 = vmatpush1.xpose.msra.mxu0 0.0
    %4927 = vmatprep.subr.mxu0 0.0
    %4928 = vmatpush1.xpose.msra.mxu0 0.0
    %4929 = vmatprep.subr.mxu0 0.0
    %4930 = vmatpush1.xpose.msra.mxu0 %v4903
    %4931 = vmatprep.subr.mxu0 0.0
    %4932 = vmatpush1.xpose.msra.mxu0 %v4900
    %4933 = vmatprep.subr.mxu0 0.0
    %4934 = vmatpush1.xpose.msra.mxu0 %v4897
    %4935 = vmatprep.subr.mxu0 0.0
    %4936 = vmatpush1.xpose.msra.mxu0 %v4894
    %4937 = vmatprep.subr.mxu0 0.0
    %4938 = vmatpush2.xpose.msra.mxu0 0.0
    %4939 = vmatprep.subr.mxu0 0.0
    %4940 = vmatpush2.xpose.msra.mxu0 0.0
    %4941 = vmatprep.subr.mxu0 0.0
    %4942 = vmatpush2.xpose.msra.mxu0 0.0
    %4943 = vmatprep.subr.mxu0 0.0
    %4944 = vmatpush2.xpose.msra.mxu0 0.0
    %4945 = vmatprep.subr.mxu0 0.0
    %4946 = vmatpush2.xpose.msra.mxu0 0.0
    %4947 = vmatprep.subr.mxu0 0.0
    %4948 = vmatpush2.xpose.msra.mxu0 0.0
    %4949 = vmatprep.subr.mxu0 0.0
    %4950 = vmatpush2.xpose.msra.mxu0 0.0
    %4951 = vmatprep.subr.mxu0 0.0
    %4952 = vmatpush2.xpose.msra.mxu0 0.0
    %4953 = vmatprep.subr.mxu0 0.0
    %4954 = vmatpush2.xpose.msra.mxu0 0.0
    %4955 = vmatprep.subr.mxu0 0.0
    %4956 = vmatpush2.xpose.msra.mxu0 0.0
    %4957 = vmatprep.subr.mxu0 0.0
    %4958 = vmatpush2.xpose.msra.mxu0 0.0
    %4959 = vmatprep.subr.mxu0 0.0
    %4960 = vmatpush2.xpose.msra.mxu0 0.0
    %4961 = vmatprep.subr.mxu0 0.0
    %4962 = vmatpush2.xpose.msra.mxu0 0.0
    %4963 = vmatprep.subr.mxu0 0.0
    %4964 = vmatpush2.xpose.msra.mxu0 0.0
    %4965 = vmatprep.subr.mxu0 0.0
    %4966 = vmatpush2.xpose.msra.mxu0 0.0
    %4967 = vmatprep.subr.mxu0 0.0
    %4968 = vmatpush2.xpose.msra.mxu0 0.0
    %4969 = vmatprep.mubr.f32.mxu0 0.0
    %4970 = vmatmul.mubr.f32.gmra.mxu0 %v4876
    %v4971 = vpop.f32.mrf.mxu0
    %v4972 = vadd.f32 %v174, %v4971
    %v4973 = vpop.f32.mrf.mxu0
    %4974 = vmatprep.mubr.f32.mxu0 0.0
    %4975 = vmatmul.mubr.f32.gmra.mxu0 %v4879
    %v4976 = vpop.f32.mrf.mxu0
    %v4977 = vadd.f32 %v175, %v4976
    %v4978 = vpop.f32.mrf.mxu0
    %4979 = vmatprep.mubr.f32.mxu0 0.0
    %4980 = vmatmul.mubr.f32.gmra.mxu0 %v4882
    %v4981 = vpop.f32.mrf.mxu0
    %v4982 = vadd.f32 %v176, %v4981
    %v4983 = vpop.f32.mrf.mxu0
    %4984 = vmatprep.mubr.f32.mxu0 0.0
    %4985 = vmatmul.mubr.f32.gmra.mxu0 %v4885
    %v4986 = vpop.f32.mrf.mxu0
    %v4987 = vadd.f32 %v177, %v4986
    %v4988 = vpop.f32.mrf.mxu0
    %4989 = vmatprep.mubr.f32.mxu0 0.0
    %4990 = vmatmul.mubr.f32.gmra.mxu0 %v4888
    %v4991 = vpop.f32.mrf.mxu0
    %v4992 = vadd.f32 %v178, %v4991
    %v4993 = vpop.f32.mrf.mxu0
    %4994 = vmatprep.mubr.f32.mxu0 0.0
    %4995 = vmatmul.mubr.f32.gmra.mxu0 %v4891
    %v4996 = vpop.f32.mrf.mxu0
    %v4997 = vadd.f32 %v179, %v4996
    %v4998 = vpop.f32.mrf.mxu0
    %4999 = vdwg.mxu0
    %v5000 = vsel %vm188, %v4972, -inf
    %5001 = vmax.xlane.f32.xlu0 %v5000
    %v5002 = vpop.xlane.xlu0 %5001
    %v5003 = vsel %vm188, %v4977, -inf
    %5004 = vmax.xlane.f32.xlu0 %v5003
    %v5005 = vpop.xlane.xlu0 %5004
    %v5006 = vsel %vm188, %v4982, -inf
    %5007 = vmax.xlane.f32.xlu0 %v5006
    %v5008 = vpop.xlane.xlu0 %5007
    %v5009 = vsel %vm188, %v4987, -inf
    %5010 = vmax.xlane.f32.xlu0 %v5009
    %v5011 = vpop.xlane.xlu0 %5010
    %v5012 = vsel %vm188, %v4992, -inf
    %5013 = vmax.xlane.f32.xlu0 %v5012
    %v5014 = vpop.xlane.xlu0 %5013
    %v5015 = vsel %vm188, %v4997, -inf
    %5016 = vmax.xlane.f32.xlu0 %v5015
    %v5017 = vpop.xlane.xlu0 %5016
    %v5018 = vsub.f32 %v4972, %v5002
    %v5019 = vsub.f32 %v4977, %v5005
    %v5020 = vsub.f32 %v4982, %v5008
    %v5021 = vsub.f32 %v4987, %v5011
    %v5022 = vsub.f32 %v4992, %v5014
    %v5023 = vsub.f32 %v4997, %v5017
    %v5024 = vmul.f32 %v5018, 1.442695
    %v5025 = vpow.pop %v5024
    %v5026 = vmul.f32 %v5019, 1.442695
    %v5027 = vpow.pop %v5026
    %v5028 = vmul.f32 %v5020, 1.442695
    %v5029 = vpow.pop %v5028
    %v5030 = vmul.f32 %v5021, 1.442695
    %v5031 = vpow.pop %v5030
    %v5032 = vmul.f32 %v5022, 1.442695
    %v5033 = vpow.pop %v5032
    %v5034 = vmul.f32 %v5023, 1.442695
    %v5035 = vpow.pop %v5034
    %v5036 = vsel %vm188, %v5025, 0.0
    %5037 = vadd.xlane.f32.xlu0 %v5036
    %v5038 = vpop.xlane.xlu0 %5037
    %v5039 = vsel %vm188, %v5027, 0.0
    %5040 = vadd.xlane.f32.xlu0 %v5039
    %v5041 = vpop.xlane.xlu0 %5040
    %v5042 = vsel %vm188, %v5029, 0.0
    %5043 = vadd.xlane.f32.xlu0 %v5042
    %v5044 = vpop.xlane.xlu0 %5043
    %v5045 = vsel %vm188, %v5031, 0.0
    %5046 = vadd.xlane.f32.xlu0 %v5045
    %v5047 = vpop.xlane.xlu0 %5046
    %v5048 = vsel %vm188, %v5033, 0.0
    %5049 = vadd.xlane.f32.xlu0 %v5048
    %v5050 = vpop.xlane.xlu0 %5049
    %v5051 = vsel %vm188, %v5035, 0.0
    %5052 = vadd.xlane.f32.xlu0 %v5051
    %v5053 = vpop.xlane.xlu0 %5052
    %v5054 = vrcp.pop %v5038
    %v5055 = vmul.f32 %v5025, %v5054
    %v5056 = vrcp.pop %v5041
    %v5057 = vmul.f32 %v5027, %v5056
    %v5058 = vrcp.pop %v5044
    %v5059 = vmul.f32 %v5029, %v5058
    %v5060 = vrcp.pop %v5047
    %v5061 = vmul.f32 %v5031, %v5060
    %v5062 = vrcp.pop %v5050
    %v5063 = vmul.f32 %v5033, %v5062
    %v5064 = vrcp.pop %v5053
    %v5065 = vmul.f32 %v5035, %v5064
    %v5066 = vadd.f32 %v5055, 1e-08
    %v5067 = vadd.f32 %v5057, 1e-08
    %v5068 = vadd.f32 %v5059, 1e-08
    %v5069 = vadd.f32 %v5061, 1e-08
    %v5070 = vadd.f32 %v5063, 1e-08
    %v5071 = vadd.f32 %v5065, 1e-08
    %v5072 = vmul.f32 %v5066, %v181
    %v5073 = vmul.f32 %v5067, %v182
    %v5074 = vmul.f32 %v5068, %v183
    %v5075 = vmul.f32 %v5069, %v184
    %v5076 = vmul.f32 %v5070, %v185
    %v5077 = vmul.f32 %v5071, %v186
    %v5078 = vsel %vm188, %v5072, 0.0
    %v5079 = vsel %vm188, %v5073, 0.0
    %v5080 = vadd.f32 %v5078, %v5079
    %v5081 = vsel %vm188, %v5074, 0.0
    %v5082 = vadd.f32 %v5080, %v5081
    %v5083 = vsel %vm188, %v5075, 0.0
    %v5084 = vadd.f32 %v5082, %v5083
    %v5085 = vsel %vm188, %v5076, 0.0
    %v5086 = vadd.f32 %v5084, %v5085
    %v5087 = vsel %vm188, %v5077, 0.0
    %v5088 = vadd.f32 %v5086, %v5087
    %v5089 = vrot.slane %v5088, 4
    %v5090 = vadd.f32 %v5088, %v5089
    %v5091 = vrot.slane %v5090, 2
    %v5092 = vadd.f32 %v5090, %v5091
    %v5093 = vrot.slane %v5092, 1
    %v5094 = vadd.f32 %v5092, %v5093
    %v5095 = vrcp.pop %v5094
    %v5096 = vmul.f32 %v5072, %v5095
    %v5097 = vmul.f32 %v5073, %v5095
    %v5098 = vmul.f32 %v5074, %v5095
    %v5099 = vmul.f32 %v5075, %v5095
    %v5100 = vmul.f32 %v5076, %v5095
    %v5101 = vmul.f32 %v5077, %v5095
    %5102 = vxpose.xlu0.b32.start [1/16] %v5096, 128
    %5103 = vxpose.xlu0.b32.cont [2/16] %v5097, 128
    %5104 = vxpose.xlu0.b32.cont [3/16] %v5098, 128
    %5105 = vxpose.xlu0.b32.cont [4/16] %v5099, 128
    %5106 = vxpose.xlu0.b32.cont [5/16] %v5100, 128
    %5107 = vxpose.xlu0.b32.cont [6/16] %v5101, 128
    %5108 = vxpose.xlu0.b32.cont [7/16] 0.0, 128
    %5109 = vxpose.xlu0.b32.cont [8/16] 0.0, 128
    %5110 = vxpose.xlu0.b32.cont [9/16] 0.0, 128
    %5111 = vxpose.xlu0.b32.cont [10/16] 0.0, 128
    %5112 = vxpose.xlu0.b32.cont [11/16] 0.0, 128
    %5113 = vxpose.xlu0.b32.cont [12/16] 0.0, 128
    %5114 = vxpose.xlu0.b32.cont [13/16] 0.0, 128
    %5115 = vxpose.xlu0.b32.cont [14/16] 0.0, 128
    %5116 = vxpose.xlu0.b32.cont [15/16] 0.0, 128
    %5117 = vxpose.xlu0.b32.end [16/16] 0.0, 128
    %v5118 = vpop.trf.xlu0
    %v5119 = vpop.trf.xlu0
    %v5120 = vpop.trf.xlu0
    %v5121 = vpop.trf.xlu0
    %v5122 = vpop.trf.xlu0
    %v5123 = vpop.trf.xlu0
    %v5124 = vpop.trf.xlu0
    %v5125 = vpop.trf.xlu0
    %v5126 = vpop.trf.xlu0
    %v5127 = vpop.trf.xlu0
    %v5128 = vpop.trf.xlu0
    %v5129 = vpop.trf.xlu0
    %v5130 = vpop.trf.xlu0
    %v5131 = vpop.trf.xlu0
    %v5132 = vpop.trf.xlu0
    %v5133 = vpop.trf.xlu0
    %5134 = vrot.lane.b32.xlu0 %v375, 96
    %v5135 = vpop.permute.xlu0 %5134
    %5136 = vrot.lane.b32.xlu0 %v381, 96
    %v5137 = vpop.permute.xlu0 %5136
    %5138 = vrot.lane.b32.xlu0 %v387, 96
    %v5139 = vpop.permute.xlu0 %5138
    %5140 = vrot.lane.b32.xlu0 %v393, 96
    %v5141 = vpop.permute.xlu0 %5140
    %5142 = vrot.lane.b32.xlu0 %v399, 96
    %v5143 = vpop.permute.xlu0 %5142
    %5144 = vrot.lane.b32.xlu0 %v405, 96
    %v5145 = vpop.permute.xlu0 %5144
    %v5153 = vsel %vm995, %v5118, 0
    %v5156 = vsel %vm995, %v5119, 0
    %v5159 = vsel %vm995, %v5120, 0
    %v5162 = vsel %vm995, %v5121, 0
    %5164 = vmatprep.subr.mxu0 0.0
    %5165 = vmatpush1.msra.mxu0 0.0
    %5166 = vmatprep.subr.mxu0 0.0
    %5167 = vmatpush1.msra.mxu0 0.0
    %5168 = vmatprep.subr.mxu0 0.0
    %5169 = vmatpush1.msra.mxu0 0.0
    %5170 = vmatprep.subr.mxu0 0.0
    %5171 = vmatpush1.msra.mxu0 0.0
    %5172 = vmatprep.subr.mxu0 0.0
    %5173 = vmatpush1.msra.mxu0 0.0
    %5174 = vmatprep.subr.mxu0 0.0
    %5175 = vmatpush1.msra.mxu0 0.0
    %5176 = vmatprep.subr.mxu0 0.0
    %5177 = vmatpush1.msra.mxu0 0.0
    %5178 = vmatprep.subr.mxu0 0.0
    %5179 = vmatpush1.msra.mxu0 0.0
    %5180 = vmatprep.subr.mxu0 0.0
    %5181 = vmatpush1.msra.mxu0 0.0
    %5182 = vmatprep.subr.mxu0 0.0
    %5183 = vmatpush1.msra.mxu0 0.0
    %5184 = vmatprep.subr.mxu0 0.0
    %5185 = vmatpush1.msra.mxu0 %v5145
    %5186 = vmatprep.subr.mxu0 0.0
    %5187 = vmatpush1.msra.mxu0 %v5143
    %5188 = vmatprep.subr.mxu0 0.0
    %5189 = vmatpush1.msra.mxu0 %v5141
    %5190 = vmatprep.subr.mxu0 0.0
    %5191 = vmatpush1.msra.mxu0 %v5139
    %5192 = vmatprep.subr.mxu0 0.0
    %5193 = vmatpush1.msra.mxu0 %v5137
    %5194 = vmatprep.subr.mxu0 0.0
    %5195 = vmatpush1.msra.mxu0 %v5135
    %5196 = vmatprep.subr.mxu0 0.0
    %5197 = vmatpush2.msra.mxu0 0.0
    %5198 = vmatprep.subr.mxu0 0.0
    %5199 = vmatpush2.msra.mxu0 0.0
    %5200 = vmatprep.subr.mxu0 0.0
    %5201 = vmatpush2.msra.mxu0 0.0
    %5202 = vmatprep.subr.mxu0 0.0
    %5203 = vmatpush2.msra.mxu0 0.0
    %5204 = vmatprep.subr.mxu0 0.0
    %5205 = vmatpush2.msra.mxu0 0.0
    %5206 = vmatprep.subr.mxu0 0.0
    %5207 = vmatpush2.msra.mxu0 0.0
    %5208 = vmatprep.subr.mxu0 0.0
    %5209 = vmatpush2.msra.mxu0 0.0
    %5210 = vmatprep.subr.mxu0 0.0
    %5211 = vmatpush2.msra.mxu0 0.0
    %5212 = vmatprep.subr.mxu0 0.0
    %5213 = vmatpush2.msra.mxu0 0.0
    %5214 = vmatprep.subr.mxu0 0.0
    %5215 = vmatpush2.msra.mxu0 0.0
    %5216 = vmatprep.subr.mxu0 0.0
    %5217 = vmatpush2.msra.mxu0 0.0
    %5218 = vmatprep.subr.mxu0 0.0
    %5219 = vmatpush2.msra.mxu0 0.0
    %5220 = vmatprep.subr.mxu0 0.0
    %5221 = vmatpush2.msra.mxu0 0.0
    %5222 = vmatprep.subr.mxu0 0.0
    %5223 = vmatpush2.msra.mxu0 0.0
    %5224 = vmatprep.subr.mxu0 0.0
    %5225 = vmatpush2.msra.mxu0 0.0
    %5226 = vmatprep.subr.mxu0 0.0
    %5227 = vmatpush2.msra.mxu0 0.0
    %5228 = vmatprep.mubr.f32.mxu0 0.0
    %5229 = vmatmul.mubr.f32.gmra.mxu0 %v5153
    %v5230 = vpop.f32.mrf.mxu0
    %v5231 = vadd.f32 0.0, %v5230
    %v5232 = vpop.f32.mrf.mxu0
    %5233 = vmatprep.mubr.f32.mxu0 0.0
    %5234 = vmatmul.mubr.f32.gmra.mxu0 %v5156
    %v5235 = vpop.f32.mrf.mxu0
    %v5236 = vadd.f32 0.0, %v5235
    %v5237 = vpop.f32.mrf.mxu0
    %5238 = vmatprep.mubr.f32.mxu0 0.0
    %5239 = vmatmul.mubr.f32.gmra.mxu0 %v5159
    %v5240 = vpop.f32.mrf.mxu0
    %v5241 = vadd.f32 0.0, %v5240
    %v5242 = vpop.f32.mrf.mxu0
    %5243 = vmatprep.mubr.f32.mxu0 0.0
    %5244 = vmatmul.mubr.f32.gmra.mxu0 %v5162
    %v5245 = vpop.f32.mrf.mxu0
    %v5246 = vadd.f32 0.0, %v5245
    %v5247 = vpop.f32.mrf.mxu0
    %5248 = vdwg.mxu0
    %v5249 = vlaneseq
    %v5250 = vshrl.u32 %v5249, 7
    %v5251 = vsub.s32 0, %v5250
    %v5252 = vrot.slane %v4704, %v5251
    %v5254 = vsel %vm188, %v5231, 0
    %v5257 = vsel %vm188, %v5236, 0
    %v5260 = vsel %vm188, %v5241, 0
    %v5263 = vsel %vm188, %v5246, 0
    %5265 = vmatprep.subr.mxu0 0.0
    %5266 = vmatpush1.msra.mxu0 0.0
    %5267 = vmatprep.subr.mxu0 0.0
    %5268 = vmatpush1.msra.mxu0 0.0
    %5269 = vmatprep.subr.mxu0 0.0
    %5270 = vmatpush1.msra.mxu0 0.0
    %5271 = vmatprep.subr.mxu0 0.0
    %5272 = vmatpush1.msra.mxu0 0.0
    %5273 = vmatprep.subr.mxu0 0.0
    %5274 = vmatpush1.msra.mxu0 0.0
    %5275 = vmatprep.subr.mxu0 0.0
    %5276 = vmatpush1.msra.mxu0 0.0
    %5277 = vmatprep.subr.mxu0 0.0
    %5278 = vmatpush1.msra.mxu0 0.0
    %5279 = vmatprep.subr.mxu0 0.0
    %5280 = vmatpush1.msra.mxu0 0.0
    %5281 = vmatprep.subr.mxu0 0.0
    %5282 = vmatpush1.msra.mxu0 0.0
    %5283 = vmatprep.subr.mxu0 0.0
    %5284 = vmatpush1.msra.mxu0 0.0
    %5285 = vmatprep.subr.mxu0 0.0
    %5286 = vmatpush1.msra.mxu0 0.0
    %5287 = vmatprep.subr.mxu0 0.0
    %5288 = vmatpush1.msra.mxu0 0.0
    %5289 = vmatprep.subr.mxu0 0.0
    %5290 = vmatpush1.msra.mxu0 %v4697
    %5291 = vmatprep.subr.mxu0 0.0
    %5292 = vmatpush1.msra.mxu0 %v4696
    %5293 = vmatprep.subr.mxu0 0.0
    %5294 = vmatpush1.msra.mxu0 %v4695
    %5295 = vmatprep.subr.mxu0 0.0
    %5296 = vmatpush1.msra.mxu0 %v4694
    %5297 = vmatprep.subr.mxu0 0.0
    %5298 = vmatpush2.msra.mxu0 0.0
    %5299 = vmatprep.subr.mxu0 0.0
    %5300 = vmatpush2.msra.mxu0 0.0
    %5301 = vmatprep.subr.mxu0 0.0
    %5302 = vmatpush2.msra.mxu0 0.0
    %5303 = vmatprep.subr.mxu0 0.0
    %5304 = vmatpush2.msra.mxu0 0.0
    %5305 = vmatprep.subr.mxu0 0.0
    %5306 = vmatpush2.msra.mxu0 0.0
    %5307 = vmatprep.subr.mxu0 0.0
    %5308 = vmatpush2.msra.mxu0 0.0
    %5309 = vmatprep.subr.mxu0 0.0
    %5310 = vmatpush2.msra.mxu0 0.0
    %5311 = vmatprep.subr.mxu0 0.0
    %5312 = vmatpush2.msra.mxu0 0.0
    %5313 = vmatprep.subr.mxu0 0.0
    %5314 = vmatpush2.msra.mxu0 0.0
    %5315 = vmatprep.subr.mxu0 0.0
    %5316 = vmatpush2.msra.mxu0 0.0
    %5317 = vmatprep.subr.mxu0 0.0
    %5318 = vmatpush2.msra.mxu0 0.0
    %5319 = vmatprep.subr.mxu0 0.0
    %5320 = vmatpush2.msra.mxu0 0.0
    %5321 = vmatprep.subr.mxu0 0.0
    %5322 = vmatpush2.msra.mxu0 0.0
    %5323 = vmatprep.subr.mxu0 0.0
    %5324 = vmatpush2.msra.mxu0 0.0
    %5325 = vmatprep.subr.mxu0 0.0
    %5326 = vmatpush2.msra.mxu0 0.0
    %5327 = vmatprep.subr.mxu0 0.0
    %5328 = vmatpush2.msra.mxu0 0.0
    %5329 = vmatprep.mubr.f32.mxu0 0.0
    %5330 = vmatmul.mubr.f32.gmra.mxu0 %v5254
    %v5331 = vpop.f32.mrf.mxu0
    %v5332 = vadd.f32 %v5252, %v5331
    %v5333 = vpop.f32.mrf.mxu0
    %5334 = vmatprep.mubr.f32.mxu0 0.0
    %5335 = vmatmul.mubr.f32.gmra.mxu0 %v5257
    %v5336 = vpop.f32.mrf.mxu0
    %v5337 = vadd.f32 %v5252, %v5336
    %v5338 = vpop.f32.mrf.mxu0
    %5339 = vmatprep.mubr.f32.mxu0 0.0
    %5340 = vmatmul.mubr.f32.gmra.mxu0 %v5260
    %v5341 = vpop.f32.mrf.mxu0
    %v5342 = vadd.f32 %v5252, %v5341
    %v5343 = vpop.f32.mrf.mxu0
    %5344 = vmatprep.mubr.f32.mxu0 0.0
    %5345 = vmatmul.mubr.f32.gmra.mxu0 %v5263
    %v5346 = vpop.f32.mrf.mxu0
    %v5347 = vadd.f32 %v5252, %v5346
    %v5348 = vpop.f32.mrf.mxu0
    %5349 = vdwg.mxu0
    %v5350 = vlaneseq
    %v5351 = vshrl.u32 %v5350, 7
    %v5352 = vsub.s32 1, %v5351
    %v5353 = vrot.slane %v4704, %v5352
    %v5355 = vsel %vm188, %v4706, 0
    %v5358 = vsel %vm188, %v4707, 0
    %v5361 = vsel %vm188, %v4708, 0
    %v5364 = vsel %vm188, %v4709, 0
    %5366 = vmatprep.subr.mxu0 0.0
    %5367 = vmatpush1.msra.mxu0 0.0
    %5368 = vmatprep.subr.mxu0 0.0
    %5369 = vmatpush1.msra.mxu0 0.0
    %5370 = vmatprep.subr.mxu0 0.0
    %5371 = vmatpush1.msra.mxu0 0.0
    %5372 = vmatprep.subr.mxu0 0.0
    %5373 = vmatpush1.msra.mxu0 0.0
    %5374 = vmatprep.subr.mxu0 0.0
    %5375 = vmatpush1.msra.mxu0 0.0
    %5376 = vmatprep.subr.mxu0 0.0
    %5377 = vmatpush1.msra.mxu0 0.0
    %5378 = vmatprep.subr.mxu0 0.0
    %5379 = vmatpush1.msra.mxu0 0.0
    %5380 = vmatprep.subr.mxu0 0.0
    %5381 = vmatpush1.msra.mxu0 0.0
    %5382 = vmatprep.subr.mxu0 0.0
    %5383 = vmatpush1.msra.mxu0 0.0
    %5384 = vmatprep.subr.mxu0 0.0
    %5385 = vmatpush1.msra.mxu0 0.0
    %5386 = vmatprep.subr.mxu0 0.0
    %5387 = vmatpush1.msra.mxu0 0.0
    %5388 = vmatprep.subr.mxu0 0.0
    %5389 = vmatpush1.msra.mxu0 0.0
    %5390 = vmatprep.subr.mxu0 0.0
    %5391 = vmatpush1.msra.mxu0 %v4702
    %5392 = vmatprep.subr.mxu0 0.0
    %5393 = vmatpush1.msra.mxu0 %v4701
    %5394 = vmatprep.subr.mxu0 0.0
    %5395 = vmatpush1.msra.mxu0 %v4700
    %5396 = vmatprep.subr.mxu0 0.0
    %5397 = vmatpush1.msra.mxu0 %v4699
    %5398 = vmatprep.subr.mxu0 0.0
    %5399 = vmatpush2.msra.mxu0 0.0
    %5400 = vmatprep.subr.mxu0 0.0
    %5401 = vmatpush2.msra.mxu0 0.0
    %5402 = vmatprep.subr.mxu0 0.0
    %5403 = vmatpush2.msra.mxu0 0.0
    %5404 = vmatprep.subr.mxu0 0.0
    %5405 = vmatpush2.msra.mxu0 0.0
    %5406 = vmatprep.subr.mxu0 0.0
    %5407 = vmatpush2.msra.mxu0 0.0
    %5408 = vmatprep.subr.mxu0 0.0
    %5409 = vmatpush2.msra.mxu0 0.0
    %5410 = vmatprep.subr.mxu0 0.0
    %5411 = vmatpush2.msra.mxu0 0.0
    %5412 = vmatprep.subr.mxu0 0.0
    %5413 = vmatpush2.msra.mxu0 0.0
    %5414 = vmatprep.subr.mxu0 0.0
    %5415 = vmatpush2.msra.mxu0 0.0
    %5416 = vmatprep.subr.mxu0 0.0
    %5417 = vmatpush2.msra.mxu0 0.0
    %5418 = vmatprep.subr.mxu0 0.0
    %5419 = vmatpush2.msra.mxu0 0.0
    %5420 = vmatprep.subr.mxu0 0.0
    %5421 = vmatpush2.msra.mxu0 0.0
    %5422 = vmatprep.subr.mxu0 0.0
    %5423 = vmatpush2.msra.mxu0 0.0
    %5424 = vmatprep.subr.mxu0 0.0
    %5425 = vmatpush2.msra.mxu0 0.0
    %5426 = vmatprep.subr.mxu0 0.0
    %5427 = vmatpush2.msra.mxu0 0.0
    %5428 = vmatprep.subr.mxu0 0.0
    %5429 = vmatpush2.msra.mxu0 0.0
    %5430 = vmatprep.mubr.f32.mxu0 0.0
    %5431 = vmatmul.mubr.f32.gmra.mxu0 %v5355
    %v5432 = vpop.f32.mrf.mxu0
    %v5433 = vadd.f32 %v5353, %v5432
    %v5434 = vpop.f32.mrf.mxu0
    %5435 = vmatprep.mubr.f32.mxu0 0.0
    %5436 = vmatmul.mubr.f32.gmra.mxu0 %v5358
    %v5437 = vpop.f32.mrf.mxu0
    %v5438 = vadd.f32 %v5353, %v5437
    %v5439 = vpop.f32.mrf.mxu0
    %5440 = vmatprep.mubr.f32.mxu0 0.0
    %5441 = vmatmul.mubr.f32.gmra.mxu0 %v5361
    %v5442 = vpop.f32.mrf.mxu0
    %v5443 = vadd.f32 %v5353, %v5442
    %v5444 = vpop.f32.mrf.mxu0
    %5445 = vmatprep.mubr.f32.mxu0 0.0
    %5446 = vmatmul.mubr.f32.gmra.mxu0 %v5364
    %v5447 = vpop.f32.mrf.mxu0
    %v5448 = vadd.f32 %v5353, %v5447
    %v5449 = vpop.f32.mrf.mxu0
    %5450 = vdwg.mxu0
    %v5451 = vadd.f32 %v5332, %v5433
    %v5452 = vadd.f32 %v5337, %v5438
    %v5453 = vadd.f32 %v5342, %v5443
    %v5454 = vadd.f32 %v5347, %v5448
    %v5455 = vxor.u32 %v5451, 2147483648
    %v5456 = vxor.u32 %v5452, 2147483648
    %v5457 = vxor.u32 %v5453, 2147483648
    %v5458 = vxor.u32 %v5454, 2147483648
    %v5459 = vmul.f32 %v5455, 1.442695
    %v5460 = vpow.pop %v5459
    %v5461 = vmul.f32 %v5456, 1.442695
    %v5462 = vpow.pop %v5461
    %v5463 = vmul.f32 %v5457, 1.442695
    %v5464 = vpow.pop %v5463
    %v5465 = vmul.f32 %v5458, 1.442695
    %v5466 = vpow.pop %v5465
    %v5467 = vadd.f32 %v5460, 1.0
    %v5468 = vadd.f32 %v5462, 1.0
    %v5469 = vadd.f32 %v5464, 1.0
    %v5470 = vadd.f32 %v5466, 1.0
    %v5471 = vrcp.pop %v5467
    %v5472 = vmul.f32 1.0, %v5471
    %v5473 = vrcp.pop %v5468
    %v5474 = vmul.f32 1.0, %v5473
    %v5475 = vrcp.pop %v5469
    %v5476 = vmul.f32 1.0, %v5475
    %v5477 = vrcp.pop %v5470
    %v5478 = vmul.f32 1.0, %v5477
    %5483 = vrot.lane.b32.xlu0 %v5433, 64
    %v5484 = vpop.permute.xlu0 %5483
    %5485 = vrot.lane.b32.xlu0 %v5438, 64
    %v5486 = vpop.permute.xlu0 %5485
    %5487 = vrot.lane.b32.xlu0 %v5443, 64
    %v5488 = vpop.permute.xlu0 %5487
    %5489 = vrot.lane.b32.xlu0 %v5448, 64
    %v5490 = vpop.permute.xlu0 %5489
    %v5495 = vmul.f32 %v5472, %v5484
    %v5496 = vmul.f32 %v5474, %v5486
    %v5497 = vmul.f32 %v5476, %v5488
    %v5498 = vmul.f32 %v5478, %v5490
    %5503 = vrot.lane.b32.xlu0 %v5495, 64
    %v5504 = vpop.permute.xlu0 %5503
    %5505 = vrot.lane.b32.xlu0 %v5496, 64
    %v5506 = vpop.permute.xlu0 %5505
    %5507 = vrot.lane.b32.xlu0 %v5497, 64
    %v5508 = vpop.permute.xlu0 %5507
    %5509 = vrot.lane.b32.xlu0 %v5498, 64
    %v5510 = vpop.permute.xlu0 %5509
    %v5515 = vadd.f32 %v5332, %v5504
    %v5516 = vadd.f32 %v5337, %v5506
    %v5517 = vadd.f32 %v5342, %v5508
    %v5518 = vadd.f32 %v5347, %v5510
    %v5519 = vtanh.pop %v5515
    %v5520 = vtanh.pop %v5516
    %v5521 = vtanh.pop %v5517
    %v5522 = vtanh.pop %v5518
    %v5523 = vsub.f32 1.0, %v5472
    %v5524 = vsub.f32 1.0, %v5474
    %v5525 = vsub.f32 1.0, %v5476
    %v5526 = vsub.f32 1.0, %v5478
    %5531 = vrot.lane.b32.xlu0 %v5519, 96
    %v5532 = vpop.permute.xlu0 %5531
    %5533 = vrot.lane.b32.xlu0 %v5520, 96
    %v5534 = vpop.permute.xlu0 %5533
    %5535 = vrot.lane.b32.xlu0 %v5521, 96
    %v5536 = vpop.permute.xlu0 %5535
    %5537 = vrot.lane.b32.xlu0 %v5522, 96
    %v5538 = vpop.permute.xlu0 %5537
    %v5543 = vmul.f32 %v5523, %v5532
    %v5544 = vmul.f32 %v5524, %v5534
    %v5545 = vmul.f32 %v5525, %v5536
    %v5546 = vmul.f32 %v5526, %v5538
    %5547 = vrot.lane.b32.xlu0 %v4706, 32
    %v5548 = vpop.permute.xlu0 %5547
    %5549 = vrot.lane.b32.xlu0 %v4707, 32
    %v5550 = vpop.permute.xlu0 %5549
    %5551 = vrot.lane.b32.xlu0 %v4708, 32
    %v5552 = vpop.permute.xlu0 %5551
    %5553 = vrot.lane.b32.xlu0 %v4709, 32
    %v5554 = vpop.permute.xlu0 %5553
    %v5559 = vmul.f32 %v5472, %v5548
    %v5560 = vmul.f32 %v5474, %v5550
    %v5561 = vmul.f32 %v5476, %v5552
    %v5562 = vmul.f32 %v5478, %v5554
    %v5563 = vadd.f32 %v5543, %v5559
    %v5564 = vadd.f32 %v5544, %v5560
    %v5565 = vadd.f32 %v5545, %v5561
    %v5566 = vadd.f32 %v5546, %v5562
    %5571 = vrot.lane.b32.xlu0 %v5563, 96
    %v5572 = vpop.permute.xlu0 %5571
    %5573 = vrot.lane.b32.xlu0 %v5564, 96
    %v5574 = vpop.permute.xlu0 %5573
    %5575 = vrot.lane.b32.xlu0 %v5565, 96
    %v5576 = vpop.permute.xlu0 %5575
    %5577 = vrot.lane.b32.xlu0 %v5566, 96
    %v5578 = vpop.permute.xlu0 %5577
    %v5583 = vsel %vm188, %v5572, 0.0
    %5584 = vadd.xlane.f32.xlu0 %v5583
    %v5585 = vpop.xlane.xlu0 %5584
    %v5586 = vsel %vm188, %v5574, 0.0
    %5587 = vadd.xlane.f32.xlu0 %v5586
    %v5588 = vpop.xlane.xlu0 %5587
    %v5589 = vsel %vm188, %v5576, 0.0
    %5590 = vadd.xlane.f32.xlu0 %v5589
    %v5591 = vpop.xlane.xlu0 %5590
    %v5592 = vsel %vm188, %v5578, 0.0
    %5593 = vadd.xlane.f32.xlu0 %v5592
    %v5594 = vpop.xlane.xlu0 %5593
    %v5595 = vmul.f32 %v5585, %v207
    %v5596 = vmul.f32 %v5588, %v207
    %v5597 = vmul.f32 %v5591, %v207
    %v5598 = vmul.f32 %v5594, %v207
    %v5599 = vsub.f32 %v5563, %v5595
    %v5600 = vsub.f32 %v5564, %v5596
    %v5601 = vsub.f32 %v5565, %v5597
    %v5602 = vsub.f32 %v5566, %v5598
    %v5603 = vmul.f32 %v5599, %v5599
    %v5604 = vmul.f32 %v5600, %v5600
    %v5605 = vmul.f32 %v5601, %v5601
    %v5606 = vmul.f32 %v5602, %v5602
    %5611 = vrot.lane.b32.xlu0 %v5603, 96
    %v5612 = vpop.permute.xlu0 %5611
    %5613 = vrot.lane.b32.xlu0 %v5604, 96
    %v5614 = vpop.permute.xlu0 %5613
    %5615 = vrot.lane.b32.xlu0 %v5605, 96
    %v5616 = vpop.permute.xlu0 %5615
    %5617 = vrot.lane.b32.xlu0 %v5606, 96
    %v5618 = vpop.permute.xlu0 %5617
    %v5623 = vsel %vm188, %v5612, 0.0
    %5624 = vadd.xlane.f32.xlu0 %v5623
    %v5625 = vpop.xlane.xlu0 %5624
    %v5626 = vsel %vm188, %v5614, 0.0
    %5627 = vadd.xlane.f32.xlu0 %v5626
    %v5628 = vpop.xlane.xlu0 %5627
    %v5629 = vsel %vm188, %v5616, 0.0
    %5630 = vadd.xlane.f32.xlu0 %v5629
    %v5631 = vpop.xlane.xlu0 %5630
    %v5632 = vsel %vm188, %v5618, 0.0
    %5633 = vadd.xlane.f32.xlu0 %v5632
    %v5634 = vpop.xlane.xlu0 %5633
    %v5635 = vmul.f32 %v5625, %v207
    %v5636 = vmul.f32 %v5628, %v207
    %v5637 = vmul.f32 %v5631, %v207
    %v5638 = vmul.f32 %v5634, %v207
    %v5639 = vadd.f32 %v5635, 1e-05
    %v5640 = vadd.f32 %v5636, 1e-05
    %v5641 = vadd.f32 %v5637, 1e-05
    %v5642 = vadd.f32 %v5638, 1e-05
    %v5643 = vrsqrt.pop %v5639
    %v5644 = vrsqrt.pop %v5640
    %v5645 = vrsqrt.pop %v5641
    %v5646 = vrsqrt.pop %v5642
    %v5647 = vmul.f32 %v5599, %v5643
    %v5648 = vmul.f32 %v5600, %v5644
    %v5649 = vmul.f32 %v5601, %v5645
    %v5650 = vmul.f32 %v5602, %v5646
    %v5651 = vlaneseq
    %v5652 = vshrl.u32 %v5651, 7
    %v5653 = vsub.s32 2, %v5652
    %v5654 = vrot.slane %v4677, %v5653
    %5656 = vrot.lane.b32.xlu0 %v5654, 32
    %v5657 = vpop.permute.xlu0 %5656
    %v5659 = vmul.f32 %v5647, %v5657
    %v5660 = vmul.f32 %v5648, %v5657
    %v5661 = vmul.f32 %v5649, %v5657
    %v5662 = vmul.f32 %v5650, %v5657
    %v5663 = vlaneseq
    %v5664 = vshrl.u32 %v5663, 7
    %v5665 = vsub.s32 3, %v5664
    %v5666 = vrot.slane %v4677, %v5665
    %5668 = vrot.lane.b32.xlu0 %v5666, 32
    %v5669 = vpop.permute.xlu0 %5668
    %v5671 = vadd.f32 %v5659, %v5669
    %v5672 = vadd.f32 %v5660, %v5669
    %v5673 = vadd.f32 %v5661, %v5669
    %v5674 = vadd.f32 %v5662, %v5669
    %v5675 = vlaneseq
    %v5676 = vshrl.u32 %v5675, 7
    %v5677 = vsub.s32 4, %v5676
    %v5678 = vrot.slane %v4677, %v5677
    %5683 = vrot.lane.b32.xlu0 %v5671, 96
    %v5684 = vpop.permute.xlu0 %5683
    %5685 = vrot.lane.b32.xlu0 %v5672, 96
    %v5686 = vpop.permute.xlu0 %5685
    %5687 = vrot.lane.b32.xlu0 %v5673, 96
    %v5688 = vpop.permute.xlu0 %5687
    %5689 = vrot.lane.b32.xlu0 %v5674, 96
    %v5690 = vpop.permute.xlu0 %5689
    %v5691 = vsel %vm188, %v5684, 0
    %v5693 = vsel %vm188, %v5686, 0
    %v5695 = vsel %vm188, %v5688, 0
    %v5697 = vsel %vm188, %v5690, 0
    %5699 = vmatprep.subr.mxu0 0.0
    %5700 = vmatpush1.msra.mxu0 0.0
    %5701 = vmatprep.subr.mxu0 0.0
    %5702 = vmatpush1.msra.mxu0 0.0
    %5703 = vmatprep.subr.mxu0 0.0
    %5704 = vmatpush1.msra.mxu0 0.0
    %5705 = vmatprep.subr.mxu0 0.0
    %5706 = vmatpush1.msra.mxu0 0.0
    %5707 = vmatprep.subr.mxu0 0.0
    %5708 = vmatpush1.msra.mxu0 0.0
    %5709 = vmatprep.subr.mxu0 0.0
    %5710 = vmatpush1.msra.mxu0 0.0
    %5711 = vmatprep.subr.mxu0 0.0
    %5712 = vmatpush1.msra.mxu0 0.0
    %5713 = vmatprep.subr.mxu0 0.0
    %5714 = vmatpush1.msra.mxu0 0.0
    %5715 = vmatprep.subr.mxu0 0.0
    %5716 = vmatpush1.msra.mxu0 0.0
    %5717 = vmatprep.subr.mxu0 0.0
    %5718 = vmatpush1.msra.mxu0 0.0
    %5719 = vmatprep.subr.mxu0 0.0
    %5720 = vmatpush1.msra.mxu0 0.0
    %5721 = vmatprep.subr.mxu0 0.0
    %5722 = vmatpush1.msra.mxu0 0.0
    %5723 = vmatprep.subr.mxu0 0.0
    %5724 = vmatpush1.msra.mxu0 %v4687
    %5725 = vmatprep.subr.mxu0 0.0
    %5726 = vmatpush1.msra.mxu0 %v4686
    %5727 = vmatprep.subr.mxu0 0.0
    %5728 = vmatpush1.msra.mxu0 %v4685
    %5729 = vmatprep.subr.mxu0 0.0
    %5730 = vmatpush1.msra.mxu0 %v4684
    %5731 = vmatprep.subr.mxu0 0.0
    %5732 = vmatpush2.msra.mxu0 0.0
    %5733 = vmatprep.subr.mxu0 0.0
    %5734 = vmatpush2.msra.mxu0 0.0
    %5735 = vmatprep.subr.mxu0 0.0
    %5736 = vmatpush2.msra.mxu0 0.0
    %5737 = vmatprep.subr.mxu0 0.0
    %5738 = vmatpush2.msra.mxu0 0.0
    %5739 = vmatprep.subr.mxu0 0.0
    %5740 = vmatpush2.msra.mxu0 0.0
    %5741 = vmatprep.subr.mxu0 0.0
    %5742 = vmatpush2.msra.mxu0 0.0
    %5743 = vmatprep.subr.mxu0 0.0
    %5744 = vmatpush2.msra.mxu0 0.0
    %5745 = vmatprep.subr.mxu0 0.0
    %5746 = vmatpush2.msra.mxu0 0.0
    %5747 = vmatprep.subr.mxu0 0.0
    %5748 = vmatpush2.msra.mxu0 0.0
    %5749 = vmatprep.subr.mxu0 0.0
    %5750 = vmatpush2.msra.mxu0 0.0
    %5751 = vmatprep.subr.mxu0 0.0
    %5752 = vmatpush2.msra.mxu0 0.0
    %5753 = vmatprep.subr.mxu0 0.0
    %5754 = vmatpush2.msra.mxu0 0.0
    %5755 = vmatprep.subr.mxu0 0.0
    %5756 = vmatpush2.msra.mxu0 0.0
    %5757 = vmatprep.subr.mxu0 0.0
    %5758 = vmatpush2.msra.mxu0 0.0
    %5759 = vmatprep.subr.mxu0 0.0
    %5760 = vmatpush2.msra.mxu0 0.0
    %5761 = vmatprep.subr.mxu0 0.0
    %5762 = vmatpush2.msra.mxu0 0.0
    %5763 = vmatprep.mubr.f32.mxu0 0.0
    %5764 = vmatmul.mubr.f32.gmra.mxu0 %v5691
    %v5765 = vpop.f32.mrf.mxu0
    %v5766 = vadd.f32 %v5678, %v5765
    %v5767 = vpop.f32.mrf.mxu0
    %5768 = vmatprep.mubr.f32.mxu0 0.0
    %5769 = vmatmul.mubr.f32.gmra.mxu0 %v5693
    %v5770 = vpop.f32.mrf.mxu0
    %v5771 = vadd.f32 %v5678, %v5770
    %v5772 = vpop.f32.mrf.mxu0
    %5773 = vmatprep.mubr.f32.mxu0 0.0
    %5774 = vmatmul.mubr.f32.gmra.mxu0 %v5695
    %v5775 = vpop.f32.mrf.mxu0
    %v5776 = vadd.f32 %v5678, %v5775
    %v5777 = vpop.f32.mrf.mxu0
    %5778 = vmatprep.mubr.f32.mxu0 0.0
    %5779 = vmatmul.mubr.f32.gmra.mxu0 %v5697
    %v5780 = vpop.f32.mrf.mxu0
    %v5781 = vadd.f32 %v5678, %v5780
    %v5782 = vpop.f32.mrf.mxu0
    %5783 = vdwg.mxu0
    %v5784 = vmax.f32 %v5766, 0.0
    %v5785 = vmax.f32 %v5771, 0.0
    %v5786 = vmax.f32 %v5776, 0.0
    %v5787 = vmax.f32 %v5781, 0.0
    %v5789 = vsel %vm188, %v5784, 0
    %v5792 = vsel %vm188, %v5785, 0
    %v5795 = vsel %vm188, %v5786, 0
    %v5798 = vsel %vm188, %v5787, 0
    %5800 = vmatprep.subr.mxu0 0.0
    %5801 = vmatpush1.msra.mxu0 0.0
    %5802 = vmatprep.subr.mxu0 0.0
    %5803 = vmatpush1.msra.mxu0 0.0
    %5804 = vmatprep.subr.mxu0 0.0
    %5805 = vmatpush1.msra.mxu0 0.0
    %5806 = vmatprep.subr.mxu0 0.0
    %5807 = vmatpush1.msra.mxu0 0.0
    %5808 = vmatprep.subr.mxu0 0.0
    %5809 = vmatpush1.msra.mxu0 0.0
    %5810 = vmatprep.subr.mxu0 0.0
    %5811 = vmatpush1.msra.mxu0 0.0
    %5812 = vmatprep.subr.mxu0 0.0
    %5813 = vmatpush1.msra.mxu0 0.0
    %5814 = vmatprep.subr.mxu0 0.0
    %5815 = vmatpush1.msra.mxu0 0.0
    %5816 = vmatprep.subr.mxu0 0.0
    %5817 = vmatpush1.msra.mxu0 0.0
    %5818 = vmatprep.subr.mxu0 0.0
    %5819 = vmatpush1.msra.mxu0 0.0
    %5820 = vmatprep.subr.mxu0 0.0
    %5821 = vmatpush1.msra.mxu0 0.0
    %5822 = vmatprep.subr.mxu0 0.0
    %5823 = vmatpush1.msra.mxu0 0.0
    %5824 = vmatprep.subr.mxu0 0.0
    %5825 = vmatpush1.msra.mxu0 %v4692
    %5826 = vmatprep.subr.mxu0 0.0
    %5827 = vmatpush1.msra.mxu0 %v4691
    %5828 = vmatprep.subr.mxu0 0.0
    %5829 = vmatpush1.msra.mxu0 %v4690
    %5830 = vmatprep.subr.mxu0 0.0
    %5831 = vmatpush1.msra.mxu0 %v4689
    %5832 = vmatprep.subr.mxu0 0.0
    %5833 = vmatpush2.msra.mxu0 0.0
    %5834 = vmatprep.subr.mxu0 0.0
    %5835 = vmatpush2.msra.mxu0 0.0
    %5836 = vmatprep.subr.mxu0 0.0
    %5837 = vmatpush2.msra.mxu0 0.0
    %5838 = vmatprep.subr.mxu0 0.0
    %5839 = vmatpush2.msra.mxu0 0.0
    %5840 = vmatprep.subr.mxu0 0.0
    %5841 = vmatpush2.msra.mxu0 0.0
    %5842 = vmatprep.subr.mxu0 0.0
    %5843 = vmatpush2.msra.mxu0 0.0
    %5844 = vmatprep.subr.mxu0 0.0
    %5845 = vmatpush2.msra.mxu0 0.0
    %5846 = vmatprep.subr.mxu0 0.0
    %5847 = vmatpush2.msra.mxu0 0.0
    %5848 = vmatprep.subr.mxu0 0.0
    %5849 = vmatpush2.msra.mxu0 0.0
    %5850 = vmatprep.subr.mxu0 0.0
    %5851 = vmatpush2.msra.mxu0 0.0
    %5852 = vmatprep.subr.mxu0 0.0
    %5853 = vmatpush2.msra.mxu0 0.0
    %5854 = vmatprep.subr.mxu0 0.0
    %5855 = vmatpush2.msra.mxu0 0.0
    %5856 = vmatprep.subr.mxu0 0.0
    %5857 = vmatpush2.msra.mxu0 0.0
    %5858 = vmatprep.subr.mxu0 0.0
    %5859 = vmatpush2.msra.mxu0 0.0
    %5860 = vmatprep.subr.mxu0 0.0
    %5861 = vmatpush2.msra.mxu0 0.0
    %5862 = vmatprep.subr.mxu0 0.0
    %5863 = vmatpush2.msra.mxu0 0.0
    %5864 = vmatprep.mubr.f32.mxu0 0.0
    %5865 = vmatmul.mubr.f32.gmra.mxu0 %v5789
    %v5866 = vpop.f32.mrf.mxu0
    %v5867 = vadd.f32 0.0, %v5866
    %v5868 = vpop.f32.mrf.mxu0
    %5869 = vmatprep.mubr.f32.mxu0 0.0
    %5870 = vmatmul.mubr.f32.gmra.mxu0 %v5792
    %v5871 = vpop.f32.mrf.mxu0
    %v5872 = vadd.f32 0.0, %v5871
    %v5873 = vpop.f32.mrf.mxu0
    %5874 = vmatprep.mubr.f32.mxu0 0.0
    %5875 = vmatmul.mubr.f32.gmra.mxu0 %v5795
    %v5876 = vpop.f32.mrf.mxu0
    %v5877 = vadd.f32 0.0, %v5876
    %v5878 = vpop.f32.mrf.mxu0
    %5879 = vmatprep.mubr.f32.mxu0 0.0
    %5880 = vmatmul.mubr.f32.gmra.mxu0 %v5798
    %v5881 = vpop.f32.mrf.mxu0
    %v5882 = vadd.f32 0.0, %v5881
    %v5883 = vpop.f32.mrf.mxu0
    %5884 = vdwg.mxu0
    %5889 = vrot.lane.b32.xlu0 %v5867, 32
    %v5890 = vpop.permute.xlu0 %5889
    %5891 = vrot.lane.b32.xlu0 %v5872, 32
    %v5892 = vpop.permute.xlu0 %5891
    %5893 = vrot.lane.b32.xlu0 %v5877, 32
    %v5894 = vpop.permute.xlu0 %5893
    %5895 = vrot.lane.b32.xlu0 %v5882, 32
    %v5896 = vpop.permute.xlu0 %5895
    %v5901 = vadd.f32 %v5563, %v5890
    %v5902 = vadd.f32 %v5564, %v5892
    %v5903 = vadd.f32 %v5565, %v5894
    %v5904 = vadd.f32 %v5566, %v5896
    %v5905 = vlaneseq
    %v5906 = vshrl.u32 %v5905, 7
    %v5907 = vsub.s32 5, %v5906
    %v5908 = vrot.slane %v4677, %v5907
    %5910 = vrot.lane.b32.xlu0 %v5908, 32
    %v5911 = vpop.permute.xlu0 %5910
    %v5913 = vadd.f32 %v5901, %v5911
    %v5914 = vadd.f32 %v5902, %v5911
    %v5915 = vadd.f32 %v5903, %v5911
    %v5916 = vadd.f32 %v5904, %v5911
    %s5917 = scalar_lea.vmem [#allocation14], 64
    %v5918 = vld [vmem:[%s5917] sm:$0xff]
    %v5919 = vld [vmem:[%s5917 + $0x8] sm:$0xff]
    %v5920 = vld [vmem:[%s5917 + $0x10] sm:$0xff]
    %v5921 = vld [vmem:[%s5917 + $0x18] sm:$0xff]
    %5926 = vrot.lane.b32.xlu0 %v5918, 32
    %v5927 = vpop.permute.xlu0 %5926
    %5928 = vrot.lane.b32.xlu0 %v5919, 32
    %v5929 = vpop.permute.xlu0 %5928
    %5930 = vrot.lane.b32.xlu0 %v5920, 32
    %v5931 = vpop.permute.xlu0 %5930
    %5932 = vrot.lane.b32.xlu0 %v5921, 32
    %v5933 = vpop.permute.xlu0 %5932
    %v5938 = vadd.f32 %v5913, %v5927
    %v5939 = vadd.f32 %v5914, %v5929
    %v5940 = vadd.f32 %v5915, %v5931
    %v5941 = vadd.f32 %v5916, %v5933
    %s5942 = scalar_lea.vmem [#allocation16], 64
    %v5943 = vld [vmem:[%s5942] sm:$0xff]
    %v5944 = vld [vmem:[%s5942 + $0x8] sm:$0xff]
    %v5945 = vld [vmem:[%s5942 + $0x10] sm:$0xff]
    %v5946 = vld [vmem:[%s5942 + $0x18] sm:$0xff]
    %5951 = vrot.lane.b32.xlu0 %v5938, 96
    %v5952 = vpop.permute.xlu0 %5951
    %5953 = vrot.lane.b32.xlu0 %v5939, 96
    %v5954 = vpop.permute.xlu0 %5953
    %5955 = vrot.lane.b32.xlu0 %v5940, 96
    %v5956 = vpop.permute.xlu0 %5955
    %5957 = vrot.lane.b32.xlu0 %v5941, 96
    %v5958 = vpop.permute.xlu0 %5957
    %v5959 = vsel %vm188, %v5952, 0
    %v5961 = vsel %vm188, %v5954, 0
    %v5963 = vsel %vm188, %v5956, 0
    %v5965 = vsel %vm188, %v5958, 0
    %5967 = vmatprep.subr.mxu0 0.0
    %5968 = vmatpush1.msra.mxu0 0.0
    %5969 = vmatprep.subr.mxu0 0.0
    %5970 = vmatpush1.msra.mxu0 0.0
    %5971 = vmatprep.subr.mxu0 0.0
    %5972 = vmatpush1.msra.mxu0 0.0
    %5973 = vmatprep.subr.mxu0 0.0
    %5974 = vmatpush1.msra.mxu0 0.0
    %5975 = vmatprep.subr.mxu0 0.0
    %5976 = vmatpush1.msra.mxu0 0.0
    %5977 = vmatprep.subr.mxu0 0.0
    %5978 = vmatpush1.msra.mxu0 0.0
    %5979 = vmatprep.subr.mxu0 0.0
    %5980 = vmatpush1.msra.mxu0 0.0
    %5981 = vmatprep.subr.mxu0 0.0
    %5982 = vmatpush1.msra.mxu0 0.0
    %5983 = vmatprep.subr.mxu0 0.0
    %5984 = vmatpush1.msra.mxu0 0.0
    %5985 = vmatprep.subr.mxu0 0.0
    %5986 = vmatpush1.msra.mxu0 0.0
    %5987 = vmatprep.subr.mxu0 0.0
    %5988 = vmatpush1.msra.mxu0 0.0
    %5989 = vmatprep.subr.mxu0 0.0
    %5990 = vmatpush1.msra.mxu0 0.0
    %5991 = vmatprep.subr.mxu0 0.0
    %5992 = vmatpush1.msra.mxu0 %v5946
    %5993 = vmatprep.subr.mxu0 0.0
    %5994 = vmatpush1.msra.mxu0 %v5945
    %5995 = vmatprep.subr.mxu0 0.0
    %5996 = vmatpush1.msra.mxu0 %v5944
    %5997 = vmatprep.subr.mxu0 0.0
    %5998 = vmatpush1.msra.mxu0 %v5943
    %5999 = vmatprep.subr.mxu0 0.0
    %6000 = vmatpush2.msra.mxu0 0.0
    %6001 = vmatprep.subr.mxu0 0.0
    %6002 = vmatpush2.msra.mxu0 0.0
    %6003 = vmatprep.subr.mxu0 0.0
    %6004 = vmatpush2.msra.mxu0 0.0
    %6005 = vmatprep.subr.mxu0 0.0
    %6006 = vmatpush2.msra.mxu0 0.0
    %6007 = vmatprep.subr.mxu0 0.0
    %6008 = vmatpush2.msra.mxu0 0.0
    %6009 = vmatprep.subr.mxu0 0.0
    %6010 = vmatpush2.msra.mxu0 0.0
    %6011 = vmatprep.subr.mxu0 0.0
    %6012 = vmatpush2.msra.mxu0 0.0
    %6013 = vmatprep.subr.mxu0 0.0
    %6014 = vmatpush2.msra.mxu0 0.0
    %6015 = vmatprep.subr.mxu0 0.0
    %6016 = vmatpush2.msra.mxu0 0.0
    %6017 = vmatprep.subr.mxu0 0.0
    %6018 = vmatpush2.msra.mxu0 0.0
    %6019 = vmatprep.subr.mxu0 0.0
    %6020 = vmatpush2.msra.mxu0 0.0
    %6021 = vmatprep.subr.mxu0 0.0
    %6022 = vmatpush2.msra.mxu0 0.0
    %6023 = vmatprep.subr.mxu0 0.0
    %6024 = vmatpush2.msra.mxu0 0.0
    %6025 = vmatprep.subr.mxu0 0.0
    %6026 = vmatpush2.msra.mxu0 0.0
    %6027 = vmatprep.subr.mxu0 0.0
    %6028 = vmatpush2.msra.mxu0 0.0
    %6029 = vmatprep.subr.mxu0 0.0
    %6030 = vmatpush2.msra.mxu0 0.0
    %6031 = vmatprep.mubr.f32.mxu0 0.0
    %6032 = vmatmul.mubr.f32.gmra.mxu0 %v5959
    %v6033 = vpop.f32.mrf.mxu0
    %v6034 = vadd.f32 0.0, %v6033
    %v6035 = vpop.f32.mrf.mxu0
    %6036 = vmatprep.mubr.f32.mxu0 0.0
    %6037 = vmatmul.mubr.f32.gmra.mxu0 %v5961
    %v6038 = vpop.f32.mrf.mxu0
    %v6039 = vadd.f32 0.0, %v6038
    %v6040 = vpop.f32.mrf.mxu0
    %6041 = vmatprep.mubr.f32.mxu0 0.0
    %6042 = vmatmul.mubr.f32.gmra.mxu0 %v5963
    %v6043 = vpop.f32.mrf.mxu0
    %v6044 = vadd.f32 0.0, %v6043
    %v6045 = vpop.f32.mrf.mxu0
    %6046 = vmatprep.mubr.f32.mxu0 0.0
    %6047 = vmatmul.mubr.f32.gmra.mxu0 %v5965
    %v6048 = vpop.f32.mrf.mxu0
    %v6049 = vadd.f32 0.0, %v6048
    %v6050 = vpop.f32.mrf.mxu0
    %6051 = vdwg.mxu0
    %6052 = vrot.lane.b32.xlu0 %v496, 64
    %v6053 = vpop.permute.xlu0 %6052
    %6054 = vrot.lane.b32.xlu0 %v501, 64
    %v6055 = vpop.permute.xlu0 %6054
    %6056 = vrot.lane.b32.xlu0 %v506, 64
    %v6057 = vpop.permute.xlu0 %6056
    %6058 = vrot.lane.b32.xlu0 %v511, 64
    %v6059 = vpop.permute.xlu0 %6058
    %6060 = vrot.lane.b32.xlu0 %v516, 64
    %v6061 = vpop.permute.xlu0 %6060
    %6062 = vrot.lane.b32.xlu0 %v521, 64
    %v6063 = vpop.permute.xlu0 %6062
    %v6064 = vsel %vm1894, %v6053, 0
    %v6066 = vsel %vm1894, %v6055, 0
    %v6068 = vsel %vm1894, %v6057, 0
    %v6070 = vsel %vm1894, %v6059, 0
    %v6072 = vsel %vm1894, %v6061, 0
    %v6074 = vsel %vm1894, %v6063, 0
    %v6077 = vsel %vm1894, %v6034, 0
    %v6080 = vsel %vm1894, %v6039, 0
    %v6083 = vsel %vm1894, %v6044, 0
    %v6086 = vsel %vm1894, %v6049, 0
    %6088 = vmatprep.subr.mxu0 0.0
    %6089 = vmatpush1.xpose.msra.mxu0 0.0
    %6090 = vmatprep.subr.mxu0 0.0
    %6091 = vmatpush1.xpose.msra.mxu0 0.0
    %6092 = vmatprep.subr.mxu0 0.0
    %6093 = vmatpush1.xpose.msra.mxu0 0.0
    %6094 = vmatprep.subr.mxu0 0.0
    %6095 = vmatpush1.xpose.msra.mxu0 0.0
    %6096 = vmatprep.subr.mxu0 0.0
    %6097 = vmatpush1.xpose.msra.mxu0 0.0
    %6098 = vmatprep.subr.mxu0 0.0
    %6099 = vmatpush1.xpose.msra.mxu0 0.0
    %6100 = vmatprep.subr.mxu0 0.0
    %6101 = vmatpush1.xpose.msra.mxu0 0.0
    %6102 = vmatprep.subr.mxu0 0.0
    %6103 = vmatpush1.xpose.msra.mxu0 0.0
    %6104 = vmatprep.subr.mxu0 0.0
    %6105 = vmatpush1.xpose.msra.mxu0 0.0
    %6106 = vmatprep.subr.mxu0 0.0
    %6107 = vmatpush1.xpose.msra.mxu0 0.0
    %6108 = vmatprep.subr.mxu0 0.0
    %6109 = vmatpush1.xpose.msra.mxu0 0.0
    %6110 = vmatprep.subr.mxu0 0.0
    %6111 = vmatpush1.xpose.msra.mxu0 0.0
    %6112 = vmatprep.subr.mxu0 0.0
    %6113 = vmatpush1.xpose.msra.mxu0 %v6086
    %6114 = vmatprep.subr.mxu0 0.0
    %6115 = vmatpush1.xpose.msra.mxu0 %v6083
    %6116 = vmatprep.subr.mxu0 0.0
    %6117 = vmatpush1.xpose.msra.mxu0 %v6080
    %6118 = vmatprep.subr.mxu0 0.0
    %6119 = vmatpush1.xpose.msra.mxu0 %v6077
    %6120 = vmatprep.subr.mxu0 0.0
    %6121 = vmatpush2.xpose.msra.mxu0 0.0
    %6122 = vmatprep.subr.mxu0 0.0
    %6123 = vmatpush2.xpose.msra.mxu0 0.0
    %6124 = vmatprep.subr.mxu0 0.0
    %6125 = vmatpush2.xpose.msra.mxu0 0.0
    %6126 = vmatprep.subr.mxu0 0.0
    %6127 = vmatpush2.xpose.msra.mxu0 0.0
    %6128 = vmatprep.subr.mxu0 0.0
    %6129 = vmatpush2.xpose.msra.mxu0 0.0
    %6130 = vmatprep.subr.mxu0 0.0
    %6131 = vmatpush2.xpose.msra.mxu0 0.0
    %6132 = vmatprep.subr.mxu0 0.0
    %6133 = vmatpush2.xpose.msra.mxu0 0.0
    %6134 = vmatprep.subr.mxu0 0.0
    %6135 = vmatpush2.xpose.msra.mxu0 0.0
    %6136 = vmatprep.subr.mxu0 0.0
    %6137 = vmatpush2.xpose.msra.mxu0 0.0
    %6138 = vmatprep.subr.mxu0 0.0
    %6139 = vmatpush2.xpose.msra.mxu0 0.0
    %6140 = vmatprep.subr.mxu0 0.0
    %6141 = vmatpush2.xpose.msra.mxu0 0.0
    %6142 = vmatprep.subr.mxu0 0.0
    %6143 = vmatpush2.xpose.msra.mxu0 0.0
    %6144 = vmatprep.subr.mxu0 0.0
    %6145 = vmatpush2.xpose.msra.mxu0 0.0
    %6146 = vmatprep.subr.mxu0 0.0
    %6147 = vmatpush2.xpose.msra.mxu0 0.0
    %6148 = vmatprep.subr.mxu0 0.0
    %6149 = vmatpush2.xpose.msra.mxu0 0.0
    %6150 = vmatprep.subr.mxu0 0.0
    %6151 = vmatpush2.xpose.msra.mxu0 0.0
    %6152 = vmatprep.mubr.f32.mxu0 0.0
    %6153 = vmatmul.mubr.f32.gmra.mxu0 %v6064
    %v6154 = vpop.f32.mrf.mxu0
    %v6155 = vadd.f32 0.0, %v6154
    %v6156 = vpop.f32.mrf.mxu0
    %6157 = vmatprep.mubr.f32.mxu0 0.0
    %6158 = vmatmul.mubr.f32.gmra.mxu0 %v6066
    %v6159 = vpop.f32.mrf.mxu0
    %v6160 = vadd.f32 0.0, %v6159
    %v6161 = vpop.f32.mrf.mxu0
    %6162 = vmatprep.mubr.f32.mxu0 0.0
    %6163 = vmatmul.mubr.f32.gmra.mxu0 %v6068
    %v6164 = vpop.f32.mrf.mxu0
    %v6165 = vadd.f32 0.0, %v6164
    %v6166 = vpop.f32.mrf.mxu0
    %6167 = vmatprep.mubr.f32.mxu0 0.0
    %6168 = vmatmul.mubr.f32.gmra.mxu0 %v6070
    %v6169 = vpop.f32.mrf.mxu0
    %v6170 = vadd.f32 0.0, %v6169
    %v6171 = vpop.f32.mrf.mxu0
    %6172 = vmatprep.mubr.f32.mxu0 0.0
    %6173 = vmatmul.mubr.f32.gmra.mxu0 %v6072
    %v6174 = vpop.f32.mrf.mxu0
    %v6175 = vadd.f32 0.0, %v6174
    %v6176 = vpop.f32.mrf.mxu0
    %6177 = vmatprep.mubr.f32.mxu0 0.0
    %6178 = vmatmul.mubr.f32.gmra.mxu0 %v6074
    %v6179 = vpop.f32.mrf.mxu0
    %v6180 = vadd.f32 0.0, %v6179
    %v6181 = vpop.f32.mrf.mxu0
    %6182 = vdwg.mxu0
    %v6183 = vmul.f32 %v6155, 0.25
    %v6184 = vmul.f32 %v6160, 0.25
    %v6185 = vmul.f32 %v6165, 0.25
    %v6186 = vmul.f32 %v6170, 0.25
    %v6187 = vmul.f32 %v6175, 0.25
    %v6188 = vmul.f32 %v6180, 0.25
    %v6189 = vadd.f32 %v6183, %v174
    %v6190 = vadd.f32 %v6184, %v175
    %v6191 = vadd.f32 %v6185, %v176
    %v6192 = vadd.f32 %v6186, %v177
    %v6193 = vadd.f32 %v6187, %v178
    %v6194 = vadd.f32 %v6188, %v179
    %v6195 = vsel %vm188, %v6189, -inf
    %6196 = vmax.xlane.f32.xlu0 %v6195
    %v6197 = vpop.xlane.xlu0 %6196
    %v6198 = vsel %vm188, %v6190, -inf
    %6199 = vmax.xlane.f32.xlu0 %v6198
    %v6200 = vpop.xlane.xlu0 %6199
    %v6201 = vsel %vm188, %v6191, -inf
    %6202 = vmax.xlane.f32.xlu0 %v6201
    %v6203 = vpop.xlane.xlu0 %6202
    %v6204 = vsel %vm188, %v6192, -inf
    %6205 = vmax.xlane.f32.xlu0 %v6204
    %v6206 = vpop.xlane.xlu0 %6205
    %v6207 = vsel %vm188, %v6193, -inf
    %6208 = vmax.xlane.f32.xlu0 %v6207
    %v6209 = vpop.xlane.xlu0 %6208
    %v6210 = vsel %vm188, %v6194, -inf
    %6211 = vmax.xlane.f32.xlu0 %v6210
    %v6212 = vpop.xlane.xlu0 %6211
    %v6213 = vsub.f32 %v6189, %v6197
    %v6214 = vsub.f32 %v6190, %v6200
    %v6215 = vsub.f32 %v6191, %v6203
    %v6216 = vsub.f32 %v6192, %v6206
    %v6217 = vsub.f32 %v6193, %v6209
    %v6218 = vsub.f32 %v6194, %v6212
    %v6219 = vmul.f32 %v6213, 1.442695
    %v6220 = vpow.pop %v6219
    %v6221 = vmul.f32 %v6214, 1.442695
    %v6222 = vpow.pop %v6221
    %v6223 = vmul.f32 %v6215, 1.442695
    %v6224 = vpow.pop %v6223
    %v6225 = vmul.f32 %v6216, 1.442695
    %v6226 = vpow.pop %v6225
    %v6227 = vmul.f32 %v6217, 1.442695
    %v6228 = vpow.pop %v6227
    %v6229 = vmul.f32 %v6218, 1.442695
    %v6230 = vpow.pop %v6229
    %v6231 = vsel %vm188, %v6220, 0.0
    %6232 = vadd.xlane.f32.xlu0 %v6231
    %v6233 = vpop.xlane.xlu0 %6232
    %v6234 = vsel %vm188, %v6222, 0.0
    %6235 = vadd.xlane.f32.xlu0 %v6234
    %v6236 = vpop.xlane.xlu0 %6235
    %v6237 = vsel %vm188, %v6224, 0.0
    %6238 = vadd.xlane.f32.xlu0 %v6237
    %v6239 = vpop.xlane.xlu0 %6238
    %v6240 = vsel %vm188, %v6226, 0.0
    %6241 = vadd.xlane.f32.xlu0 %v6240
    %v6242 = vpop.xlane.xlu0 %6241
    %v6243 = vsel %vm188, %v6228, 0.0
    %6244 = vadd.xlane.f32.xlu0 %v6243
    %v6245 = vpop.xlane.xlu0 %6244
    %v6246 = vsel %vm188, %v6230, 0.0
    %6247 = vadd.xlane.f32.xlu0 %v6246
    %v6248 = vpop.xlane.xlu0 %6247
    %v6249 = vrcp.pop %v6233
    %v6250 = vrcp.pop %v6236
    %v6251 = vrcp.pop %v6239
    %v6252 = vrcp.pop %v6242
    %v6253 = vrcp.pop %v6245
    %v6254 = vrcp.pop %v6248
    %v6255 = vmul.f32 %v6220, %v6249
    %v6256 = vmul.f32 %v6222, %v6250
    %v6257 = vmul.f32 %v6224, %v6251
    %v6258 = vmul.f32 %v6226, %v6252
    %v6259 = vmul.f32 %v6228, %v6253
    %v6260 = vmul.f32 %v6230, %v6254
    %v6261 = vadd.f32 %v6255, 0.0
    %v6262 = vadd.f32 %v6256, 0.0
    %v6263 = vadd.f32 %v6257, 0.0
    %v6264 = vadd.f32 %v6258, 0.0
    %v6265 = vadd.f32 %v6259, 0.0
    %v6266 = vadd.f32 %v6260, 0.0
    %6267 = vrot.lane.b32.xlu0 %v496, 48
    %v6268 = vpop.permute.xlu0 %6267
    %6269 = vrot.lane.b32.xlu0 %v501, 48
    %v6270 = vpop.permute.xlu0 %6269
    %6271 = vrot.lane.b32.xlu0 %v506, 48
    %v6272 = vpop.permute.xlu0 %6271
    %6273 = vrot.lane.b32.xlu0 %v511, 48
    %v6274 = vpop.permute.xlu0 %6273
    %6275 = vrot.lane.b32.xlu0 %v516, 48
    %v6276 = vpop.permute.xlu0 %6275
    %6277 = vrot.lane.b32.xlu0 %v521, 48
    %v6278 = vpop.permute.xlu0 %6277
    %6279 = vrot.lane.b32.xlu0 %v6034, 112
    %v6280 = vpop.permute.xlu0 %6279
    %6281 = vrot.lane.b32.xlu0 %v6039, 112
    %v6282 = vpop.permute.xlu0 %6281
    %6283 = vrot.lane.b32.xlu0 %v6044, 112
    %v6284 = vpop.permute.xlu0 %6283
    %6285 = vrot.lane.b32.xlu0 %v6049, 112
    %v6286 = vpop.permute.xlu0 %6285
    %v6287 = vsel %vm1894, %v6268, 0
    %v6289 = vsel %vm1894, %v6270, 0
    %v6291 = vsel %vm1894, %v6272, 0
    %v6293 = vsel %vm1894, %v6274, 0
    %v6295 = vsel %vm1894, %v6276, 0
    %v6297 = vsel %vm1894, %v6278, 0
    %v6299 = vsel %vm1894, %v6280, 0
    %v6301 = vsel %vm1894, %v6282, 0
    %v6303 = vsel %vm1894, %v6284, 0
    %v6305 = vsel %vm1894, %v6286, 0
    %6307 = vmatprep.subr.mxu0 0.0
    %6308 = vmatpush1.xpose.msra.mxu0 0.0
    %6309 = vmatprep.subr.mxu0 0.0
    %6310 = vmatpush1.xpose.msra.mxu0 0.0
    %6311 = vmatprep.subr.mxu0 0.0
    %6312 = vmatpush1.xpose.msra.mxu0 0.0
    %6313 = vmatprep.subr.mxu0 0.0
    %6314 = vmatpush1.xpose.msra.mxu0 0.0
    %6315 = vmatprep.subr.mxu0 0.0
    %6316 = vmatpush1.xpose.msra.mxu0 0.0
    %6317 = vmatprep.subr.mxu0 0.0
    %6318 = vmatpush1.xpose.msra.mxu0 0.0
    %6319 = vmatprep.subr.mxu0 0.0
    %6320 = vmatpush1.xpose.msra.mxu0 0.0
    %6321 = vmatprep.subr.mxu0 0.0
    %6322 = vmatpush1.xpose.msra.mxu0 0.0
    %6323 = vmatprep.subr.mxu0 0.0
    %6324 = vmatpush1.xpose.msra.mxu0 0.0
    %6325 = vmatprep.subr.mxu0 0.0
    %6326 = vmatpush1.xpose.msra.mxu0 0.0
    %6327 = vmatprep.subr.mxu0 0.0
    %6328 = vmatpush1.xpose.msra.mxu0 0.0
    %6329 = vmatprep.subr.mxu0 0.0
    %6330 = vmatpush1.xpose.msra.mxu0 0.0
    %6331 = vmatprep.subr.mxu0 0.0
    %6332 = vmatpush1.xpose.msra.mxu0 %v6305
    %6333 = vmatprep.subr.mxu0 0.0
    %6334 = vmatpush1.xpose.msra.mxu0 %v6303
    %6335 = vmatprep.subr.mxu0 0.0
    %6336 = vmatpush1.xpose.msra.mxu0 %v6301
    %6337 = vmatprep.subr.mxu0 0.0
    %6338 = vmatpush1.xpose.msra.mxu0 %v6299
    %6339 = vmatprep.subr.mxu0 0.0
    %6340 = vmatpush2.xpose.msra.mxu0 0.0
    %6341 = vmatprep.subr.mxu0 0.0
    %6342 = vmatpush2.xpose.msra.mxu0 0.0
    %6343 = vmatprep.subr.mxu0 0.0
    %6344 = vmatpush2.xpose.msra.mxu0 0.0
    %6345 = vmatprep.subr.mxu0 0.0
    %6346 = vmatpush2.xpose.msra.mxu0 0.0
    %6347 = vmatprep.subr.mxu0 0.0
    %6348 = vmatpush2.xpose.msra.mxu0 0.0
    %6349 = vmatprep.subr.mxu0 0.0
    %6350 = vmatpush2.xpose.msra.mxu0 0.0
    %6351 = vmatprep.subr.mxu0 0.0
    %6352 = vmatpush2.xpose.msra.mxu0 0.0
    %6353 = vmatprep.subr.mxu0 0.0
    %6354 = vmatpush2.xpose.msra.mxu0 0.0
    %6355 = vmatprep.subr.mxu0 0.0
    %6356 = vmatpush2.xpose.msra.mxu0 0.0
    %6357 = vmatprep.subr.mxu0 0.0
    %6358 = vmatpush2.xpose.msra.mxu0 0.0
    %6359 = vmatprep.subr.mxu0 0.0
    %6360 = vmatpush2.xpose.msra.mxu0 0.0
    %6361 = vmatprep.subr.mxu0 0.0
    %6362 = vmatpush2.xpose.msra.mxu0 0.0
    %6363 = vmatprep.subr.mxu0 0.0
    %6364 = vmatpush2.xpose.msra.mxu0 0.0
    %6365 = vmatprep.subr.mxu0 0.0
    %6366 = vmatpush2.xpose.msra.mxu0 0.0
    %6367 = vmatprep.subr.mxu0 0.0
    %6368 = vmatpush2.xpose.msra.mxu0 0.0
    %6369 = vmatprep.subr.mxu0 0.0
    %6370 = vmatpush2.xpose.msra.mxu0 0.0
    %6371 = vmatprep.mubr.f32.mxu0 0.0
    %6372 = vmatmul.mubr.f32.gmra.mxu0 %v6287
    %v6373 = vpop.f32.mrf.mxu0
    %v6374 = vadd.f32 0.0, %v6373
    %v6375 = vpop.f32.mrf.mxu0
    %6376 = vmatprep.mubr.f32.mxu0 0.0
    %6377 = vmatmul.mubr.f32.gmra.mxu0 %v6289
    %v6378 = vpop.f32.mrf.mxu0
    %v6379 = vadd.f32 0.0, %v6378
    %v6380 = vpop.f32.mrf.mxu0
    %6381 = vmatprep.mubr.f32.mxu0 0.0
    %6382 = vmatmul.mubr.f32.gmra.mxu0 %v6291
    %v6383 = vpop.f32.mrf.mxu0
    %v6384 = vadd.f32 0.0, %v6383
    %v6385 = vpop.f32.mrf.mxu0
    %6386 = vmatprep.mubr.f32.mxu0 0.0
    %6387 = vmatmul.mubr.f32.gmra.mxu0 %v6293
    %v6388 = vpop.f32.mrf.mxu0
    %v6389 = vadd.f32 0.0, %v6388
    %v6390 = vpop.f32.mrf.mxu0
    %6391 = vmatprep.mubr.f32.mxu0 0.0
    %6392 = vmatmul.mubr.f32.gmra.mxu0 %v6295
    %v6393 = vpop.f32.mrf.mxu0
    %v6394 = vadd.f32 0.0, %v6393
    %v6395 = vpop.f32.mrf.mxu0
    %6396 = vmatprep.mubr.f32.mxu0 0.0
    %6397 = vmatmul.mubr.f32.gmra.mxu0 %v6297
    %v6398 = vpop.f32.mrf.mxu0
    %v6399 = vadd.f32 0.0, %v6398
    %v6400 = vpop.f32.mrf.mxu0
    %6401 = vdwg.mxu0
    %v6402 = vmul.f32 %v6374, 0.25
    %v6403 = vmul.f32 %v6379, 0.25
    %v6404 = vmul.f32 %v6384, 0.25
    %v6405 = vmul.f32 %v6389, 0.25
    %v6406 = vmul.f32 %v6394, 0.25
    %v6407 = vmul.f32 %v6399, 0.25
    %v6408 = vadd.f32 %v6402, %v174
    %v6409 = vadd.f32 %v6403, %v175
    %v6410 = vadd.f32 %v6404, %v176
    %v6411 = vadd.f32 %v6405, %v177
    %v6412 = vadd.f32 %v6406, %v178
    %v6413 = vadd.f32 %v6407, %v179
    %v6414 = vsel %vm188, %v6408, -inf
    %6415 = vmax.xlane.f32.xlu0 %v6414
    %v6416 = vpop.xlane.xlu0 %6415
    %v6417 = vsel %vm188, %v6409, -inf
    %6418 = vmax.xlane.f32.xlu0 %v6417
    %v6419 = vpop.xlane.xlu0 %6418
    %v6420 = vsel %vm188, %v6410, -inf
    %6421 = vmax.xlane.f32.xlu0 %v6420
    %v6422 = vpop.xlane.xlu0 %6421
    %v6423 = vsel %vm188, %v6411, -inf
    %6424 = vmax.xlane.f32.xlu0 %v6423
    %v6425 = vpop.xlane.xlu0 %6424
    %v6426 = vsel %vm188, %v6412, -inf
    %6427 = vmax.xlane.f32.xlu0 %v6426
    %v6428 = vpop.xlane.xlu0 %6427
    %v6429 = vsel %vm188, %v6413, -inf
    %6430 = vmax.xlane.f32.xlu0 %v6429
    %v6431 = vpop.xlane.xlu0 %6430
    %v6432 = vsub.f32 %v6408, %v6416
    %v6433 = vsub.f32 %v6409, %v6419
    %v6434 = vsub.f32 %v6410, %v6422
    %v6435 = vsub.f32 %v6411, %v6425
    %v6436 = vsub.f32 %v6412, %v6428
    %v6437 = vsub.f32 %v6413, %v6431
    %v6438 = vmul.f32 %v6432, 1.442695
    %v6439 = vpow.pop %v6438
    %v6440 = vmul.f32 %v6433, 1.442695
    %v6441 = vpow.pop %v6440
    %v6442 = vmul.f32 %v6434, 1.442695
    %v6443 = vpow.pop %v6442
    %v6444 = vmul.f32 %v6435, 1.442695
    %v6445 = vpow.pop %v6444
    %v6446 = vmul.f32 %v6436, 1.442695
    %v6447 = vpow.pop %v6446
    %v6448 = vmul.f32 %v6437, 1.442695
    %v6449 = vpow.pop %v6448
    %v6450 = vsel %vm188, %v6439, 0.0
    %6451 = vadd.xlane.f32.xlu0 %v6450
    %v6452 = vpop.xlane.xlu0 %6451
    %v6453 = vsel %vm188, %v6441, 0.0
    %6454 = vadd.xlane.f32.xlu0 %v6453
    %v6455 = vpop.xlane.xlu0 %6454
    %v6456 = vsel %vm188, %v6443, 0.0
    %6457 = vadd.xlane.f32.xlu0 %v6456
    %v6458 = vpop.xlane.xlu0 %6457
    %v6459 = vsel %vm188, %v6445, 0.0
    %6460 = vadd.xlane.f32.xlu0 %v6459
    %v6461 = vpop.xlane.xlu0 %6460
    %v6462 = vsel %vm188, %v6447, 0.0
    %6463 = vadd.xlane.f32.xlu0 %v6462
    %v6464 = vpop.xlane.xlu0 %6463
    %v6465 = vsel %vm188, %v6449, 0.0
    %6466 = vadd.xlane.f32.xlu0 %v6465
    %v6467 = vpop.xlane.xlu0 %6466
    %v6468 = vrcp.pop %v6452
    %v6469 = vrcp.pop %v6455
    %v6470 = vrcp.pop %v6458
    %v6471 = vrcp.pop %v6461
    %v6472 = vrcp.pop %v6464
    %v6473 = vrcp.pop %v6467
    %v6474 = vmul.f32 %v6439, %v6468
    %v6475 = vmul.f32 %v6441, %v6469
    %v6476 = vmul.f32 %v6443, %v6470
    %v6477 = vmul.f32 %v6445, %v6471
    %v6478 = vmul.f32 %v6447, %v6472
    %v6479 = vmul.f32 %v6449, %v6473
    %v6480 = vadd.f32 %v6261, %v6474
    %v6481 = vadd.f32 %v6262, %v6475
    %v6482 = vadd.f32 %v6263, %v6476
    %v6483 = vadd.f32 %v6264, %v6477
    %v6484 = vadd.f32 %v6265, %v6478
    %v6485 = vadd.f32 %v6266, %v6479
    %6486 = vrot.lane.b32.xlu0 %v6034, 86
    %v6487 = vpop.permute.xlu0 %6486
    %6488 = vrot.lane.b32.xlu0 %v6039, 86
    %v6489 = vpop.permute.xlu0 %6488
    %6490 = vrot.lane.b32.xlu0 %v6044, 86
    %v6491 = vpop.permute.xlu0 %6490
    %6492 = vrot.lane.b32.xlu0 %v6049, 86
    %v6493 = vpop.permute.xlu0 %6492
    %v6499 = vsel %vm188, %v6474, 0
    %v6502 = vsel %vm188, %v6475, 0
    %v6505 = vsel %vm188, %v6476, 0
    %v6508 = vsel %vm188, %v6477, 0
    %v6511 = vsel %vm188, %v6478, 0
    %v6514 = vsel %vm188, %v6479, 0
    %6516 = vmatprep.subr.mxu0 0.0
    %6517 = vmatpush1.msra.mxu0 0.0
    %6518 = vmatprep.subr.mxu0 0.0
    %6519 = vmatpush1.msra.mxu0 0.0
    %6520 = vmatprep.subr.mxu0 0.0
    %6521 = vmatpush1.msra.mxu0 0.0
    %6522 = vmatprep.subr.mxu0 0.0
    %6523 = vmatpush1.msra.mxu0 0.0
    %6524 = vmatprep.subr.mxu0 0.0
    %6525 = vmatpush1.msra.mxu0 0.0
    %6526 = vmatprep.subr.mxu0 0.0
    %6527 = vmatpush1.msra.mxu0 0.0
    %6528 = vmatprep.subr.mxu0 0.0
    %6529 = vmatpush1.msra.mxu0 0.0
    %6530 = vmatprep.subr.mxu0 0.0
    %6531 = vmatpush1.msra.mxu0 0.0
    %6532 = vmatprep.subr.mxu0 0.0
    %6533 = vmatpush1.msra.mxu0 0.0
    %6534 = vmatprep.subr.mxu0 0.0
    %6535 = vmatpush1.msra.mxu0 0.0
    %6536 = vmatprep.subr.mxu0 0.0
    %6537 = vmatpush1.msra.mxu0 0.0
    %6538 = vmatprep.subr.mxu0 0.0
    %6539 = vmatpush1.msra.mxu0 0.0
    %6540 = vmatprep.subr.mxu0 0.0
    %6541 = vmatpush1.msra.mxu0 %v6493
    %6542 = vmatprep.subr.mxu0 0.0
    %6543 = vmatpush1.msra.mxu0 %v6491
    %6544 = vmatprep.subr.mxu0 0.0
    %6545 = vmatpush1.msra.mxu0 %v6489
    %6546 = vmatprep.subr.mxu0 0.0
    %6547 = vmatpush1.msra.mxu0 %v6487
    %6548 = vmatprep.subr.mxu0 0.0
    %6549 = vmatpush2.msra.mxu0 0.0
    %6550 = vmatprep.subr.mxu0 0.0
    %6551 = vmatpush2.msra.mxu0 0.0
    %6552 = vmatprep.subr.mxu0 0.0
    %6553 = vmatpush2.msra.mxu0 0.0
    %6554 = vmatprep.subr.mxu0 0.0
    %6555 = vmatpush2.msra.mxu0 0.0
    %6556 = vmatprep.subr.mxu0 0.0
    %6557 = vmatpush2.msra.mxu0 0.0
    %6558 = vmatprep.subr.mxu0 0.0
    %6559 = vmatpush2.msra.mxu0 0.0
    %6560 = vmatprep.subr.mxu0 0.0
    %6561 = vmatpush2.msra.mxu0 0.0
    %6562 = vmatprep.subr.mxu0 0.0
    %6563 = vmatpush2.msra.mxu0 0.0
    %6564 = vmatprep.subr.mxu0 0.0
    %6565 = vmatpush2.msra.mxu0 0.0
    %6566 = vmatprep.subr.mxu0 0.0
    %6567 = vmatpush2.msra.mxu0 0.0
    %6568 = vmatprep.subr.mxu0 0.0
    %6569 = vmatpush2.msra.mxu0 0.0
    %6570 = vmatprep.subr.mxu0 0.0
    %6571 = vmatpush2.msra.mxu0 0.0
    %6572 = vmatprep.subr.mxu0 0.0
    %6573 = vmatpush2.msra.mxu0 0.0
    %6574 = vmatprep.subr.mxu0 0.0
    %6575 = vmatpush2.msra.mxu0 0.0
    %6576 = vmatprep.subr.mxu0 0.0
    %6577 = vmatpush2.msra.mxu0 0.0
    %6578 = vmatprep.subr.mxu0 0.0
    %6579 = vmatpush2.msra.mxu0 0.0
    %6580 = vmatprep.mubr.f32.mxu0 0.0
    %6581 = vmatmul.mubr.f32.gmra.mxu0 %v6499
    %v6582 = vpop.f32.mrf.mxu0
    %v6583 = vadd.f32 0.0, %v6582
    %v6584 = vpop.f32.mrf.mxu0
    %6585 = vmatprep.mubr.f32.mxu0 0.0
    %6586 = vmatmul.mubr.f32.gmra.mxu0 %v6502
    %v6587 = vpop.f32.mrf.mxu0
    %v6588 = vadd.f32 0.0, %v6587
    %v6589 = vpop.f32.mrf.mxu0
    %6590 = vmatprep.mubr.f32.mxu0 0.0
    %6591 = vmatmul.mubr.f32.gmra.mxu0 %v6505
    %v6592 = vpop.f32.mrf.mxu0
    %v6593 = vadd.f32 0.0, %v6592
    %v6594 = vpop.f32.mrf.mxu0
    %6595 = vmatprep.mubr.f32.mxu0 0.0
    %6596 = vmatmul.mubr.f32.gmra.mxu0 %v6508
    %v6597 = vpop.f32.mrf.mxu0
    %v6598 = vadd.f32 0.0, %v6597
    %v6599 = vpop.f32.mrf.mxu0
    %6600 = vmatprep.mubr.f32.mxu0 0.0
    %6601 = vmatmul.mubr.f32.gmra.mxu0 %v6511
    %v6602 = vpop.f32.mrf.mxu0
    %v6603 = vadd.f32 0.0, %v6602
    %v6604 = vpop.f32.mrf.mxu0
    %6605 = vmatprep.mubr.f32.mxu0 0.0
    %6606 = vmatmul.mubr.f32.gmra.mxu0 %v6514
    %v6607 = vpop.f32.mrf.mxu0
    %v6608 = vadd.f32 0.0, %v6607
    %v6609 = vpop.f32.mrf.mxu0
    %6610 = vdwg.mxu0
    %6611 = vrot.lane.b32.xlu0 %v6034, 96
    %v6612 = vpop.permute.xlu0 %6611
    %6613 = vrot.lane.b32.xlu0 %v6039, 96
    %v6614 = vpop.permute.xlu0 %6613
    %6615 = vrot.lane.b32.xlu0 %v6044, 96
    %v6616 = vpop.permute.xlu0 %6615
    %6617 = vrot.lane.b32.xlu0 %v6049, 96
    %v6618 = vpop.permute.xlu0 %6617
    %v6624 = vsel %vm188, %v6255, 0
    %v6627 = vsel %vm188, %v6256, 0
    %v6630 = vsel %vm188, %v6257, 0
    %v6633 = vsel %vm188, %v6258, 0
    %v6636 = vsel %vm188, %v6259, 0
    %v6639 = vsel %vm188, %v6260, 0
    %6641 = vmatprep.subr.mxu0 0.0
    %6642 = vmatpush1.msra.mxu0 0.0
    %6643 = vmatprep.subr.mxu0 0.0
    %6644 = vmatpush1.msra.mxu0 0.0
    %6645 = vmatprep.subr.mxu0 0.0
    %6646 = vmatpush1.msra.mxu0 0.0
    %6647 = vmatprep.subr.mxu0 0.0
    %6648 = vmatpush1.msra.mxu0 0.0
    %6649 = vmatprep.subr.mxu0 0.0
    %6650 = vmatpush1.msra.mxu0 0.0
    %6651 = vmatprep.subr.mxu0 0.0
    %6652 = vmatpush1.msra.mxu0 0.0
    %6653 = vmatprep.subr.mxu0 0.0
    %6654 = vmatpush1.msra.mxu0 0.0
    %6655 = vmatprep.subr.mxu0 0.0
    %6656 = vmatpush1.msra.mxu0 0.0
    %6657 = vmatprep.subr.mxu0 0.0
    %6658 = vmatpush1.msra.mxu0 0.0
    %6659 = vmatprep.subr.mxu0 0.0
    %6660 = vmatpush1.msra.mxu0 0.0
    %6661 = vmatprep.subr.mxu0 0.0
    %6662 = vmatpush1.msra.mxu0 0.0
    %6663 = vmatprep.subr.mxu0 0.0
    %6664 = vmatpush1.msra.mxu0 0.0
    %6665 = vmatprep.subr.mxu0 0.0
    %6666 = vmatpush1.msra.mxu0 %v6618
    %6667 = vmatprep.subr.mxu0 0.0
    %6668 = vmatpush1.msra.mxu0 %v6616
    %6669 = vmatprep.subr.mxu0 0.0
    %6670 = vmatpush1.msra.mxu0 %v6614
    %6671 = vmatprep.subr.mxu0 0.0
    %6672 = vmatpush1.msra.mxu0 %v6612
    %6673 = vmatprep.subr.mxu0 0.0
    %6674 = vmatpush2.msra.mxu0 0.0
    %6675 = vmatprep.subr.mxu0 0.0
    %6676 = vmatpush2.msra.mxu0 0.0
    %6677 = vmatprep.subr.mxu0 0.0
    %6678 = vmatpush2.msra.mxu0 0.0
    %6679 = vmatprep.subr.mxu0 0.0
    %6680 = vmatpush2.msra.mxu0 0.0
    %6681 = vmatprep.subr.mxu0 0.0
    %6682 = vmatpush2.msra.mxu0 0.0
    %6683 = vmatprep.subr.mxu0 0.0
    %6684 = vmatpush2.msra.mxu0 0.0
    %6685 = vmatprep.subr.mxu0 0.0
    %6686 = vmatpush2.msra.mxu0 0.0
    %6687 = vmatprep.subr.mxu0 0.0
    %6688 = vmatpush2.msra.mxu0 0.0
    %6689 = vmatprep.subr.mxu0 0.0
    %6690 = vmatpush2.msra.mxu0 0.0
    %6691 = vmatprep.subr.mxu0 0.0
    %6692 = vmatpush2.msra.mxu0 0.0
    %6693 = vmatprep.subr.mxu0 0.0
    %6694 = vmatpush2.msra.mxu0 0.0
    %6695 = vmatprep.subr.mxu0 0.0
    %6696 = vmatpush2.msra.mxu0 0.0
    %6697 = vmatprep.subr.mxu0 0.0
    %6698 = vmatpush2.msra.mxu0 0.0
    %6699 = vmatprep.subr.mxu0 0.0
    %6700 = vmatpush2.msra.mxu0 0.0
    %6701 = vmatprep.subr.mxu0 0.0
    %6702 = vmatpush2.msra.mxu0 0.0
    %6703 = vmatprep.subr.mxu0 0.0
    %6704 = vmatpush2.msra.mxu0 0.0
    %6705 = vmatprep.mubr.f32.mxu0 0.0
    %6706 = vmatmul.mubr.f32.gmra.mxu0 %v6624
    %v6707 = vpop.f32.mrf.mxu0
    %v6708 = vadd.f32 %v6583, %v6707
    %v6709 = vpop.f32.mrf.mxu0
    %6710 = vmatprep.mubr.f32.mxu0 0.0
    %6711 = vmatmul.mubr.f32.gmra.mxu0 %v6627
    %v6712 = vpop.f32.mrf.mxu0
    %v6713 = vadd.f32 %v6588, %v6712
    %v6714 = vpop.f32.mrf.mxu0
    %6715 = vmatprep.mubr.f32.mxu0 0.0
    %6716 = vmatmul.mubr.f32.gmra.mxu0 %v6630
    %v6717 = vpop.f32.mrf.mxu0
    %v6718 = vadd.f32 %v6593, %v6717
    %v6719 = vpop.f32.mrf.mxu0
    %6720 = vmatprep.mubr.f32.mxu0 0.0
    %6721 = vmatmul.mubr.f32.gmra.mxu0 %v6633
    %v6722 = vpop.f32.mrf.mxu0
    %v6723 = vadd.f32 %v6598, %v6722
    %v6724 = vpop.f32.mrf.mxu0
    %6725 = vmatprep.mubr.f32.mxu0 0.0
    %6726 = vmatmul.mubr.f32.gmra.mxu0 %v6636
    %v6727 = vpop.f32.mrf.mxu0
    %v6728 = vadd.f32 %v6603, %v6727
    %v6729 = vpop.f32.mrf.mxu0
    %6730 = vmatprep.mubr.f32.mxu0 0.0
    %6731 = vmatmul.mubr.f32.gmra.mxu0 %v6639
    %v6732 = vpop.f32.mrf.mxu0
    %v6733 = vadd.f32 %v6608, %v6732
    %v6734 = vpop.f32.mrf.mxu0
    %6735 = vdwg.mxu0
    %v6736 = vmul.f32 %v6480, 0.5
    %v6737 = vmul.f32 %v6481, 0.5
    %v6738 = vmul.f32 %v6482, 0.5
    %v6739 = vmul.f32 %v6483, 0.5
    %v6740 = vmul.f32 %v6484, 0.5
    %v6741 = vmul.f32 %v6485, 0.5
    %s6742 = scalar_lea.vmem %s15, 96
    %6743 = vst.msk [vmem:[%s6742] sm:$0xff] %vm188, %v6736
    %6744 = vst.msk [vmem:[%s6742 + $0x8] sm:$0xff] %vm188, %v6737
    %6745 = vst.msk [vmem:[%s6742 + $0x10] sm:$0xff] %vm188, %v6738
    %6746 = vst.msk [vmem:[%s6742 + $0x18] sm:$0xff] %vm188, %v6739
    %6747 = vst.msk [vmem:[%s6742 + $0x20] sm:$0xff] %vm188, %v6740
    %6748 = vst.msk [vmem:[%s6742 + $0x28] sm:$0xff] %vm188, %v6741
    %v6749 = vadd.f32 %v4670, %v6708
    %v6750 = vadd.f32 %v4671, %v6713
    %v6751 = vadd.f32 %v4672, %v6718
    %v6752 = vadd.f32 %v4673, %v6723
    %v6753 = vadd.f32 %v4674, %v6728
    %v6754 = vadd.f32 %v4675, %v6733
    %v6755 = vld [vmem:[%s13] sm:$0x1]
    %v6757 = vlaneseq
    %v6758 = vshrl.u32 %v6757, 7
    %v6759 = vsub.s32 0, %v6758
    %v6760 = vrot.slane %v6755, %v6759
    %v6763 = vsel %vm995, %v187, 0
    %6765 = vmatprep.subr.mxu0 0.0
    %6766 = vmatpush1.msra.mxu0 0.0
    %6767 = vmatprep.subr.mxu0 0.0
    %6768 = vmatpush1.msra.mxu0 0.0
    %6769 = vmatprep.subr.mxu0 0.0
    %6770 = vmatpush1.msra.mxu0 0.0
    %6771 = vmatprep.subr.mxu0 0.0
    %6772 = vmatpush1.msra.mxu0 0.0
    %6773 = vmatprep.subr.mxu0 0.0
    %6774 = vmatpush1.msra.mxu0 0.0
    %6775 = vmatprep.subr.mxu0 0.0
    %6776 = vmatpush1.msra.mxu0 0.0
    %6777 = vmatprep.subr.mxu0 0.0
    %6778 = vmatpush1.msra.mxu0 0.0
    %6779 = vmatprep.subr.mxu0 0.0
    %6780 = vmatpush1.msra.mxu0 0.0
    %6781 = vmatprep.subr.mxu0 0.0
    %6782 = vmatpush1.msra.mxu0 0.0
    %6783 = vmatprep.subr.mxu0 0.0
    %6784 = vmatpush1.msra.mxu0 0.0
    %6785 = vmatprep.subr.mxu0 0.0
    %6786 = vmatpush1.msra.mxu0 %v6754
    %6787 = vmatprep.subr.mxu0 0.0
    %6788 = vmatpush1.msra.mxu0 %v6753
    %6789 = vmatprep.subr.mxu0 0.0
    %6790 = vmatpush1.msra.mxu0 %v6752
    %6791 = vmatprep.subr.mxu0 0.0
    %6792 = vmatpush1.msra.mxu0 %v6751
    %6793 = vmatprep.subr.mxu0 0.0
    %6794 = vmatpush1.msra.mxu0 %v6750
    %6795 = vmatprep.subr.mxu0 0.0
    %6796 = vmatpush1.msra.mxu0 %v6749
    %6797 = vmatprep.subr.mxu0 0.0
    %6798 = vmatpush2.msra.mxu0 0.0
    %6799 = vmatprep.subr.mxu0 0.0
    %6800 = vmatpush2.msra.mxu0 0.0
    %6801 = vmatprep.subr.mxu0 0.0
    %6802 = vmatpush2.msra.mxu0 0.0
    %6803 = vmatprep.subr.mxu0 0.0
    %6804 = vmatpush2.msra.mxu0 0.0
    %6805 = vmatprep.subr.mxu0 0.0
    %6806 = vmatpush2.msra.mxu0 0.0
    %6807 = vmatprep.subr.mxu0 0.0
    %6808 = vmatpush2.msra.mxu0 0.0
    %6809 = vmatprep.subr.mxu0 0.0
    %6810 = vmatpush2.msra.mxu0 0.0
    %6811 = vmatprep.subr.mxu0 0.0
    %6812 = vmatpush2.msra.mxu0 0.0
    %6813 = vmatprep.subr.mxu0 0.0
    %6814 = vmatpush2.msra.mxu0 0.0
    %6815 = vmatprep.subr.mxu0 0.0
    %6816 = vmatpush2.msra.mxu0 0.0
    %6817 = vmatprep.subr.mxu0 0.0
    %6818 = vmatpush2.msra.mxu0 0.0
    %6819 = vmatprep.subr.mxu0 0.0
    %6820 = vmatpush2.msra.mxu0 0.0
    %6821 = vmatprep.subr.mxu0 0.0
    %6822 = vmatpush2.msra.mxu0 0.0
    %6823 = vmatprep.subr.mxu0 0.0
    %6824 = vmatpush2.msra.mxu0 0.0
    %6825 = vmatprep.subr.mxu0 0.0
    %6826 = vmatpush2.msra.mxu0 0.0
    %6827 = vmatprep.subr.mxu0 0.0
    %6828 = vmatpush2.msra.mxu0 0.0
    %6829 = vmatprep.mubr.f32.mxu0 0.0
    %6830 = vmatmul.mubr.f32.gmra.mxu0 %v6763
    %v6831 = vpop.f32.mrf.mxu0
    %v6832 = vadd.f32 %v6760, %v6831
    %v6833 = vpop.f32.mrf.mxu0
    %6834 = vdwg.mxu0
    %vm6835 = vcmask 74752
    %6836 = vst.msk [vmem:[#allocation17] sm:$0x3] %vm6835, %v6832
    // Predicated region
    $region94: #{tpu_custom_call.1} parent=1 // pred_check
      _
    $region95: #{tpu_custom_call.1} parent=1 // pred_check_branch
      %6838 = sbr.rel (0) target = $region97
    $region96: #{tpu_custom_call.1} parent=1 // pred_region
      %s6840 = ssub.s32 32, 32
      %6841 = vsyncadd [#allocation4], %s6840
      %s6843 = sshll.u32 [#allocation17], 4
      %s6844 = int_to_ptr.vmem [resolvable:$true] %s6843
      %6846 = dma.vmem_to_hbm [thread:$0]  %s6844, 32, %s14, [#allocation4]
    $region97: #{tpu_custom_call.1} parent=1 // pred_fallthru
      _
    // Predicated region
    $region98: #{tpu_custom_call.1} parent=1 // pred_check
      _
    $region99: #{tpu_custom_call.1} parent=1 // pred_check_branch
      %6848 = sbr.rel (0) target = $region101
    $region100: #{tpu_custom_call.1} parent=1 // pred_region
      _
    $region101: #{tpu_custom_call.1} parent=1 // pred_fallthru
      _
    // Predicated region
    $region102: #{tpu_custom_call.1} parent=1 // pred_check
      _
    $region103: #{tpu_custom_call.1} parent=1 // pred_check_branch
      %6850 = sbr.rel (0) target = $region105
    $region104: #{tpu_custom_call.1} parent=1 // pred_region
      %6851 = dma.done [#allocation4], 32
    $region105: #{tpu_custom_call.1} parent=1 // pred_fallthru
      _
    // Predicated region
    $region106: #{tpu_custom_call.1} parent=1 // pred_check
      _
    $region107: #{tpu_custom_call.1} parent=1 // pred_check_branch
      %6853 = sbr.rel (0) target = $region109
    $region108: #{tpu_custom_call.1} parent=1 // pred_region
      _
    $region109: #{tpu_custom_call.1} parent=1 // pred_fallthru
      _
    %6854 = vsyncpa [#allocation3], 1
    %6855 = vsyncpa [#allocation6], 1
    %6856 = vsyncpa [#allocation9], 1
    %6857 = vsyncpa [#allocation12], 1
    %6858 = vsyncpa [#allocation15], 1
    %6859 = vsyncpa [#allocation4], 1

</llo_original>
